<compile_context>
chip_gen: v7x
topology: tpu7x:2x2x1
jax: 0.10.0
libtpu: 0.0.40
codegen_flags: <defaults>
</compile_context>

<pallas_src>
import jax
import jax.numpy as jnp
from jax import lax
from jax.experimental import pallas as pl
from jax.experimental.pallas import tpu as pltpu

# ----------------------------- small ChatGLM-like config -----------------------------
HIDDEN        = 32            # config.hidden_size
NUM_HEADS     = 4             # config.num_attention_heads
HEAD_DIM      = HIDDEN // NUM_HEADS           # 8
NUM_KV_HEADS  = 2             # config.multi_query_group_num
Q_SIZE        = NUM_HEADS * HEAD_DIM          # 32  (projection_size)
KV_SIZE       = NUM_KV_HEADS * HEAD_DIM       # 16
QKV_SIZE      = Q_SIZE + 2 * KV_SIZE          # 64
FFN           = 64            # config.ffn_hidden_size
NUM_LAYERS    = 2             # config.num_layers
VOCAB         = 128           # config.padded_vocab_size
SEQ_LEN       = 128           # prefill tokens this run (<= config.seq_length)
ROPE_THETA    = 10000.0       # rope_theta
ROT_DIM       = HEAD_DIM // 2 # partial rotary dims per head (interleaved, non-neox)
EPS           = 1e-5          # config.layernorm_epsilon
SCALING       = HEAD_DIM ** (-0.5)
DTYPE         = jnp.float32   # config.torch_dtype (activations / residual stream)
WDTYPE        = jnp.bfloat16  # matmul-weight storage dtype (MXU operands)
ADD_QKV_BIAS  = True          # config.add_qkv_bias
# apply_residual_connection_post_layernorm = False, add_bias_linear = False

# The RoPE-via-roll trick rolls across the full concatenated-head axis; it is correct
# only because the sin tables are zero at every position where the roll would wrap
# across a head (or array) boundary, which holds for ROT_DIM <= HEAD_DIM with even
# HEAD_DIM and interleaved layout.
assert ROT_DIM <= HEAD_DIM and HEAD_DIM % 2 == 0


# ----------------------------- fused whole-stack kernel -----------------------------
def glm_stack_kernel(h0_ref, mask_ref, rope_q_ref, rope_k_ref, final_ln_ref,
                     ln1_ref, ln2_ref, qkv_w_ref, qkv_b_ref, dense_w_ref,
                     wgu_ref, wd_ref, out_ref):
    f32 = jnp.float32
    bf16 = jnp.bfloat16

    hid = h0_ref[...].astype(f32)                 # [T, HIDDEN] residual stream (f32)
    mask = mask_ref[...]                          # [T, T] additive causal bias (0 / -1e30)

    # unpack packed RoPE tables once (hoisted out of the layer loop)
    rq = rope_q_ref[...]
    rk = rope_k_ref[...]
    cos_q, sina_q, sinb_q = rq[:, :Q_SIZE], rq[:, Q_SIZE:2 * Q_SIZE], rq[:, 2 * Q_SIZE:]
    cos_k, sina_k, sinb_k = rk[:, :KV_SIZE], rk[:, KV_SIZE:2 * KV_SIZE], rk[:, 2 * KV_SIZE:]

    def rmsnorm(x, w):
        var = jnp.mean(x * x, axis=-1, keepdims=True)
        return x * lax.rsqrt(var + EPS) * w

    def rope(x, cos_t, sin_a, sin_b):
        # interleaved partial rotary via XLU rolls:
        #   out[2i]   = x[2i]  *cos - x[2i+1]*sin
        #   out[2i+1] = x[2i+1]*cos + x[2i]  *sin
        # pltpu.roll matches jnp.roll: roll(x, s)[j] = x[(j - s) % w]
        w = x.shape[-1]
        nxt = pltpu.roll(x, w - 1, axis=1)   # x[j+1] at position j (used at even j)
        prv = pltpu.roll(x, 1, axis=1)       # x[j-1] at position j (used at odd j)
        return x * cos_t + nxt * sin_a + prv * sin_b

    rep = NUM_HEADS // NUM_KV_HEADS
    t = hid.shape[0]

    for layer in range(NUM_LAYERS):           # L=2: static unroll, weights stay VMEM-resident
        # --------------------- self attention ---------------------
        ln1 = rmsnorm(hid, ln1_ref[layer])
        qkv = jnp.dot(ln1.astype(bf16), qkv_w_ref[layer],
                      preferred_element_type=f32) + qkv_b_ref[layer]
        # attention scale pre-folded into the q-side RoPE tables (RoPE is linear in x)
        q = rope(qkv[:, :Q_SIZE], cos_q, sina_q, sinb_q)
        k = rope(qkv[:, Q_SIZE:Q_SIZE + KV_SIZE], cos_k, sina_k, sinb_k)
        v = qkv[:, Q_SIZE + KV_SIZE:]

        # batched heads: (H, T, D); GQA groups broadcast via static slices (no HBM repeat)
        q3 = jnp.stack(
            [q[:, hd * HEAD_DIM:(hd + 1) * HEAD_DIM] for hd in range(NUM_HEADS)],
            axis=0).astype(bf16)
        k3 = jnp.stack(
            [k[:, (hd // rep) * HEAD_DIM:((hd // rep) + 1) * HEAD_DIM]
             for hd in range(NUM_HEADS)], axis=0).astype(bf16)
        v3 = jnp.stack(
            [v[:, (hd // rep) * HEAD_DIM:((hd // rep) + 1) * HEAD_DIM]
             for hd in range(NUM_HEADS)], axis=0).astype(bf16)

        s = jnp.einsum('htd,hsd->hts', q3, k3, preferred_element_type=f32)   # [H,T,T] f32
        s = s + mask[None, :, :]                                             # causal bias
        p = jnp.exp(s - jnp.max(s, axis=-1, keepdims=True))
        p = p * pl.reciprocal(jnp.sum(p, axis=-1, keepdims=True), approx=True)
        o3 = jnp.einsum('hts,hsd->htd', p.astype(bf16), v3,
                        preferred_element_type=f32)                          # [H,T,D] f32

        # one dense projection matmul over the full concatenated-head slab
        o_slab = jnp.concatenate([o3[hd] for hd in range(NUM_HEADS)], axis=-1)  # [T, Q_SIZE]
        attn_out = jnp.dot(o_slab.astype(bf16), dense_w_ref[layer],
                           preferred_element_type=f32)

        # apply_residual_connection_post_layernorm = False -> residual is the block input
        ln_input = hid + attn_out

        # --------------------- MLP (fused gate/up + SwiGLU) ---------------------
        ln2 = rmsnorm(ln_input, ln2_ref[layer])
        gu = jnp.dot(ln2.astype(bf16), wgu_ref[layer], preferred_element_type=f32)  # [T, 2*FFN]
        gate = gu[:, :FFN]
        up = gu[:, FFN:]
        act = gate * jax.nn.sigmoid(gate) * up                # f32 elementwise (v5e-safe)
        mlp_out = jnp.dot(act.astype(bf16), wd_ref[layer], preferred_element_type=f32)

        hid = ln_input + mlp_out                              # carry in registers/VMEM only

    # GLMTransformer.post_layer_norm — the only activation written back to HBM
    out_ref[...] = rmsnorm(hid, final_ln_ref[...]).astype(out_ref.dtype)


# ----------------------------- rotary tables (param/glue setup) -----------------------------
def rope_tables(positions):
    # RotaryEmbedding(head_dim, rotary_dim=head_dim//2, ..., is_neox_style=False)
    inv_freq = 1.0 / (ROPE_THETA ** (jnp.arange(0, ROT_DIM, 2, dtype=jnp.float32) / ROT_DIM))
    freqs = positions.astype(jnp.float32)[:, None] * inv_freq[None, :]   # [T, ROT_DIM/2]
    cos = jnp.repeat(jnp.cos(freqs), 2, axis=1)                          # [T, ROT_DIM]
    sin = jnp.repeat(jnp.sin(freqs), 2, axis=1)
    t = positions.shape[0]
    pad1 = jnp.ones((t, HEAD_DIM - ROT_DIM), jnp.float32)
    pad0 = jnp.zeros((t, HEAD_DIM - ROT_DIM), jnp.float32)
    even = (jnp.arange(ROT_DIM) % 2) == 0
    cos_h = jnp.concatenate([cos, pad1], axis=1)                         # [T, D]
    # sin_a multiplies roll(x, W-1) (== x[j+1]) -> active at even j with -sin
    # sin_b multiplies roll(x, 1)   (== x[j-1]) -> active at odd  j with +sin
    # pad0 keeps both tables zero in the pass-through half of every head, so the
    # in-kernel roll never mixes data across head boundaries with a nonzero weight.
    sin_a_h = jnp.concatenate([jnp.where(even, -sin, 0.0), pad0], axis=1)
    sin_b_h = jnp.concatenate([jnp.where(even, 0.0, sin), pad0], axis=1)

    def tile(x, n):
        return jnp.tile(x, (1, n))

    # attention scaling (head_dim ** -0.5) folded into the q-side tables
    cos_q = tile(cos_h, NUM_HEADS) * SCALING
    sin_a_q = tile(sin_a_h, NUM_HEADS) * SCALING
    sin_b_q = tile(sin_b_h, NUM_HEADS) * SCALING
    cos_k = tile(cos_h, NUM_KV_HEADS)
    sin_a_k = tile(sin_a_h, NUM_KV_HEADS)
    sin_b_k = tile(sin_b_h, NUM_KV_HEADS)

    # pack into two inputs to cut pallas_call input / descriptor count
    rope_q = jnp.concatenate([cos_q, sin_a_q, sin_b_q], axis=1)          # [T, 3*Q_SIZE]
    rope_k = jnp.concatenate([cos_k, sin_a_k, sin_b_k], axis=1)          # [T, 3*KV_SIZE]
    return rope_q, rope_k


# ----------------------------- params -----------------------------
def init_params(key):
    keys = jax.random.split(key, 8)

    def nrm(k, shape, dtype, scale=0.02):
        return (scale * jax.random.normal(k, shape, jnp.float32)).astype(dtype)

    L = NUM_LAYERS
    return {
        'embedding': nrm(keys[0], (VOCAB, HIDDEN), DTYPE),
        # output_layer exists on the module but ChatGLMModel.forward never applies it.
        'output_layer': nrm(keys[1], (HIDDEN, VOCAB), DTYPE),
        'final_ln': jnp.ones((1, HIDDEN), jnp.float32),
        # per-layer weights stacked on a leading L axis; matmul weights stored in bf16
        'ln1': jnp.ones((L, 1, HIDDEN), jnp.float32),
        'ln2': jnp.ones((L, 1, HIDDEN), jnp.float32),
        'qkv_w': nrm(keys[2], (L, HIDDEN, QKV_SIZE), WDTYPE),
        'qkv_b': (nrm(keys[3], (L, 1, QKV_SIZE), jnp.float32) if ADD_QKV_BIAS
                  else jnp.zeros((L, 1, QKV_SIZE), jnp.float32)),
        'dense_w': nrm(keys[4], (L, Q_SIZE, HIDDEN), WDTYPE),  # add_bias_linear=False -> no bias
        'w_gu': nrm(keys[5], (L, HIDDEN, 2 * FFN), WDTYPE),    # dense_h_to_4h (gate | up)
        'w_d': nrm(keys[6], (L, FFN, HIDDEN), WDTYPE),         # dense_4h_to_h
    }


# ----------------------------- forward -----------------------------
@jax.jit
def chatglm_forward(params, tokens, positions):
    # nn.Embedding lookup = row gather (outside the kernel).
    # TODO(synk): at a real vocab size (65k+) do this with a scalar-prefetch / DMA gather kernel.
    h0 = jnp.take(params['embedding'], tokens, axis=0).astype(jnp.float32)

    rope_q, rope_k = rope_tables(positions)
    T = tokens.shape[0]

    # causal mask hoisted out of the kernel layer body: additive 0 / -1e30 bias
    row = jnp.arange(T, dtype=jnp.int32)[:, None]
    col = jnp.arange(T, dtype=jnp.int32)[None, :]
    mask = jnp.where(col <= row, 0.0, -1e30).astype(jnp.float32)

    vmem = pl.BlockSpec(memory_space=pltpu.MemorySpace.VMEM)

    return pl.pallas_call(
        glm_stack_kernel,
        out_shape=jax.ShapeDtypeStruct((T, HIDDEN), DTYPE),
        in_specs=[vmem] * 12,
        out_specs=vmem,
    )(h0, mask, rope_q, rope_k, params['final_ln'],
      params['ln1'], params['ln2'],
      params['qkv_w'], params['qkv_b'], params['dense_w'],
      params['w_gu'], params['w_d'])


# ----------------------------- main -----------------------------
if __name__ == "__main__":
    key = jax.random.PRNGKey(0)
    pkey, tkey = jax.random.split(key)
    params = init_params(pkey)

    tokens = jax.random.randint(tkey, (SEQ_LEN,), 0, VOCAB, dtype=jnp.int32)
    positions = jnp.arange(SEQ_LEN, dtype=jnp.int32)

    # TODO(synk): the serving FlashAttention/paged-KV InputData path is modeled as
    # dense causal prefill attention over the flattened token sequence.
    out = chatglm_forward(params, tokens, positions)
    out = jax.block_until_ready(out)
    assert out.shape == (SEQ_LEN, HIDDEN) and out.dtype == DTYPE
    assert bool(jnp.all(jnp.isfinite(out)))
    print("KERNEL_OK")
</pallas_src>

<mosaic_0001>
module attributes {stable_mosaic.version = 11 : i64} {
  func.func @glm_stack_kernel(%arg0: memref<128x32xf32, #tpu.memory_space<vmem>>, %arg1: memref<128x128xf32, #tpu.memory_space<vmem>>, %arg2: memref<128x96xf32, #tpu.memory_space<vmem>>, %arg3: memref<128x48xf32, #tpu.memory_space<vmem>>, %arg4: memref<1x32xf32, #tpu.memory_space<vmem>>, %arg5: memref<2x1x32xf32, #tpu.memory_space<vmem>>, %arg6: memref<2x1x32xf32, #tpu.memory_space<vmem>>, %arg7: memref<2x32x64xbf16, #tpu.memory_space<vmem>>, %arg8: memref<2x1x64xf32, #tpu.memory_space<vmem>>, %arg9: memref<2x32x32xbf16, #tpu.memory_space<vmem>>, %arg10: memref<2x32x128xbf16, #tpu.memory_space<vmem>>, %arg11: memref<2x64x32xbf16, #tpu.memory_space<vmem>>, %arg12: memref<128x32xf32, #tpu.memory_space<vmem>>) attributes {dimension_semantics = [], scalar_prefetch = 0 : i64, scratch_operands = 0 : i64, tpu.core_type = #tpu.core_type<tc>} {
    %c0 = arith.constant 0 : index
    %c0_0 = arith.constant 0 : index
    %0 = vector.load %arg0[%c0, %c0_0] : memref<128x32xf32, #tpu.memory_space<vmem>>, vector<128x32xf32>
    %c0_1 = arith.constant 0 : index
    %c0_2 = arith.constant 0 : index
    %1 = vector.load %arg1[%c0_1, %c0_2] : memref<128x128xf32, #tpu.memory_space<vmem>>, vector<128x128xf32>
    %c0_3 = arith.constant 0 : index
    %c0_4 = arith.constant 0 : index
    %2 = vector.load %arg2[%c0_3, %c0_4] : memref<128x96xf32, #tpu.memory_space<vmem>>, vector<128x96xf32>
    %c0_5 = arith.constant 0 : index
    %c0_6 = arith.constant 0 : index
    %3 = vector.load %arg3[%c0_5, %c0_6] : memref<128x48xf32, #tpu.memory_space<vmem>>, vector<128x48xf32>
    %4 = vector.extract_strided_slice %2 {offsets = [0, 0], sizes = [128, 32], strides = [1, 1]} : vector<128x96xf32> to vector<128x32xf32>
    %5 = vector.extract_strided_slice %2 {offsets = [0, 32], sizes = [128, 32], strides = [1, 1]} : vector<128x96xf32> to vector<128x32xf32>
    %6 = vector.extract_strided_slice %2 {offsets = [0, 64], sizes = [128, 32], strides = [1, 1]} : vector<128x96xf32> to vector<128x32xf32>
    %7 = vector.extract_strided_slice %3 {offsets = [0, 0], sizes = [128, 16], strides = [1, 1]} : vector<128x48xf32> to vector<128x16xf32>
    %8 = vector.extract_strided_slice %3 {offsets = [0, 16], sizes = [128, 16], strides = [1, 1]} : vector<128x48xf32> to vector<128x16xf32>
    %9 = vector.extract_strided_slice %3 {offsets = [0, 32], sizes = [128, 16], strides = [1, 1]} : vector<128x48xf32> to vector<128x16xf32>
    %c0_7 = arith.constant 0 : index
    %c0_8 = arith.constant 0 : index
    %c0_9 = arith.constant 0 : index
    %10 = vector.load %arg5[%c0_7, %c0_8, %c0_9] : memref<2x1x32xf32, #tpu.memory_space<vmem>>, vector<1x1x32xf32>
    %11 = vector.shape_cast %10 : vector<1x1x32xf32> to vector<1x32xf32>
    %12 = arith.mulf %0, %0 : vector<128x32xf32>
    %cst = arith.constant dense<0.000000e+00> : vector<128xf32>
    %13 = vector.multi_reduction <add>, %12, %cst [1] : vector<128x32xf32> to vector<128xf32>
    %14 = vector.shape_cast %13 : vector<128xf32> to vector<128x1xf32>
    %cst_10 = arith.constant 3.200000e+01 : f32
    %15 = vector.broadcast %cst_10 : f32 to vector<128x1xf32>
    %16 = arith.divf %14, %15 : vector<128x1xf32>
    %cst_11 = arith.constant 9.99999974E-6 : f32
    %17 = vector.broadcast %cst_11 : f32 to vector<128x1xf32>
    %18 = arith.addf %16, %17 : vector<128x1xf32>
    %19 = math.rsqrt %18 : vector<128x1xf32>
    %20 = vector.broadcast %19 : vector<128x1xf32> to vector<128x32xf32>
    %21 = arith.mulf %0, %20 : vector<128x32xf32>
    %22 = vector.broadcast %11 : vector<1x32xf32> to vector<128x32xf32>
    %23 = arith.mulf %21, %22 : vector<128x32xf32>
    %24 = arith.truncf %23 : vector<128x32xf32> to vector<128x32xbf16>
    %c0_12 = arith.constant 0 : index
    %c0_13 = arith.constant 0 : index
    %c0_14 = arith.constant 0 : index
    %25 = vector.load %arg7[%c0_12, %c0_13, %c0_14] : memref<2x32x64xbf16, #tpu.memory_space<vmem>>, vector<1x32x64xbf16>
    %26 = vector.shape_cast %25 : vector<1x32x64xbf16> to vector<32x64xbf16>
    %cst_15 = arith.constant dense<0.000000e+00> : vector<128x64xf32>
    %27 = tpu.matmul %24, %26, %cst_15 {dimension_numbers = #tpu.dot_dimension_numbers<[1], [0], [0], [1], [0, 0, 1, 1], [], []>} : vector<128x32xbf16>, vector<32x64xbf16>, vector<128x64xf32> -> vector<128x64xf32>
    %c0_16 = arith.constant 0 : index
    %c0_17 = arith.constant 0 : index
    %c0_18 = arith.constant 0 : index
    %28 = vector.load %arg8[%c0_16, %c0_17, %c0_18] : memref<2x1x64xf32, #tpu.memory_space<vmem>>, vector<1x1x64xf32>
    %29 = vector.shape_cast %28 : vector<1x1x64xf32> to vector<1x64xf32>
    %30 = vector.broadcast %29 : vector<1x64xf32> to vector<128x64xf32>
    %31 = arith.addf %27, %30 : vector<128x64xf32>
    %32 = vector.extract_strided_slice %31 {offsets = [0, 0], sizes = [128, 32], strides = [1, 1]} : vector<128x64xf32> to vector<128x32xf32>
    %c31_i32 = arith.constant 31 : i32
    %33 = tpu.dynamic_rotate %32 by %c31_i32 dim 1 : vector<128x32xf32>, i32 -> vector<128x32xf32>
    %c1_i32 = arith.constant 1 : i32
    %34 = tpu.dynamic_rotate %32 by %c1_i32 dim 1 : vector<128x32xf32>, i32 -> vector<128x32xf32>
    %35 = arith.mulf %32, %4 : vector<128x32xf32>
    %36 = arith.mulf %33, %5 : vector<128x32xf32>
    %37 = arith.addf %35, %36 : vector<128x32xf32>
    %38 = arith.mulf %34, %6 : vector<128x32xf32>
    %39 = arith.addf %37, %38 : vector<128x32xf32>
    %40 = vector.extract_strided_slice %31 {offsets = [0, 32], sizes = [128, 16], strides = [1, 1]} : vector<128x64xf32> to vector<128x16xf32>
    %c15_i32 = arith.constant 15 : i32
    %41 = tpu.dynamic_rotate %40 by %c15_i32 dim 1 : vector<128x16xf32>, i32 -> vector<128x16xf32>
    %c1_i32_19 = arith.constant 1 : i32
    %42 = tpu.dynamic_rotate %40 by %c1_i32_19 dim 1 : vector<128x16xf32>, i32 -> vector<128x16xf32>
    %43 = arith.mulf %40, %7 : vector<128x16xf32>
    %44 = arith.mulf %41, %8 : vector<128x16xf32>
    %45 = arith.addf %43, %44 : vector<128x16xf32>
    %46 = arith.mulf %42, %9 : vector<128x16xf32>
    %47 = arith.addf %45, %46 : vector<128x16xf32>
    %48 = vector.extract_strided_slice %31 {offsets = [0, 48], sizes = [128, 16], strides = [1, 1]} : vector<128x64xf32> to vector<128x16xf32>
    %49 = vector.extract_strided_slice %39 {offsets = [0, 0], sizes = [128, 8], strides = [1, 1]} : vector<128x32xf32> to vector<128x8xf32>
    %50 = vector.extract_strided_slice %39 {offsets = [0, 8], sizes = [128, 8], strides = [1, 1]} : vector<128x32xf32> to vector<128x8xf32>
    %51 = vector.extract_strided_slice %39 {offsets = [0, 16], sizes = [128, 8], strides = [1, 1]} : vector<128x32xf32> to vector<128x8xf32>
    %52 = vector.extract_strided_slice %39 {offsets = [0, 24], sizes = [128, 8], strides = [1, 1]} : vector<128x32xf32> to vector<128x8xf32>
    %53 = vector.shape_cast %49 : vector<128x8xf32> to vector<1x128x8xf32>
    %54 = vector.shape_cast %50 : vector<128x8xf32> to vector<1x128x8xf32>
    %55 = vector.shape_cast %51 : vector<128x8xf32> to vector<1x128x8xf32>
    %56 = vector.shape_cast %52 : vector<128x8xf32> to vector<1x128x8xf32>
    %57 = tpu.concatenate %53, %54, %55, %56 in 0 : vector<1x128x8xf32>, vector<1x128x8xf32>, vector<1x128x8xf32>, vector<1x128x8xf32> -> vector<4x128x8xf32>
    %58 = arith.truncf %57 : vector<4x128x8xf32> to vector<4x128x8xbf16>
    %59 = vector.extract_strided_slice %47 {offsets = [0, 0], sizes = [128, 8], strides = [1, 1]} : vector<128x16xf32> to vector<128x8xf32>
    %60 = vector.extract_strided_slice %47 {offsets = [0, 0], sizes = [128, 8], strides = [1, 1]} : vector<128x16xf32> to vector<128x8xf32>
    %61 = vector.extract_strided_slice %47 {offsets = [0, 8], sizes = [128, 8], strides = [1, 1]} : vector<128x16xf32> to vector<128x8xf32>
    %62 = vector.extract_strided_slice %47 {offsets = [0, 8], sizes = [128, 8], strides = [1, 1]} : vector<128x16xf32> to vector<128x8xf32>
    %63 = vector.shape_cast %59 : vector<128x8xf32> to vector<1x128x8xf32>
    %64 = vector.shape_cast %60 : vector<128x8xf32> to vector<1x128x8xf32>
    %65 = vector.shape_cast %61 : vector<128x8xf32> to vector<1x128x8xf32>
    %66 = vector.shape_cast %62 : vector<128x8xf32> to vector<1x128x8xf32>
    %67 = tpu.concatenate %63, %64, %65, %66 in 0 : vector<1x128x8xf32>, vector<1x128x8xf32>, vector<1x128x8xf32>, vector<1x128x8xf32> -> vector<4x128x8xf32>
    %68 = arith.truncf %67 : vector<4x128x8xf32> to vector<4x128x8xbf16>
    %69 = vector.extract_strided_slice %48 {offsets = [0, 0], sizes = [128, 8], strides = [1, 1]} : vector<128x16xf32> to vector<128x8xf32>
    %70 = vector.extract_strided_slice %48 {offsets = [0, 0], sizes = [128, 8], strides = [1, 1]} : vector<128x16xf32> to vector<128x8xf32>
    %71 = vector.extract_strided_slice %48 {offsets = [0, 8], sizes = [128, 8], strides = [1, 1]} : vector<128x16xf32> to vector<128x8xf32>
    %72 = vector.extract_strided_slice %48 {offsets = [0, 8], sizes = [128, 8], strides = [1, 1]} : vector<128x16xf32> to vector<128x8xf32>
    %73 = vector.shape_cast %69 : vector<128x8xf32> to vector<1x128x8xf32>
    %74 = vector.shape_cast %70 : vector<128x8xf32> to vector<1x128x8xf32>
    %75 = vector.shape_cast %71 : vector<128x8xf32> to vector<1x128x8xf32>
    %76 = vector.shape_cast %72 : vector<128x8xf32> to vector<1x128x8xf32>
    %77 = tpu.concatenate %73, %74, %75, %76 in 0 : vector<1x128x8xf32>, vector<1x128x8xf32>, vector<1x128x8xf32>, vector<1x128x8xf32> -> vector<4x128x8xf32>
    %78 = arith.truncf %77 : vector<4x128x8xf32> to vector<4x128x8xbf16>
    "tpu.trace_start"() <{level = 10 : i32, message = "htd,hsd->hts"}> : () -> ()
    %cst_20 = arith.constant dense<0.000000e+00> : vector<4x128x128xf32>
    %79 = tpu.matmul %58, %68, %cst_20 {dimension_numbers = #tpu.dot_dimension_numbers<[2], [2], [1], [1], [0, 0, 0, 1, 1, 1], [0], [0]>} : vector<4x128x8xbf16>, vector<4x128x8xbf16>, vector<4x128x128xf32> -> vector<4x128x128xf32>
    "tpu.trace_stop"() : () -> ()
    %80 = vector.shape_cast %1 : vector<128x128xf32> to vector<1x128x128xf32>
    %81 = vector.broadcast %80 : vector<1x128x128xf32> to vector<4x128x128xf32>
    %82 = arith.addf %79, %81 : vector<4x128x128xf32>
    %cst_21 = arith.constant dense<0xFF800000> : vector<4x128xf32>
    %83 = vector.multi_reduction <maximumf>, %82, %cst_21 [2] : vector<4x128x128xf32> to vector<4x128xf32>
    %84 = vector.shape_cast %83 : vector<4x128xf32> to vector<4x128x1xf32>
    %85 = vector.broadcast %84 : vector<4x128x1xf32> to vector<4x128x128xf32>
    %86 = arith.subf %82, %85 : vector<4x128x128xf32>
    %87 = math.exp %86 : vector<4x128x128xf32>
    %cst_22 = arith.constant dense<0.000000e+00> : vector<4x128xf32>
    %88 = vector.multi_reduction <add>, %87, %cst_22 [2] : vector<4x128x128xf32> to vector<4x128xf32>
    %89 = vector.shape_cast %88 : vector<4x128xf32> to vector<4x128x1xf32>
    %90 = tpu.reciprocal %89 {approx = true} : vector<4x128x1xf32> -> vector<4x128x1xf32>
    %91 = vector.broadcast %90 : vector<4x128x1xf32> to vector<4x128x128xf32>
    %92 = arith.mulf %87, %91 : vector<4x128x128xf32>
    %93 = arith.truncf %92 : vector<4x128x128xf32> to vector<4x128x128xbf16>
    "tpu.trace_start"() <{level = 10 : i32, message = "hts,hsd->htd"}> : () -> ()
    %cst_23 = arith.constant dense<0.000000e+00> : vector<4x128x8xf32>
    %94 = tpu.matmul %93, %78, %cst_23 {dimension_numbers = #tpu.dot_dimension_numbers<[2], [1], [1], [2], [0, 0, 0, 1, 1, 2], [0], [0]>} : vector<4x128x128xbf16>, vector<4x128x8xbf16>, vector<4x128x8xf32> -> vector<4x128x8xf32>
    "tpu.trace_stop"() : () -> ()
    %95 = vector.extract_strided_slice %94 {offsets = [0, 0, 0], sizes = [1, 128, 8], strides = [1, 1, 1]} : vector<4x128x8xf32> to vector<1x128x8xf32>
    %96 = vector.shape_cast %95 : vector<1x128x8xf32> to vector<128x8xf32>
    %97 = vector.extract_strided_slice %94 {offsets = [1, 0, 0], sizes = [1, 128, 8], strides = [1, 1, 1]} : vector<4x128x8xf32> to vector<1x128x8xf32>
    %98 = vector.shape_cast %97 : vector<1x128x8xf32> to vector<128x8xf32>
    %99 = vector.extract_strided_slice %94 {offsets = [2, 0, 0], sizes = [1, 128, 8], strides = [1, 1, 1]} : vector<4x128x8xf32> to vector<1x128x8xf32>
    %100 = vector.shape_cast %99 : vector<1x128x8xf32> to vector<128x8xf32>
    %101 = vector.extract_strided_slice %94 {offsets = [3, 0, 0], sizes = [1, 128, 8], strides = [1, 1, 1]} : vector<4x128x8xf32> to vector<1x128x8xf32>
    %102 = vector.shape_cast %101 : vector<1x128x8xf32> to vector<128x8xf32>
    %103 = tpu.concatenate %96, %98, %100, %102 in 1 : vector<128x8xf32>, vector<128x8xf32>, vector<128x8xf32>, vector<128x8xf32> -> vector<128x32xf32>
    %104 = arith.truncf %103 : vector<128x32xf32> to vector<128x32xbf16>
    %c0_24 = arith.constant 0 : index
    %c0_25 = arith.constant 0 : index
    %c0_26 = arith.constant 0 : index
    %105 = vector.load %arg9[%c0_24, %c0_25, %c0_26] : memref<2x32x32xbf16, #tpu.memory_space<vmem>>, vector<1x32x32xbf16>
    %106 = vector.shape_cast %105 : vector<1x32x32xbf16> to vector<32x32xbf16>
    %cst_27 = arith.constant dense<0.000000e+00> : vector<128x32xf32>
    %107 = tpu.matmul %104, %106, %cst_27 {dimension_numbers = #tpu.dot_dimension_numbers<[1], [0], [0], [1], [0, 0, 1, 1], [], []>} : vector<128x32xbf16>, vector<32x32xbf16>, vector<128x32xf32> -> vector<128x32xf32>
    %108 = arith.addf %0, %107 : vector<128x32xf32>
    %c0_28 = arith.constant 0 : index
    %c0_29 = arith.constant 0 : index
    %c0_30 = arith.constant 0 : index
    %109 = vector.load %arg6[%c0_28, %c0_29, %c0_30] : memref<2x1x32xf32, #tpu.memory_space<vmem>>, vector<1x1x32xf32>
    %110 = vector.shape_cast %109 : vector<1x1x32xf32> to vector<1x32xf32>
    %111 = arith.mulf %108, %108 : vector<128x32xf32>
    %cst_31 = arith.constant dense<0.000000e+00> : vector<128xf32>
    %112 = vector.multi_reduction <add>, %111, %cst_31 [1] : vector<128x32xf32> to vector<128xf32>
    %113 = vector.shape_cast %112 : vector<128xf32> to vector<128x1xf32>
    %cst_32 = arith.constant 3.200000e+01 : f32
    %114 = vector.broadcast %cst_32 : f32 to vector<128x1xf32>
    %115 = arith.divf %113, %114 : vector<128x1xf32>
    %cst_33 = arith.constant 9.99999974E-6 : f32
    %116 = vector.broadcast %cst_33 : f32 to vector<128x1xf32>
    %117 = arith.addf %115, %116 : vector<128x1xf32>
    %118 = math.rsqrt %117 : vector<128x1xf32>
    %119 = vector.broadcast %118 : vector<128x1xf32> to vector<128x32xf32>
    %120 = arith.mulf %108, %119 : vector<128x32xf32>
    %121 = vector.broadcast %110 : vector<1x32xf32> to vector<128x32xf32>
    %122 = arith.mulf %120, %121 : vector<128x32xf32>
    %123 = arith.truncf %122 : vector<128x32xf32> to vector<128x32xbf16>
    %c0_34 = arith.constant 0 : index
    %c0_35 = arith.constant 0 : index
    %c0_36 = arith.constant 0 : index
    %124 = vector.load %arg10[%c0_34, %c0_35, %c0_36] : memref<2x32x128xbf16, #tpu.memory_space<vmem>>, vector<1x32x128xbf16>
    %125 = vector.shape_cast %124 : vector<1x32x128xbf16> to vector<32x128xbf16>
    %cst_37 = arith.constant dense<0.000000e+00> : vector<128x128xf32>
    %126 = tpu.matmul %123, %125, %cst_37 {dimension_numbers = #tpu.dot_dimension_numbers<[1], [0], [0], [1], [0, 0, 1, 1], [], []>} : vector<128x32xbf16>, vector<32x128xbf16>, vector<128x128xf32> -> vector<128x128xf32>
    %127 = vector.extract_strided_slice %126 {offsets = [0, 0], sizes = [128, 64], strides = [1, 1]} : vector<128x128xf32> to vector<128x64xf32>
    %128 = vector.extract_strided_slice %126 {offsets = [0, 64], sizes = [128, 64], strides = [1, 1]} : vector<128x128xf32> to vector<128x64xf32>
    %129 = arith.negf %127 : vector<128x64xf32>
    %130 = math.exp %129 : vector<128x64xf32>
    %cst_38 = arith.constant 1.000000e+00 : f32
    %131 = vector.broadcast %cst_38 : f32 to vector<128x64xf32>
    %132 = arith.addf %131, %130 : vector<128x64xf32>
    %133 = arith.divf %131, %132 : vector<128x64xf32>
    %134 = arith.mulf %127, %133 : vector<128x64xf32>
    %135 = arith.mulf %134, %128 : vector<128x64xf32>
    %136 = arith.truncf %135 : vector<128x64xf32> to vector<128x64xbf16>
    %c0_39 = arith.constant 0 : index
    %c0_40 = arith.constant 0 : index
    %c0_41 = arith.constant 0 : index
    %137 = vector.load %arg11[%c0_39, %c0_40, %c0_41] : memref<2x64x32xbf16, #tpu.memory_space<vmem>>, vector<1x64x32xbf16>
    %138 = vector.shape_cast %137 : vector<1x64x32xbf16> to vector<64x32xbf16>
    %cst_42 = arith.constant dense<0.000000e+00> : vector<128x32xf32>
    %139 = tpu.matmul %136, %138, %cst_42 {dimension_numbers = #tpu.dot_dimension_numbers<[1], [0], [0], [1], [0, 0, 1, 1], [], []>} : vector<128x64xbf16>, vector<64x32xbf16>, vector<128x32xf32> -> vector<128x32xf32>
    %140 = arith.addf %108, %139 : vector<128x32xf32>
    %c1 = arith.constant 1 : index
    %c0_43 = arith.constant 0 : index
    %c0_44 = arith.constant 0 : index
    %141 = vector.load %arg5[%c1, %c0_43, %c0_44] : memref<2x1x32xf32, #tpu.memory_space<vmem>>, vector<1x1x32xf32>
    %142 = vector.shape_cast %141 : vector<1x1x32xf32> to vector<1x32xf32>
    %143 = arith.mulf %140, %140 : vector<128x32xf32>
    %cst_45 = arith.constant dense<0.000000e+00> : vector<128xf32>
    %144 = vector.multi_reduction <add>, %143, %cst_45 [1] : vector<128x32xf32> to vector<128xf32>
    %145 = vector.shape_cast %144 : vector<128xf32> to vector<128x1xf32>
    %cst_46 = arith.constant 3.200000e+01 : f32
    %146 = vector.broadcast %cst_46 : f32 to vector<128x1xf32>
    %147 = arith.divf %145, %146 : vector<128x1xf32>
    %cst_47 = arith.constant 9.99999974E-6 : f32
    %148 = vector.broadcast %cst_47 : f32 to vector<128x1xf32>
    %149 = arith.addf %147, %148 : vector<128x1xf32>
    %150 = math.rsqrt %149 : vector<128x1xf32>
    %151 = vector.broadcast %150 : vector<128x1xf32> to vector<128x32xf32>
    %152 = arith.mulf %140, %151 : vector<128x32xf32>
    %153 = vector.broadcast %142 : vector<1x32xf32> to vector<128x32xf32>
    %154 = arith.mulf %152, %153 : vector<128x32xf32>
    %155 = arith.truncf %154 : vector<128x32xf32> to vector<128x32xbf16>
    %c1_48 = arith.constant 1 : index
    %c0_49 = arith.constant 0 : index
    %c0_50 = arith.constant 0 : index
    %156 = vector.load %arg7[%c1_48, %c0_49, %c0_50] : memref<2x32x64xbf16, #tpu.memory_space<vmem>>, vector<1x32x64xbf16>
    %157 = vector.shape_cast %156 : vector<1x32x64xbf16> to vector<32x64xbf16>
    %cst_51 = arith.constant dense<0.000000e+00> : vector<128x64xf32>
    %158 = tpu.matmul %155, %157, %cst_51 {dimension_numbers = #tpu.dot_dimension_numbers<[1], [0], [0], [1], [0, 0, 1, 1], [], []>} : vector<128x32xbf16>, vector<32x64xbf16>, vector<128x64xf32> -> vector<128x64xf32>
    %c1_52 = arith.constant 1 : index
    %c0_53 = arith.constant 0 : index
    %c0_54 = arith.constant 0 : index
    %159 = vector.load %arg8[%c1_52, %c0_53, %c0_54] : memref<2x1x64xf32, #tpu.memory_space<vmem>>, vector<1x1x64xf32>
    %160 = vector.shape_cast %159 : vector<1x1x64xf32> to vector<1x64xf32>
    %161 = vector.broadcast %160 : vector<1x64xf32> to vector<128x64xf32>
    %162 = arith.addf %158, %161 : vector<128x64xf32>
    %163 = vector.extract_strided_slice %162 {offsets = [0, 0], sizes = [128, 32], strides = [1, 1]} : vector<128x64xf32> to vector<128x32xf32>
    %c31_i32_55 = arith.constant 31 : i32
    %164 = tpu.dynamic_rotate %163 by %c31_i32_55 dim 1 : vector<128x32xf32>, i32 -> vector<128x32xf32>
    %c1_i32_56 = arith.constant 1 : i32
    %165 = tpu.dynamic_rotate %163 by %c1_i32_56 dim 1 : vector<128x32xf32>, i32 -> vector<128x32xf32>
    %166 = arith.mulf %163, %4 : vector<128x32xf32>
    %167 = arith.mulf %164, %5 : vector<128x32xf32>
    %168 = arith.addf %166, %167 : vector<128x32xf32>
    %169 = arith.mulf %165, %6 : vector<128x32xf32>
    %170 = arith.addf %168, %169 : vector<128x32xf32>
    %171 = vector.extract_strided_slice %162 {offsets = [0, 32], sizes = [128, 16], strides = [1, 1]} : vector<128x64xf32> to vector<128x16xf32>
    %c15_i32_57 = arith.constant 15 : i32
    %172 = tpu.dynamic_rotate %171 by %c15_i32_57 dim 1 : vector<128x16xf32>, i32 -> vector<128x16xf32>
    %c1_i32_58 = arith.constant 1 : i32
    %173 = tpu.dynamic_rotate %171 by %c1_i32_58 dim 1 : vector<128x16xf32>, i32 -> vector<128x16xf32>
    %174 = arith.mulf %171, %7 : vector<128x16xf32>
    %175 = arith.mulf %172, %8 : vector<128x16xf32>
    %176 = arith.addf %174, %175 : vector<128x16xf32>
    %177 = arith.mulf %173, %9 : vector<128x16xf32>
    %178 = arith.addf %176, %177 : vector<128x16xf32>
    %179 = vector.extract_strided_slice %162 {offsets = [0, 48], sizes = [128, 16], strides = [1, 1]} : vector<128x64xf32> to vector<128x16xf32>
    %180 = vector.extract_strided_slice %170 {offsets = [0, 0], sizes = [128, 8], strides = [1, 1]} : vector<128x32xf32> to vector<128x8xf32>
    %181 = vector.extract_strided_slice %170 {offsets = [0, 8], sizes = [128, 8], strides = [1, 1]} : vector<128x32xf32> to vector<128x8xf32>
    %182 = vector.extract_strided_slice %170 {offsets = [0, 16], sizes = [128, 8], strides = [1, 1]} : vector<128x32xf32> to vector<128x8xf32>
    %183 = vector.extract_strided_slice %170 {offsets = [0, 24], sizes = [128, 8], strides = [1, 1]} : vector<128x32xf32> to vector<128x8xf32>
    %184 = vector.shape_cast %180 : vector<128x8xf32> to vector<1x128x8xf32>
    %185 = vector.shape_cast %181 : vector<128x8xf32> to vector<1x128x8xf32>
    %186 = vector.shape_cast %182 : vector<128x8xf32> to vector<1x128x8xf32>
    %187 = vector.shape_cast %183 : vector<128x8xf32> to vector<1x128x8xf32>
    %188 = tpu.concatenate %184, %185, %186, %187 in 0 : vector<1x128x8xf32>, vector<1x128x8xf32>, vector<1x128x8xf32>, vector<1x128x8xf32> -> vector<4x128x8xf32>
    %189 = arith.truncf %188 : vector<4x128x8xf32> to vector<4x128x8xbf16>
    %190 = vector.extract_strided_slice %178 {offsets = [0, 0], sizes = [128, 8], strides = [1, 1]} : vector<128x16xf32> to vector<128x8xf32>
    %191 = vector.extract_strided_slice %178 {offsets = [0, 0], sizes = [128, 8], strides = [1, 1]} : vector<128x16xf32> to vector<128x8xf32>
    %192 = vector.extract_strided_slice %178 {offsets = [0, 8], sizes = [128, 8], strides = [1, 1]} : vector<128x16xf32> to vector<128x8xf32>
    %193 = vector.extract_strided_slice %178 {offsets = [0, 8], sizes = [128, 8], strides = [1, 1]} : vector<128x16xf32> to vector<128x8xf32>
    %194 = vector.shape_cast %190 : vector<128x8xf32> to vector<1x128x8xf32>
    %195 = vector.shape_cast %191 : vector<128x8xf32> to vector<1x128x8xf32>
    %196 = vector.shape_cast %192 : vector<128x8xf32> to vector<1x128x8xf32>
    %197 = vector.shape_cast %193 : vector<128x8xf32> to vector<1x128x8xf32>
    %198 = tpu.concatenate %194, %195, %196, %197 in 0 : vector<1x128x8xf32>, vector<1x128x8xf32>, vector<1x128x8xf32>, vector<1x128x8xf32> -> vector<4x128x8xf32>
    %199 = arith.truncf %198 : vector<4x128x8xf32> to vector<4x128x8xbf16>
    %200 = vector.extract_strided_slice %179 {offsets = [0, 0], sizes = [128, 8], strides = [1, 1]} : vector<128x16xf32> to vector<128x8xf32>
    %201 = vector.extract_strided_slice %179 {offsets = [0, 0], sizes = [128, 8], strides = [1, 1]} : vector<128x16xf32> to vector<128x8xf32>
    %202 = vector.extract_strided_slice %179 {offsets = [0, 8], sizes = [128, 8], strides = [1, 1]} : vector<128x16xf32> to vector<128x8xf32>
    %203 = vector.extract_strided_slice %179 {offsets = [0, 8], sizes = [128, 8], strides = [1, 1]} : vector<128x16xf32> to vector<128x8xf32>
    %204 = vector.shape_cast %200 : vector<128x8xf32> to vector<1x128x8xf32>
    %205 = vector.shape_cast %201 : vector<128x8xf32> to vector<1x128x8xf32>
    %206 = vector.shape_cast %202 : vector<128x8xf32> to vector<1x128x8xf32>
    %207 = vector.shape_cast %203 : vector<128x8xf32> to vector<1x128x8xf32>
    %208 = tpu.concatenate %204, %205, %206, %207 in 0 : vector<1x128x8xf32>, vector<1x128x8xf32>, vector<1x128x8xf32>, vector<1x128x8xf32> -> vector<4x128x8xf32>
    %209 = arith.truncf %208 : vector<4x128x8xf32> to vector<4x128x8xbf16>
    "tpu.trace_start"() <{level = 10 : i32, message = "htd,hsd->hts"}> : () -> ()
    %cst_59 = arith.constant dense<0.000000e+00> : vector<4x128x128xf32>
    %210 = tpu.matmul %189, %199, %cst_59 {dimension_numbers = #tpu.dot_dimension_numbers<[2], [2], [1], [1], [0, 0, 0, 1, 1, 1], [0], [0]>} : vector<4x128x8xbf16>, vector<4x128x8xbf16>, vector<4x128x128xf32> -> vector<4x128x128xf32>
    "tpu.trace_stop"() : () -> ()
    %211 = vector.shape_cast %1 : vector<128x128xf32> to vector<1x128x128xf32>
    %212 = vector.broadcast %211 : vector<1x128x128xf32> to vector<4x128x128xf32>
    %213 = arith.addf %210, %212 : vector<4x128x128xf32>
    %cst_60 = arith.constant dense<0xFF800000> : vector<4x128xf32>
    %214 = vector.multi_reduction <maximumf>, %213, %cst_60 [2] : vector<4x128x128xf32> to vector<4x128xf32>
    %215 = vector.shape_cast %214 : vector<4x128xf32> to vector<4x128x1xf32>
    %216 = vector.broadcast %215 : vector<4x128x1xf32> to vector<4x128x128xf32>
    %217 = arith.subf %213, %216 : vector<4x128x128xf32>
    %218 = math.exp %217 : vector<4x128x128xf32>
    %cst_61 = arith.constant dense<0.000000e+00> : vector<4x128xf32>
    %219 = vector.multi_reduction <add>, %218, %cst_61 [2] : vector<4x128x128xf32> to vector<4x128xf32>
    %220 = vector.shape_cast %219 : vector<4x128xf32> to vector<4x128x1xf32>
    %221 = tpu.reciprocal %220 {approx = true} : vector<4x128x1xf32> -> vector<4x128x1xf32>
    %222 = vector.broadcast %221 : vector<4x128x1xf32> to vector<4x128x128xf32>
    %223 = arith.mulf %218, %222 : vector<4x128x128xf32>
    %224 = arith.truncf %223 : vector<4x128x128xf32> to vector<4x128x128xbf16>
    "tpu.trace_start"() <{level = 10 : i32, message = "hts,hsd->htd"}> : () -> ()
    %cst_62 = arith.constant dense<0.000000e+00> : vector<4x128x8xf32>
    %225 = tpu.matmul %224, %209, %cst_62 {dimension_numbers = #tpu.dot_dimension_numbers<[2], [1], [1], [2], [0, 0, 0, 1, 1, 2], [0], [0]>} : vector<4x128x128xbf16>, vector<4x128x8xbf16>, vector<4x128x8xf32> -> vector<4x128x8xf32>
    "tpu.trace_stop"() : () -> ()
    %226 = vector.extract_strided_slice %225 {offsets = [0, 0, 0], sizes = [1, 128, 8], strides = [1, 1, 1]} : vector<4x128x8xf32> to vector<1x128x8xf32>
    %227 = vector.shape_cast %226 : vector<1x128x8xf32> to vector<128x8xf32>
    %228 = vector.extract_strided_slice %225 {offsets = [1, 0, 0], sizes = [1, 128, 8], strides = [1, 1, 1]} : vector<4x128x8xf32> to vector<1x128x8xf32>
    %229 = vector.shape_cast %228 : vector<1x128x8xf32> to vector<128x8xf32>
    %230 = vector.extract_strided_slice %225 {offsets = [2, 0, 0], sizes = [1, 128, 8], strides = [1, 1, 1]} : vector<4x128x8xf32> to vector<1x128x8xf32>
    %231 = vector.shape_cast %230 : vector<1x128x8xf32> to vector<128x8xf32>
    %232 = vector.extract_strided_slice %225 {offsets = [3, 0, 0], sizes = [1, 128, 8], strides = [1, 1, 1]} : vector<4x128x8xf32> to vector<1x128x8xf32>
    %233 = vector.shape_cast %232 : vector<1x128x8xf32> to vector<128x8xf32>
    %234 = tpu.concatenate %227, %229, %231, %233 in 1 : vector<128x8xf32>, vector<128x8xf32>, vector<128x8xf32>, vector<128x8xf32> -> vector<128x32xf32>
    %235 = arith.truncf %234 : vector<128x32xf32> to vector<128x32xbf16>
    %c1_63 = arith.constant 1 : index
    %c0_64 = arith.constant 0 : index
    %c0_65 = arith.constant 0 : index
    %236 = vector.load %arg9[%c1_63, %c0_64, %c0_65] : memref<2x32x32xbf16, #tpu.memory_space<vmem>>, vector<1x32x32xbf16>
    %237 = vector.shape_cast %236 : vector<1x32x32xbf16> to vector<32x32xbf16>
    %cst_66 = arith.constant dense<0.000000e+00> : vector<128x32xf32>
    %238 = tpu.matmul %235, %237, %cst_66 {dimension_numbers = #tpu.dot_dimension_numbers<[1], [0], [0], [1], [0, 0, 1, 1], [], []>} : vector<128x32xbf16>, vector<32x32xbf16>, vector<128x32xf32> -> vector<128x32xf32>
    %239 = arith.addf %140, %238 : vector<128x32xf32>
    %c1_67 = arith.constant 1 : index
    %c0_68 = arith.constant 0 : index
    %c0_69 = arith.constant 0 : index
    %240 = vector.load %arg6[%c1_67, %c0_68, %c0_69] : memref<2x1x32xf32, #tpu.memory_space<vmem>>, vector<1x1x32xf32>
    %241 = vector.shape_cast %240 : vector<1x1x32xf32> to vector<1x32xf32>
    %242 = arith.mulf %239, %239 : vector<128x32xf32>
    %cst_70 = arith.constant dense<0.000000e+00> : vector<128xf32>
    %243 = vector.multi_reduction <add>, %242, %cst_70 [1] : vector<128x32xf32> to vector<128xf32>
    %244 = vector.shape_cast %243 : vector<128xf32> to vector<128x1xf32>
    %cst_71 = arith.constant 3.200000e+01 : f32
    %245 = vector.broadcast %cst_71 : f32 to vector<128x1xf32>
    %246 = arith.divf %244, %245 : vector<128x1xf32>
    %cst_72 = arith.constant 9.99999974E-6 : f32
    %247 = vector.broadcast %cst_72 : f32 to vector<128x1xf32>
    %248 = arith.addf %246, %247 : vector<128x1xf32>
    %249 = math.rsqrt %248 : vector<128x1xf32>
    %250 = vector.broadcast %249 : vector<128x1xf32> to vector<128x32xf32>
    %251 = arith.mulf %239, %250 : vector<128x32xf32>
    %252 = vector.broadcast %241 : vector<1x32xf32> to vector<128x32xf32>
    %253 = arith.mulf %251, %252 : vector<128x32xf32>
    %254 = arith.truncf %253 : vector<128x32xf32> to vector<128x32xbf16>
    %c1_73 = arith.constant 1 : index
    %c0_74 = arith.constant 0 : index
    %c0_75 = arith.constant 0 : index
    %255 = vector.load %arg10[%c1_73, %c0_74, %c0_75] : memref<2x32x128xbf16, #tpu.memory_space<vmem>>, vector<1x32x128xbf16>
    %256 = vector.shape_cast %255 : vector<1x32x128xbf16> to vector<32x128xbf16>
    %cst_76 = arith.constant dense<0.000000e+00> : vector<128x128xf32>
    %257 = tpu.matmul %254, %256, %cst_76 {dimension_numbers = #tpu.dot_dimension_numbers<[1], [0], [0], [1], [0, 0, 1, 1], [], []>} : vector<128x32xbf16>, vector<32x128xbf16>, vector<128x128xf32> -> vector<128x128xf32>
    %258 = vector.extract_strided_slice %257 {offsets = [0, 0], sizes = [128, 64], strides = [1, 1]} : vector<128x128xf32> to vector<128x64xf32>
    %259 = vector.extract_strided_slice %257 {offsets = [0, 64], sizes = [128, 64], strides = [1, 1]} : vector<128x128xf32> to vector<128x64xf32>
    %260 = arith.negf %258 : vector<128x64xf32>
    %261 = math.exp %260 : vector<128x64xf32>
    %cst_77 = arith.constant 1.000000e+00 : f32
    %262 = vector.broadcast %cst_77 : f32 to vector<128x64xf32>
    %263 = arith.addf %262, %261 : vector<128x64xf32>
    %264 = arith.divf %262, %263 : vector<128x64xf32>
    %265 = arith.mulf %258, %264 : vector<128x64xf32>
    %266 = arith.mulf %265, %259 : vector<128x64xf32>
    %267 = arith.truncf %266 : vector<128x64xf32> to vector<128x64xbf16>
    %c1_78 = arith.constant 1 : index
    %c0_79 = arith.constant 0 : index
    %c0_80 = arith.constant 0 : index
    %268 = vector.load %arg11[%c1_78, %c0_79, %c0_80] : memref<2x64x32xbf16, #tpu.memory_space<vmem>>, vector<1x64x32xbf16>
    %269 = vector.shape_cast %268 : vector<1x64x32xbf16> to vector<64x32xbf16>
    %cst_81 = arith.constant dense<0.000000e+00> : vector<128x32xf32>
    %270 = tpu.matmul %267, %269, %cst_81 {dimension_numbers = #tpu.dot_dimension_numbers<[1], [0], [0], [1], [0, 0, 1, 1], [], []>} : vector<128x64xbf16>, vector<64x32xbf16>, vector<128x32xf32> -> vector<128x32xf32>
    %271 = arith.addf %239, %270 : vector<128x32xf32>
    %c0_82 = arith.constant 0 : index
    %c0_83 = arith.constant 0 : index
    %272 = vector.load %arg4[%c0_82, %c0_83] : memref<1x32xf32, #tpu.memory_space<vmem>>, vector<1x32xf32>
    %273 = arith.mulf %271, %271 : vector<128x32xf32>
    %cst_84 = arith.constant dense<0.000000e+00> : vector<128xf32>
    %274 = vector.multi_reduction <add>, %273, %cst_84 [1] : vector<128x32xf32> to vector<128xf32>
    %275 = vector.shape_cast %274 : vector<128xf32> to vector<128x1xf32>
    %cst_85 = arith.constant 3.200000e+01 : f32
    %276 = vector.broadcast %cst_85 : f32 to vector<128x1xf32>
    %277 = arith.divf %275, %276 : vector<128x1xf32>
    %cst_86 = arith.constant 9.99999974E-6 : f32
    %278 = vector.broadcast %cst_86 : f32 to vector<128x1xf32>
    %279 = arith.addf %277, %278 : vector<128x1xf32>
    %280 = math.rsqrt %279 : vector<128x1xf32>
    %281 = vector.broadcast %280 : vector<128x1xf32> to vector<128x32xf32>
    %282 = arith.mulf %271, %281 : vector<128x32xf32>
    %283 = vector.broadcast %272 : vector<1x32xf32> to vector<128x32xf32>
    %284 = arith.mulf %282, %283 : vector<128x32xf32>
    %c0_87 = arith.constant 0 : index
    %c0_88 = arith.constant 0 : index
    %285 = vector.load %arg12[%c0_87, %c0_88] : memref<128x32xf32, #tpu.memory_space<vmem>>, vector<128x32xf32>
    tpu.vector_store %arg12[%c0_87, %c0_88], %284 {strides = array<i32>} : memref<128x32xf32, #tpu.memory_space<vmem>>, vector<128x32xf32>,
    return
  }
}

</mosaic_0001>

<llo_original>
// kernel: chatglm_forward.1
$region0: #{chatglm_forward.1}
  #allocation0 [shape = 'u32[]', space=smem, size = 0x4, offset = 0x4, fixed_abs, tag = 'smem constant byte address 0x4 - core index']
  #allocation1 [shape = 'u32[144,128]{1,0:T(1,128)}', space=vmem, size = 0x12000, scoped, tag = 'internal scratch']
  %s0 = inlined_call_operand.vmem [shape: f32[128,32], index: 0, kind: input, shape index: {}]
  %s1 = inlined_call_operand.vmem [shape: f32[128,128], index: 1, kind: input, shape index: {}]
  %s2 = inlined_call_operand.vmem [shape: f32[128,96], index: 2, kind: input, shape index: {}]
  %s3 = inlined_call_operand.vmem [shape: f32[128,48], index: 3, kind: input, shape index: {}]
  %s4 = inlined_call_operand.vmem [shape: f32[1,32], index: 4, kind: input, shape index: {}]
  %s5 = inlined_call_operand.vmem [shape: f32[2,1,32], index: 5, kind: input, shape index: {}]
  %s6 = inlined_call_operand.vmem [shape: f32[2,1,32], index: 6, kind: input, shape index: {}]
  %s7 = inlined_call_operand.vmem [shape: bf16[2,32,64], index: 7, kind: input, shape index: {}]
  %s8 = inlined_call_operand.vmem [shape: f32[2,1,64], index: 8, kind: input, shape index: {}]
  %s9 = inlined_call_operand.vmem [shape: bf16[2,32,32], index: 9, kind: input, shape index: {}]
  %s10 = inlined_call_operand.vmem [shape: bf16[2,32,128], index: 10, kind: input, shape index: {}]
  %s11 = inlined_call_operand.vmem [shape: bf16[2,64,32], index: 11, kind: input, shape index: {}]
  %s12 = inlined_call_operand.vmem [shape: f32[128,32], index: 12, kind: output, shape index: {}]
  %s13 = sld [smem:[#allocation0]]
  $region58: #{chatglm_forward.1} parent=0
    _
  %s15 = ssub.s32 1, %s13
  %s16 = scalar_select 0, %s15, %s13
  // Predicated region
  $region2: #{chatglm_forward.1} parent=0 // pred_check
    _
  $region3: #{chatglm_forward.1} parent=0 // pred_check_branch
    %18 = sbr.rel (0) target = $region5
  $region4: #{chatglm_forward.1} parent=0 // pred_region
    _
  $region5: #{chatglm_forward.1} parent=0 // pred_fallthru
    _
  // Predicated region
  $region6: #{chatglm_forward.1} parent=0 // pred_check
    _
  $region7: #{chatglm_forward.1} parent=0 // pred_check_branch
    %20 = sbr.rel (0) target = $region9
  $region8: #{chatglm_forward.1} parent=0 // pred_region
    _
  $region9: #{chatglm_forward.1} parent=0 // pred_fallthru
    _
  // Predicated region
  $region10: #{chatglm_forward.1} parent=0 // pred_check
    _
  $region11: #{chatglm_forward.1} parent=0 // pred_check_branch
    %22 = sbr.rel (0) target = $region13
  $region12: #{chatglm_forward.1} parent=0 // pred_region
    _
  $region13: #{chatglm_forward.1} parent=0 // pred_fallthru
    _
  // Predicated region
  $region14: #{chatglm_forward.1} parent=0 // pred_check
    _
  $region15: #{chatglm_forward.1} parent=0 // pred_check_branch
    %24 = sbr.rel (0) target = $region17
  $region16: #{chatglm_forward.1} parent=0 // pred_region
    _
  $region17: #{chatglm_forward.1} parent=0 // pred_fallthru
    _
  // Predicated region
  $region18: #{chatglm_forward.1} parent=0 // pred_check
    _
  $region19: #{chatglm_forward.1} parent=0 // pred_check_branch
    %26 = sbr.rel (0) target = $region21
  $region20: #{chatglm_forward.1} parent=0 // pred_region
    _
  $region21: #{chatglm_forward.1} parent=0 // pred_fallthru
    _
  // Predicated region
  $region22: #{chatglm_forward.1} parent=0 // pred_check
    _
  $region23: #{chatglm_forward.1} parent=0 // pred_check_branch
    %28 = sbr.rel (0) target = $region25
  $region24: #{chatglm_forward.1} parent=0 // pred_region
    _
  $region25: #{chatglm_forward.1} parent=0 // pred_fallthru
    _
  // Predicated region
  $region26: #{chatglm_forward.1} parent=0 // pred_check
    _
  $region27: #{chatglm_forward.1} parent=0 // pred_check_branch
    %30 = sbr.rel (0) target = $region29
  $region28: #{chatglm_forward.1} parent=0 // pred_region
    _
  $region29: #{chatglm_forward.1} parent=0 // pred_fallthru
    _
  // Predicated region
  $region30: #{chatglm_forward.1} parent=0 // pred_check
    _
  $region31: #{chatglm_forward.1} parent=0 // pred_check_branch
    %32 = sbr.rel (0) target = $region33
  $region32: #{chatglm_forward.1} parent=0 // pred_region
    _
  $region33: #{chatglm_forward.1} parent=0 // pred_fallthru
    _
  // Predicated region
  $region34: #{chatglm_forward.1} parent=0 // pred_check
    _
  $region35: #{chatglm_forward.1} parent=0 // pred_check_branch
    %34 = sbr.rel (0) target = $region37
  $region36: #{chatglm_forward.1} parent=0 // pred_region
    _
  $region37: #{chatglm_forward.1} parent=0 // pred_fallthru
    _
  // Predicated region
  $region38: #{chatglm_forward.1} parent=0 // pred_check
    _
  $region39: #{chatglm_forward.1} parent=0 // pred_check_branch
    %36 = sbr.rel (0) target = $region41
  $region40: #{chatglm_forward.1} parent=0 // pred_region
    _
  $region41: #{chatglm_forward.1} parent=0 // pred_fallthru
    _
  // Predicated region
  $region42: #{chatglm_forward.1} parent=0 // pred_check
    _
  $region43: #{chatglm_forward.1} parent=0 // pred_check_branch
    %38 = sbr.rel (0) target = $region45
  $region44: #{chatglm_forward.1} parent=0 // pred_region
    _
  $region45: #{chatglm_forward.1} parent=0 // pred_fallthru
    _
  // Predicated region
  $region46: #{chatglm_forward.1} parent=0 // pred_check
    _
  $region47: #{chatglm_forward.1} parent=0 // pred_check_branch
    %40 = sbr.rel (0) target = $region49
  $region48: #{chatglm_forward.1} parent=0 // pred_region
    _
  $region49: #{chatglm_forward.1} parent=0 // pred_fallthru
    _
  %v42 = vld [vmem:[%s0] sm:$0xff]
  %v43 = vld [vmem:[%s0 + $0x8] sm:$0xff]
  %v44 = vld [vmem:[%s0 + $0x10] sm:$0xff]
  %v45 = vld [vmem:[%s0 + $0x18] sm:$0xff]
  %v46 = vld [vmem:[%s0 + $0x20] sm:$0xff]
  %v47 = vld [vmem:[%s0 + $0x28] sm:$0xff]
  %v48 = vld [vmem:[%s0 + $0x30] sm:$0xff]
  %v49 = vld [vmem:[%s0 + $0x38] sm:$0xff]
  %v50 = vld [vmem:[%s0 + $0x40] sm:$0xff]
  %v51 = vld [vmem:[%s0 + $0x48] sm:$0xff]
  %v52 = vld [vmem:[%s0 + $0x50] sm:$0xff]
  %v53 = vld [vmem:[%s0 + $0x58] sm:$0xff]
  %v54 = vld [vmem:[%s0 + $0x60] sm:$0xff]
  %v55 = vld [vmem:[%s0 + $0x68] sm:$0xff]
  %v56 = vld [vmem:[%s0 + $0x70] sm:$0xff]
  %v57 = vld [vmem:[%s0 + $0x78] sm:$0xff]
  %v58 = vld [vmem:[%s1] sm:$0xff]
  %v59 = vld [vmem:[%s1 + $0x8] sm:$0xff]
  %v60 = vld [vmem:[%s1 + $0x10] sm:$0xff]
  %v61 = vld [vmem:[%s1 + $0x18] sm:$0xff]
  %v62 = vld [vmem:[%s1 + $0x20] sm:$0xff]
  %v63 = vld [vmem:[%s1 + $0x28] sm:$0xff]
  %v64 = vld [vmem:[%s1 + $0x30] sm:$0xff]
  %v65 = vld [vmem:[%s1 + $0x38] sm:$0xff]
  %v66 = vld [vmem:[%s1 + $0x40] sm:$0xff]
  %v67 = vld [vmem:[%s1 + $0x48] sm:$0xff]
  %v68 = vld [vmem:[%s1 + $0x50] sm:$0xff]
  %v69 = vld [vmem:[%s1 + $0x58] sm:$0xff]
  %v70 = vld [vmem:[%s1 + $0x60] sm:$0xff]
  %v71 = vld [vmem:[%s1 + $0x68] sm:$0xff]
  %v72 = vld [vmem:[%s1 + $0x70] sm:$0xff]
  %v73 = vld [vmem:[%s1 + $0x78] sm:$0xff]
  %v74 = vld [vmem:[%s2] sm:$0xff]
  %v75 = vld [vmem:[%s2 + $0x8] sm:$0xff]
  %v76 = vld [vmem:[%s2 + $0x10] sm:$0xff]
  %v77 = vld [vmem:[%s2 + $0x18] sm:$0xff]
  %v78 = vld [vmem:[%s2 + $0x20] sm:$0xff]
  %v79 = vld [vmem:[%s2 + $0x28] sm:$0xff]
  %v80 = vld [vmem:[%s2 + $0x30] sm:$0xff]
  %v81 = vld [vmem:[%s2 + $0x38] sm:$0xff]
  %v82 = vld [vmem:[%s2 + $0x40] sm:$0xff]
  %v83 = vld [vmem:[%s2 + $0x48] sm:$0xff]
  %v84 = vld [vmem:[%s2 + $0x50] sm:$0xff]
  %v85 = vld [vmem:[%s2 + $0x58] sm:$0xff]
  %v86 = vld [vmem:[%s2 + $0x60] sm:$0xff]
  %v87 = vld [vmem:[%s2 + $0x68] sm:$0xff]
  %v88 = vld [vmem:[%s2 + $0x70] sm:$0xff]
  %v89 = vld [vmem:[%s2 + $0x78] sm:$0xff]
  %v90 = vld [vmem:[%s3] sm:$0xff]
  %v91 = vld [vmem:[%s3 + $0x8] sm:$0xff]
  %v92 = vld [vmem:[%s3 + $0x10] sm:$0xff]
  %v93 = vld [vmem:[%s3 + $0x18] sm:$0xff]
  %v94 = vld [vmem:[%s3 + $0x20] sm:$0xff]
  %v95 = vld [vmem:[%s3 + $0x28] sm:$0xff]
  %v96 = vld [vmem:[%s3 + $0x30] sm:$0xff]
  %v97 = vld [vmem:[%s3 + $0x38] sm:$0xff]
  %v98 = vld [vmem:[%s3 + $0x40] sm:$0xff]
  %v99 = vld [vmem:[%s3 + $0x48] sm:$0xff]
  %v100 = vld [vmem:[%s3 + $0x50] sm:$0xff]
  %v101 = vld [vmem:[%s3 + $0x58] sm:$0xff]
  %v102 = vld [vmem:[%s3 + $0x60] sm:$0xff]
  %v103 = vld [vmem:[%s3 + $0x68] sm:$0xff]
  %v104 = vld [vmem:[%s3 + $0x70] sm:$0xff]
  %v105 = vld [vmem:[%s3 + $0x78] sm:$0xff]
  %v106 = vld [vmem:[%s5] sm:$0x1]
  %v107 = vmul.f32 %v42, %v42
  %v108 = vmul.f32 %v43, %v43
  %v109 = vmul.f32 %v44, %v44
  %v110 = vmul.f32 %v45, %v45
  %v111 = vmul.f32 %v46, %v46
  %v112 = vmul.f32 %v47, %v47
  %v113 = vmul.f32 %v48, %v48
  %v114 = vmul.f32 %v49, %v49
  %v115 = vmul.f32 %v50, %v50
  %v116 = vmul.f32 %v51, %v51
  %v117 = vmul.f32 %v52, %v52
  %v118 = vmul.f32 %v53, %v53
  %v119 = vmul.f32 %v54, %v54
  %v120 = vmul.f32 %v55, %v55
  %v121 = vmul.f32 %v56, %v56
  %v122 = vmul.f32 %v57, %v57
  %vm123 = vcmask 261120
  %v124 = vsel %vm123, %v107, 0.0
  %125 = vadd.xlane.f32.xlu0 %v124
  %v126 = vpop.xlane.xlu0 %125
  %v127 = vsel %vm123, %v108, 0.0
  %128 = vadd.xlane.f32.xlu0 %v127
  %v129 = vpop.xlane.xlu0 %128
  %v130 = vsel %vm123, %v109, 0.0
  %131 = vadd.xlane.f32.xlu0 %v130
  %v132 = vpop.xlane.xlu0 %131
  %v133 = vsel %vm123, %v110, 0.0
  %134 = vadd.xlane.f32.xlu0 %v133
  %v135 = vpop.xlane.xlu0 %134
  %v136 = vsel %vm123, %v111, 0.0
  %137 = vadd.xlane.f32.xlu0 %v136
  %v138 = vpop.xlane.xlu0 %137
  %v139 = vsel %vm123, %v112, 0.0
  %140 = vadd.xlane.f32.xlu0 %v139
  %v141 = vpop.xlane.xlu0 %140
  %v142 = vsel %vm123, %v113, 0.0
  %143 = vadd.xlane.f32.xlu0 %v142
  %v144 = vpop.xlane.xlu0 %143
  %v145 = vsel %vm123, %v114, 0.0
  %146 = vadd.xlane.f32.xlu0 %v145
  %v147 = vpop.xlane.xlu0 %146
  %v148 = vsel %vm123, %v115, 0.0
  %149 = vadd.xlane.f32.xlu0 %v148
  %v150 = vpop.xlane.xlu0 %149
  %v151 = vsel %vm123, %v116, 0.0
  %152 = vadd.xlane.f32.xlu0 %v151
  %v153 = vpop.xlane.xlu0 %152
  %v154 = vsel %vm123, %v117, 0.0
  %155 = vadd.xlane.f32.xlu0 %v154
  %v156 = vpop.xlane.xlu0 %155
  %v157 = vsel %vm123, %v118, 0.0
  %158 = vadd.xlane.f32.xlu0 %v157
  %v159 = vpop.xlane.xlu0 %158
  %v160 = vsel %vm123, %v119, 0.0
  %161 = vadd.xlane.f32.xlu0 %v160
  %v162 = vpop.xlane.xlu0 %161
  %v163 = vsel %vm123, %v120, 0.0
  %164 = vadd.xlane.f32.xlu0 %v163
  %v165 = vpop.xlane.xlu0 %164
  %v166 = vsel %vm123, %v121, 0.0
  %167 = vadd.xlane.f32.xlu0 %v166
  %v168 = vpop.xlane.xlu0 %167
  %v169 = vsel %vm123, %v122, 0.0
  %170 = vadd.xlane.f32.xlu0 %v169
  %v171 = vpop.xlane.xlu0 %170
  %v172 = vrcp.pop 32.0
  %v173 = vmul.f32 %v126, %v172
  %v174 = vmul.f32 %v129, %v172
  %v175 = vmul.f32 %v132, %v172
  %v176 = vmul.f32 %v135, %v172
  %v177 = vmul.f32 %v138, %v172
  %v178 = vmul.f32 %v141, %v172
  %v179 = vmul.f32 %v144, %v172
  %v180 = vmul.f32 %v147, %v172
  %v181 = vmul.f32 %v150, %v172
  %v182 = vmul.f32 %v153, %v172
  %v183 = vmul.f32 %v156, %v172
  %v184 = vmul.f32 %v159, %v172
  %v185 = vmul.f32 %v162, %v172
  %v186 = vmul.f32 %v165, %v172
  %v187 = vmul.f32 %v168, %v172
  %v188 = vmul.f32 %v171, %v172
  %v189 = vadd.f32 %v173, 1e-05
  %v190 = vadd.f32 %v174, 1e-05
  %v191 = vadd.f32 %v175, 1e-05
  %v192 = vadd.f32 %v176, 1e-05
  %v193 = vadd.f32 %v177, 1e-05
  %v194 = vadd.f32 %v178, 1e-05
  %v195 = vadd.f32 %v179, 1e-05
  %v196 = vadd.f32 %v180, 1e-05
  %v197 = vadd.f32 %v181, 1e-05
  %v198 = vadd.f32 %v182, 1e-05
  %v199 = vadd.f32 %v183, 1e-05
  %v200 = vadd.f32 %v184, 1e-05
  %v201 = vadd.f32 %v185, 1e-05
  %v202 = vadd.f32 %v186, 1e-05
  %v203 = vadd.f32 %v187, 1e-05
  %v204 = vadd.f32 %v188, 1e-05
  %v205 = vrsqrt.pop %v189
  %v206 = vrsqrt.pop %v190
  %v207 = vrsqrt.pop %v191
  %v208 = vrsqrt.pop %v192
  %v209 = vrsqrt.pop %v193
  %v210 = vrsqrt.pop %v194
  %v211 = vrsqrt.pop %v195
  %v212 = vrsqrt.pop %v196
  %v213 = vrsqrt.pop %v197
  %v214 = vrsqrt.pop %v198
  %v215 = vrsqrt.pop %v199
  %v216 = vrsqrt.pop %v200
  %v217 = vrsqrt.pop %v201
  %v218 = vrsqrt.pop %v202
  %v219 = vrsqrt.pop %v203
  %v220 = vrsqrt.pop %v204
  %v221 = vmul.f32 %v42, %v205
  %v222 = vmul.f32 %v43, %v206
  %v223 = vmul.f32 %v44, %v207
  %v224 = vmul.f32 %v45, %v208
  %v225 = vmul.f32 %v46, %v209
  %v226 = vmul.f32 %v47, %v210
  %v227 = vmul.f32 %v48, %v211
  %v228 = vmul.f32 %v49, %v212
  %v229 = vmul.f32 %v50, %v213
  %v230 = vmul.f32 %v51, %v214
  %v231 = vmul.f32 %v52, %v215
  %v232 = vmul.f32 %v53, %v216
  %v233 = vmul.f32 %v54, %v217
  %v234 = vmul.f32 %v55, %v218
  %v235 = vmul.f32 %v56, %v219
  %v236 = vmul.f32 %v57, %v220
  %v238 = vlaneseq
  %v239 = vshrl.u32 %v238, 7
  %v240 = vsub.s32 0, %v239
  %v241 = vrot.slane %v106, %v240
  %v243 = vmul.f32 %v221, %v241
  %v244 = vmul.f32 %v222, %v241
  %v245 = vmul.f32 %v223, %v241
  %v246 = vmul.f32 %v224, %v241
  %v247 = vmul.f32 %v225, %v241
  %v248 = vmul.f32 %v226, %v241
  %v249 = vmul.f32 %v227, %v241
  %v250 = vmul.f32 %v228, %v241
  %v251 = vmul.f32 %v229, %v241
  %v252 = vmul.f32 %v230, %v241
  %v253 = vmul.f32 %v231, %v241
  %v254 = vmul.f32 %v232, %v241
  %v255 = vmul.f32 %v233, %v241
  %v256 = vmul.f32 %v234, %v241
  %v257 = vmul.f32 %v235, %v241
  %v258 = vmul.f32 %v236, %v241
  %v259 = vpack.c.bf16 %v244, %v243
  %v260 = vpack.c.bf16 %v246, %v245
  %v261 = vpack.c.bf16 %v248, %v247
  %v262 = vpack.c.bf16 %v250, %v249
  %v263 = vpack.c.bf16 %v252, %v251
  %v264 = vpack.c.bf16 %v254, %v253
  %v265 = vpack.c.bf16 %v256, %v255
  %v266 = vpack.c.bf16 %v258, %v257
  %v267 = vld [vmem:[%s7] sm:$0xf]
  %v268 = vld [vmem:[%s7 + $0x4] sm:$0xf]
  %v269 = vld [vmem:[%s7 + $0x8] sm:$0xf]
  %v270 = vld [vmem:[%s7 + $0xc] sm:$0xf]
  %v271 = vld [vmem:[%s8] sm:$0x1]
  %v273 = vlaneseq
  %v274 = vshrl.u32 %v273, 7
  %v275 = vsub.s32 0, %v274
  %v276 = vrot.slane %v271, %v275
  %v282 = vunpack.c.l.b16 %v267
  %v283 = vunpack.c.l.b16 %v268
  %v284 = vunpack.c.l.b16 %v269
  %v285 = vunpack.c.l.b16 %v270
  %v286 = vpack.c.b16 %v283, %v282
  %v287 = vpack.c.b16 %v285, %v284
  %v291 = vsel %vm123, %v259, 0
  %v294 = vsel %vm123, %v260, 0
  %v297 = vsel %vm123, %v261, 0
  %v300 = vsel %vm123, %v262, 0
  %v303 = vsel %vm123, %v263, 0
  %v306 = vsel %vm123, %v264, 0
  %v309 = vsel %vm123, %v265, 0
  %v312 = vsel %vm123, %v266, 0
  %314 = vmatprep.subr.bf16.mxu0 0
  %315 = vmatpush1.bf16.msra.mxu0 %v286
  %316 = vmatprep.subr.bf16.mxu0 0
  %317 = vmatpush1.bf16.msra.mxu0 %v287
  %318 = vmatprep.subr.bf16.mxu0 0
  %319 = vmatpush1.bf16.msra.mxu0 0
  %320 = vmatprep.subr.bf16.mxu0 0
  %321 = vmatpush1.bf16.msra.mxu0 0
  %322 = vmatprep.subr.bf16.mxu0 0
  %323 = vmatpush1.bf16.msra.mxu0 0
  %324 = vmatprep.subr.bf16.mxu0 0
  %325 = vmatpush1.bf16.msra.mxu0 0
  %326 = vmatprep.subr.bf16.mxu0 0
  %327 = vmatpush1.bf16.msra.mxu0 0
  %328 = vmatprep.subr.bf16.mxu0 0
  %329 = vmatpush1.bf16.msra.mxu0 0
  %330 = vmatprep.subr.bf16.mxu0 0
  %331 = vmatpush1.bf16.msra.mxu0 0
  %332 = vmatprep.subr.bf16.mxu0 0
  %333 = vmatpush1.bf16.msra.mxu0 0
  %334 = vmatprep.subr.bf16.mxu0 0
  %335 = vmatpush1.bf16.msra.mxu0 0
  %336 = vmatprep.subr.bf16.mxu0 0
  %337 = vmatpush1.bf16.msra.mxu0 0
  %338 = vmatprep.subr.bf16.mxu0 0
  %339 = vmatpush1.bf16.msra.mxu0 0
  %340 = vmatprep.subr.bf16.mxu0 0
  %341 = vmatpush1.bf16.msra.mxu0 0
  %342 = vmatprep.subr.bf16.mxu0 0
  %343 = vmatpush1.bf16.msra.mxu0 0
  %344 = vmatprep.subr.bf16.mxu0 0
  %345 = vmatpush1.bf16.msra.mxu0 0
  %346 = vmatprep.mubr.bf16.mxu0 0
  %347 = vmatmul.mubr.bf16.gmra.mrb[0].mxu0 %v291
  %v348 = vpop.f32.mrb[0].mxu0
  %v349 = vadd.f32 %v276, %v348
  %v350 = vpop.f32.mrb[0].mxu0
  %v351 = vpop.f32.mrb[0].mxu0
  %v352 = vadd.f32 %v276, %v351
  %v353 = vpop.f32.mrb[0].mxu0
  %354 = vmatprep.mubr.bf16.mxu0 0
  %355 = vmatmul.mubr.bf16.gmra.mrb[0].mxu0 %v294
  %v356 = vpop.f32.mrb[0].mxu0
  %v357 = vadd.f32 %v276, %v356
  %v358 = vpop.f32.mrb[0].mxu0
  %v359 = vpop.f32.mrb[0].mxu0
  %v360 = vadd.f32 %v276, %v359
  %v361 = vpop.f32.mrb[0].mxu0
  %362 = vmatprep.mubr.bf16.mxu0 0
  %363 = vmatmul.mubr.bf16.gmra.mrb[0].mxu0 %v297
  %v364 = vpop.f32.mrb[0].mxu0
  %v365 = vadd.f32 %v276, %v364
  %v366 = vpop.f32.mrb[0].mxu0
  %v367 = vpop.f32.mrb[0].mxu0
  %v368 = vadd.f32 %v276, %v367
  %v369 = vpop.f32.mrb[0].mxu0
  %370 = vmatprep.mubr.bf16.mxu0 0
  %371 = vmatmul.mubr.bf16.gmra.mrb[0].mxu0 %v300
  %v372 = vpop.f32.mrb[0].mxu0
  %v373 = vadd.f32 %v276, %v372
  %v374 = vpop.f32.mrb[0].mxu0
  %v375 = vpop.f32.mrb[0].mxu0
  %v376 = vadd.f32 %v276, %v375
  %v377 = vpop.f32.mrb[0].mxu0
  %378 = vmatprep.mubr.bf16.mxu0 0
  %379 = vmatmul.mubr.bf16.gmra.mrb[0].mxu0 %v303
  %v380 = vpop.f32.mrb[0].mxu0
  %v381 = vadd.f32 %v276, %v380
  %v382 = vpop.f32.mrb[0].mxu0
  %v383 = vpop.f32.mrb[0].mxu0
  %v384 = vadd.f32 %v276, %v383
  %v385 = vpop.f32.mrb[0].mxu0
  %386 = vmatprep.mubr.bf16.mxu0 0
  %387 = vmatmul.mubr.bf16.gmra.mrb[0].mxu0 %v306
  %v388 = vpop.f32.mrb[0].mxu0
  %v389 = vadd.f32 %v276, %v388
  %v390 = vpop.f32.mrb[0].mxu0
  %v391 = vpop.f32.mrb[0].mxu0
  %v392 = vadd.f32 %v276, %v391
  %v393 = vpop.f32.mrb[0].mxu0
  %394 = vmatprep.mubr.bf16.mxu0 0
  %395 = vmatmul.mubr.bf16.gmra.mrb[0].mxu0 %v309
  %v396 = vpop.f32.mrb[0].mxu0
  %v397 = vadd.f32 %v276, %v396
  %v398 = vpop.f32.mrb[0].mxu0
  %v399 = vpop.f32.mrb[0].mxu0
  %v400 = vadd.f32 %v276, %v399
  %v401 = vpop.f32.mrb[0].mxu0
  %402 = vmatprep.mubr.bf16.mxu0 0
  %403 = vmatmul.mubr.bf16.gmra.mrb[0].mxu0 %v312
  %v404 = vpop.f32.mrb[0].mxu0
  %v405 = vadd.f32 %v276, %v404
  %v406 = vpop.f32.mrb[0].mxu0
  %v407 = vpop.f32.mrb[0].mxu0
  %v408 = vadd.f32 %v276, %v407
  %v409 = vpop.f32.mrb[0].mxu0
  %410 = vdwg.mxu0
  %vm411 = vcmask 1047808
  %412 = vrot.lane.b32.xlu0 %v349, 32
  %v413 = vpop.permute.xlu0 %412
  %v414 = vsel %vm411, %v413, %v349
  %415 = vrot.lane.b32.xlu0 %v352, 32
  %v416 = vpop.permute.xlu0 %415
  %v417 = vsel %vm411, %v416, %v352
  %418 = vrot.lane.b32.xlu0 %v357, 32
  %v419 = vpop.permute.xlu0 %418
  %v420 = vsel %vm411, %v419, %v357
  %421 = vrot.lane.b32.xlu0 %v360, 32
  %v422 = vpop.permute.xlu0 %421
  %v423 = vsel %vm411, %v422, %v360
  %424 = vrot.lane.b32.xlu0 %v365, 32
  %v425 = vpop.permute.xlu0 %424
  %v426 = vsel %vm411, %v425, %v365
  %427 = vrot.lane.b32.xlu0 %v368, 32
  %v428 = vpop.permute.xlu0 %427
  %v429 = vsel %vm411, %v428, %v368
  %430 = vrot.lane.b32.xlu0 %v373, 32
  %v431 = vpop.permute.xlu0 %430
  %v432 = vsel %vm411, %v431, %v373
  %433 = vrot.lane.b32.xlu0 %v376, 32
  %v434 = vpop.permute.xlu0 %433
  %v435 = vsel %vm411, %v434, %v376
  %436 = vrot.lane.b32.xlu0 %v381, 32
  %v437 = vpop.permute.xlu0 %436
  %v438 = vsel %vm411, %v437, %v381
  %439 = vrot.lane.b32.xlu0 %v384, 32
  %v440 = vpop.permute.xlu0 %439
  %v441 = vsel %vm411, %v440, %v384
  %442 = vrot.lane.b32.xlu0 %v389, 32
  %v443 = vpop.permute.xlu0 %442
  %v444 = vsel %vm411, %v443, %v389
  %445 = vrot.lane.b32.xlu0 %v392, 32
  %v446 = vpop.permute.xlu0 %445
  %v447 = vsel %vm411, %v446, %v392
  %448 = vrot.lane.b32.xlu0 %v397, 32
  %v449 = vpop.permute.xlu0 %448
  %v450 = vsel %vm411, %v449, %v397
  %451 = vrot.lane.b32.xlu0 %v400, 32
  %v452 = vpop.permute.xlu0 %451
  %v453 = vsel %vm411, %v452, %v400
  %454 = vrot.lane.b32.xlu0 %v405, 32
  %v455 = vpop.permute.xlu0 %454
  %v456 = vsel %vm411, %v455, %v405
  %457 = vrot.lane.b32.xlu0 %v408, 32
  %v458 = vpop.permute.xlu0 %457
  %v459 = vsel %vm411, %v458, %v408
  %460 = vrot.lane.b32.xlu0 %v414, 32
  %v461 = vpop.permute.xlu0 %460
  %462 = vrot.lane.b32.xlu0 %v417, 32
  %v463 = vpop.permute.xlu0 %462
  %464 = vrot.lane.b32.xlu0 %v420, 32
  %v465 = vpop.permute.xlu0 %464
  %466 = vrot.lane.b32.xlu0 %v423, 32
  %v467 = vpop.permute.xlu0 %466
  %468 = vrot.lane.b32.xlu0 %v426, 32
  %v469 = vpop.permute.xlu0 %468
  %470 = vrot.lane.b32.xlu0 %v429, 32
  %v471 = vpop.permute.xlu0 %470
  %472 = vrot.lane.b32.xlu0 %v432, 32
  %v473 = vpop.permute.xlu0 %472
  %474 = vrot.lane.b32.xlu0 %v435, 32
  %v475 = vpop.permute.xlu0 %474
  %476 = vrot.lane.b32.xlu0 %v438, 32
  %v477 = vpop.permute.xlu0 %476
  %478 = vrot.lane.b32.xlu0 %v441, 32
  %v479 = vpop.permute.xlu0 %478
  %480 = vrot.lane.b32.xlu0 %v444, 32
  %v481 = vpop.permute.xlu0 %480
  %482 = vrot.lane.b32.xlu0 %v447, 32
  %v483 = vpop.permute.xlu0 %482
  %484 = vrot.lane.b32.xlu0 %v450, 32
  %v485 = vpop.permute.xlu0 %484
  %486 = vrot.lane.b32.xlu0 %v453, 32
  %v487 = vpop.permute.xlu0 %486
  %488 = vrot.lane.b32.xlu0 %v456, 32
  %v489 = vpop.permute.xlu0 %488
  %490 = vrot.lane.b32.xlu0 %v459, 32
  %v491 = vpop.permute.xlu0 %490
  %v492 = vsel %vm411, %v461, %v349
  %v493 = vsel %vm411, %v463, %v352
  %v494 = vsel %vm411, %v465, %v357
  %v495 = vsel %vm411, %v467, %v360
  %v496 = vsel %vm411, %v469, %v365
  %v497 = vsel %vm411, %v471, %v368
  %v498 = vsel %vm411, %v473, %v373
  %v499 = vsel %vm411, %v475, %v376
  %v500 = vsel %vm411, %v477, %v381
  %v501 = vsel %vm411, %v479, %v384
  %v502 = vsel %vm411, %v481, %v389
  %v503 = vsel %vm411, %v483, %v392
  %v504 = vsel %vm411, %v485, %v397
  %v505 = vsel %vm411, %v487, %v400
  %v506 = vsel %vm411, %v489, %v405
  %v507 = vsel %vm411, %v491, %v408
  %v508 = vmul.f32 %v349, %v74
  %v509 = vmul.f32 %v352, %v75
  %v510 = vmul.f32 %v357, %v76
  %v511 = vmul.f32 %v360, %v77
  %v512 = vmul.f32 %v365, %v78
  %v513 = vmul.f32 %v368, %v79
  %v514 = vmul.f32 %v373, %v80
  %v515 = vmul.f32 %v376, %v81
  %v516 = vmul.f32 %v381, %v82
  %v517 = vmul.f32 %v384, %v83
  %v518 = vmul.f32 %v389, %v84
  %v519 = vmul.f32 %v392, %v85
  %v520 = vmul.f32 %v397, %v86
  %v521 = vmul.f32 %v400, %v87
  %v522 = vmul.f32 %v405, %v88
  %v523 = vmul.f32 %v408, %v89
  %540 = vrot.lane.b32.xlu0 %v74, 97
  %v541 = vpop.permute.xlu0 %540
  %542 = vrot.lane.b32.xlu0 %v75, 97
  %v543 = vpop.permute.xlu0 %542
  %544 = vrot.lane.b32.xlu0 %v76, 97
  %v545 = vpop.permute.xlu0 %544
  %546 = vrot.lane.b32.xlu0 %v77, 97
  %v547 = vpop.permute.xlu0 %546
  %548 = vrot.lane.b32.xlu0 %v78, 97
  %v549 = vpop.permute.xlu0 %548
  %550 = vrot.lane.b32.xlu0 %v79, 97
  %v551 = vpop.permute.xlu0 %550
  %552 = vrot.lane.b32.xlu0 %v80, 97
  %v553 = vpop.permute.xlu0 %552
  %554 = vrot.lane.b32.xlu0 %v81, 97
  %v555 = vpop.permute.xlu0 %554
  %556 = vrot.lane.b32.xlu0 %v82, 97
  %v557 = vpop.permute.xlu0 %556
  %558 = vrot.lane.b32.xlu0 %v83, 97
  %v559 = vpop.permute.xlu0 %558
  %560 = vrot.lane.b32.xlu0 %v84, 97
  %v561 = vpop.permute.xlu0 %560
  %562 = vrot.lane.b32.xlu0 %v85, 97
  %v563 = vpop.permute.xlu0 %562
  %564 = vrot.lane.b32.xlu0 %v86, 97
  %v565 = vpop.permute.xlu0 %564
  %566 = vrot.lane.b32.xlu0 %v87, 97
  %v567 = vpop.permute.xlu0 %566
  %568 = vrot.lane.b32.xlu0 %v88, 97
  %v569 = vpop.permute.xlu0 %568
  %570 = vrot.lane.b32.xlu0 %v89, 97
  %v571 = vpop.permute.xlu0 %570
  %v588 = vmul.f32 %v492, %v541
  %v589 = vmul.f32 %v493, %v543
  %v590 = vmul.f32 %v494, %v545
  %v591 = vmul.f32 %v495, %v547
  %v592 = vmul.f32 %v496, %v549
  %v593 = vmul.f32 %v497, %v551
  %v594 = vmul.f32 %v498, %v553
  %v595 = vmul.f32 %v499, %v555
  %v596 = vmul.f32 %v500, %v557
  %v597 = vmul.f32 %v501, %v559
  %v598 = vmul.f32 %v502, %v561
  %v599 = vmul.f32 %v503, %v563
  %v600 = vmul.f32 %v504, %v565
  %v601 = vmul.f32 %v505, %v567
  %v602 = vmul.f32 %v506, %v569
  %v603 = vmul.f32 %v507, %v571
  %620 = vrot.lane.b32.xlu0 %v588, 127
  %v621 = vpop.permute.xlu0 %620
  %622 = vrot.lane.b32.xlu0 %v589, 127
  %v623 = vpop.permute.xlu0 %622
  %624 = vrot.lane.b32.xlu0 %v590, 127
  %v625 = vpop.permute.xlu0 %624
  %626 = vrot.lane.b32.xlu0 %v591, 127
  %v627 = vpop.permute.xlu0 %626
  %628 = vrot.lane.b32.xlu0 %v592, 127
  %v629 = vpop.permute.xlu0 %628
  %630 = vrot.lane.b32.xlu0 %v593, 127
  %v631 = vpop.permute.xlu0 %630
  %632 = vrot.lane.b32.xlu0 %v594, 127
  %v633 = vpop.permute.xlu0 %632
  %634 = vrot.lane.b32.xlu0 %v595, 127
  %v635 = vpop.permute.xlu0 %634
  %636 = vrot.lane.b32.xlu0 %v596, 127
  %v637 = vpop.permute.xlu0 %636
  %638 = vrot.lane.b32.xlu0 %v597, 127
  %v639 = vpop.permute.xlu0 %638
  %640 = vrot.lane.b32.xlu0 %v598, 127
  %v641 = vpop.permute.xlu0 %640
  %642 = vrot.lane.b32.xlu0 %v599, 127
  %v643 = vpop.permute.xlu0 %642
  %644 = vrot.lane.b32.xlu0 %v600, 127
  %v645 = vpop.permute.xlu0 %644
  %646 = vrot.lane.b32.xlu0 %v601, 127
  %v647 = vpop.permute.xlu0 %646
  %648 = vrot.lane.b32.xlu0 %v602, 127
  %v649 = vpop.permute.xlu0 %648
  %650 = vrot.lane.b32.xlu0 %v603, 127
  %v651 = vpop.permute.xlu0 %650
  %v668 = vadd.f32 %v508, %v621
  %v669 = vadd.f32 %v509, %v623
  %v670 = vadd.f32 %v510, %v625
  %v671 = vadd.f32 %v511, %v627
  %v672 = vadd.f32 %v512, %v629
  %v673 = vadd.f32 %v513, %v631
  %v674 = vadd.f32 %v514, %v633
  %v675 = vadd.f32 %v515, %v635
  %v676 = vadd.f32 %v516, %v637
  %v677 = vadd.f32 %v517, %v639
  %v678 = vadd.f32 %v518, %v641
  %v679 = vadd.f32 %v519, %v643
  %v680 = vadd.f32 %v520, %v645
  %v681 = vadd.f32 %v521, %v647
  %v682 = vadd.f32 %v522, %v649
  %v683 = vadd.f32 %v523, %v651
  %684 = vrot.lane.b32.xlu0 %v74, 95
  %v685 = vpop.permute.xlu0 %684
  %686 = vrot.lane.b32.xlu0 %v75, 95
  %v687 = vpop.permute.xlu0 %686
  %688 = vrot.lane.b32.xlu0 %v76, 95
  %v689 = vpop.permute.xlu0 %688
  %690 = vrot.lane.b32.xlu0 %v77, 95
  %v691 = vpop.permute.xlu0 %690
  %692 = vrot.lane.b32.xlu0 %v78, 95
  %v693 = vpop.permute.xlu0 %692
  %694 = vrot.lane.b32.xlu0 %v79, 95
  %v695 = vpop.permute.xlu0 %694
  %696 = vrot.lane.b32.xlu0 %v80, 95
  %v697 = vpop.permute.xlu0 %696
  %698 = vrot.lane.b32.xlu0 %v81, 95
  %v699 = vpop.permute.xlu0 %698
  %700 = vrot.lane.b32.xlu0 %v82, 95
  %v701 = vpop.permute.xlu0 %700
  %702 = vrot.lane.b32.xlu0 %v83, 95
  %v703 = vpop.permute.xlu0 %702
  %704 = vrot.lane.b32.xlu0 %v84, 95
  %v705 = vpop.permute.xlu0 %704
  %706 = vrot.lane.b32.xlu0 %v85, 95
  %v707 = vpop.permute.xlu0 %706
  %708 = vrot.lane.b32.xlu0 %v86, 95
  %v709 = vpop.permute.xlu0 %708
  %710 = vrot.lane.b32.xlu0 %v87, 95
  %v711 = vpop.permute.xlu0 %710
  %712 = vrot.lane.b32.xlu0 %v88, 95
  %v713 = vpop.permute.xlu0 %712
  %714 = vrot.lane.b32.xlu0 %v89, 95
  %v715 = vpop.permute.xlu0 %714
  %v732 = vmul.f32 %v492, %v685
  %v733 = vmul.f32 %v493, %v687
  %v734 = vmul.f32 %v494, %v689
  %v735 = vmul.f32 %v495, %v691
  %v736 = vmul.f32 %v496, %v693
  %v737 = vmul.f32 %v497, %v695
  %v738 = vmul.f32 %v498, %v697
  %v739 = vmul.f32 %v499, %v699
  %v740 = vmul.f32 %v500, %v701
  %v741 = vmul.f32 %v501, %v703
  %v742 = vmul.f32 %v502, %v705
  %v743 = vmul.f32 %v503, %v707
  %v744 = vmul.f32 %v504, %v709
  %v745 = vmul.f32 %v505, %v711
  %v746 = vmul.f32 %v506, %v713
  %v747 = vmul.f32 %v507, %v715
  %764 = vrot.lane.b32.xlu0 %v732, 97
  %v765 = vpop.permute.xlu0 %764
  %766 = vrot.lane.b32.xlu0 %v733, 97
  %v767 = vpop.permute.xlu0 %766
  %768 = vrot.lane.b32.xlu0 %v734, 97
  %v769 = vpop.permute.xlu0 %768
  %770 = vrot.lane.b32.xlu0 %v735, 97
  %v771 = vpop.permute.xlu0 %770
  %772 = vrot.lane.b32.xlu0 %v736, 97
  %v773 = vpop.permute.xlu0 %772
  %774 = vrot.lane.b32.xlu0 %v737, 97
  %v775 = vpop.permute.xlu0 %774
  %776 = vrot.lane.b32.xlu0 %v738, 97
  %v777 = vpop.permute.xlu0 %776
  %778 = vrot.lane.b32.xlu0 %v739, 97
  %v779 = vpop.permute.xlu0 %778
  %780 = vrot.lane.b32.xlu0 %v740, 97
  %v781 = vpop.permute.xlu0 %780
  %782 = vrot.lane.b32.xlu0 %v741, 97
  %v783 = vpop.permute.xlu0 %782
  %784 = vrot.lane.b32.xlu0 %v742, 97
  %v785 = vpop.permute.xlu0 %784
  %786 = vrot.lane.b32.xlu0 %v743, 97
  %v787 = vpop.permute.xlu0 %786
  %788 = vrot.lane.b32.xlu0 %v744, 97
  %v789 = vpop.permute.xlu0 %788
  %790 = vrot.lane.b32.xlu0 %v745, 97
  %v791 = vpop.permute.xlu0 %790
  %792 = vrot.lane.b32.xlu0 %v746, 97
  %v793 = vpop.permute.xlu0 %792
  %794 = vrot.lane.b32.xlu0 %v747, 97
  %v795 = vpop.permute.xlu0 %794
  %v812 = vadd.f32 %v668, %v765
  %v813 = vadd.f32 %v669, %v767
  %v814 = vadd.f32 %v670, %v769
  %v815 = vadd.f32 %v671, %v771
  %v816 = vadd.f32 %v672, %v773
  %v817 = vadd.f32 %v673, %v775
  %v818 = vadd.f32 %v674, %v777
  %v819 = vadd.f32 %v675, %v779
  %v820 = vadd.f32 %v676, %v781
  %v821 = vadd.f32 %v677, %v783
  %v822 = vadd.f32 %v678, %v785
  %v823 = vadd.f32 %v679, %v787
  %v824 = vadd.f32 %v680, %v789
  %v825 = vadd.f32 %v681, %v791
  %v826 = vadd.f32 %v682, %v793
  %v827 = vadd.f32 %v683, %v795
  %844 = vrot.lane.b32.xlu0 %v349, 96
  %v845 = vpop.permute.xlu0 %844
  %846 = vrot.lane.b32.xlu0 %v352, 96
  %v847 = vpop.permute.xlu0 %846
  %848 = vrot.lane.b32.xlu0 %v357, 96
  %v849 = vpop.permute.xlu0 %848
  %850 = vrot.lane.b32.xlu0 %v360, 96
  %v851 = vpop.permute.xlu0 %850
  %852 = vrot.lane.b32.xlu0 %v365, 96
  %v853 = vpop.permute.xlu0 %852
  %854 = vrot.lane.b32.xlu0 %v368, 96
  %v855 = vpop.permute.xlu0 %854
  %856 = vrot.lane.b32.xlu0 %v373, 96
  %v857 = vpop.permute.xlu0 %856
  %858 = vrot.lane.b32.xlu0 %v376, 96
  %v859 = vpop.permute.xlu0 %858
  %860 = vrot.lane.b32.xlu0 %v381, 96
  %v861 = vpop.permute.xlu0 %860
  %862 = vrot.lane.b32.xlu0 %v384, 96
  %v863 = vpop.permute.xlu0 %862
  %864 = vrot.lane.b32.xlu0 %v389, 96
  %v865 = vpop.permute.xlu0 %864
  %866 = vrot.lane.b32.xlu0 %v392, 96
  %v867 = vpop.permute.xlu0 %866
  %868 = vrot.lane.b32.xlu0 %v397, 96
  %v869 = vpop.permute.xlu0 %868
  %870 = vrot.lane.b32.xlu0 %v400, 96
  %v871 = vpop.permute.xlu0 %870
  %872 = vrot.lane.b32.xlu0 %v405, 96
  %v873 = vpop.permute.xlu0 %872
  %874 = vrot.lane.b32.xlu0 %v408, 96
  %v875 = vpop.permute.xlu0 %874
  %vm892 = vcmask 1047680
  %893 = vrot.lane.b32.xlu0 %v845, 16
  %v894 = vpop.permute.xlu0 %893
  %v895 = vsel %vm892, %v894, %v845
  %896 = vrot.lane.b32.xlu0 %v847, 16
  %v897 = vpop.permute.xlu0 %896
  %v898 = vsel %vm892, %v897, %v847
  %899 = vrot.lane.b32.xlu0 %v849, 16
  %v900 = vpop.permute.xlu0 %899
  %v901 = vsel %vm892, %v900, %v849
  %902 = vrot.lane.b32.xlu0 %v851, 16
  %v903 = vpop.permute.xlu0 %902
  %v904 = vsel %vm892, %v903, %v851
  %905 = vrot.lane.b32.xlu0 %v853, 16
  %v906 = vpop.permute.xlu0 %905
  %v907 = vsel %vm892, %v906, %v853
  %908 = vrot.lane.b32.xlu0 %v855, 16
  %v909 = vpop.permute.xlu0 %908
  %v910 = vsel %vm892, %v909, %v855
  %911 = vrot.lane.b32.xlu0 %v857, 16
  %v912 = vpop.permute.xlu0 %911
  %v913 = vsel %vm892, %v912, %v857
  %914 = vrot.lane.b32.xlu0 %v859, 16
  %v915 = vpop.permute.xlu0 %914
  %v916 = vsel %vm892, %v915, %v859
  %917 = vrot.lane.b32.xlu0 %v861, 16
  %v918 = vpop.permute.xlu0 %917
  %v919 = vsel %vm892, %v918, %v861
  %920 = vrot.lane.b32.xlu0 %v863, 16
  %v921 = vpop.permute.xlu0 %920
  %v922 = vsel %vm892, %v921, %v863
  %923 = vrot.lane.b32.xlu0 %v865, 16
  %v924 = vpop.permute.xlu0 %923
  %v925 = vsel %vm892, %v924, %v865
  %926 = vrot.lane.b32.xlu0 %v867, 16
  %v927 = vpop.permute.xlu0 %926
  %v928 = vsel %vm892, %v927, %v867
  %929 = vrot.lane.b32.xlu0 %v869, 16
  %v930 = vpop.permute.xlu0 %929
  %v931 = vsel %vm892, %v930, %v869
  %932 = vrot.lane.b32.xlu0 %v871, 16
  %v933 = vpop.permute.xlu0 %932
  %v934 = vsel %vm892, %v933, %v871
  %935 = vrot.lane.b32.xlu0 %v873, 16
  %v936 = vpop.permute.xlu0 %935
  %v937 = vsel %vm892, %v936, %v873
  %938 = vrot.lane.b32.xlu0 %v875, 16
  %v939 = vpop.permute.xlu0 %938
  %v940 = vsel %vm892, %v939, %v875
  %941 = vrot.lane.b32.xlu0 %v895, 16
  %v942 = vpop.permute.xlu0 %941
  %943 = vrot.lane.b32.xlu0 %v898, 16
  %v944 = vpop.permute.xlu0 %943
  %945 = vrot.lane.b32.xlu0 %v901, 16
  %v946 = vpop.permute.xlu0 %945
  %947 = vrot.lane.b32.xlu0 %v904, 16
  %v948 = vpop.permute.xlu0 %947
  %949 = vrot.lane.b32.xlu0 %v907, 16
  %v950 = vpop.permute.xlu0 %949
  %951 = vrot.lane.b32.xlu0 %v910, 16
  %v952 = vpop.permute.xlu0 %951
  %953 = vrot.lane.b32.xlu0 %v913, 16
  %v954 = vpop.permute.xlu0 %953
  %955 = vrot.lane.b32.xlu0 %v916, 16
  %v956 = vpop.permute.xlu0 %955
  %957 = vrot.lane.b32.xlu0 %v919, 16
  %v958 = vpop.permute.xlu0 %957
  %959 = vrot.lane.b32.xlu0 %v922, 16
  %v960 = vpop.permute.xlu0 %959
  %961 = vrot.lane.b32.xlu0 %v925, 16
  %v962 = vpop.permute.xlu0 %961
  %963 = vrot.lane.b32.xlu0 %v928, 16
  %v964 = vpop.permute.xlu0 %963
  %965 = vrot.lane.b32.xlu0 %v931, 16
  %v966 = vpop.permute.xlu0 %965
  %967 = vrot.lane.b32.xlu0 %v934, 16
  %v968 = vpop.permute.xlu0 %967
  %969 = vrot.lane.b32.xlu0 %v937, 16
  %v970 = vpop.permute.xlu0 %969
  %971 = vrot.lane.b32.xlu0 %v940, 16
  %v972 = vpop.permute.xlu0 %971
  %v973 = vsel %vm892, %v942, %v845
  %v974 = vsel %vm892, %v944, %v847
  %v975 = vsel %vm892, %v946, %v849
  %v976 = vsel %vm892, %v948, %v851
  %v977 = vsel %vm892, %v950, %v853
  %v978 = vsel %vm892, %v952, %v855
  %v979 = vsel %vm892, %v954, %v857
  %v980 = vsel %vm892, %v956, %v859
  %v981 = vsel %vm892, %v958, %v861
  %v982 = vsel %vm892, %v960, %v863
  %v983 = vsel %vm892, %v962, %v865
  %v984 = vsel %vm892, %v964, %v867
  %v985 = vsel %vm892, %v966, %v869
  %v986 = vsel %vm892, %v968, %v871
  %v987 = vsel %vm892, %v970, %v873
  %v988 = vsel %vm892, %v972, %v875
  %1005 = vrot.lane.b32.xlu0 %v90, 32
  %v1006 = vpop.permute.xlu0 %1005
  %1007 = vrot.lane.b32.xlu0 %v91, 32
  %v1008 = vpop.permute.xlu0 %1007
  %1009 = vrot.lane.b32.xlu0 %v92, 32
  %v1010 = vpop.permute.xlu0 %1009
  %1011 = vrot.lane.b32.xlu0 %v93, 32
  %v1012 = vpop.permute.xlu0 %1011
  %1013 = vrot.lane.b32.xlu0 %v94, 32
  %v1014 = vpop.permute.xlu0 %1013
  %1015 = vrot.lane.b32.xlu0 %v95, 32
  %v1016 = vpop.permute.xlu0 %1015
  %1017 = vrot.lane.b32.xlu0 %v96, 32
  %v1018 = vpop.permute.xlu0 %1017
  %1019 = vrot.lane.b32.xlu0 %v97, 32
  %v1020 = vpop.permute.xlu0 %1019
  %1021 = vrot.lane.b32.xlu0 %v98, 32
  %v1022 = vpop.permute.xlu0 %1021
  %1023 = vrot.lane.b32.xlu0 %v99, 32
  %v1024 = vpop.permute.xlu0 %1023
  %1025 = vrot.lane.b32.xlu0 %v100, 32
  %v1026 = vpop.permute.xlu0 %1025
  %1027 = vrot.lane.b32.xlu0 %v101, 32
  %v1028 = vpop.permute.xlu0 %1027
  %1029 = vrot.lane.b32.xlu0 %v102, 32
  %v1030 = vpop.permute.xlu0 %1029
  %1031 = vrot.lane.b32.xlu0 %v103, 32
  %v1032 = vpop.permute.xlu0 %1031
  %1033 = vrot.lane.b32.xlu0 %v104, 32
  %v1034 = vpop.permute.xlu0 %1033
  %1035 = vrot.lane.b32.xlu0 %v105, 32
  %v1036 = vpop.permute.xlu0 %1035
  %v1053 = vmul.f32 %v349, %v1006
  %v1054 = vmul.f32 %v352, %v1008
  %v1055 = vmul.f32 %v357, %v1010
  %v1056 = vmul.f32 %v360, %v1012
  %v1057 = vmul.f32 %v365, %v1014
  %v1058 = vmul.f32 %v368, %v1016
  %v1059 = vmul.f32 %v373, %v1018
  %v1060 = vmul.f32 %v376, %v1020
  %v1061 = vmul.f32 %v381, %v1022
  %v1062 = vmul.f32 %v384, %v1024
  %v1063 = vmul.f32 %v389, %v1026
  %v1064 = vmul.f32 %v392, %v1028
  %v1065 = vmul.f32 %v397, %v1030
  %v1066 = vmul.f32 %v400, %v1032
  %v1067 = vmul.f32 %v405, %v1034
  %v1068 = vmul.f32 %v408, %v1036
  %1069 = vrot.lane.b32.xlu0 %v90, 113
  %v1070 = vpop.permute.xlu0 %1069
  %1071 = vrot.lane.b32.xlu0 %v91, 113
  %v1072 = vpop.permute.xlu0 %1071
  %1073 = vrot.lane.b32.xlu0 %v92, 113
  %v1074 = vpop.permute.xlu0 %1073
  %1075 = vrot.lane.b32.xlu0 %v93, 113
  %v1076 = vpop.permute.xlu0 %1075
  %1077 = vrot.lane.b32.xlu0 %v94, 113
  %v1078 = vpop.permute.xlu0 %1077
  %1079 = vrot.lane.b32.xlu0 %v95, 113
  %v1080 = vpop.permute.xlu0 %1079
  %1081 = vrot.lane.b32.xlu0 %v96, 113
  %v1082 = vpop.permute.xlu0 %1081
  %1083 = vrot.lane.b32.xlu0 %v97, 113
  %v1084 = vpop.permute.xlu0 %1083
  %1085 = vrot.lane.b32.xlu0 %v98, 113
  %v1086 = vpop.permute.xlu0 %1085
  %1087 = vrot.lane.b32.xlu0 %v99, 113
  %v1088 = vpop.permute.xlu0 %1087
  %1089 = vrot.lane.b32.xlu0 %v100, 113
  %v1090 = vpop.permute.xlu0 %1089
  %1091 = vrot.lane.b32.xlu0 %v101, 113
  %v1092 = vpop.permute.xlu0 %1091
  %1093 = vrot.lane.b32.xlu0 %v102, 113
  %v1094 = vpop.permute.xlu0 %1093
  %1095 = vrot.lane.b32.xlu0 %v103, 113
  %v1096 = vpop.permute.xlu0 %1095
  %1097 = vrot.lane.b32.xlu0 %v104, 113
  %v1098 = vpop.permute.xlu0 %1097
  %1099 = vrot.lane.b32.xlu0 %v105, 113
  %v1100 = vpop.permute.xlu0 %1099
  %v1117 = vmul.f32 %v973, %v1070
  %v1118 = vmul.f32 %v974, %v1072
  %v1119 = vmul.f32 %v975, %v1074
  %v1120 = vmul.f32 %v976, %v1076
  %v1121 = vmul.f32 %v977, %v1078
  %v1122 = vmul.f32 %v978, %v1080
  %v1123 = vmul.f32 %v979, %v1082
  %v1124 = vmul.f32 %v980, %v1084
  %v1125 = vmul.f32 %v981, %v1086
  %v1126 = vmul.f32 %v982, %v1088
  %v1127 = vmul.f32 %v983, %v1090
  %v1128 = vmul.f32 %v984, %v1092
  %v1129 = vmul.f32 %v985, %v1094
  %v1130 = vmul.f32 %v986, %v1096
  %v1131 = vmul.f32 %v987, %v1098
  %v1132 = vmul.f32 %v988, %v1100
  %1149 = vrot.lane.b32.xlu0 %v1117, 31
  %v1150 = vpop.permute.xlu0 %1149
  %1151 = vrot.lane.b32.xlu0 %v1118, 31
  %v1152 = vpop.permute.xlu0 %1151
  %1153 = vrot.lane.b32.xlu0 %v1119, 31
  %v1154 = vpop.permute.xlu0 %1153
  %1155 = vrot.lane.b32.xlu0 %v1120, 31
  %v1156 = vpop.permute.xlu0 %1155
  %1157 = vrot.lane.b32.xlu0 %v1121, 31
  %v1158 = vpop.permute.xlu0 %1157
  %1159 = vrot.lane.b32.xlu0 %v1122, 31
  %v1160 = vpop.permute.xlu0 %1159
  %1161 = vrot.lane.b32.xlu0 %v1123, 31
  %v1162 = vpop.permute.xlu0 %1161
  %1163 = vrot.lane.b32.xlu0 %v1124, 31
  %v1164 = vpop.permute.xlu0 %1163
  %1165 = vrot.lane.b32.xlu0 %v1125, 31
  %v1166 = vpop.permute.xlu0 %1165
  %1167 = vrot.lane.b32.xlu0 %v1126, 31
  %v1168 = vpop.permute.xlu0 %1167
  %1169 = vrot.lane.b32.xlu0 %v1127, 31
  %v1170 = vpop.permute.xlu0 %1169
  %1171 = vrot.lane.b32.xlu0 %v1128, 31
  %v1172 = vpop.permute.xlu0 %1171
  %1173 = vrot.lane.b32.xlu0 %v1129, 31
  %v1174 = vpop.permute.xlu0 %1173
  %1175 = vrot.lane.b32.xlu0 %v1130, 31
  %v1176 = vpop.permute.xlu0 %1175
  %1177 = vrot.lane.b32.xlu0 %v1131, 31
  %v1178 = vpop.permute.xlu0 %1177
  %1179 = vrot.lane.b32.xlu0 %v1132, 31
  %v1180 = vpop.permute.xlu0 %1179
  %v1197 = vadd.f32 %v1053, %v1150
  %v1198 = vadd.f32 %v1054, %v1152
  %v1199 = vadd.f32 %v1055, %v1154
  %v1200 = vadd.f32 %v1056, %v1156
  %v1201 = vadd.f32 %v1057, %v1158
  %v1202 = vadd.f32 %v1058, %v1160
  %v1203 = vadd.f32 %v1059, %v1162
  %v1204 = vadd.f32 %v1060, %v1164
  %v1205 = vadd.f32 %v1061, %v1166
  %v1206 = vadd.f32 %v1062, %v1168
  %v1207 = vadd.f32 %v1063, %v1170
  %v1208 = vadd.f32 %v1064, %v1172
  %v1209 = vadd.f32 %v1065, %v1174
  %v1210 = vadd.f32 %v1066, %v1176
  %v1211 = vadd.f32 %v1067, %v1178
  %v1212 = vadd.f32 %v1068, %v1180
  %1213 = vrot.lane.b32.xlu0 %v90, 111
  %v1214 = vpop.permute.xlu0 %1213
  %1215 = vrot.lane.b32.xlu0 %v91, 111
  %v1216 = vpop.permute.xlu0 %1215
  %1217 = vrot.lane.b32.xlu0 %v92, 111
  %v1218 = vpop.permute.xlu0 %1217
  %1219 = vrot.lane.b32.xlu0 %v93, 111
  %v1220 = vpop.permute.xlu0 %1219
  %1221 = vrot.lane.b32.xlu0 %v94, 111
  %v1222 = vpop.permute.xlu0 %1221
  %1223 = vrot.lane.b32.xlu0 %v95, 111
  %v1224 = vpop.permute.xlu0 %1223
  %1225 = vrot.lane.b32.xlu0 %v96, 111
  %v1226 = vpop.permute.xlu0 %1225
  %1227 = vrot.lane.b32.xlu0 %v97, 111
  %v1228 = vpop.permute.xlu0 %1227
  %1229 = vrot.lane.b32.xlu0 %v98, 111
  %v1230 = vpop.permute.xlu0 %1229
  %1231 = vrot.lane.b32.xlu0 %v99, 111
  %v1232 = vpop.permute.xlu0 %1231
  %1233 = vrot.lane.b32.xlu0 %v100, 111
  %v1234 = vpop.permute.xlu0 %1233
  %1235 = vrot.lane.b32.xlu0 %v101, 111
  %v1236 = vpop.permute.xlu0 %1235
  %1237 = vrot.lane.b32.xlu0 %v102, 111
  %v1238 = vpop.permute.xlu0 %1237
  %1239 = vrot.lane.b32.xlu0 %v103, 111
  %v1240 = vpop.permute.xlu0 %1239
  %1241 = vrot.lane.b32.xlu0 %v104, 111
  %v1242 = vpop.permute.xlu0 %1241
  %1243 = vrot.lane.b32.xlu0 %v105, 111
  %v1244 = vpop.permute.xlu0 %1243
  %v1261 = vmul.f32 %v973, %v1214
  %v1262 = vmul.f32 %v974, %v1216
  %v1263 = vmul.f32 %v975, %v1218
  %v1264 = vmul.f32 %v976, %v1220
  %v1265 = vmul.f32 %v977, %v1222
  %v1266 = vmul.f32 %v978, %v1224
  %v1267 = vmul.f32 %v979, %v1226
  %v1268 = vmul.f32 %v980, %v1228
  %v1269 = vmul.f32 %v981, %v1230
  %v1270 = vmul.f32 %v982, %v1232
  %v1271 = vmul.f32 %v983, %v1234
  %v1272 = vmul.f32 %v984, %v1236
  %v1273 = vmul.f32 %v985, %v1238
  %v1274 = vmul.f32 %v986, %v1240
  %v1275 = vmul.f32 %v987, %v1242
  %v1276 = vmul.f32 %v988, %v1244
  %1293 = vrot.lane.b32.xlu0 %v1261, 17
  %v1294 = vpop.permute.xlu0 %1293
  %1295 = vrot.lane.b32.xlu0 %v1262, 17
  %v1296 = vpop.permute.xlu0 %1295
  %1297 = vrot.lane.b32.xlu0 %v1263, 17
  %v1298 = vpop.permute.xlu0 %1297
  %1299 = vrot.lane.b32.xlu0 %v1264, 17
  %v1300 = vpop.permute.xlu0 %1299
  %1301 = vrot.lane.b32.xlu0 %v1265, 17
  %v1302 = vpop.permute.xlu0 %1301
  %1303 = vrot.lane.b32.xlu0 %v1266, 17
  %v1304 = vpop.permute.xlu0 %1303
  %1305 = vrot.lane.b32.xlu0 %v1267, 17
  %v1306 = vpop.permute.xlu0 %1305
  %1307 = vrot.lane.b32.xlu0 %v1268, 17
  %v1308 = vpop.permute.xlu0 %1307
  %1309 = vrot.lane.b32.xlu0 %v1269, 17
  %v1310 = vpop.permute.xlu0 %1309
  %1311 = vrot.lane.b32.xlu0 %v1270, 17
  %v1312 = vpop.permute.xlu0 %1311
  %1313 = vrot.lane.b32.xlu0 %v1271, 17
  %v1314 = vpop.permute.xlu0 %1313
  %1315 = vrot.lane.b32.xlu0 %v1272, 17
  %v1316 = vpop.permute.xlu0 %1315
  %1317 = vrot.lane.b32.xlu0 %v1273, 17
  %v1318 = vpop.permute.xlu0 %1317
  %1319 = vrot.lane.b32.xlu0 %v1274, 17
  %v1320 = vpop.permute.xlu0 %1319
  %1321 = vrot.lane.b32.xlu0 %v1275, 17
  %v1322 = vpop.permute.xlu0 %1321
  %1323 = vrot.lane.b32.xlu0 %v1276, 17
  %v1324 = vpop.permute.xlu0 %1323
  %v1341 = vadd.f32 %v1197, %v1294
  %v1342 = vadd.f32 %v1198, %v1296
  %v1343 = vadd.f32 %v1199, %v1298
  %v1344 = vadd.f32 %v1200, %v1300
  %v1345 = vadd.f32 %v1201, %v1302
  %v1346 = vadd.f32 %v1202, %v1304
  %v1347 = vadd.f32 %v1203, %v1306
  %v1348 = vadd.f32 %v1204, %v1308
  %v1349 = vadd.f32 %v1205, %v1310
  %v1350 = vadd.f32 %v1206, %v1312
  %v1351 = vadd.f32 %v1207, %v1314
  %v1352 = vadd.f32 %v1208, %v1316
  %v1353 = vadd.f32 %v1209, %v1318
  %v1354 = vadd.f32 %v1210, %v1320
  %v1355 = vadd.f32 %v1211, %v1322
  %v1356 = vadd.f32 %v1212, %v1324
  %1373 = vrot.lane.b32.xlu0 %v812, 120
  %v1374 = vpop.permute.xlu0 %1373
  %1375 = vrot.lane.b32.xlu0 %v813, 120
  %v1376 = vpop.permute.xlu0 %1375
  %1377 = vrot.lane.b32.xlu0 %v814, 120
  %v1378 = vpop.permute.xlu0 %1377
  %1379 = vrot.lane.b32.xlu0 %v815, 120
  %v1380 = vpop.permute.xlu0 %1379
  %1381 = vrot.lane.b32.xlu0 %v816, 120
  %v1382 = vpop.permute.xlu0 %1381
  %1383 = vrot.lane.b32.xlu0 %v817, 120
  %v1384 = vpop.permute.xlu0 %1383
  %1385 = vrot.lane.b32.xlu0 %v818, 120
  %v1386 = vpop.permute.xlu0 %1385
  %1387 = vrot.lane.b32.xlu0 %v819, 120
  %v1388 = vpop.permute.xlu0 %1387
  %1389 = vrot.lane.b32.xlu0 %v820, 120
  %v1390 = vpop.permute.xlu0 %1389
  %1391 = vrot.lane.b32.xlu0 %v821, 120
  %v1392 = vpop.permute.xlu0 %1391
  %1393 = vrot.lane.b32.xlu0 %v822, 120
  %v1394 = vpop.permute.xlu0 %1393
  %1395 = vrot.lane.b32.xlu0 %v823, 120
  %v1396 = vpop.permute.xlu0 %1395
  %1397 = vrot.lane.b32.xlu0 %v824, 120
  %v1398 = vpop.permute.xlu0 %1397
  %1399 = vrot.lane.b32.xlu0 %v825, 120
  %v1400 = vpop.permute.xlu0 %1399
  %1401 = vrot.lane.b32.xlu0 %v826, 120
  %v1402 = vpop.permute.xlu0 %1401
  %1403 = vrot.lane.b32.xlu0 %v827, 120
  %v1404 = vpop.permute.xlu0 %1403
  %1421 = vrot.lane.b32.xlu0 %v812, 112
  %v1422 = vpop.permute.xlu0 %1421
  %1423 = vrot.lane.b32.xlu0 %v813, 112
  %v1424 = vpop.permute.xlu0 %1423
  %1425 = vrot.lane.b32.xlu0 %v814, 112
  %v1426 = vpop.permute.xlu0 %1425
  %1427 = vrot.lane.b32.xlu0 %v815, 112
  %v1428 = vpop.permute.xlu0 %1427
  %1429 = vrot.lane.b32.xlu0 %v816, 112
  %v1430 = vpop.permute.xlu0 %1429
  %1431 = vrot.lane.b32.xlu0 %v817, 112
  %v1432 = vpop.permute.xlu0 %1431
  %1433 = vrot.lane.b32.xlu0 %v818, 112
  %v1434 = vpop.permute.xlu0 %1433
  %1435 = vrot.lane.b32.xlu0 %v819, 112
  %v1436 = vpop.permute.xlu0 %1435
  %1437 = vrot.lane.b32.xlu0 %v820, 112
  %v1438 = vpop.permute.xlu0 %1437
  %1439 = vrot.lane.b32.xlu0 %v821, 112
  %v1440 = vpop.permute.xlu0 %1439
  %1441 = vrot.lane.b32.xlu0 %v822, 112
  %v1442 = vpop.permute.xlu0 %1441
  %1443 = vrot.lane.b32.xlu0 %v823, 112
  %v1444 = vpop.permute.xlu0 %1443
  %1445 = vrot.lane.b32.xlu0 %v824, 112
  %v1446 = vpop.permute.xlu0 %1445
  %1447 = vrot.lane.b32.xlu0 %v825, 112
  %v1448 = vpop.permute.xlu0 %1447
  %1449 = vrot.lane.b32.xlu0 %v826, 112
  %v1450 = vpop.permute.xlu0 %1449
  %1451 = vrot.lane.b32.xlu0 %v827, 112
  %v1452 = vpop.permute.xlu0 %1451
  %1469 = vrot.lane.b32.xlu0 %v812, 104
  %v1470 = vpop.permute.xlu0 %1469
  %1471 = vrot.lane.b32.xlu0 %v813, 104
  %v1472 = vpop.permute.xlu0 %1471
  %1473 = vrot.lane.b32.xlu0 %v814, 104
  %v1474 = vpop.permute.xlu0 %1473
  %1475 = vrot.lane.b32.xlu0 %v815, 104
  %v1476 = vpop.permute.xlu0 %1475
  %1477 = vrot.lane.b32.xlu0 %v816, 104
  %v1478 = vpop.permute.xlu0 %1477
  %1479 = vrot.lane.b32.xlu0 %v817, 104
  %v1480 = vpop.permute.xlu0 %1479
  %1481 = vrot.lane.b32.xlu0 %v818, 104
  %v1482 = vpop.permute.xlu0 %1481
  %1483 = vrot.lane.b32.xlu0 %v819, 104
  %v1484 = vpop.permute.xlu0 %1483
  %1485 = vrot.lane.b32.xlu0 %v820, 104
  %v1486 = vpop.permute.xlu0 %1485
  %1487 = vrot.lane.b32.xlu0 %v821, 104
  %v1488 = vpop.permute.xlu0 %1487
  %1489 = vrot.lane.b32.xlu0 %v822, 104
  %v1490 = vpop.permute.xlu0 %1489
  %1491 = vrot.lane.b32.xlu0 %v823, 104
  %v1492 = vpop.permute.xlu0 %1491
  %1493 = vrot.lane.b32.xlu0 %v824, 104
  %v1494 = vpop.permute.xlu0 %1493
  %1495 = vrot.lane.b32.xlu0 %v825, 104
  %v1496 = vpop.permute.xlu0 %1495
  %1497 = vrot.lane.b32.xlu0 %v826, 104
  %v1498 = vpop.permute.xlu0 %1497
  %1499 = vrot.lane.b32.xlu0 %v827, 104
  %v1500 = vpop.permute.xlu0 %1499
  %v1517 = vpack.c.bf16 %v813, %v812
  %v1518 = vpack.c.bf16 %v815, %v814
  %v1519 = vpack.c.bf16 %v817, %v816
  %v1520 = vpack.c.bf16 %v819, %v818
  %v1521 = vpack.c.bf16 %v821, %v820
  %v1522 = vpack.c.bf16 %v823, %v822
  %v1523 = vpack.c.bf16 %v825, %v824
  %v1524 = vpack.c.bf16 %v827, %v826
  %v1525 = vpack.c.bf16 %v1376, %v1374
  %v1526 = vpack.c.bf16 %v1380, %v1378
  %v1527 = vpack.c.bf16 %v1384, %v1382
  %v1528 = vpack.c.bf16 %v1388, %v1386
  %v1529 = vpack.c.bf16 %v1392, %v1390
  %v1530 = vpack.c.bf16 %v1396, %v1394
  %v1531 = vpack.c.bf16 %v1400, %v1398
  %v1532 = vpack.c.bf16 %v1404, %v1402
  %v1533 = vpack.c.bf16 %v1424, %v1422
  %v1534 = vpack.c.bf16 %v1428, %v1426
  %v1535 = vpack.c.bf16 %v1432, %v1430
  %v1536 = vpack.c.bf16 %v1436, %v1434
  %v1537 = vpack.c.bf16 %v1440, %v1438
  %v1538 = vpack.c.bf16 %v1444, %v1442
  %v1539 = vpack.c.bf16 %v1448, %v1446
  %v1540 = vpack.c.bf16 %v1452, %v1450
  %v1541 = vpack.c.bf16 %v1472, %v1470
  %v1542 = vpack.c.bf16 %v1476, %v1474
  %v1543 = vpack.c.bf16 %v1480, %v1478
  %v1544 = vpack.c.bf16 %v1484, %v1482
  %v1545 = vpack.c.bf16 %v1488, %v1486
  %v1546 = vpack.c.bf16 %v1492, %v1490
  %v1547 = vpack.c.bf16 %v1496, %v1494
  %v1548 = vpack.c.bf16 %v1500, %v1498
  %1565 = vrot.lane.b32.xlu0 %v1341, 120
  %v1566 = vpop.permute.xlu0 %1565
  %1567 = vrot.lane.b32.xlu0 %v1342, 120
  %v1568 = vpop.permute.xlu0 %1567
  %1569 = vrot.lane.b32.xlu0 %v1343, 120
  %v1570 = vpop.permute.xlu0 %1569
  %1571 = vrot.lane.b32.xlu0 %v1344, 120
  %v1572 = vpop.permute.xlu0 %1571
  %1573 = vrot.lane.b32.xlu0 %v1345, 120
  %v1574 = vpop.permute.xlu0 %1573
  %1575 = vrot.lane.b32.xlu0 %v1346, 120
  %v1576 = vpop.permute.xlu0 %1575
  %1577 = vrot.lane.b32.xlu0 %v1347, 120
  %v1578 = vpop.permute.xlu0 %1577
  %1579 = vrot.lane.b32.xlu0 %v1348, 120
  %v1580 = vpop.permute.xlu0 %1579
  %1581 = vrot.lane.b32.xlu0 %v1349, 120
  %v1582 = vpop.permute.xlu0 %1581
  %1583 = vrot.lane.b32.xlu0 %v1350, 120
  %v1584 = vpop.permute.xlu0 %1583
  %1585 = vrot.lane.b32.xlu0 %v1351, 120
  %v1586 = vpop.permute.xlu0 %1585
  %1587 = vrot.lane.b32.xlu0 %v1352, 120
  %v1588 = vpop.permute.xlu0 %1587
  %1589 = vrot.lane.b32.xlu0 %v1353, 120
  %v1590 = vpop.permute.xlu0 %1589
  %1591 = vrot.lane.b32.xlu0 %v1354, 120
  %v1592 = vpop.permute.xlu0 %1591
  %1593 = vrot.lane.b32.xlu0 %v1355, 120
  %v1594 = vpop.permute.xlu0 %1593
  %1595 = vrot.lane.b32.xlu0 %v1356, 120
  %v1596 = vpop.permute.xlu0 %1595
  %v1613 = vpack.c.bf16 %v1342, %v1341
  %v1614 = vpack.c.bf16 %v1344, %v1343
  %v1615 = vpack.c.bf16 %v1346, %v1345
  %v1616 = vpack.c.bf16 %v1348, %v1347
  %v1617 = vpack.c.bf16 %v1350, %v1349
  %v1618 = vpack.c.bf16 %v1352, %v1351
  %v1619 = vpack.c.bf16 %v1354, %v1353
  %v1620 = vpack.c.bf16 %v1356, %v1355
  %v1621 = vpack.c.bf16 %v1568, %v1566
  %v1622 = vpack.c.bf16 %v1572, %v1570
  %v1623 = vpack.c.bf16 %v1576, %v1574
  %v1624 = vpack.c.bf16 %v1580, %v1578
  %v1625 = vpack.c.bf16 %v1584, %v1582
  %v1626 = vpack.c.bf16 %v1588, %v1586
  %v1627 = vpack.c.bf16 %v1592, %v1590
  %v1628 = vpack.c.bf16 %v1596, %v1594
  %1629 = vrot.lane.b32.xlu0 %v349, 120
  %v1630 = vpop.permute.xlu0 %1629
  %1631 = vrot.lane.b32.xlu0 %v352, 120
  %v1632 = vpop.permute.xlu0 %1631
  %1633 = vrot.lane.b32.xlu0 %v357, 120
  %v1634 = vpop.permute.xlu0 %1633
  %1635 = vrot.lane.b32.xlu0 %v360, 120
  %v1636 = vpop.permute.xlu0 %1635
  %1637 = vrot.lane.b32.xlu0 %v365, 120
  %v1638 = vpop.permute.xlu0 %1637
  %1639 = vrot.lane.b32.xlu0 %v368, 120
  %v1640 = vpop.permute.xlu0 %1639
  %1641 = vrot.lane.b32.xlu0 %v373, 120
  %v1642 = vpop.permute.xlu0 %1641
  %1643 = vrot.lane.b32.xlu0 %v376, 120
  %v1644 = vpop.permute.xlu0 %1643
  %1645 = vrot.lane.b32.xlu0 %v381, 120
  %v1646 = vpop.permute.xlu0 %1645
  %1647 = vrot.lane.b32.xlu0 %v384, 120
  %v1648 = vpop.permute.xlu0 %1647
  %1649 = vrot.lane.b32.xlu0 %v389, 120
  %v1650 = vpop.permute.xlu0 %1649
  %1651 = vrot.lane.b32.xlu0 %v392, 120
  %v1652 = vpop.permute.xlu0 %1651
  %1653 = vrot.lane.b32.xlu0 %v397, 120
  %v1654 = vpop.permute.xlu0 %1653
  %1655 = vrot.lane.b32.xlu0 %v400, 120
  %v1656 = vpop.permute.xlu0 %1655
  %1657 = vrot.lane.b32.xlu0 %v405, 120
  %v1658 = vpop.permute.xlu0 %1657
  %1659 = vrot.lane.b32.xlu0 %v408, 120
  %v1660 = vpop.permute.xlu0 %1659
  %v1677 = vpack.c.bf16 %v352, %v349
  %v1678 = vpack.c.bf16 %v360, %v357
  %v1679 = vpack.c.bf16 %v368, %v365
  %v1680 = vpack.c.bf16 %v376, %v373
  %v1681 = vpack.c.bf16 %v384, %v381
  %v1682 = vpack.c.bf16 %v392, %v389
  %v1683 = vpack.c.bf16 %v400, %v397
  %v1684 = vpack.c.bf16 %v408, %v405
  %v1685 = vpack.c.bf16 %v1632, %v1630
  %v1686 = vpack.c.bf16 %v1636, %v1634
  %v1687 = vpack.c.bf16 %v1640, %v1638
  %v1688 = vpack.c.bf16 %v1644, %v1642
  %v1689 = vpack.c.bf16 %v1648, %v1646
  %v1690 = vpack.c.bf16 %v1652, %v1650
  %v1691 = vpack.c.bf16 %v1656, %v1654
  %v1692 = vpack.c.bf16 %v1660, %v1658
  %1701 = vrot.lane.b32.xlu0 %v1613, 96
  %v1702 = vpop.permute.xlu0 %1701
  %1703 = vrot.lane.b32.xlu0 %v1614, 96
  %v1704 = vpop.permute.xlu0 %1703
  %1705 = vrot.lane.b32.xlu0 %v1615, 96
  %v1706 = vpop.permute.xlu0 %1705
  %1707 = vrot.lane.b32.xlu0 %v1616, 96
  %v1708 = vpop.permute.xlu0 %1707
  %1709 = vrot.lane.b32.xlu0 %v1617, 96
  %v1710 = vpop.permute.xlu0 %1709
  %1711 = vrot.lane.b32.xlu0 %v1618, 96
  %v1712 = vpop.permute.xlu0 %1711
  %1713 = vrot.lane.b32.xlu0 %v1619, 96
  %v1714 = vpop.permute.xlu0 %1713
  %1715 = vrot.lane.b32.xlu0 %v1620, 96
  %v1716 = vpop.permute.xlu0 %1715
  %vm1717 = vcmask 64512
  %v1719 = vsel %vm1717, %v1517, 0
  %v1722 = vsel %vm1717, %v1518, 0
  %v1725 = vsel %vm1717, %v1519, 0
  %v1728 = vsel %vm1717, %v1520, 0
  %v1731 = vsel %vm1717, %v1521, 0
  %v1734 = vsel %vm1717, %v1522, 0
  %v1737 = vsel %vm1717, %v1523, 0
  %v1740 = vsel %vm1717, %v1524, 0
  %v1743 = vsel %vm1717, %v1702, 0
  %v1746 = vsel %vm1717, %v1704, 0
  %v1749 = vsel %vm1717, %v1706, 0
  %v1752 = vsel %vm1717, %v1708, 0
  %v1755 = vsel %vm1717, %v1710, 0
  %v1758 = vsel %vm1717, %v1712, 0
  %v1761 = vsel %vm1717, %v1714, 0
  %v1764 = vsel %vm1717, %v1716, 0
  %1766 = vmatprep.subr.bf16.mxu0 0
  %1767 = vmatpush1.bf16.xpose.msra.mxu0 %v1743
  %1768 = vmatprep.subr.bf16.mxu0 0
  %1769 = vmatpush1.bf16.xpose.msra.mxu0 %v1746
  %1770 = vmatprep.subr.bf16.mxu0 0
  %1771 = vmatpush1.bf16.xpose.msra.mxu0 %v1749
  %1772 = vmatprep.subr.bf16.mxu0 0
  %1773 = vmatpush1.bf16.xpose.msra.mxu0 %v1752
  %1774 = vmatprep.subr.bf16.mxu0 0
  %1775 = vmatpush1.bf16.xpose.msra.mxu0 %v1755
  %1776 = vmatprep.subr.bf16.mxu0 0
  %1777 = vmatpush1.bf16.xpose.msra.mxu0 %v1758
  %1778 = vmatprep.subr.bf16.mxu0 0
  %1779 = vmatpush1.bf16.xpose.msra.mxu0 %v1761
  %1780 = vmatprep.subr.bf16.mxu0 0
  %1781 = vmatpush1.bf16.xpose.msra.mxu0 %v1764
  %1782 = vmatprep.subr.bf16.mxu0 0
  %1783 = vmatpush1.bf16.xpose.msra.mxu0 0
  %1784 = vmatprep.subr.bf16.mxu0 0
  %1785 = vmatpush1.bf16.xpose.msra.mxu0 0
  %1786 = vmatprep.subr.bf16.mxu0 0
  %1787 = vmatpush1.bf16.xpose.msra.mxu0 0
  %1788 = vmatprep.subr.bf16.mxu0 0
  %1789 = vmatpush1.bf16.xpose.msra.mxu0 0
  %1790 = vmatprep.subr.bf16.mxu0 0
  %1791 = vmatpush1.bf16.xpose.msra.mxu0 0
  %1792 = vmatprep.subr.bf16.mxu0 0
  %1793 = vmatpush1.bf16.xpose.msra.mxu0 0
  %1794 = vmatprep.subr.bf16.mxu0 0
  %1795 = vmatpush1.bf16.xpose.msra.mxu0 0
  %1796 = vmatprep.subr.bf16.mxu0 0
  %1797 = vmatpush1.bf16.xpose.msra.mxu0 0
  %1798 = vmatprep.mubr.bf16.mxu0 0
  %1799 = vmatmul.mubr.bf16.gmra.mrb[0].mxu0 %v1719
  %v1800 = vpop.f32.mrb[0].mxu0
  %v1801 = vadd.f32 %v58, %v1800
  %v1802 = vpop.f32.mrb[0].mxu0
  %v1803 = vpop.f32.mrb[0].mxu0
  %v1804 = vadd.f32 %v59, %v1803
  %v1805 = vpop.f32.mrb[0].mxu0
  %1806 = vmatprep.mubr.bf16.mxu0 0
  %1807 = vmatmul.mubr.bf16.gmra.mrb[0].mxu0 %v1722
  %v1808 = vpop.f32.mrb[0].mxu0
  %v1809 = vadd.f32 %v60, %v1808
  %v1810 = vpop.f32.mrb[0].mxu0
  %v1811 = vpop.f32.mrb[0].mxu0
  %v1812 = vadd.f32 %v61, %v1811
  %v1813 = vpop.f32.mrb[0].mxu0
  %1814 = vmatprep.mubr.bf16.mxu0 0
  %1815 = vmatmul.mubr.bf16.gmra.mrb[0].mxu0 %v1725
  %v1816 = vpop.f32.mrb[0].mxu0
  %v1817 = vadd.f32 %v62, %v1816
  %v1818 = vpop.f32.mrb[0].mxu0
  %v1819 = vpop.f32.mrb[0].mxu0
  %v1820 = vadd.f32 %v63, %v1819
  %v1821 = vpop.f32.mrb[0].mxu0
  %1822 = vmatprep.mubr.bf16.mxu0 0
  %1823 = vmatmul.mubr.bf16.gmra.mrb[0].mxu0 %v1728
  %v1824 = vpop.f32.mrb[0].mxu0
  %v1825 = vadd.f32 %v64, %v1824
  %v1826 = vpop.f32.mrb[0].mxu0
  %v1827 = vpop.f32.mrb[0].mxu0
  %v1828 = vadd.f32 %v65, %v1827
  %v1829 = vpop.f32.mrb[0].mxu0
  %1830 = vmatprep.mubr.bf16.mxu0 0
  %1831 = vmatmul.mubr.bf16.gmra.mrb[0].mxu0 %v1731
  %v1832 = vpop.f32.mrb[0].mxu0
  %v1833 = vadd.f32 %v66, %v1832
  %v1834 = vpop.f32.mrb[0].mxu0
  %v1835 = vpop.f32.mrb[0].mxu0
  %v1836 = vadd.f32 %v67, %v1835
  %v1837 = vpop.f32.mrb[0].mxu0
  %1838 = vmatprep.mubr.bf16.mxu0 0
  %1839 = vmatmul.mubr.bf16.gmra.mrb[0].mxu0 %v1734
  %v1840 = vpop.f32.mrb[0].mxu0
  %v1841 = vadd.f32 %v68, %v1840
  %v1842 = vpop.f32.mrb[0].mxu0
  %v1843 = vpop.f32.mrb[0].mxu0
  %v1844 = vadd.f32 %v69, %v1843
  %v1845 = vpop.f32.mrb[0].mxu0
  %1846 = vmatprep.mubr.bf16.mxu0 0
  %1847 = vmatmul.mubr.bf16.gmra.mrb[0].mxu0 %v1737
  %v1848 = vpop.f32.mrb[0].mxu0
  %v1849 = vadd.f32 %v70, %v1848
  %v1850 = vpop.f32.mrb[0].mxu0
  %v1851 = vpop.f32.mrb[0].mxu0
  %v1852 = vadd.f32 %v71, %v1851
  %v1853 = vpop.f32.mrb[0].mxu0
  %1854 = vmatprep.mubr.bf16.mxu0 0
  %1855 = vmatmul.mubr.bf16.gmra.mrb[0].mxu0 %v1740
  %v1856 = vpop.f32.mrb[0].mxu0
  %v1857 = vadd.f32 %v72, %v1856
  %v1858 = vpop.f32.mrb[0].mxu0
  %v1859 = vpop.f32.mrb[0].mxu0
  %v1860 = vadd.f32 %v73, %v1859
  %v1861 = vpop.f32.mrb[0].mxu0
  %1862 = vdwg.mxu0
  %v1864 = vsel %vm1717, %v1525, 0
  %v1867 = vsel %vm1717, %v1526, 0
  %v1870 = vsel %vm1717, %v1527, 0
  %v1873 = vsel %vm1717, %v1528, 0
  %v1876 = vsel %vm1717, %v1529, 0
  %v1879 = vsel %vm1717, %v1530, 0
  %v1882 = vsel %vm1717, %v1531, 0
  %v1885 = vsel %vm1717, %v1532, 0
  %1887 = vmatprep.subr.bf16.mxu0 0
  %1888 = vmatpush1.bf16.xpose.msra.mxu0 %v1743
  %1889 = vmatprep.subr.bf16.mxu0 0
  %1890 = vmatpush1.bf16.xpose.msra.mxu0 %v1746
  %1891 = vmatprep.subr.bf16.mxu0 0
  %1892 = vmatpush1.bf16.xpose.msra.mxu0 %v1749
  %1893 = vmatprep.subr.bf16.mxu0 0
  %1894 = vmatpush1.bf16.xpose.msra.mxu0 %v1752
  %1895 = vmatprep.subr.bf16.mxu0 0
  %1896 = vmatpush1.bf16.xpose.msra.mxu0 %v1755
  %1897 = vmatprep.subr.bf16.mxu0 0
  %1898 = vmatpush1.bf16.xpose.msra.mxu0 %v1758
  %1899 = vmatprep.subr.bf16.mxu0 0
  %1900 = vmatpush1.bf16.xpose.msra.mxu0 %v1761
  %1901 = vmatprep.subr.bf16.mxu0 0
  %1902 = vmatpush1.bf16.xpose.msra.mxu0 %v1764
  %1903 = vmatprep.subr.bf16.mxu0 0
  %1904 = vmatpush1.bf16.xpose.msra.mxu0 0
  %1905 = vmatprep.subr.bf16.mxu0 0
  %1906 = vmatpush1.bf16.xpose.msra.mxu0 0
  %1907 = vmatprep.subr.bf16.mxu0 0
  %1908 = vmatpush1.bf16.xpose.msra.mxu0 0
  %1909 = vmatprep.subr.bf16.mxu0 0
  %1910 = vmatpush1.bf16.xpose.msra.mxu0 0
  %1911 = vmatprep.subr.bf16.mxu0 0
  %1912 = vmatpush1.bf16.xpose.msra.mxu0 0
  %1913 = vmatprep.subr.bf16.mxu0 0
  %1914 = vmatpush1.bf16.xpose.msra.mxu0 0
  %1915 = vmatprep.subr.bf16.mxu0 0
  %1916 = vmatpush1.bf16.xpose.msra.mxu0 0
  %1917 = vmatprep.subr.bf16.mxu0 0
  %1918 = vmatpush1.bf16.xpose.msra.mxu0 0
  %1919 = vmatprep.mubr.bf16.mxu0 0
  %1920 = vmatmul.mubr.bf16.gmra.mrb[0].mxu0 %v1864
  %v1921 = vpop.f32.mrb[0].mxu0
  %v1922 = vadd.f32 %v58, %v1921
  %v1923 = vpop.f32.mrb[0].mxu0
  %v1924 = vpop.f32.mrb[0].mxu0
  %v1925 = vadd.f32 %v59, %v1924
  %v1926 = vpop.f32.mrb[0].mxu0
  %1927 = vmatprep.mubr.bf16.mxu0 0
  %1928 = vmatmul.mubr.bf16.gmra.mrb[0].mxu0 %v1867
  %v1929 = vpop.f32.mrb[0].mxu0
  %v1930 = vadd.f32 %v60, %v1929
  %v1931 = vpop.f32.mrb[0].mxu0
  %v1932 = vpop.f32.mrb[0].mxu0
  %v1933 = vadd.f32 %v61, %v1932
  %v1934 = vpop.f32.mrb[0].mxu0
  %1935 = vmatprep.mubr.bf16.mxu0 0
  %1936 = vmatmul.mubr.bf16.gmra.mrb[0].mxu0 %v1870
  %v1937 = vpop.f32.mrb[0].mxu0
  %v1938 = vadd.f32 %v62, %v1937
  %v1939 = vpop.f32.mrb[0].mxu0
  %v1940 = vpop.f32.mrb[0].mxu0
  %v1941 = vadd.f32 %v63, %v1940
  %v1942 = vpop.f32.mrb[0].mxu0
  %1943 = vmatprep.mubr.bf16.mxu0 0
  %1944 = vmatmul.mubr.bf16.gmra.mrb[0].mxu0 %v1873
  %v1945 = vpop.f32.mrb[0].mxu0
  %v1946 = vadd.f32 %v64, %v1945
  %v1947 = vpop.f32.mrb[0].mxu0
  %v1948 = vpop.f32.mrb[0].mxu0
  %v1949 = vadd.f32 %v65, %v1948
  %v1950 = vpop.f32.mrb[0].mxu0
  %1951 = vmatprep.mubr.bf16.mxu0 0
  %1952 = vmatmul.mubr.bf16.gmra.mrb[0].mxu0 %v1876
  %v1953 = vpop.f32.mrb[0].mxu0
  %v1954 = vadd.f32 %v66, %v1953
  %v1955 = vpop.f32.mrb[0].mxu0
  %v1956 = vpop.f32.mrb[0].mxu0
  %v1957 = vadd.f32 %v67, %v1956
  %v1958 = vpop.f32.mrb[0].mxu0
  %1959 = vmatprep.mubr.bf16.mxu0 0
  %1960 = vmatmul.mubr.bf16.gmra.mrb[0].mxu0 %v1879
  %v1961 = vpop.f32.mrb[0].mxu0
  %v1962 = vadd.f32 %v68, %v1961
  %v1963 = vpop.f32.mrb[0].mxu0
  %v1964 = vpop.f32.mrb[0].mxu0
  %v1965 = vadd.f32 %v69, %v1964
  %v1966 = vpop.f32.mrb[0].mxu0
  %1967 = vmatprep.mubr.bf16.mxu0 0
  %1968 = vmatmul.mubr.bf16.gmra.mrb[0].mxu0 %v1882
  %v1969 = vpop.f32.mrb[0].mxu0
  %v1970 = vadd.f32 %v70, %v1969
  %v1971 = vpop.f32.mrb[0].mxu0
  %v1972 = vpop.f32.mrb[0].mxu0
  %v1973 = vadd.f32 %v71, %v1972
  %v1974 = vpop.f32.mrb[0].mxu0
  %1975 = vmatprep.mubr.bf16.mxu0 0
  %1976 = vmatmul.mubr.bf16.gmra.mrb[0].mxu0 %v1885
  %v1977 = vpop.f32.mrb[0].mxu0
  %v1978 = vadd.f32 %v72, %v1977
  %v1979 = vpop.f32.mrb[0].mxu0
  %v1980 = vpop.f32.mrb[0].mxu0
  %v1981 = vadd.f32 %v73, %v1980
  %v1982 = vpop.f32.mrb[0].mxu0
  %1983 = vdwg.mxu0
  %1992 = vrot.lane.b32.xlu0 %v1621, 96
  %v1993 = vpop.permute.xlu0 %1992
  %1994 = vrot.lane.b32.xlu0 %v1622, 96
  %v1995 = vpop.permute.xlu0 %1994
  %1996 = vrot.lane.b32.xlu0 %v1623, 96
  %v1997 = vpop.permute.xlu0 %1996
  %1998 = vrot.lane.b32.xlu0 %v1624, 96
  %v1999 = vpop.permute.xlu0 %1998
  %2000 = vrot.lane.b32.xlu0 %v1625, 96
  %v2001 = vpop.permute.xlu0 %2000
  %2002 = vrot.lane.b32.xlu0 %v1626, 96
  %v2003 = vpop.permute.xlu0 %2002
  %2004 = vrot.lane.b32.xlu0 %v1627, 96
  %v2005 = vpop.permute.xlu0 %2004
  %2006 = vrot.lane.b32.xlu0 %v1628, 96
  %v2007 = vpop.permute.xlu0 %2006
  %v2009 = vsel %vm1717, %v1533, 0
  %v2012 = vsel %vm1717, %v1534, 0
  %v2015 = vsel %vm1717, %v1535, 0
  %v2018 = vsel %vm1717, %v1536, 0
  %v2021 = vsel %vm1717, %v1537, 0
  %v2024 = vsel %vm1717, %v1538, 0
  %v2027 = vsel %vm1717, %v1539, 0
  %v2030 = vsel %vm1717, %v1540, 0
  %v2033 = vsel %vm1717, %v1993, 0
  %v2036 = vsel %vm1717, %v1995, 0
  %v2039 = vsel %vm1717, %v1997, 0
  %v2042 = vsel %vm1717, %v1999, 0
  %v2045 = vsel %vm1717, %v2001, 0
  %v2048 = vsel %vm1717, %v2003, 0
  %v2051 = vsel %vm1717, %v2005, 0
  %v2054 = vsel %vm1717, %v2007, 0
  %2056 = vmatprep.subr.bf16.mxu0 0
  %2057 = vmatpush1.bf16.xpose.msra.mxu0 %v2033
  %2058 = vmatprep.subr.bf16.mxu0 0
  %2059 = vmatpush1.bf16.xpose.msra.mxu0 %v2036
  %2060 = vmatprep.subr.bf16.mxu0 0
  %2061 = vmatpush1.bf16.xpose.msra.mxu0 %v2039
  %2062 = vmatprep.subr.bf16.mxu0 0
  %2063 = vmatpush1.bf16.xpose.msra.mxu0 %v2042
  %2064 = vmatprep.subr.bf16.mxu0 0
  %2065 = vmatpush1.bf16.xpose.msra.mxu0 %v2045
  %2066 = vmatprep.subr.bf16.mxu0 0
  %2067 = vmatpush1.bf16.xpose.msra.mxu0 %v2048
  %2068 = vmatprep.subr.bf16.mxu0 0
  %2069 = vmatpush1.bf16.xpose.msra.mxu0 %v2051
  %2070 = vmatprep.subr.bf16.mxu0 0
  %2071 = vmatpush1.bf16.xpose.msra.mxu0 %v2054
  %2072 = vmatprep.subr.bf16.mxu0 0
  %2073 = vmatpush1.bf16.xpose.msra.mxu0 0
  %2074 = vmatprep.subr.bf16.mxu0 0
  %2075 = vmatpush1.bf16.xpose.msra.mxu0 0
  %2076 = vmatprep.subr.bf16.mxu0 0
  %2077 = vmatpush1.bf16.xpose.msra.mxu0 0
  %2078 = vmatprep.subr.bf16.mxu0 0
  %2079 = vmatpush1.bf16.xpose.msra.mxu0 0
  %2080 = vmatprep.subr.bf16.mxu0 0
  %2081 = vmatpush1.bf16.xpose.msra.mxu0 0
  %2082 = vmatprep.subr.bf16.mxu0 0
  %2083 = vmatpush1.bf16.xpose.msra.mxu0 0
  %2084 = vmatprep.subr.bf16.mxu0 0
  %2085 = vmatpush1.bf16.xpose.msra.mxu0 0
  %2086 = vmatprep.subr.bf16.mxu0 0
  %2087 = vmatpush1.bf16.xpose.msra.mxu0 0
  %2088 = vmatprep.mubr.bf16.mxu0 0
  %2089 = vmatmul.mubr.bf16.gmra.mrb[0].mxu0 %v2009
  %v2090 = vpop.f32.mrb[0].mxu0
  %v2091 = vadd.f32 %v58, %v2090
  %v2092 = vpop.f32.mrb[0].mxu0
  %v2093 = vpop.f32.mrb[0].mxu0
  %v2094 = vadd.f32 %v59, %v2093
  %v2095 = vpop.f32.mrb[0].mxu0
  %2096 = vmatprep.mubr.bf16.mxu0 0
  %2097 = vmatmul.mubr.bf16.gmra.mrb[0].mxu0 %v2012
  %v2098 = vpop.f32.mrb[0].mxu0
  %v2099 = vadd.f32 %v60, %v2098
  %v2100 = vpop.f32.mrb[0].mxu0
  %v2101 = vpop.f32.mrb[0].mxu0
  %v2102 = vadd.f32 %v61, %v2101
  %v2103 = vpop.f32.mrb[0].mxu0
  %2104 = vmatprep.mubr.bf16.mxu0 0
  %2105 = vmatmul.mubr.bf16.gmra.mrb[0].mxu0 %v2015
  %v2106 = vpop.f32.mrb[0].mxu0
  %v2107 = vadd.f32 %v62, %v2106
  %v2108 = vpop.f32.mrb[0].mxu0
  %v2109 = vpop.f32.mrb[0].mxu0
  %v2110 = vadd.f32 %v63, %v2109
  %v2111 = vpop.f32.mrb[0].mxu0
  %2112 = vmatprep.mubr.bf16.mxu0 0
  %2113 = vmatmul.mubr.bf16.gmra.mrb[0].mxu0 %v2018
  %v2114 = vpop.f32.mrb[0].mxu0
  %v2115 = vadd.f32 %v64, %v2114
  %v2116 = vpop.f32.mrb[0].mxu0
  %v2117 = vpop.f32.mrb[0].mxu0
  %v2118 = vadd.f32 %v65, %v2117
  %v2119 = vpop.f32.mrb[0].mxu0
  %2120 = vmatprep.mubr.bf16.mxu0 0
  %2121 = vmatmul.mubr.bf16.gmra.mrb[0].mxu0 %v2021
  %v2122 = vpop.f32.mrb[0].mxu0
  %v2123 = vadd.f32 %v66, %v2122
  %v2124 = vpop.f32.mrb[0].mxu0
  %v2125 = vpop.f32.mrb[0].mxu0
  %v2126 = vadd.f32 %v67, %v2125
  %v2127 = vpop.f32.mrb[0].mxu0
  %2128 = vmatprep.mubr.bf16.mxu0 0
  %2129 = vmatmul.mubr.bf16.gmra.mrb[0].mxu0 %v2024
  %v2130 = vpop.f32.mrb[0].mxu0
  %v2131 = vadd.f32 %v68, %v2130
  %v2132 = vpop.f32.mrb[0].mxu0
  %v2133 = vpop.f32.mrb[0].mxu0
  %v2134 = vadd.f32 %v69, %v2133
  %v2135 = vpop.f32.mrb[0].mxu0
  %2136 = vmatprep.mubr.bf16.mxu0 0
  %2137 = vmatmul.mubr.bf16.gmra.mrb[0].mxu0 %v2027
  %v2138 = vpop.f32.mrb[0].mxu0
  %v2139 = vadd.f32 %v70, %v2138
  %v2140 = vpop.f32.mrb[0].mxu0
  %v2141 = vpop.f32.mrb[0].mxu0
  %v2142 = vadd.f32 %v71, %v2141
  %v2143 = vpop.f32.mrb[0].mxu0
  %2144 = vmatprep.mubr.bf16.mxu0 0
  %2145 = vmatmul.mubr.bf16.gmra.mrb[0].mxu0 %v2030
  %v2146 = vpop.f32.mrb[0].mxu0
  %v2147 = vadd.f32 %v72, %v2146
  %v2148 = vpop.f32.mrb[0].mxu0
  %v2149 = vpop.f32.mrb[0].mxu0
  %v2150 = vadd.f32 %v73, %v2149
  %v2151 = vpop.f32.mrb[0].mxu0
  %2152 = vdwg.mxu0
  %v2154 = vsel %vm1717, %v1541, 0
  %v2157 = vsel %vm1717, %v1542, 0
  %v2160 = vsel %vm1717, %v1543, 0
  %v2163 = vsel %vm1717, %v1544, 0
  %v2166 = vsel %vm1717, %v1545, 0
  %v2169 = vsel %vm1717, %v1546, 0
  %v2172 = vsel %vm1717, %v1547, 0
  %v2175 = vsel %vm1717, %v1548, 0
  %2177 = vmatprep.subr.bf16.mxu0 0
  %2178 = vmatpush1.bf16.xpose.msra.mxu0 %v2033
  %2179 = vmatprep.subr.bf16.mxu0 0
  %2180 = vmatpush1.bf16.xpose.msra.mxu0 %v2036
  %2181 = vmatprep.subr.bf16.mxu0 0
  %2182 = vmatpush1.bf16.xpose.msra.mxu0 %v2039
  %2183 = vmatprep.subr.bf16.mxu0 0
  %2184 = vmatpush1.bf16.xpose.msra.mxu0 %v2042
  %2185 = vmatprep.subr.bf16.mxu0 0
  %2186 = vmatpush1.bf16.xpose.msra.mxu0 %v2045
  %2187 = vmatprep.subr.bf16.mxu0 0
  %2188 = vmatpush1.bf16.xpose.msra.mxu0 %v2048
  %2189 = vmatprep.subr.bf16.mxu0 0
  %2190 = vmatpush1.bf16.xpose.msra.mxu0 %v2051
  %2191 = vmatprep.subr.bf16.mxu0 0
  %2192 = vmatpush1.bf16.xpose.msra.mxu0 %v2054
  %2193 = vmatprep.subr.bf16.mxu0 0
  %2194 = vmatpush1.bf16.xpose.msra.mxu0 0
  %2195 = vmatprep.subr.bf16.mxu0 0
  %2196 = vmatpush1.bf16.xpose.msra.mxu0 0
  %2197 = vmatprep.subr.bf16.mxu0 0
  %2198 = vmatpush1.bf16.xpose.msra.mxu0 0
  %2199 = vmatprep.subr.bf16.mxu0 0
  %2200 = vmatpush1.bf16.xpose.msra.mxu0 0
  %2201 = vmatprep.subr.bf16.mxu0 0
  %2202 = vmatpush1.bf16.xpose.msra.mxu0 0
  %2203 = vmatprep.subr.bf16.mxu0 0
  %2204 = vmatpush1.bf16.xpose.msra.mxu0 0
  %2205 = vmatprep.subr.bf16.mxu0 0
  %2206 = vmatpush1.bf16.xpose.msra.mxu0 0
  %2207 = vmatprep.subr.bf16.mxu0 0
  %2208 = vmatpush1.bf16.xpose.msra.mxu0 0
  %2209 = vmatprep.mubr.bf16.mxu0 0
  %2210 = vmatmul.mubr.bf16.gmra.mrb[0].mxu0 %v2154
  %v2211 = vpop.f32.mrb[0].mxu0
  %v2212 = vadd.f32 %v58, %v2211
  %v2213 = vpop.f32.mrb[0].mxu0
  %v2214 = vpop.f32.mrb[0].mxu0
  %v2215 = vadd.f32 %v59, %v2214
  %v2216 = vpop.f32.mrb[0].mxu0
  %2217 = vmatprep.mubr.bf16.mxu0 0
  %2218 = vmatmul.mubr.bf16.gmra.mrb[0].mxu0 %v2157
  %v2219 = vpop.f32.mrb[0].mxu0
  %v2220 = vadd.f32 %v60, %v2219
  %v2221 = vpop.f32.mrb[0].mxu0
  %v2222 = vpop.f32.mrb[0].mxu0
  %v2223 = vadd.f32 %v61, %v2222
  %v2224 = vpop.f32.mrb[0].mxu0
  %2225 = vmatprep.mubr.bf16.mxu0 0
  %2226 = vmatmul.mubr.bf16.gmra.mrb[0].mxu0 %v2160
  %v2227 = vpop.f32.mrb[0].mxu0
  %v2228 = vadd.f32 %v62, %v2227
  %v2229 = vpop.f32.mrb[0].mxu0
  %v2230 = vpop.f32.mrb[0].mxu0
  %v2231 = vadd.f32 %v63, %v2230
  %v2232 = vpop.f32.mrb[0].mxu0
  %2233 = vmatprep.mubr.bf16.mxu0 0
  %2234 = vmatmul.mubr.bf16.gmra.mrb[0].mxu0 %v2163
  %v2235 = vpop.f32.mrb[0].mxu0
  %v2236 = vadd.f32 %v64, %v2235
  %v2237 = vpop.f32.mrb[0].mxu0
  %v2238 = vpop.f32.mrb[0].mxu0
  %v2239 = vadd.f32 %v65, %v2238
  %v2240 = vpop.f32.mrb[0].mxu0
  %2241 = vmatprep.mubr.bf16.mxu0 0
  %2242 = vmatmul.mubr.bf16.gmra.mrb[0].mxu0 %v2166
  %v2243 = vpop.f32.mrb[0].mxu0
  %v2244 = vadd.f32 %v66, %v2243
  %v2245 = vpop.f32.mrb[0].mxu0
  %v2246 = vpop.f32.mrb[0].mxu0
  %v2247 = vadd.f32 %v67, %v2246
  %v2248 = vpop.f32.mrb[0].mxu0
  %2249 = vmatprep.mubr.bf16.mxu0 0
  %2250 = vmatmul.mubr.bf16.gmra.mrb[0].mxu0 %v2169
  %v2251 = vpop.f32.mrb[0].mxu0
  %v2252 = vadd.f32 %v68, %v2251
  %v2253 = vpop.f32.mrb[0].mxu0
  %v2254 = vpop.f32.mrb[0].mxu0
  %v2255 = vadd.f32 %v69, %v2254
  %v2256 = vpop.f32.mrb[0].mxu0
  %2257 = vmatprep.mubr.bf16.mxu0 0
  %2258 = vmatmul.mubr.bf16.gmra.mrb[0].mxu0 %v2172
  %v2259 = vpop.f32.mrb[0].mxu0
  %v2260 = vadd.f32 %v70, %v2259
  %v2261 = vpop.f32.mrb[0].mxu0
  %v2262 = vpop.f32.mrb[0].mxu0
  %v2263 = vadd.f32 %v71, %v2262
  %v2264 = vpop.f32.mrb[0].mxu0
  %2265 = vmatprep.mubr.bf16.mxu0 0
  %2266 = vmatmul.mubr.bf16.gmra.mrb[0].mxu0 %v2175
  %v2267 = vpop.f32.mrb[0].mxu0
  %v2268 = vadd.f32 %v72, %v2267
  %v2269 = vpop.f32.mrb[0].mxu0
  %v2270 = vpop.f32.mrb[0].mxu0
  %v2271 = vadd.f32 %v73, %v2270
  %v2272 = vpop.f32.mrb[0].mxu0
  %2273 = vdwg.mxu0
  %2274 = vmax.xlane.f32.xlu0 %v1801
  %v2275 = vpop.xlane.xlu0 %2274
  %2276 = vmax.xlane.f32.xlu0 %v1804
  %v2277 = vpop.xlane.xlu0 %2276
  %2278 = vmax.xlane.f32.xlu0 %v1809
  %v2279 = vpop.xlane.xlu0 %2278
  %2280 = vmax.xlane.f32.xlu0 %v1812
  %v2281 = vpop.xlane.xlu0 %2280
  %2282 = vmax.xlane.f32.xlu0 %v1817
  %v2283 = vpop.xlane.xlu0 %2282
  %2284 = vmax.xlane.f32.xlu0 %v1820
  %v2285 = vpop.xlane.xlu0 %2284
  %2286 = vmax.xlane.f32.xlu0 %v1825
  %v2287 = vpop.xlane.xlu0 %2286
  %2288 = vmax.xlane.f32.xlu0 %v1828
  %v2289 = vpop.xlane.xlu0 %2288
  %2290 = vmax.xlane.f32.xlu0 %v1833
  %v2291 = vpop.xlane.xlu0 %2290
  %2292 = vmax.xlane.f32.xlu0 %v1836
  %v2293 = vpop.xlane.xlu0 %2292
  %2294 = vmax.xlane.f32.xlu0 %v1841
  %v2295 = vpop.xlane.xlu0 %2294
  %2296 = vmax.xlane.f32.xlu0 %v1844
  %v2297 = vpop.xlane.xlu0 %2296
  %2298 = vmax.xlane.f32.xlu0 %v1849
  %v2299 = vpop.xlane.xlu0 %2298
  %2300 = vmax.xlane.f32.xlu0 %v1852
  %v2301 = vpop.xlane.xlu0 %2300
  %2302 = vmax.xlane.f32.xlu0 %v1857
  %v2303 = vpop.xlane.xlu0 %2302
  %2304 = vmax.xlane.f32.xlu0 %v1860
  %v2305 = vpop.xlane.xlu0 %2304
  %2306 = vmax.xlane.f32.xlu0 %v1922
  %v2307 = vpop.xlane.xlu0 %2306
  %2308 = vmax.xlane.f32.xlu0 %v1925
  %v2309 = vpop.xlane.xlu0 %2308
  %2310 = vmax.xlane.f32.xlu0 %v1930
  %v2311 = vpop.xlane.xlu0 %2310
  %2312 = vmax.xlane.f32.xlu0 %v1933
  %v2313 = vpop.xlane.xlu0 %2312
  %2314 = vmax.xlane.f32.xlu0 %v1938
  %v2315 = vpop.xlane.xlu0 %2314
  %2316 = vmax.xlane.f32.xlu0 %v1941
  %v2317 = vpop.xlane.xlu0 %2316
  %2318 = vmax.xlane.f32.xlu0 %v1946
  %v2319 = vpop.xlane.xlu0 %2318
  %2320 = vmax.xlane.f32.xlu0 %v1949
  %v2321 = vpop.xlane.xlu0 %2320
  %2322 = vmax.xlane.f32.xlu0 %v1954
  %v2323 = vpop.xlane.xlu0 %2322
  %2324 = vmax.xlane.f32.xlu0 %v1957
  %v2325 = vpop.xlane.xlu0 %2324
  %2326 = vmax.xlane.f32.xlu0 %v1962
  %v2327 = vpop.xlane.xlu0 %2326
  %2328 = vmax.xlane.f32.xlu0 %v1965
  %v2329 = vpop.xlane.xlu0 %2328
  %2330 = vmax.xlane.f32.xlu0 %v1970
  %v2331 = vpop.xlane.xlu0 %2330
  %2332 = vmax.xlane.f32.xlu0 %v1973
  %v2333 = vpop.xlane.xlu0 %2332
  %2334 = vmax.xlane.f32.xlu0 %v1978
  %v2335 = vpop.xlane.xlu0 %2334
  %2336 = vmax.xlane.f32.xlu0 %v1981
  %v2337 = vpop.xlane.xlu0 %2336
  %2338 = vmax.xlane.f32.xlu0 %v2091
  %v2339 = vpop.xlane.xlu0 %2338
  %2340 = vmax.xlane.f32.xlu0 %v2094
  %v2341 = vpop.xlane.xlu0 %2340
  %2342 = vmax.xlane.f32.xlu0 %v2099
  %v2343 = vpop.xlane.xlu0 %2342
  %2344 = vmax.xlane.f32.xlu0 %v2102
  %v2345 = vpop.xlane.xlu0 %2344
  %2346 = vmax.xlane.f32.xlu0 %v2107
  %v2347 = vpop.xlane.xlu0 %2346
  %2348 = vmax.xlane.f32.xlu0 %v2110
  %v2349 = vpop.xlane.xlu0 %2348
  %2350 = vmax.xlane.f32.xlu0 %v2115
  %v2351 = vpop.xlane.xlu0 %2350
  %2352 = vmax.xlane.f32.xlu0 %v2118
  %v2353 = vpop.xlane.xlu0 %2352
  %2354 = vmax.xlane.f32.xlu0 %v2123
  %v2355 = vpop.xlane.xlu0 %2354
  %2356 = vmax.xlane.f32.xlu0 %v2126
  %v2357 = vpop.xlane.xlu0 %2356
  %2358 = vmax.xlane.f32.xlu0 %v2131
  %v2359 = vpop.xlane.xlu0 %2358
  %2360 = vmax.xlane.f32.xlu0 %v2134
  %v2361 = vpop.xlane.xlu0 %2360
  %2362 = vmax.xlane.f32.xlu0 %v2139
  %v2363 = vpop.xlane.xlu0 %2362
  %2364 = vmax.xlane.f32.xlu0 %v2142
  %v2365 = vpop.xlane.xlu0 %2364
  %2366 = vmax.xlane.f32.xlu0 %v2147
  %v2367 = vpop.xlane.xlu0 %2366
  %2368 = vmax.xlane.f32.xlu0 %v2150
  %v2369 = vpop.xlane.xlu0 %2368
  %2370 = vmax.xlane.f32.xlu0 %v2212
  %v2371 = vpop.xlane.xlu0 %2370
  %2372 = vmax.xlane.f32.xlu0 %v2215
  %v2373 = vpop.xlane.xlu0 %2372
  %2374 = vmax.xlane.f32.xlu0 %v2220
  %v2375 = vpop.xlane.xlu0 %2374
  %2376 = vmax.xlane.f32.xlu0 %v2223
  %v2377 = vpop.xlane.xlu0 %2376
  %2378 = vmax.xlane.f32.xlu0 %v2228
  %v2379 = vpop.xlane.xlu0 %2378
  %2380 = vmax.xlane.f32.xlu0 %v2231
  %v2381 = vpop.xlane.xlu0 %2380
  %2382 = vmax.xlane.f32.xlu0 %v2236
  %v2383 = vpop.xlane.xlu0 %2382
  %2384 = vmax.xlane.f32.xlu0 %v2239
  %v2385 = vpop.xlane.xlu0 %2384
  %2386 = vmax.xlane.f32.xlu0 %v2244
  %v2387 = vpop.xlane.xlu0 %2386
  %2388 = vmax.xlane.f32.xlu0 %v2247
  %v2389 = vpop.xlane.xlu0 %2388
  %2390 = vmax.xlane.f32.xlu0 %v2252
  %v2391 = vpop.xlane.xlu0 %2390
  %2392 = vmax.xlane.f32.xlu0 %v2255
  %v2393 = vpop.xlane.xlu0 %2392
  %2394 = vmax.xlane.f32.xlu0 %v2260
  %v2395 = vpop.xlane.xlu0 %2394
  %2396 = vmax.xlane.f32.xlu0 %v2263
  %v2397 = vpop.xlane.xlu0 %2396
  %2398 = vmax.xlane.f32.xlu0 %v2268
  %v2399 = vpop.xlane.xlu0 %2398
  %2400 = vmax.xlane.f32.xlu0 %v2271
  %v2401 = vpop.xlane.xlu0 %2400
  %v2402 = vsub.f32 %v1801, %v2275
  %v2403 = vsub.f32 %v1804, %v2277
  %v2404 = vsub.f32 %v1809, %v2279
  %v2405 = vsub.f32 %v1812, %v2281
  %v2406 = vsub.f32 %v1817, %v2283
  %v2407 = vsub.f32 %v1820, %v2285
  %v2408 = vsub.f32 %v1825, %v2287
  %v2409 = vsub.f32 %v1828, %v2289
  %v2410 = vsub.f32 %v1833, %v2291
  %v2411 = vsub.f32 %v1836, %v2293
  %v2412 = vsub.f32 %v1841, %v2295
  %v2413 = vsub.f32 %v1844, %v2297
  %v2414 = vsub.f32 %v1849, %v2299
  %v2415 = vsub.f32 %v1852, %v2301
  %v2416 = vsub.f32 %v1857, %v2303
  %v2417 = vsub.f32 %v1860, %v2305
  %v2418 = vsub.f32 %v1922, %v2307
  %v2419 = vsub.f32 %v1925, %v2309
  %v2420 = vsub.f32 %v1930, %v2311
  %v2421 = vsub.f32 %v1933, %v2313
  %v2422 = vsub.f32 %v1938, %v2315
  %v2423 = vsub.f32 %v1941, %v2317
  %v2424 = vsub.f32 %v1946, %v2319
  %v2425 = vsub.f32 %v1949, %v2321
  %v2426 = vsub.f32 %v1954, %v2323
  %v2427 = vsub.f32 %v1957, %v2325
  %v2428 = vsub.f32 %v1962, %v2327
  %v2429 = vsub.f32 %v1965, %v2329
  %v2430 = vsub.f32 %v1970, %v2331
  %v2431 = vsub.f32 %v1973, %v2333
  %v2432 = vsub.f32 %v1978, %v2335
  %v2433 = vsub.f32 %v1981, %v2337
  %v2434 = vsub.f32 %v2091, %v2339
  %v2435 = vsub.f32 %v2094, %v2341
  %v2436 = vsub.f32 %v2099, %v2343
  %v2437 = vsub.f32 %v2102, %v2345
  %v2438 = vsub.f32 %v2107, %v2347
  %v2439 = vsub.f32 %v2110, %v2349
  %v2440 = vsub.f32 %v2115, %v2351
  %v2441 = vsub.f32 %v2118, %v2353
  %v2442 = vsub.f32 %v2123, %v2355
  %v2443 = vsub.f32 %v2126, %v2357
  %v2444 = vsub.f32 %v2131, %v2359
  %v2445 = vsub.f32 %v2134, %v2361
  %v2446 = vsub.f32 %v2139, %v2363
  %v2447 = vsub.f32 %v2142, %v2365
  %v2448 = vsub.f32 %v2147, %v2367
  %v2449 = vsub.f32 %v2150, %v2369
  %v2450 = vsub.f32 %v2212, %v2371
  %v2451 = vsub.f32 %v2215, %v2373
  %v2452 = vsub.f32 %v2220, %v2375
  %v2453 = vsub.f32 %v2223, %v2377
  %v2454 = vsub.f32 %v2228, %v2379
  %v2455 = vsub.f32 %v2231, %v2381
  %v2456 = vsub.f32 %v2236, %v2383
  %v2457 = vsub.f32 %v2239, %v2385
  %v2458 = vsub.f32 %v2244, %v2387
  %v2459 = vsub.f32 %v2247, %v2389
  %v2460 = vsub.f32 %v2252, %v2391
  %v2461 = vsub.f32 %v2255, %v2393
  %v2462 = vsub.f32 %v2260, %v2395
  %v2463 = vsub.f32 %v2263, %v2397
  %v2464 = vsub.f32 %v2268, %v2399
  %v2465 = vsub.f32 %v2271, %v2401
  %v2466 = vmul.f32 %v2402, 1.442695
  %v2467 = vpow.pop %v2466
  %v2468 = vmul.f32 %v2403, 1.442695
  %v2469 = vpow.pop %v2468
  %v2470 = vmul.f32 %v2404, 1.442695
  %v2471 = vpow.pop %v2470
  %v2472 = vmul.f32 %v2405, 1.442695
  %v2473 = vpow.pop %v2472
  %v2474 = vmul.f32 %v2406, 1.442695
  %v2475 = vpow.pop %v2474
  %v2476 = vmul.f32 %v2407, 1.442695
  %v2477 = vpow.pop %v2476
  %v2478 = vmul.f32 %v2408, 1.442695
  %v2479 = vpow.pop %v2478
  %v2480 = vmul.f32 %v2409, 1.442695
  %v2481 = vpow.pop %v2480
  %v2482 = vmul.f32 %v2410, 1.442695
  %v2483 = vpow.pop %v2482
  %v2484 = vmul.f32 %v2411, 1.442695
  %v2485 = vpow.pop %v2484
  %v2486 = vmul.f32 %v2412, 1.442695
  %v2487 = vpow.pop %v2486
  %v2488 = vmul.f32 %v2413, 1.442695
  %v2489 = vpow.pop %v2488
  %v2490 = vmul.f32 %v2414, 1.442695
  %v2491 = vpow.pop %v2490
  %v2492 = vmul.f32 %v2415, 1.442695
  %v2493 = vpow.pop %v2492
  %v2494 = vmul.f32 %v2416, 1.442695
  %v2495 = vpow.pop %v2494
  %v2496 = vmul.f32 %v2417, 1.442695
  %v2497 = vpow.pop %v2496
  %v2498 = vmul.f32 %v2418, 1.442695
  %v2499 = vpow.pop %v2498
  %v2500 = vmul.f32 %v2419, 1.442695
  %v2501 = vpow.pop %v2500
  %v2502 = vmul.f32 %v2420, 1.442695
  %v2503 = vpow.pop %v2502
  %v2504 = vmul.f32 %v2421, 1.442695
  %v2505 = vpow.pop %v2504
  %v2506 = vmul.f32 %v2422, 1.442695
  %v2507 = vpow.pop %v2506
  %v2508 = vmul.f32 %v2423, 1.442695
  %v2509 = vpow.pop %v2508
  %v2510 = vmul.f32 %v2424, 1.442695
  %v2511 = vpow.pop %v2510
  %v2512 = vmul.f32 %v2425, 1.442695
  %v2513 = vpow.pop %v2512
  %v2514 = vmul.f32 %v2426, 1.442695
  %v2515 = vpow.pop %v2514
  %v2516 = vmul.f32 %v2427, 1.442695
  %v2517 = vpow.pop %v2516
  %v2518 = vmul.f32 %v2428, 1.442695
  %v2519 = vpow.pop %v2518
  %v2520 = vmul.f32 %v2429, 1.442695
  %v2521 = vpow.pop %v2520
  %v2522 = vmul.f32 %v2430, 1.442695
  %v2523 = vpow.pop %v2522
  %v2524 = vmul.f32 %v2431, 1.442695
  %v2525 = vpow.pop %v2524
  %v2526 = vmul.f32 %v2432, 1.442695
  %v2527 = vpow.pop %v2526
  %v2528 = vmul.f32 %v2433, 1.442695
  %v2529 = vpow.pop %v2528
  %v2530 = vmul.f32 %v2434, 1.442695
  %v2531 = vpow.pop %v2530
  %v2532 = vmul.f32 %v2435, 1.442695
  %v2533 = vpow.pop %v2532
  %v2534 = vmul.f32 %v2436, 1.442695
  %v2535 = vpow.pop %v2534
  %v2536 = vmul.f32 %v2437, 1.442695
  %v2537 = vpow.pop %v2536
  %v2538 = vmul.f32 %v2438, 1.442695
  %v2539 = vpow.pop %v2538
  %v2540 = vmul.f32 %v2439, 1.442695
  %v2541 = vpow.pop %v2540
  %v2542 = vmul.f32 %v2440, 1.442695
  %v2543 = vpow.pop %v2542
  %v2544 = vmul.f32 %v2441, 1.442695
  %v2545 = vpow.pop %v2544
  %v2546 = vmul.f32 %v2442, 1.442695
  %v2547 = vpow.pop %v2546
  %v2548 = vmul.f32 %v2443, 1.442695
  %v2549 = vpow.pop %v2548
  %v2550 = vmul.f32 %v2444, 1.442695
  %v2551 = vpow.pop %v2550
  %v2552 = vmul.f32 %v2445, 1.442695
  %v2553 = vpow.pop %v2552
  %v2554 = vmul.f32 %v2446, 1.442695
  %v2555 = vpow.pop %v2554
  %v2556 = vmul.f32 %v2447, 1.442695
  %v2557 = vpow.pop %v2556
  %v2558 = vmul.f32 %v2448, 1.442695
  %v2559 = vpow.pop %v2558
  %v2560 = vmul.f32 %v2449, 1.442695
  %v2561 = vpow.pop %v2560
  %v2562 = vmul.f32 %v2450, 1.442695
  %v2563 = vpow.pop %v2562
  %v2564 = vmul.f32 %v2451, 1.442695
  %v2565 = vpow.pop %v2564
  %v2566 = vmul.f32 %v2452, 1.442695
  %v2567 = vpow.pop %v2566
  %v2568 = vmul.f32 %v2453, 1.442695
  %v2569 = vpow.pop %v2568
  %v2570 = vmul.f32 %v2454, 1.442695
  %v2571 = vpow.pop %v2570
  %v2572 = vmul.f32 %v2455, 1.442695
  %v2573 = vpow.pop %v2572
  %v2574 = vmul.f32 %v2456, 1.442695
  %v2575 = vpow.pop %v2574
  %v2576 = vmul.f32 %v2457, 1.442695
  %v2577 = vpow.pop %v2576
  %v2578 = vmul.f32 %v2458, 1.442695
  %v2579 = vpow.pop %v2578
  %v2580 = vmul.f32 %v2459, 1.442695
  %v2581 = vpow.pop %v2580
  %v2582 = vmul.f32 %v2460, 1.442695
  %v2583 = vpow.pop %v2582
  %v2584 = vmul.f32 %v2461, 1.442695
  %v2585 = vpow.pop %v2584
  %v2586 = vmul.f32 %v2462, 1.442695
  %v2587 = vpow.pop %v2586
  %v2588 = vmul.f32 %v2463, 1.442695
  %v2589 = vpow.pop %v2588
  %v2590 = vmul.f32 %v2464, 1.442695
  %v2591 = vpow.pop %v2590
  %v2592 = vmul.f32 %v2465, 1.442695
  %v2593 = vpow.pop %v2592
  %2594 = vadd.xlane.f32.xlu0 %v2467
  %v2595 = vpop.xlane.xlu0 %2594
  %2596 = vadd.xlane.f32.xlu0 %v2469
  %v2597 = vpop.xlane.xlu0 %2596
  %2598 = vadd.xlane.f32.xlu0 %v2471
  %v2599 = vpop.xlane.xlu0 %2598
  %2600 = vadd.xlane.f32.xlu0 %v2473
  %v2601 = vpop.xlane.xlu0 %2600
  %2602 = vadd.xlane.f32.xlu0 %v2475
  %v2603 = vpop.xlane.xlu0 %2602
  %2604 = vadd.xlane.f32.xlu0 %v2477
  %v2605 = vpop.xlane.xlu0 %2604
  %2606 = vadd.xlane.f32.xlu0 %v2479
  %v2607 = vpop.xlane.xlu0 %2606
  %2608 = vadd.xlane.f32.xlu0 %v2481
  %v2609 = vpop.xlane.xlu0 %2608
  %2610 = vadd.xlane.f32.xlu0 %v2483
  %v2611 = vpop.xlane.xlu0 %2610
  %2612 = vadd.xlane.f32.xlu0 %v2485
  %v2613 = vpop.xlane.xlu0 %2612
  %2614 = vadd.xlane.f32.xlu0 %v2487
  %v2615 = vpop.xlane.xlu0 %2614
  %2616 = vadd.xlane.f32.xlu0 %v2489
  %v2617 = vpop.xlane.xlu0 %2616
  %2618 = vadd.xlane.f32.xlu0 %v2491
  %v2619 = vpop.xlane.xlu0 %2618
  %2620 = vadd.xlane.f32.xlu0 %v2493
  %v2621 = vpop.xlane.xlu0 %2620
  %2622 = vadd.xlane.f32.xlu0 %v2495
  %v2623 = vpop.xlane.xlu0 %2622
  %2624 = vadd.xlane.f32.xlu0 %v2497
  %v2625 = vpop.xlane.xlu0 %2624
  %2626 = vadd.xlane.f32.xlu0 %v2499
  %v2627 = vpop.xlane.xlu0 %2626
  %2628 = vadd.xlane.f32.xlu0 %v2501
  %v2629 = vpop.xlane.xlu0 %2628
  %2630 = vadd.xlane.f32.xlu0 %v2503
  %v2631 = vpop.xlane.xlu0 %2630
  %2632 = vadd.xlane.f32.xlu0 %v2505
  %v2633 = vpop.xlane.xlu0 %2632
  %2634 = vadd.xlane.f32.xlu0 %v2507
  %v2635 = vpop.xlane.xlu0 %2634
  %2636 = vadd.xlane.f32.xlu0 %v2509
  %v2637 = vpop.xlane.xlu0 %2636
  %2638 = vadd.xlane.f32.xlu0 %v2511
  %v2639 = vpop.xlane.xlu0 %2638
  %2640 = vadd.xlane.f32.xlu0 %v2513
  %v2641 = vpop.xlane.xlu0 %2640
  %2642 = vadd.xlane.f32.xlu0 %v2515
  %v2643 = vpop.xlane.xlu0 %2642
  %2644 = vadd.xlane.f32.xlu0 %v2517
  %v2645 = vpop.xlane.xlu0 %2644
  %2646 = vadd.xlane.f32.xlu0 %v2519
  %v2647 = vpop.xlane.xlu0 %2646
  %2648 = vadd.xlane.f32.xlu0 %v2521
  %v2649 = vpop.xlane.xlu0 %2648
  %2650 = vadd.xlane.f32.xlu0 %v2523
  %v2651 = vpop.xlane.xlu0 %2650
  %2652 = vadd.xlane.f32.xlu0 %v2525
  %v2653 = vpop.xlane.xlu0 %2652
  %2654 = vadd.xlane.f32.xlu0 %v2527
  %v2655 = vpop.xlane.xlu0 %2654
  %2656 = vadd.xlane.f32.xlu0 %v2529
  %v2657 = vpop.xlane.xlu0 %2656
  %2658 = vadd.xlane.f32.xlu0 %v2531
  %v2659 = vpop.xlane.xlu0 %2658
  %2660 = vadd.xlane.f32.xlu0 %v2533
  %v2661 = vpop.xlane.xlu0 %2660
  %2662 = vadd.xlane.f32.xlu0 %v2535
  %v2663 = vpop.xlane.xlu0 %2662
  %2664 = vadd.xlane.f32.xlu0 %v2537
  %v2665 = vpop.xlane.xlu0 %2664
  %2666 = vadd.xlane.f32.xlu0 %v2539
  %v2667 = vpop.xlane.xlu0 %2666
  %2668 = vadd.xlane.f32.xlu0 %v2541
  %v2669 = vpop.xlane.xlu0 %2668
  %2670 = vadd.xlane.f32.xlu0 %v2543
  %v2671 = vpop.xlane.xlu0 %2670
  %2672 = vadd.xlane.f32.xlu0 %v2545
  %v2673 = vpop.xlane.xlu0 %2672
  %2674 = vadd.xlane.f32.xlu0 %v2547
  %v2675 = vpop.xlane.xlu0 %2674
  %2676 = vadd.xlane.f32.xlu0 %v2549
  %v2677 = vpop.xlane.xlu0 %2676
  %2678 = vadd.xlane.f32.xlu0 %v2551
  %v2679 = vpop.xlane.xlu0 %2678
  %2680 = vadd.xlane.f32.xlu0 %v2553
  %v2681 = vpop.xlane.xlu0 %2680
  %2682 = vadd.xlane.f32.xlu0 %v2555
  %v2683 = vpop.xlane.xlu0 %2682
  %2684 = vadd.xlane.f32.xlu0 %v2557
  %v2685 = vpop.xlane.xlu0 %2684
  %2686 = vadd.xlane.f32.xlu0 %v2559
  %v2687 = vpop.xlane.xlu0 %2686
  %2688 = vadd.xlane.f32.xlu0 %v2561
  %v2689 = vpop.xlane.xlu0 %2688
  %2690 = vadd.xlane.f32.xlu0 %v2563
  %v2691 = vpop.xlane.xlu0 %2690
  %2692 = vadd.xlane.f32.xlu0 %v2565
  %v2693 = vpop.xlane.xlu0 %2692
  %2694 = vadd.xlane.f32.xlu0 %v2567
  %v2695 = vpop.xlane.xlu0 %2694
  %2696 = vadd.xlane.f32.xlu0 %v2569
  %v2697 = vpop.xlane.xlu0 %2696
  %2698 = vadd.xlane.f32.xlu0 %v2571
  %v2699 = vpop.xlane.xlu0 %2698
  %2700 = vadd.xlane.f32.xlu0 %v2573
  %v2701 = vpop.xlane.xlu0 %2700
  %2702 = vadd.xlane.f32.xlu0 %v2575
  %v2703 = vpop.xlane.xlu0 %2702
  %2704 = vadd.xlane.f32.xlu0 %v2577
  %v2705 = vpop.xlane.xlu0 %2704
  %2706 = vadd.xlane.f32.xlu0 %v2579
  %v2707 = vpop.xlane.xlu0 %2706
  %2708 = vadd.xlane.f32.xlu0 %v2581
  %v2709 = vpop.xlane.xlu0 %2708
  %2710 = vadd.xlane.f32.xlu0 %v2583
  %v2711 = vpop.xlane.xlu0 %2710
  %2712 = vadd.xlane.f32.xlu0 %v2585
  %v2713 = vpop.xlane.xlu0 %2712
  %2714 = vadd.xlane.f32.xlu0 %v2587
  %v2715 = vpop.xlane.xlu0 %2714
  %2716 = vadd.xlane.f32.xlu0 %v2589
  %v2717 = vpop.xlane.xlu0 %2716
  %2718 = vadd.xlane.f32.xlu0 %v2591
  %v2719 = vpop.xlane.xlu0 %2718
  %2720 = vadd.xlane.f32.xlu0 %v2593
  %v2721 = vpop.xlane.xlu0 %2720
  %v2722 = vrcp.pop %v2595
  %v2723 = vrcp.pop %v2597
  %v2724 = vrcp.pop %v2599
  %v2725 = vrcp.pop %v2601
  %v2726 = vrcp.pop %v2603
  %v2727 = vrcp.pop %v2605
  %v2728 = vrcp.pop %v2607
  %v2729 = vrcp.pop %v2609
  %v2730 = vrcp.pop %v2611
  %v2731 = vrcp.pop %v2613
  %v2732 = vrcp.pop %v2615
  %v2733 = vrcp.pop %v2617
  %v2734 = vrcp.pop %v2619
  %v2735 = vrcp.pop %v2621
  %v2736 = vrcp.pop %v2623
  %v2737 = vrcp.pop %v2625
  %v2738 = vrcp.pop %v2627
  %v2739 = vrcp.pop %v2629
  %v2740 = vrcp.pop %v2631
  %v2741 = vrcp.pop %v2633
  %v2742 = vrcp.pop %v2635
  %v2743 = vrcp.pop %v2637
  %v2744 = vrcp.pop %v2639
  %v2745 = vrcp.pop %v2641
  %v2746 = vrcp.pop %v2643
  %v2747 = vrcp.pop %v2645
  %v2748 = vrcp.pop %v2647
  %v2749 = vrcp.pop %v2649
  %v2750 = vrcp.pop %v2651
  %v2751 = vrcp.pop %v2653
  %v2752 = vrcp.pop %v2655
  %v2753 = vrcp.pop %v2657
  %v2754 = vrcp.pop %v2659
  %v2755 = vrcp.pop %v2661
  %v2756 = vrcp.pop %v2663
  %v2757 = vrcp.pop %v2665
  %v2758 = vrcp.pop %v2667
  %v2759 = vrcp.pop %v2669
  %v2760 = vrcp.pop %v2671
  %v2761 = vrcp.pop %v2673
  %v2762 = vrcp.pop %v2675
  %v2763 = vrcp.pop %v2677
  %v2764 = vrcp.pop %v2679
  %v2765 = vrcp.pop %v2681
  %v2766 = vrcp.pop %v2683
  %v2767 = vrcp.pop %v2685
  %v2768 = vrcp.pop %v2687
  %v2769 = vrcp.pop %v2689
  %v2770 = vrcp.pop %v2691
  %v2771 = vrcp.pop %v2693
  %v2772 = vrcp.pop %v2695
  %v2773 = vrcp.pop %v2697
  %v2774 = vrcp.pop %v2699
  %v2775 = vrcp.pop %v2701
  %v2776 = vrcp.pop %v2703
  %v2777 = vrcp.pop %v2705
  %v2778 = vrcp.pop %v2707
  %v2779 = vrcp.pop %v2709
  %v2780 = vrcp.pop %v2711
  %v2781 = vrcp.pop %v2713
  %v2782 = vrcp.pop %v2715
  %v2783 = vrcp.pop %v2717
  %v2784 = vrcp.pop %v2719
  %v2785 = vrcp.pop %v2721
  %v2786 = vmul.f32 %v2467, %v2722
  %v2787 = vmul.f32 %v2469, %v2723
  %v2788 = vmul.f32 %v2471, %v2724
  %v2789 = vmul.f32 %v2473, %v2725
  %v2790 = vmul.f32 %v2475, %v2726
  %v2791 = vmul.f32 %v2477, %v2727
  %v2792 = vmul.f32 %v2479, %v2728
  %v2793 = vmul.f32 %v2481, %v2729
  %v2794 = vmul.f32 %v2483, %v2730
  %v2795 = vmul.f32 %v2485, %v2731
  %v2796 = vmul.f32 %v2487, %v2732
  %v2797 = vmul.f32 %v2489, %v2733
  %v2798 = vmul.f32 %v2491, %v2734
  %v2799 = vmul.f32 %v2493, %v2735
  %v2800 = vmul.f32 %v2495, %v2736
  %v2801 = vmul.f32 %v2497, %v2737
  %v2802 = vmul.f32 %v2499, %v2738
  %v2803 = vmul.f32 %v2501, %v2739
  %v2804 = vmul.f32 %v2503, %v2740
  %v2805 = vmul.f32 %v2505, %v2741
  %v2806 = vmul.f32 %v2507, %v2742
  %v2807 = vmul.f32 %v2509, %v2743
  %v2808 = vmul.f32 %v2511, %v2744
  %v2809 = vmul.f32 %v2513, %v2745
  %v2810 = vmul.f32 %v2515, %v2746
  %v2811 = vmul.f32 %v2517, %v2747
  %v2812 = vmul.f32 %v2519, %v2748
  %v2813 = vmul.f32 %v2521, %v2749
  %v2814 = vmul.f32 %v2523, %v2750
  %v2815 = vmul.f32 %v2525, %v2751
  %v2816 = vmul.f32 %v2527, %v2752
  %v2817 = vmul.f32 %v2529, %v2753
  %v2818 = vmul.f32 %v2531, %v2754
  %v2819 = vmul.f32 %v2533, %v2755
  %v2820 = vmul.f32 %v2535, %v2756
  %v2821 = vmul.f32 %v2537, %v2757
  %v2822 = vmul.f32 %v2539, %v2758
  %v2823 = vmul.f32 %v2541, %v2759
  %v2824 = vmul.f32 %v2543, %v2760
  %v2825 = vmul.f32 %v2545, %v2761
  %v2826 = vmul.f32 %v2547, %v2762
  %v2827 = vmul.f32 %v2549, %v2763
  %v2828 = vmul.f32 %v2551, %v2764
  %v2829 = vmul.f32 %v2553, %v2765
  %v2830 = vmul.f32 %v2555, %v2766
  %v2831 = vmul.f32 %v2557, %v2767
  %v2832 = vmul.f32 %v2559, %v2768
  %v2833 = vmul.f32 %v2561, %v2769
  %v2834 = vmul.f32 %v2563, %v2770
  %v2835 = vmul.f32 %v2565, %v2771
  %v2836 = vmul.f32 %v2567, %v2772
  %v2837 = vmul.f32 %v2569, %v2773
  %v2838 = vmul.f32 %v2571, %v2774
  %v2839 = vmul.f32 %v2573, %v2775
  %v2840 = vmul.f32 %v2575, %v2776
  %v2841 = vmul.f32 %v2577, %v2777
  %v2842 = vmul.f32 %v2579, %v2778
  %v2843 = vmul.f32 %v2581, %v2779
  %v2844 = vmul.f32 %v2583, %v2780
  %v2845 = vmul.f32 %v2585, %v2781
  %v2846 = vmul.f32 %v2587, %v2782
  %v2847 = vmul.f32 %v2589, %v2783
  %v2848 = vmul.f32 %v2591, %v2784
  %v2849 = vmul.f32 %v2593, %v2785
  %v2850 = vpack.c.bf16 %v2787, %v2786
  %v2851 = vpack.c.bf16 %v2789, %v2788
  %v2852 = vpack.c.bf16 %v2791, %v2790
  %v2853 = vpack.c.bf16 %v2793, %v2792
  %v2854 = vpack.c.bf16 %v2795, %v2794
  %v2855 = vpack.c.bf16 %v2797, %v2796
  %v2856 = vpack.c.bf16 %v2799, %v2798
  %v2857 = vpack.c.bf16 %v2801, %v2800
  %v2858 = vpack.c.bf16 %v2803, %v2802
  %v2859 = vpack.c.bf16 %v2805, %v2804
  %v2860 = vpack.c.bf16 %v2807, %v2806
  %v2861 = vpack.c.bf16 %v2809, %v2808
  %v2862 = vpack.c.bf16 %v2811, %v2810
  %v2863 = vpack.c.bf16 %v2813, %v2812
  %v2864 = vpack.c.bf16 %v2815, %v2814
  %v2865 = vpack.c.bf16 %v2817, %v2816
  %v2866 = vpack.c.bf16 %v2819, %v2818
  %v2867 = vpack.c.bf16 %v2821, %v2820
  %v2868 = vpack.c.bf16 %v2823, %v2822
  %v2869 = vpack.c.bf16 %v2825, %v2824
  %v2870 = vpack.c.bf16 %v2827, %v2826
  %v2871 = vpack.c.bf16 %v2829, %v2828
  %v2872 = vpack.c.bf16 %v2831, %v2830
  %v2873 = vpack.c.bf16 %v2833, %v2832
  %v2874 = vpack.c.bf16 %v2835, %v2834
  %v2875 = vpack.c.bf16 %v2837, %v2836
  %v2876 = vpack.c.bf16 %v2839, %v2838
  %v2877 = vpack.c.bf16 %v2841, %v2840
  %v2878 = vpack.c.bf16 %v2843, %v2842
  %v2879 = vpack.c.bf16 %v2845, %v2844
  %v2880 = vpack.c.bf16 %v2847, %v2846
  %v2881 = vpack.c.bf16 %v2849, %v2848
  %2890 = vrot.lane.b32.xlu0 %v1677, 80
  %v2891 = vpop.permute.xlu0 %2890
  %2892 = vrot.lane.b32.xlu0 %v1678, 80
  %v2893 = vpop.permute.xlu0 %2892
  %2894 = vrot.lane.b32.xlu0 %v1679, 80
  %v2895 = vpop.permute.xlu0 %2894
  %2896 = vrot.lane.b32.xlu0 %v1680, 80
  %v2897 = vpop.permute.xlu0 %2896
  %2898 = vrot.lane.b32.xlu0 %v1681, 80
  %v2899 = vpop.permute.xlu0 %2898
  %2900 = vrot.lane.b32.xlu0 %v1682, 80
  %v2901 = vpop.permute.xlu0 %2900
  %2902 = vrot.lane.b32.xlu0 %v1683, 80
  %v2903 = vpop.permute.xlu0 %2902
  %2904 = vrot.lane.b32.xlu0 %v1684, 80
  %v2905 = vpop.permute.xlu0 %2904
  %2914 = vmatprep.subr.bf16.mxu0 0
  %2915 = vmatpush1.bf16.msra.mxu0 %v2891
  %2916 = vmatprep.subr.bf16.mxu0 0
  %2917 = vmatpush1.bf16.msra.mxu0 %v2893
  %2918 = vmatprep.subr.bf16.mxu0 0
  %2919 = vmatpush1.bf16.msra.mxu0 %v2895
  %2920 = vmatprep.subr.bf16.mxu0 0
  %2921 = vmatpush1.bf16.msra.mxu0 %v2897
  %2922 = vmatprep.subr.bf16.mxu0 0
  %2923 = vmatpush1.bf16.msra.mxu0 %v2899
  %2924 = vmatprep.subr.bf16.mxu0 0
  %2925 = vmatpush1.bf16.msra.mxu0 %v2901
  %2926 = vmatprep.subr.bf16.mxu0 0
  %2927 = vmatpush1.bf16.msra.mxu0 %v2903
  %2928 = vmatprep.subr.bf16.mxu0 0
  %2929 = vmatpush1.bf16.msra.mxu0 %v2905
  %2930 = vmatprep.subr.bf16.mxu0 0
  %2931 = vmatpush1.bf16.msra.mxu0 0
  %2932 = vmatprep.subr.bf16.mxu0 0
  %2933 = vmatpush1.bf16.msra.mxu0 0
  %2934 = vmatprep.subr.bf16.mxu0 0
  %2935 = vmatpush1.bf16.msra.mxu0 0
  %2936 = vmatprep.subr.bf16.mxu0 0
  %2937 = vmatpush1.bf16.msra.mxu0 0
  %2938 = vmatprep.subr.bf16.mxu0 0
  %2939 = vmatpush1.bf16.msra.mxu0 0
  %2940 = vmatprep.subr.bf16.mxu0 0
  %2941 = vmatpush1.bf16.msra.mxu0 0
  %2942 = vmatprep.subr.bf16.mxu0 0
  %2943 = vmatpush1.bf16.msra.mxu0 0
  %2944 = vmatprep.subr.bf16.mxu0 0
  %2945 = vmatpush1.bf16.msra.mxu0 0
  %2946 = vmatprep.mubr.bf16.mxu0 0
  %2947 = vmatmul.mubr.bf16.gmra.mrb[0].mxu0 %v2850
  %v2948 = vpop.f32.mrb[0].mxu0
  %v2949 = vadd.f32 0.0, %v2948
  %v2950 = vpop.f32.mrb[0].mxu0
  %v2951 = vpop.f32.mrb[0].mxu0
  %v2952 = vadd.f32 0.0, %v2951
  %v2953 = vpop.f32.mrb[0].mxu0
  %2954 = vmatprep.mubr.bf16.mxu0 0
  %2955 = vmatmul.mubr.bf16.gmra.mrb[0].mxu0 %v2851
  %v2956 = vpop.f32.mrb[0].mxu0
  %v2957 = vadd.f32 0.0, %v2956
  %v2958 = vpop.f32.mrb[0].mxu0
  %v2959 = vpop.f32.mrb[0].mxu0
  %v2960 = vadd.f32 0.0, %v2959
  %v2961 = vpop.f32.mrb[0].mxu0
  %2962 = vmatprep.mubr.bf16.mxu0 0
  %2963 = vmatmul.mubr.bf16.gmra.mrb[0].mxu0 %v2852
  %v2964 = vpop.f32.mrb[0].mxu0
  %v2965 = vadd.f32 0.0, %v2964
  %v2966 = vpop.f32.mrb[0].mxu0
  %v2967 = vpop.f32.mrb[0].mxu0
  %v2968 = vadd.f32 0.0, %v2967
  %v2969 = vpop.f32.mrb[0].mxu0
  %2970 = vmatprep.mubr.bf16.mxu0 0
  %2971 = vmatmul.mubr.bf16.gmra.mrb[0].mxu0 %v2853
  %v2972 = vpop.f32.mrb[0].mxu0
  %v2973 = vadd.f32 0.0, %v2972
  %v2974 = vpop.f32.mrb[0].mxu0
  %v2975 = vpop.f32.mrb[0].mxu0
  %v2976 = vadd.f32 0.0, %v2975
  %v2977 = vpop.f32.mrb[0].mxu0
  %2978 = vmatprep.mubr.bf16.mxu0 0
  %2979 = vmatmul.mubr.bf16.gmra.mrb[0].mxu0 %v2854
  %v2980 = vpop.f32.mrb[0].mxu0
  %v2981 = vadd.f32 0.0, %v2980
  %v2982 = vpop.f32.mrb[0].mxu0
  %v2983 = vpop.f32.mrb[0].mxu0
  %v2984 = vadd.f32 0.0, %v2983
  %v2985 = vpop.f32.mrb[0].mxu0
  %2986 = vmatprep.mubr.bf16.mxu0 0
  %2987 = vmatmul.mubr.bf16.gmra.mrb[0].mxu0 %v2855
  %v2988 = vpop.f32.mrb[0].mxu0
  %v2989 = vadd.f32 0.0, %v2988
  %v2990 = vpop.f32.mrb[0].mxu0
  %v2991 = vpop.f32.mrb[0].mxu0
  %v2992 = vadd.f32 0.0, %v2991
  %v2993 = vpop.f32.mrb[0].mxu0
  %2994 = vmatprep.mubr.bf16.mxu0 0
  %2995 = vmatmul.mubr.bf16.gmra.mrb[0].mxu0 %v2856
  %v2996 = vpop.f32.mrb[0].mxu0
  %v2997 = vadd.f32 0.0, %v2996
  %v2998 = vpop.f32.mrb[0].mxu0
  %v2999 = vpop.f32.mrb[0].mxu0
  %v3000 = vadd.f32 0.0, %v2999
  %v3001 = vpop.f32.mrb[0].mxu0
  %3002 = vmatprep.mubr.bf16.mxu0 0
  %3003 = vmatmul.mubr.bf16.gmra.mrb[0].mxu0 %v2857
  %v3004 = vpop.f32.mrb[0].mxu0
  %v3005 = vadd.f32 0.0, %v3004
  %v3006 = vpop.f32.mrb[0].mxu0
  %v3007 = vpop.f32.mrb[0].mxu0
  %v3008 = vadd.f32 0.0, %v3007
  %v3009 = vpop.f32.mrb[0].mxu0
  %3010 = vdwg.mxu0
  %3011 = vmatprep.subr.bf16.mxu0 0
  %3012 = vmatpush1.bf16.msra.mxu0 %v2891
  %3013 = vmatprep.subr.bf16.mxu0 0
  %3014 = vmatpush1.bf16.msra.mxu0 %v2893
  %3015 = vmatprep.subr.bf16.mxu0 0
  %3016 = vmatpush1.bf16.msra.mxu0 %v2895
  %3017 = vmatprep.subr.bf16.mxu0 0
  %3018 = vmatpush1.bf16.msra.mxu0 %v2897
  %3019 = vmatprep.subr.bf16.mxu0 0
  %3020 = vmatpush1.bf16.msra.mxu0 %v2899
  %3021 = vmatprep.subr.bf16.mxu0 0
  %3022 = vmatpush1.bf16.msra.mxu0 %v2901
  %3023 = vmatprep.subr.bf16.mxu0 0
  %3024 = vmatpush1.bf16.msra.mxu0 %v2903
  %3025 = vmatprep.subr.bf16.mxu0 0
  %3026 = vmatpush1.bf16.msra.mxu0 %v2905
  %3027 = vmatprep.subr.bf16.mxu0 0
  %3028 = vmatpush1.bf16.msra.mxu0 0
  %3029 = vmatprep.subr.bf16.mxu0 0
  %3030 = vmatpush1.bf16.msra.mxu0 0
  %3031 = vmatprep.subr.bf16.mxu0 0
  %3032 = vmatpush1.bf16.msra.mxu0 0
  %3033 = vmatprep.subr.bf16.mxu0 0
  %3034 = vmatpush1.bf16.msra.mxu0 0
  %3035 = vmatprep.subr.bf16.mxu0 0
  %3036 = vmatpush1.bf16.msra.mxu0 0
  %3037 = vmatprep.subr.bf16.mxu0 0
  %3038 = vmatpush1.bf16.msra.mxu0 0
  %3039 = vmatprep.subr.bf16.mxu0 0
  %3040 = vmatpush1.bf16.msra.mxu0 0
  %3041 = vmatprep.subr.bf16.mxu0 0
  %3042 = vmatpush1.bf16.msra.mxu0 0
  %3043 = vmatprep.mubr.bf16.mxu0 0
  %3044 = vmatmul.mubr.bf16.gmra.mrb[0].mxu0 %v2858
  %v3045 = vpop.f32.mrb[0].mxu0
  %v3046 = vadd.f32 0.0, %v3045
  %v3047 = vpop.f32.mrb[0].mxu0
  %v3048 = vpop.f32.mrb[0].mxu0
  %v3049 = vadd.f32 0.0, %v3048
  %v3050 = vpop.f32.mrb[0].mxu0
  %3051 = vmatprep.mubr.bf16.mxu0 0
  %3052 = vmatmul.mubr.bf16.gmra.mrb[0].mxu0 %v2859
  %v3053 = vpop.f32.mrb[0].mxu0
  %v3054 = vadd.f32 0.0, %v3053
  %v3055 = vpop.f32.mrb[0].mxu0
  %v3056 = vpop.f32.mrb[0].mxu0
  %v3057 = vadd.f32 0.0, %v3056
  %v3058 = vpop.f32.mrb[0].mxu0
  %3059 = vmatprep.mubr.bf16.mxu0 0
  %3060 = vmatmul.mubr.bf16.gmra.mrb[0].mxu0 %v2860
  %v3061 = vpop.f32.mrb[0].mxu0
  %v3062 = vadd.f32 0.0, %v3061
  %v3063 = vpop.f32.mrb[0].mxu0
  %v3064 = vpop.f32.mrb[0].mxu0
  %v3065 = vadd.f32 0.0, %v3064
  %v3066 = vpop.f32.mrb[0].mxu0
  %3067 = vmatprep.mubr.bf16.mxu0 0
  %3068 = vmatmul.mubr.bf16.gmra.mrb[0].mxu0 %v2861
  %v3069 = vpop.f32.mrb[0].mxu0
  %v3070 = vadd.f32 0.0, %v3069
  %v3071 = vpop.f32.mrb[0].mxu0
  %v3072 = vpop.f32.mrb[0].mxu0
  %v3073 = vadd.f32 0.0, %v3072
  %v3074 = vpop.f32.mrb[0].mxu0
  %3075 = vmatprep.mubr.bf16.mxu0 0
  %3076 = vmatmul.mubr.bf16.gmra.mrb[0].mxu0 %v2862
  %v3077 = vpop.f32.mrb[0].mxu0
  %v3078 = vadd.f32 0.0, %v3077
  %v3079 = vpop.f32.mrb[0].mxu0
  %v3080 = vpop.f32.mrb[0].mxu0
  %v3081 = vadd.f32 0.0, %v3080
  %v3082 = vpop.f32.mrb[0].mxu0
  %3083 = vmatprep.mubr.bf16.mxu0 0
  %3084 = vmatmul.mubr.bf16.gmra.mrb[0].mxu0 %v2863
  %v3085 = vpop.f32.mrb[0].mxu0
  %v3086 = vadd.f32 0.0, %v3085
  %v3087 = vpop.f32.mrb[0].mxu0
  %v3088 = vpop.f32.mrb[0].mxu0
  %v3089 = vadd.f32 0.0, %v3088
  %v3090 = vpop.f32.mrb[0].mxu0
  %3091 = vmatprep.mubr.bf16.mxu0 0
  %3092 = vmatmul.mubr.bf16.gmra.mrb[0].mxu0 %v2864
  %v3093 = vpop.f32.mrb[0].mxu0
  %v3094 = vadd.f32 0.0, %v3093
  %v3095 = vpop.f32.mrb[0].mxu0
  %v3096 = vpop.f32.mrb[0].mxu0
  %v3097 = vadd.f32 0.0, %v3096
  %v3098 = vpop.f32.mrb[0].mxu0
  %3099 = vmatprep.mubr.bf16.mxu0 0
  %3100 = vmatmul.mubr.bf16.gmra.mrb[0].mxu0 %v2865
  %v3101 = vpop.f32.mrb[0].mxu0
  %v3102 = vadd.f32 0.0, %v3101
  %v3103 = vpop.f32.mrb[0].mxu0
  %v3104 = vpop.f32.mrb[0].mxu0
  %v3105 = vadd.f32 0.0, %v3104
  %v3106 = vpop.f32.mrb[0].mxu0
  %3107 = vdwg.mxu0
  %3116 = vrot.lane.b32.xlu0 %v1685, 80
  %v3117 = vpop.permute.xlu0 %3116
  %3118 = vrot.lane.b32.xlu0 %v1686, 80
  %v3119 = vpop.permute.xlu0 %3118
  %3120 = vrot.lane.b32.xlu0 %v1687, 80
  %v3121 = vpop.permute.xlu0 %3120
  %3122 = vrot.lane.b32.xlu0 %v1688, 80
  %v3123 = vpop.permute.xlu0 %3122
  %3124 = vrot.lane.b32.xlu0 %v1689, 80
  %v3125 = vpop.permute.xlu0 %3124
  %3126 = vrot.lane.b32.xlu0 %v1690, 80
  %v3127 = vpop.permute.xlu0 %3126
  %3128 = vrot.lane.b32.xlu0 %v1691, 80
  %v3129 = vpop.permute.xlu0 %3128
  %3130 = vrot.lane.b32.xlu0 %v1692, 80
  %v3131 = vpop.permute.xlu0 %3130
  %3140 = vmatprep.subr.bf16.mxu0 0
  %3141 = vmatpush1.bf16.msra.mxu0 %v3117
  %3142 = vmatprep.subr.bf16.mxu0 0
  %3143 = vmatpush1.bf16.msra.mxu0 %v3119
  %3144 = vmatprep.subr.bf16.mxu0 0
  %3145 = vmatpush1.bf16.msra.mxu0 %v3121
  %3146 = vmatprep.subr.bf16.mxu0 0
  %3147 = vmatpush1.bf16.msra.mxu0 %v3123
  %3148 = vmatprep.subr.bf16.mxu0 0
  %3149 = vmatpush1.bf16.msra.mxu0 %v3125
  %3150 = vmatprep.subr.bf16.mxu0 0
  %3151 = vmatpush1.bf16.msra.mxu0 %v3127
  %3152 = vmatprep.subr.bf16.mxu0 0
  %3153 = vmatpush1.bf16.msra.mxu0 %v3129
  %3154 = vmatprep.subr.bf16.mxu0 0
  %3155 = vmatpush1.bf16.msra.mxu0 %v3131
  %3156 = vmatprep.subr.bf16.mxu0 0
  %3157 = vmatpush1.bf16.msra.mxu0 0
  %3158 = vmatprep.subr.bf16.mxu0 0
  %3159 = vmatpush1.bf16.msra.mxu0 0
  %3160 = vmatprep.subr.bf16.mxu0 0
  %3161 = vmatpush1.bf16.msra.mxu0 0
  %3162 = vmatprep.subr.bf16.mxu0 0
  %3163 = vmatpush1.bf16.msra.mxu0 0
  %3164 = vmatprep.subr.bf16.mxu0 0
  %3165 = vmatpush1.bf16.msra.mxu0 0
  %3166 = vmatprep.subr.bf16.mxu0 0
  %3167 = vmatpush1.bf16.msra.mxu0 0
  %3168 = vmatprep.subr.bf16.mxu0 0
  %3169 = vmatpush1.bf16.msra.mxu0 0
  %3170 = vmatprep.subr.bf16.mxu0 0
  %3171 = vmatpush1.bf16.msra.mxu0 0
  %3172 = vmatprep.mubr.bf16.mxu0 0
  %3173 = vmatmul.mubr.bf16.gmra.mrb[0].mxu0 %v2866
  %v3174 = vpop.f32.mrb[0].mxu0
  %v3175 = vadd.f32 0.0, %v3174
  %v3176 = vpop.f32.mrb[0].mxu0
  %v3177 = vpop.f32.mrb[0].mxu0
  %v3178 = vadd.f32 0.0, %v3177
  %v3179 = vpop.f32.mrb[0].mxu0
  %3180 = vmatprep.mubr.bf16.mxu0 0
  %3181 = vmatmul.mubr.bf16.gmra.mrb[0].mxu0 %v2867
  %v3182 = vpop.f32.mrb[0].mxu0
  %v3183 = vadd.f32 0.0, %v3182
  %v3184 = vpop.f32.mrb[0].mxu0
  %v3185 = vpop.f32.mrb[0].mxu0
  %v3186 = vadd.f32 0.0, %v3185
  %v3187 = vpop.f32.mrb[0].mxu0
  %3188 = vmatprep.mubr.bf16.mxu0 0
  %3189 = vmatmul.mubr.bf16.gmra.mrb[0].mxu0 %v2868
  %v3190 = vpop.f32.mrb[0].mxu0
  %v3191 = vadd.f32 0.0, %v3190
  %v3192 = vpop.f32.mrb[0].mxu0
  %v3193 = vpop.f32.mrb[0].mxu0
  %v3194 = vadd.f32 0.0, %v3193
  %v3195 = vpop.f32.mrb[0].mxu0
  %3196 = vmatprep.mubr.bf16.mxu0 0
  %3197 = vmatmul.mubr.bf16.gmra.mrb[0].mxu0 %v2869
  %v3198 = vpop.f32.mrb[0].mxu0
  %v3199 = vadd.f32 0.0, %v3198
  %v3200 = vpop.f32.mrb[0].mxu0
  %v3201 = vpop.f32.mrb[0].mxu0
  %v3202 = vadd.f32 0.0, %v3201
  %v3203 = vpop.f32.mrb[0].mxu0
  %3204 = vmatprep.mubr.bf16.mxu0 0
  %3205 = vmatmul.mubr.bf16.gmra.mrb[0].mxu0 %v2870
  %v3206 = vpop.f32.mrb[0].mxu0
  %v3207 = vadd.f32 0.0, %v3206
  %v3208 = vpop.f32.mrb[0].mxu0
  %v3209 = vpop.f32.mrb[0].mxu0
  %v3210 = vadd.f32 0.0, %v3209
  %v3211 = vpop.f32.mrb[0].mxu0
  %3212 = vmatprep.mubr.bf16.mxu0 0
  %3213 = vmatmul.mubr.bf16.gmra.mrb[0].mxu0 %v2871
  %v3214 = vpop.f32.mrb[0].mxu0
  %v3215 = vadd.f32 0.0, %v3214
  %v3216 = vpop.f32.mrb[0].mxu0
  %v3217 = vpop.f32.mrb[0].mxu0
  %v3218 = vadd.f32 0.0, %v3217
  %v3219 = vpop.f32.mrb[0].mxu0
  %3220 = vmatprep.mubr.bf16.mxu0 0
  %3221 = vmatmul.mubr.bf16.gmra.mrb[0].mxu0 %v2872
  %v3222 = vpop.f32.mrb[0].mxu0
  %v3223 = vadd.f32 0.0, %v3222
  %v3224 = vpop.f32.mrb[0].mxu0
  %v3225 = vpop.f32.mrb[0].mxu0
  %v3226 = vadd.f32 0.0, %v3225
  %v3227 = vpop.f32.mrb[0].mxu0
  %3228 = vmatprep.mubr.bf16.mxu0 0
  %3229 = vmatmul.mubr.bf16.gmra.mrb[0].mxu0 %v2873
  %v3230 = vpop.f32.mrb[0].mxu0
  %v3231 = vadd.f32 0.0, %v3230
  %v3232 = vpop.f32.mrb[0].mxu0
  %v3233 = vpop.f32.mrb[0].mxu0
  %v3234 = vadd.f32 0.0, %v3233
  %v3235 = vpop.f32.mrb[0].mxu0
  %3236 = vdwg.mxu0
  %3237 = vmatprep.subr.bf16.mxu0 0
  %3238 = vmatpush1.bf16.msra.mxu0 %v3117
  %3239 = vmatprep.subr.bf16.mxu0 0
  %3240 = vmatpush1.bf16.msra.mxu0 %v3119
  %3241 = vmatprep.subr.bf16.mxu0 0
  %3242 = vmatpush1.bf16.msra.mxu0 %v3121
  %3243 = vmatprep.subr.bf16.mxu0 0
  %3244 = vmatpush1.bf16.msra.mxu0 %v3123
  %3245 = vmatprep.subr.bf16.mxu0 0
  %3246 = vmatpush1.bf16.msra.mxu0 %v3125
  %3247 = vmatprep.subr.bf16.mxu0 0
  %3248 = vmatpush1.bf16.msra.mxu0 %v3127
  %3249 = vmatprep.subr.bf16.mxu0 0
  %3250 = vmatpush1.bf16.msra.mxu0 %v3129
  %3251 = vmatprep.subr.bf16.mxu0 0
  %3252 = vmatpush1.bf16.msra.mxu0 %v3131
  %3253 = vmatprep.subr.bf16.mxu0 0
  %3254 = vmatpush1.bf16.msra.mxu0 0
  %3255 = vmatprep.subr.bf16.mxu0 0
  %3256 = vmatpush1.bf16.msra.mxu0 0
  %3257 = vmatprep.subr.bf16.mxu0 0
  %3258 = vmatpush1.bf16.msra.mxu0 0
  %3259 = vmatprep.subr.bf16.mxu0 0
  %3260 = vmatpush1.bf16.msra.mxu0 0
  %3261 = vmatprep.subr.bf16.mxu0 0
  %3262 = vmatpush1.bf16.msra.mxu0 0
  %3263 = vmatprep.subr.bf16.mxu0 0
  %3264 = vmatpush1.bf16.msra.mxu0 0
  %3265 = vmatprep.subr.bf16.mxu0 0
  %3266 = vmatpush1.bf16.msra.mxu0 0
  %3267 = vmatprep.subr.bf16.mxu0 0
  %3268 = vmatpush1.bf16.msra.mxu0 0
  %3269 = vmatprep.mubr.bf16.mxu0 0
  %3270 = vmatmul.mubr.bf16.gmra.mrb[0].mxu0 %v2874
  %v3271 = vpop.f32.mrb[0].mxu0
  %v3272 = vadd.f32 0.0, %v3271
  %v3273 = vpop.f32.mrb[0].mxu0
  %v3274 = vpop.f32.mrb[0].mxu0
  %v3275 = vadd.f32 0.0, %v3274
  %v3276 = vpop.f32.mrb[0].mxu0
  %3277 = vmatprep.mubr.bf16.mxu0 0
  %3278 = vmatmul.mubr.bf16.gmra.mrb[0].mxu0 %v2875
  %v3279 = vpop.f32.mrb[0].mxu0
  %v3280 = vadd.f32 0.0, %v3279
  %v3281 = vpop.f32.mrb[0].mxu0
  %v3282 = vpop.f32.mrb[0].mxu0
  %v3283 = vadd.f32 0.0, %v3282
  %v3284 = vpop.f32.mrb[0].mxu0
  %3285 = vmatprep.mubr.bf16.mxu0 0
  %3286 = vmatmul.mubr.bf16.gmra.mrb[0].mxu0 %v2876
  %v3287 = vpop.f32.mrb[0].mxu0
  %v3288 = vadd.f32 0.0, %v3287
  %v3289 = vpop.f32.mrb[0].mxu0
  %v3290 = vpop.f32.mrb[0].mxu0
  %v3291 = vadd.f32 0.0, %v3290
  %v3292 = vpop.f32.mrb[0].mxu0
  %3293 = vmatprep.mubr.bf16.mxu0 0
  %3294 = vmatmul.mubr.bf16.gmra.mrb[0].mxu0 %v2877
  %v3295 = vpop.f32.mrb[0].mxu0
  %v3296 = vadd.f32 0.0, %v3295
  %v3297 = vpop.f32.mrb[0].mxu0
  %v3298 = vpop.f32.mrb[0].mxu0
  %v3299 = vadd.f32 0.0, %v3298
  %v3300 = vpop.f32.mrb[0].mxu0
  %3301 = vmatprep.mubr.bf16.mxu0 0
  %3302 = vmatmul.mubr.bf16.gmra.mrb[0].mxu0 %v2878
  %v3303 = vpop.f32.mrb[0].mxu0
  %v3304 = vadd.f32 0.0, %v3303
  %v3305 = vpop.f32.mrb[0].mxu0
  %v3306 = vpop.f32.mrb[0].mxu0
  %v3307 = vadd.f32 0.0, %v3306
  %v3308 = vpop.f32.mrb[0].mxu0
  %3309 = vmatprep.mubr.bf16.mxu0 0
  %3310 = vmatmul.mubr.bf16.gmra.mrb[0].mxu0 %v2879
  %v3311 = vpop.f32.mrb[0].mxu0
  %v3312 = vadd.f32 0.0, %v3311
  %v3313 = vpop.f32.mrb[0].mxu0
  %v3314 = vpop.f32.mrb[0].mxu0
  %v3315 = vadd.f32 0.0, %v3314
  %v3316 = vpop.f32.mrb[0].mxu0
  %3317 = vmatprep.mubr.bf16.mxu0 0
  %3318 = vmatmul.mubr.bf16.gmra.mrb[0].mxu0 %v2880
  %v3319 = vpop.f32.mrb[0].mxu0
  %v3320 = vadd.f32 0.0, %v3319
  %v3321 = vpop.f32.mrb[0].mxu0
  %v3322 = vpop.f32.mrb[0].mxu0
  %v3323 = vadd.f32 0.0, %v3322
  %v3324 = vpop.f32.mrb[0].mxu0
  %3325 = vmatprep.mubr.bf16.mxu0 0
  %3326 = vmatmul.mubr.bf16.gmra.mrb[0].mxu0 %v2881
  %v3327 = vpop.f32.mrb[0].mxu0
  %v3328 = vadd.f32 0.0, %v3327
  %v3329 = vpop.f32.mrb[0].mxu0
  %v3330 = vpop.f32.mrb[0].mxu0
  %v3331 = vadd.f32 0.0, %v3330
  %v3332 = vpop.f32.mrb[0].mxu0
  %3333 = vdwg.mxu0
  %3350 = vrot.lane.b32.xlu0 %v3046, 8
  %v3351 = vpop.permute.xlu0 %3350
  %3352 = vrot.lane.b32.xlu0 %v3049, 8
  %v3353 = vpop.permute.xlu0 %3352
  %3354 = vrot.lane.b32.xlu0 %v3054, 8
  %v3355 = vpop.permute.xlu0 %3354
  %3356 = vrot.lane.b32.xlu0 %v3057, 8
  %v3357 = vpop.permute.xlu0 %3356
  %3358 = vrot.lane.b32.xlu0 %v3062, 8
  %v3359 = vpop.permute.xlu0 %3358
  %3360 = vrot.lane.b32.xlu0 %v3065, 8
  %v3361 = vpop.permute.xlu0 %3360
  %3362 = vrot.lane.b32.xlu0 %v3070, 8
  %v3363 = vpop.permute.xlu0 %3362
  %3364 = vrot.lane.b32.xlu0 %v3073, 8
  %v3365 = vpop.permute.xlu0 %3364
  %3366 = vrot.lane.b32.xlu0 %v3078, 8
  %v3367 = vpop.permute.xlu0 %3366
  %3368 = vrot.lane.b32.xlu0 %v3081, 8
  %v3369 = vpop.permute.xlu0 %3368
  %3370 = vrot.lane.b32.xlu0 %v3086, 8
  %v3371 = vpop.permute.xlu0 %3370
  %3372 = vrot.lane.b32.xlu0 %v3089, 8
  %v3373 = vpop.permute.xlu0 %3372
  %3374 = vrot.lane.b32.xlu0 %v3094, 8
  %v3375 = vpop.permute.xlu0 %3374
  %3376 = vrot.lane.b32.xlu0 %v3097, 8
  %v3377 = vpop.permute.xlu0 %3376
  %3378 = vrot.lane.b32.xlu0 %v3102, 8
  %v3379 = vpop.permute.xlu0 %3378
  %3380 = vrot.lane.b32.xlu0 %v3105, 8
  %v3381 = vpop.permute.xlu0 %3380
  %3414 = vrot.lane.b32.xlu0 %v3175, 16
  %v3415 = vpop.permute.xlu0 %3414
  %3416 = vrot.lane.b32.xlu0 %v3178, 16
  %v3417 = vpop.permute.xlu0 %3416
  %3418 = vrot.lane.b32.xlu0 %v3183, 16
  %v3419 = vpop.permute.xlu0 %3418
  %3420 = vrot.lane.b32.xlu0 %v3186, 16
  %v3421 = vpop.permute.xlu0 %3420
  %3422 = vrot.lane.b32.xlu0 %v3191, 16
  %v3423 = vpop.permute.xlu0 %3422
  %3424 = vrot.lane.b32.xlu0 %v3194, 16
  %v3425 = vpop.permute.xlu0 %3424
  %3426 = vrot.lane.b32.xlu0 %v3199, 16
  %v3427 = vpop.permute.xlu0 %3426
  %3428 = vrot.lane.b32.xlu0 %v3202, 16
  %v3429 = vpop.permute.xlu0 %3428
  %3430 = vrot.lane.b32.xlu0 %v3207, 16
  %v3431 = vpop.permute.xlu0 %3430
  %3432 = vrot.lane.b32.xlu0 %v3210, 16
  %v3433 = vpop.permute.xlu0 %3432
  %3434 = vrot.lane.b32.xlu0 %v3215, 16
  %v3435 = vpop.permute.xlu0 %3434
  %3436 = vrot.lane.b32.xlu0 %v3218, 16
  %v3437 = vpop.permute.xlu0 %3436
  %3438 = vrot.lane.b32.xlu0 %v3223, 16
  %v3439 = vpop.permute.xlu0 %3438
  %3440 = vrot.lane.b32.xlu0 %v3226, 16
  %v3441 = vpop.permute.xlu0 %3440
  %3442 = vrot.lane.b32.xlu0 %v3231, 16
  %v3443 = vpop.permute.xlu0 %3442
  %3444 = vrot.lane.b32.xlu0 %v3234, 16
  %v3445 = vpop.permute.xlu0 %3444
  %3478 = vrot.lane.b32.xlu0 %v3272, 24
  %v3479 = vpop.permute.xlu0 %3478
  %3480 = vrot.lane.b32.xlu0 %v3275, 24
  %v3481 = vpop.permute.xlu0 %3480
  %3482 = vrot.lane.b32.xlu0 %v3280, 24
  %v3483 = vpop.permute.xlu0 %3482
  %3484 = vrot.lane.b32.xlu0 %v3283, 24
  %v3485 = vpop.permute.xlu0 %3484
  %3486 = vrot.lane.b32.xlu0 %v3288, 24
  %v3487 = vpop.permute.xlu0 %3486
  %3488 = vrot.lane.b32.xlu0 %v3291, 24
  %v3489 = vpop.permute.xlu0 %3488
  %3490 = vrot.lane.b32.xlu0 %v3296, 24
  %v3491 = vpop.permute.xlu0 %3490
  %3492 = vrot.lane.b32.xlu0 %v3299, 24
  %v3493 = vpop.permute.xlu0 %3492
  %3494 = vrot.lane.b32.xlu0 %v3304, 24
  %v3495 = vpop.permute.xlu0 %3494
  %3496 = vrot.lane.b32.xlu0 %v3307, 24
  %v3497 = vpop.permute.xlu0 %3496
  %3498 = vrot.lane.b32.xlu0 %v3312, 24
  %v3499 = vpop.permute.xlu0 %3498
  %3500 = vrot.lane.b32.xlu0 %v3315, 24
  %v3501 = vpop.permute.xlu0 %3500
  %3502 = vrot.lane.b32.xlu0 %v3320, 24
  %v3503 = vpop.permute.xlu0 %3502
  %3504 = vrot.lane.b32.xlu0 %v3323, 24
  %v3505 = vpop.permute.xlu0 %3504
  %3506 = vrot.lane.b32.xlu0 %v3328, 24
  %v3507 = vpop.permute.xlu0 %3506
  %3508 = vrot.lane.b32.xlu0 %v3331, 24
  %v3509 = vpop.permute.xlu0 %3508
  %v3526 = vsel %vm1717, %v2949, %v3351
  %v3527 = vsel %vm1717, %v2952, %v3353
  %v3528 = vsel %vm1717, %v2957, %v3355
  %v3529 = vsel %vm1717, %v2960, %v3357
  %v3530 = vsel %vm1717, %v2965, %v3359
  %v3531 = vsel %vm1717, %v2968, %v3361
  %v3532 = vsel %vm1717, %v2973, %v3363
  %v3533 = vsel %vm1717, %v2976, %v3365
  %v3534 = vsel %vm1717, %v2981, %v3367
  %v3535 = vsel %vm1717, %v2984, %v3369
  %v3536 = vsel %vm1717, %v2989, %v3371
  %v3537 = vsel %vm1717, %v2992, %v3373
  %v3538 = vsel %vm1717, %v2997, %v3375
  %v3539 = vsel %vm1717, %v3000, %v3377
  %v3540 = vsel %vm1717, %v3005, %v3379
  %v3541 = vsel %vm1717, %v3008, %v3381
  %vm3542 = vcmask 130048
  %v3543 = vsel %vm3542, %v3526, %v3415
  %v3544 = vsel %vm3542, %v3527, %v3417
  %v3545 = vsel %vm3542, %v3528, %v3419
  %v3546 = vsel %vm3542, %v3529, %v3421
  %v3547 = vsel %vm3542, %v3530, %v3423
  %v3548 = vsel %vm3542, %v3531, %v3425
  %v3549 = vsel %vm3542, %v3532, %v3427
  %v3550 = vsel %vm3542, %v3533, %v3429
  %v3551 = vsel %vm3542, %v3534, %v3431
  %v3552 = vsel %vm3542, %v3535, %v3433
  %v3553 = vsel %vm3542, %v3536, %v3435
  %v3554 = vsel %vm3542, %v3537, %v3437
  %v3555 = vsel %vm3542, %v3538, %v3439
  %v3556 = vsel %vm3542, %v3539, %v3441
  %v3557 = vsel %vm3542, %v3540, %v3443
  %v3558 = vsel %vm3542, %v3541, %v3445
  %vm3559 = vcmask 195584
  %v3560 = vsel %vm3559, %v3543, %v3479
  %v3561 = vsel %vm3559, %v3544, %v3481
  %v3562 = vsel %vm3559, %v3545, %v3483
  %v3563 = vsel %vm3559, %v3546, %v3485
  %v3564 = vsel %vm3559, %v3547, %v3487
  %v3565 = vsel %vm3559, %v3548, %v3489
  %v3566 = vsel %vm3559, %v3549, %v3491
  %v3567 = vsel %vm3559, %v3550, %v3493
  %v3568 = vsel %vm3559, %v3551, %v3495
  %v3569 = vsel %vm3559, %v3552, %v3497
  %v3570 = vsel %vm3559, %v3553, %v3499
  %v3571 = vsel %vm3559, %v3554, %v3501
  %v3572 = vsel %vm3559, %v3555, %v3503
  %v3573 = vsel %vm3559, %v3556, %v3505
  %v3574 = vsel %vm3559, %v3557, %v3507
  %v3575 = vsel %vm3559, %v3558, %v3509
  %v3576 = vpack.c.bf16 %v3561, %v3560
  %v3577 = vpack.c.bf16 %v3563, %v3562
  %v3578 = vpack.c.bf16 %v3565, %v3564
  %v3579 = vpack.c.bf16 %v3567, %v3566
  %v3580 = vpack.c.bf16 %v3569, %v3568
  %v3581 = vpack.c.bf16 %v3571, %v3570
  %v3582 = vpack.c.bf16 %v3573, %v3572
  %v3583 = vpack.c.bf16 %v3575, %v3574
  %v3584 = vld [vmem:[%s9] sm:$0xf]
  %v3585 = vld [vmem:[%s9 + $0x4] sm:$0xf]
  %v3586 = vld [vmem:[%s9 + $0x8] sm:$0xf]
  %v3587 = vld [vmem:[%s9 + $0xc] sm:$0xf]
  %v3592 = vunpack.c.l.b16 %v3584
  %v3593 = vunpack.c.l.b16 %v3585
  %v3594 = vunpack.c.l.b16 %v3586
  %v3595 = vunpack.c.l.b16 %v3587
  %v3596 = vpack.c.b16 %v3593, %v3592
  %v3597 = vpack.c.b16 %v3595, %v3594
  %v3601 = vsel %vm123, %v3576, 0
  %v3604 = vsel %vm123, %v3577, 0
  %v3607 = vsel %vm123, %v3578, 0
  %v3610 = vsel %vm123, %v3579, 0
  %v3613 = vsel %vm123, %v3580, 0
  %v3616 = vsel %vm123, %v3581, 0
  %v3619 = vsel %vm123, %v3582, 0
  %v3622 = vsel %vm123, %v3583, 0
  %3624 = vmatprep.subr.bf16.mxu0 0
  %3625 = vmatpush1.bf16.msra.mxu0 %v3596
  %3626 = vmatprep.subr.bf16.mxu0 0
  %3627 = vmatpush1.bf16.msra.mxu0 %v3597
  %3628 = vmatprep.subr.bf16.mxu0 0
  %3629 = vmatpush1.bf16.msra.mxu0 0
  %3630 = vmatprep.subr.bf16.mxu0 0
  %3631 = vmatpush1.bf16.msra.mxu0 0
  %3632 = vmatprep.subr.bf16.mxu0 0
  %3633 = vmatpush1.bf16.msra.mxu0 0
  %3634 = vmatprep.subr.bf16.mxu0 0
  %3635 = vmatpush1.bf16.msra.mxu0 0
  %3636 = vmatprep.subr.bf16.mxu0 0
  %3637 = vmatpush1.bf16.msra.mxu0 0
  %3638 = vmatprep.subr.bf16.mxu0 0
  %3639 = vmatpush1.bf16.msra.mxu0 0
  %3640 = vmatprep.subr.bf16.mxu0 0
  %3641 = vmatpush1.bf16.msra.mxu0 0
  %3642 = vmatprep.subr.bf16.mxu0 0
  %3643 = vmatpush1.bf16.msra.mxu0 0
  %3644 = vmatprep.subr.bf16.mxu0 0
  %3645 = vmatpush1.bf16.msra.mxu0 0
  %3646 = vmatprep.subr.bf16.mxu0 0
  %3647 = vmatpush1.bf16.msra.mxu0 0
  %3648 = vmatprep.subr.bf16.mxu0 0
  %3649 = vmatpush1.bf16.msra.mxu0 0
  %3650 = vmatprep.subr.bf16.mxu0 0
  %3651 = vmatpush1.bf16.msra.mxu0 0
  %3652 = vmatprep.subr.bf16.mxu0 0
  %3653 = vmatpush1.bf16.msra.mxu0 0
  %3654 = vmatprep.subr.bf16.mxu0 0
  %3655 = vmatpush1.bf16.msra.mxu0 0
  %3656 = vmatprep.mubr.bf16.mxu0 0
  %3657 = vmatmul.mubr.bf16.gmra.mrb[0].mxu0 %v3601
  %v3658 = vpop.f32.mrb[0].mxu0
  %v3659 = vadd.f32 0.0, %v3658
  %v3660 = vpop.f32.mrb[0].mxu0
  %v3661 = vpop.f32.mrb[0].mxu0
  %v3662 = vadd.f32 0.0, %v3661
  %v3663 = vpop.f32.mrb[0].mxu0
  %3664 = vmatprep.mubr.bf16.mxu0 0
  %3665 = vmatmul.mubr.bf16.gmra.mrb[0].mxu0 %v3604
  %v3666 = vpop.f32.mrb[0].mxu0
  %v3667 = vadd.f32 0.0, %v3666
  %v3668 = vpop.f32.mrb[0].mxu0
  %v3669 = vpop.f32.mrb[0].mxu0
  %v3670 = vadd.f32 0.0, %v3669
  %v3671 = vpop.f32.mrb[0].mxu0
  %3672 = vmatprep.mubr.bf16.mxu0 0
  %3673 = vmatmul.mubr.bf16.gmra.mrb[0].mxu0 %v3607
  %v3674 = vpop.f32.mrb[0].mxu0
  %v3675 = vadd.f32 0.0, %v3674
  %v3676 = vpop.f32.mrb[0].mxu0
  %v3677 = vpop.f32.mrb[0].mxu0
  %v3678 = vadd.f32 0.0, %v3677
  %v3679 = vpop.f32.mrb[0].mxu0
  %3680 = vmatprep.mubr.bf16.mxu0 0
  %3681 = vmatmul.mubr.bf16.gmra.mrb[0].mxu0 %v3610
  %v3682 = vpop.f32.mrb[0].mxu0
  %v3683 = vadd.f32 0.0, %v3682
  %v3684 = vpop.f32.mrb[0].mxu0
  %v3685 = vpop.f32.mrb[0].mxu0
  %v3686 = vadd.f32 0.0, %v3685
  %v3687 = vpop.f32.mrb[0].mxu0
  %3688 = vmatprep.mubr.bf16.mxu0 0
  %3689 = vmatmul.mubr.bf16.gmra.mrb[0].mxu0 %v3613
  %v3690 = vpop.f32.mrb[0].mxu0
  %v3691 = vadd.f32 0.0, %v3690
  %v3692 = vpop.f32.mrb[0].mxu0
  %v3693 = vpop.f32.mrb[0].mxu0
  %v3694 = vadd.f32 0.0, %v3693
  %v3695 = vpop.f32.mrb[0].mxu0
  %3696 = vmatprep.mubr.bf16.mxu0 0
  %3697 = vmatmul.mubr.bf16.gmra.mrb[0].mxu0 %v3616
  %v3698 = vpop.f32.mrb[0].mxu0
  %v3699 = vadd.f32 0.0, %v3698
  %v3700 = vpop.f32.mrb[0].mxu0
  %v3701 = vpop.f32.mrb[0].mxu0
  %v3702 = vadd.f32 0.0, %v3701
  %v3703 = vpop.f32.mrb[0].mxu0
  %3704 = vmatprep.mubr.bf16.mxu0 0
  %3705 = vmatmul.mubr.bf16.gmra.mrb[0].mxu0 %v3619
  %v3706 = vpop.f32.mrb[0].mxu0
  %v3707 = vadd.f32 0.0, %v3706
  %v3708 = vpop.f32.mrb[0].mxu0
  %v3709 = vpop.f32.mrb[0].mxu0
  %v3710 = vadd.f32 0.0, %v3709
  %v3711 = vpop.f32.mrb[0].mxu0
  %3712 = vmatprep.mubr.bf16.mxu0 0
  %3713 = vmatmul.mubr.bf16.gmra.mrb[0].mxu0 %v3622
  %v3714 = vpop.f32.mrb[0].mxu0
  %v3715 = vadd.f32 0.0, %v3714
  %v3716 = vpop.f32.mrb[0].mxu0
  %v3717 = vpop.f32.mrb[0].mxu0
  %v3718 = vadd.f32 0.0, %v3717
  %v3719 = vpop.f32.mrb[0].mxu0
  %3720 = vdwg.mxu0
  %v3721 = vadd.f32 %v42, %v3659
  %v3722 = vadd.f32 %v43, %v3662
  %v3723 = vadd.f32 %v44, %v3667
  %v3724 = vadd.f32 %v45, %v3670
  %v3725 = vadd.f32 %v46, %v3675
  %v3726 = vadd.f32 %v47, %v3678
  %v3727 = vadd.f32 %v48, %v3683
  %v3728 = vadd.f32 %v49, %v3686
  %v3729 = vadd.f32 %v50, %v3691
  %v3730 = vadd.f32 %v51, %v3694
  %v3731 = vadd.f32 %v52, %v3699
  %v3732 = vadd.f32 %v53, %v3702
  %v3733 = vadd.f32 %v54, %v3707
  %v3734 = vadd.f32 %v55, %v3710
  %v3735 = vadd.f32 %v56, %v3715
  %v3736 = vadd.f32 %v57, %v3718
  %v3737 = vld [vmem:[%s6] sm:$0x1]
  %v3738 = vmul.f32 %v3721, %v3721
  %v3739 = vmul.f32 %v3722, %v3722
  %v3740 = vmul.f32 %v3723, %v3723
  %v3741 = vmul.f32 %v3724, %v3724
  %v3742 = vmul.f32 %v3725, %v3725
  %v3743 = vmul.f32 %v3726, %v3726
  %v3744 = vmul.f32 %v3727, %v3727
  %v3745 = vmul.f32 %v3728, %v3728
  %v3746 = vmul.f32 %v3729, %v3729
  %v3747 = vmul.f32 %v3730, %v3730
  %v3748 = vmul.f32 %v3731, %v3731
  %v3749 = vmul.f32 %v3732, %v3732
  %v3750 = vmul.f32 %v3733, %v3733
  %v3751 = vmul.f32 %v3734, %v3734
  %v3752 = vmul.f32 %v3735, %v3735
  %v3753 = vmul.f32 %v3736, %v3736
  %v3754 = vsel %vm123, %v3738, 0.0
  %3755 = vadd.xlane.f32.xlu0 %v3754
  %v3756 = vpop.xlane.xlu0 %3755
  %v3757 = vsel %vm123, %v3739, 0.0
  %3758 = vadd.xlane.f32.xlu0 %v3757
  %v3759 = vpop.xlane.xlu0 %3758
  %v3760 = vsel %vm123, %v3740, 0.0
  %3761 = vadd.xlane.f32.xlu0 %v3760
  %v3762 = vpop.xlane.xlu0 %3761
  %v3763 = vsel %vm123, %v3741, 0.0
  %3764 = vadd.xlane.f32.xlu0 %v3763
  %v3765 = vpop.xlane.xlu0 %3764
  %v3766 = vsel %vm123, %v3742, 0.0
  %3767 = vadd.xlane.f32.xlu0 %v3766
  %v3768 = vpop.xlane.xlu0 %3767
  %v3769 = vsel %vm123, %v3743, 0.0
  %3770 = vadd.xlane.f32.xlu0 %v3769
  %v3771 = vpop.xlane.xlu0 %3770
  %v3772 = vsel %vm123, %v3744, 0.0
  %3773 = vadd.xlane.f32.xlu0 %v3772
  %v3774 = vpop.xlane.xlu0 %3773
  %v3775 = vsel %vm123, %v3745, 0.0
  %3776 = vadd.xlane.f32.xlu0 %v3775
  %v3777 = vpop.xlane.xlu0 %3776
  %v3778 = vsel %vm123, %v3746, 0.0
  %3779 = vadd.xlane.f32.xlu0 %v3778
  %v3780 = vpop.xlane.xlu0 %3779
  %v3781 = vsel %vm123, %v3747, 0.0
  %3782 = vadd.xlane.f32.xlu0 %v3781
  %v3783 = vpop.xlane.xlu0 %3782
  %v3784 = vsel %vm123, %v3748, 0.0
  %3785 = vadd.xlane.f32.xlu0 %v3784
  %v3786 = vpop.xlane.xlu0 %3785
  %v3787 = vsel %vm123, %v3749, 0.0
  %3788 = vadd.xlane.f32.xlu0 %v3787
  %v3789 = vpop.xlane.xlu0 %3788
  %v3790 = vsel %vm123, %v3750, 0.0
  %3791 = vadd.xlane.f32.xlu0 %v3790
  %v3792 = vpop.xlane.xlu0 %3791
  %v3793 = vsel %vm123, %v3751, 0.0
  %3794 = vadd.xlane.f32.xlu0 %v3793
  %v3795 = vpop.xlane.xlu0 %3794
  %v3796 = vsel %vm123, %v3752, 0.0
  %3797 = vadd.xlane.f32.xlu0 %v3796
  %v3798 = vpop.xlane.xlu0 %3797
  %v3799 = vsel %vm123, %v3753, 0.0
  %3800 = vadd.xlane.f32.xlu0 %v3799
  %v3801 = vpop.xlane.xlu0 %3800
  %v3802 = vmul.f32 %v3756, %v172
  %v3803 = vmul.f32 %v3759, %v172
  %v3804 = vmul.f32 %v3762, %v172
  %v3805 = vmul.f32 %v3765, %v172
  %v3806 = vmul.f32 %v3768, %v172
  %v3807 = vmul.f32 %v3771, %v172
  %v3808 = vmul.f32 %v3774, %v172
  %v3809 = vmul.f32 %v3777, %v172
  %v3810 = vmul.f32 %v3780, %v172
  %v3811 = vmul.f32 %v3783, %v172
  %v3812 = vmul.f32 %v3786, %v172
  %v3813 = vmul.f32 %v3789, %v172
  %v3814 = vmul.f32 %v3792, %v172
  %v3815 = vmul.f32 %v3795, %v172
  %v3816 = vmul.f32 %v3798, %v172
  %v3817 = vmul.f32 %v3801, %v172
  %v3818 = vadd.f32 %v3802, 1e-05
  %v3819 = vadd.f32 %v3803, 1e-05
  %v3820 = vadd.f32 %v3804, 1e-05
  %v3821 = vadd.f32 %v3805, 1e-05
  %v3822 = vadd.f32 %v3806, 1e-05
  %v3823 = vadd.f32 %v3807, 1e-05
  %v3824 = vadd.f32 %v3808, 1e-05
  %v3825 = vadd.f32 %v3809, 1e-05
  %v3826 = vadd.f32 %v3810, 1e-05
  %v3827 = vadd.f32 %v3811, 1e-05
  %v3828 = vadd.f32 %v3812, 1e-05
  %v3829 = vadd.f32 %v3813, 1e-05
  %v3830 = vadd.f32 %v3814, 1e-05
  %v3831 = vadd.f32 %v3815, 1e-05
  %v3832 = vadd.f32 %v3816, 1e-05
  %v3833 = vadd.f32 %v3817, 1e-05
  %v3834 = vrsqrt.pop %v3818
  %v3835 = vrsqrt.pop %v3819
  %v3836 = vrsqrt.pop %v3820
  %v3837 = vrsqrt.pop %v3821
  %v3838 = vrsqrt.pop %v3822
  %v3839 = vrsqrt.pop %v3823
  %v3840 = vrsqrt.pop %v3824
  %v3841 = vrsqrt.pop %v3825
  %v3842 = vrsqrt.pop %v3826
  %v3843 = vrsqrt.pop %v3827
  %v3844 = vrsqrt.pop %v3828
  %v3845 = vrsqrt.pop %v3829
  %v3846 = vrsqrt.pop %v3830
  %v3847 = vrsqrt.pop %v3831
  %v3848 = vrsqrt.pop %v3832
  %v3849 = vrsqrt.pop %v3833
  %v3850 = vmul.f32 %v3721, %v3834
  %v3851 = vmul.f32 %v3722, %v3835
  %v3852 = vmul.f32 %v3723, %v3836
  %v3853 = vmul.f32 %v3724, %v3837
  %v3854 = vmul.f32 %v3725, %v3838
  %v3855 = vmul.f32 %v3726, %v3839
  %v3856 = vmul.f32 %v3727, %v3840
  %v3857 = vmul.f32 %v3728, %v3841
  %v3858 = vmul.f32 %v3729, %v3842
  %v3859 = vmul.f32 %v3730, %v3843
  %v3860 = vmul.f32 %v3731, %v3844
  %v3861 = vmul.f32 %v3732, %v3845
  %v3862 = vmul.f32 %v3733, %v3846
  %v3863 = vmul.f32 %v3734, %v3847
  %v3864 = vmul.f32 %v3735, %v3848
  %v3865 = vmul.f32 %v3736, %v3849
  %v3867 = vlaneseq
  %v3868 = vshrl.u32 %v3867, 7
  %v3869 = vsub.s32 0, %v3868
  %v3870 = vrot.slane %v3737, %v3869
  %v3872 = vmul.f32 %v3850, %v3870
  %v3873 = vmul.f32 %v3851, %v3870
  %v3874 = vmul.f32 %v3852, %v3870
  %v3875 = vmul.f32 %v3853, %v3870
  %v3876 = vmul.f32 %v3854, %v3870
  %v3877 = vmul.f32 %v3855, %v3870
  %v3878 = vmul.f32 %v3856, %v3870
  %v3879 = vmul.f32 %v3857, %v3870
  %v3880 = vmul.f32 %v3858, %v3870
  %v3881 = vmul.f32 %v3859, %v3870
  %v3882 = vmul.f32 %v3860, %v3870
  %v3883 = vmul.f32 %v3861, %v3870
  %v3884 = vmul.f32 %v3862, %v3870
  %v3885 = vmul.f32 %v3863, %v3870
  %v3886 = vmul.f32 %v3864, %v3870
  %v3887 = vmul.f32 %v3865, %v3870
  %v3888 = vpack.c.bf16 %v3873, %v3872
  %v3889 = vpack.c.bf16 %v3875, %v3874
  %v3890 = vpack.c.bf16 %v3877, %v3876
  %v3891 = vpack.c.bf16 %v3879, %v3878
  %v3892 = vpack.c.bf16 %v3881, %v3880
  %v3893 = vpack.c.bf16 %v3883, %v3882
  %v3894 = vpack.c.bf16 %v3885, %v3884
  %v3895 = vpack.c.bf16 %v3887, %v3886
  %v3896 = vld [vmem:[%s10] sm:$0xf]
  %v3897 = vld [vmem:[%s10 + $0x4] sm:$0xf]
  %v3898 = vld [vmem:[%s10 + $0x8] sm:$0xf]
  %v3899 = vld [vmem:[%s10 + $0xc] sm:$0xf]
  %v3904 = vunpack.c.l.b16 %v3896
  %v3905 = vunpack.c.l.b16 %v3897
  %v3906 = vunpack.c.l.b16 %v3898
  %v3907 = vunpack.c.l.b16 %v3899
  %v3908 = vpack.c.b16 %v3905, %v3904
  %v3909 = vpack.c.b16 %v3907, %v3906
  %v3913 = vsel %vm123, %v3888, 0
  %v3916 = vsel %vm123, %v3889, 0
  %v3919 = vsel %vm123, %v3890, 0
  %v3922 = vsel %vm123, %v3891, 0
  %v3925 = vsel %vm123, %v3892, 0
  %v3928 = vsel %vm123, %v3893, 0
  %v3931 = vsel %vm123, %v3894, 0
  %v3934 = vsel %vm123, %v3895, 0
  %3936 = vmatprep.subr.bf16.mxu0 0
  %3937 = vmatpush1.bf16.msra.mxu0 %v3908
  %3938 = vmatprep.subr.bf16.mxu0 0
  %3939 = vmatpush1.bf16.msra.mxu0 %v3909
  %3940 = vmatprep.subr.bf16.mxu0 0
  %3941 = vmatpush1.bf16.msra.mxu0 0
  %3942 = vmatprep.subr.bf16.mxu0 0
  %3943 = vmatpush1.bf16.msra.mxu0 0
  %3944 = vmatprep.subr.bf16.mxu0 0
  %3945 = vmatpush1.bf16.msra.mxu0 0
  %3946 = vmatprep.subr.bf16.mxu0 0
  %3947 = vmatpush1.bf16.msra.mxu0 0
  %3948 = vmatprep.subr.bf16.mxu0 0
  %3949 = vmatpush1.bf16.msra.mxu0 0
  %3950 = vmatprep.subr.bf16.mxu0 0
  %3951 = vmatpush1.bf16.msra.mxu0 0
  %3952 = vmatprep.subr.bf16.mxu0 0
  %3953 = vmatpush1.bf16.msra.mxu0 0
  %3954 = vmatprep.subr.bf16.mxu0 0
  %3955 = vmatpush1.bf16.msra.mxu0 0
  %3956 = vmatprep.subr.bf16.mxu0 0
  %3957 = vmatpush1.bf16.msra.mxu0 0
  %3958 = vmatprep.subr.bf16.mxu0 0
  %3959 = vmatpush1.bf16.msra.mxu0 0
  %3960 = vmatprep.subr.bf16.mxu0 0
  %3961 = vmatpush1.bf16.msra.mxu0 0
  %3962 = vmatprep.subr.bf16.mxu0 0
  %3963 = vmatpush1.bf16.msra.mxu0 0
  %3964 = vmatprep.subr.bf16.mxu0 0
  %3965 = vmatpush1.bf16.msra.mxu0 0
  %3966 = vmatprep.subr.bf16.mxu0 0
  %3967 = vmatpush1.bf16.msra.mxu0 0
  %3968 = vmatprep.mubr.bf16.mxu0 0
  %3969 = vmatmul.mubr.bf16.gmra.mrb[0].mxu0 %v3913
  %v3970 = vpop.f32.mrb[0].mxu0
  %v3971 = vadd.f32 0.0, %v3970
  %v3972 = vpop.f32.mrb[0].mxu0
  %v3973 = vpop.f32.mrb[0].mxu0
  %v3974 = vadd.f32 0.0, %v3973
  %v3975 = vpop.f32.mrb[0].mxu0
  %3976 = vmatprep.mubr.bf16.mxu0 0
  %3977 = vmatmul.mubr.bf16.gmra.mrb[0].mxu0 %v3916
  %v3978 = vpop.f32.mrb[0].mxu0
  %v3979 = vadd.f32 0.0, %v3978
  %v3980 = vpop.f32.mrb[0].mxu0
  %v3981 = vpop.f32.mrb[0].mxu0
  %v3982 = vadd.f32 0.0, %v3981
  %v3983 = vpop.f32.mrb[0].mxu0
  %3984 = vmatprep.mubr.bf16.mxu0 0
  %3985 = vmatmul.mubr.bf16.gmra.mrb[0].mxu0 %v3919
  %v3986 = vpop.f32.mrb[0].mxu0
  %v3987 = vadd.f32 0.0, %v3986
  %v3988 = vpop.f32.mrb[0].mxu0
  %v3989 = vpop.f32.mrb[0].mxu0
  %v3990 = vadd.f32 0.0, %v3989
  %v3991 = vpop.f32.mrb[0].mxu0
  %3992 = vmatprep.mubr.bf16.mxu0 0
  %3993 = vmatmul.mubr.bf16.gmra.mrb[0].mxu0 %v3922
  %v3994 = vpop.f32.mrb[0].mxu0
  %v3995 = vadd.f32 0.0, %v3994
  %v3996 = vpop.f32.mrb[0].mxu0
  %v3997 = vpop.f32.mrb[0].mxu0
  %v3998 = vadd.f32 0.0, %v3997
  %v3999 = vpop.f32.mrb[0].mxu0
  %4000 = vmatprep.mubr.bf16.mxu0 0
  %4001 = vmatmul.mubr.bf16.gmra.mrb[0].mxu0 %v3925
  %v4002 = vpop.f32.mrb[0].mxu0
  %v4003 = vadd.f32 0.0, %v4002
  %v4004 = vpop.f32.mrb[0].mxu0
  %v4005 = vpop.f32.mrb[0].mxu0
  %v4006 = vadd.f32 0.0, %v4005
  %v4007 = vpop.f32.mrb[0].mxu0
  %4008 = vmatprep.mubr.bf16.mxu0 0
  %4009 = vmatmul.mubr.bf16.gmra.mrb[0].mxu0 %v3928
  %v4010 = vpop.f32.mrb[0].mxu0
  %v4011 = vadd.f32 0.0, %v4010
  %v4012 = vpop.f32.mrb[0].mxu0
  %v4013 = vpop.f32.mrb[0].mxu0
  %v4014 = vadd.f32 0.0, %v4013
  %v4015 = vpop.f32.mrb[0].mxu0
  %4016 = vmatprep.mubr.bf16.mxu0 0
  %4017 = vmatmul.mubr.bf16.gmra.mrb[0].mxu0 %v3931
  %v4018 = vpop.f32.mrb[0].mxu0
  %v4019 = vadd.f32 0.0, %v4018
  %v4020 = vpop.f32.mrb[0].mxu0
  %v4021 = vpop.f32.mrb[0].mxu0
  %v4022 = vadd.f32 0.0, %v4021
  %v4023 = vpop.f32.mrb[0].mxu0
  %4024 = vmatprep.mubr.bf16.mxu0 0
  %4025 = vmatmul.mubr.bf16.gmra.mrb[0].mxu0 %v3934
  %v4026 = vpop.f32.mrb[0].mxu0
  %v4027 = vadd.f32 0.0, %v4026
  %v4028 = vpop.f32.mrb[0].mxu0
  %v4029 = vpop.f32.mrb[0].mxu0
  %v4030 = vadd.f32 0.0, %v4029
  %v4031 = vpop.f32.mrb[0].mxu0
  %4032 = vdwg.mxu0
  %v4033 = vxor.u32 %v3971, 2147483648
  %v4034 = vxor.u32 %v3974, 2147483648
  %v4035 = vxor.u32 %v3979, 2147483648
  %v4036 = vxor.u32 %v3982, 2147483648
  %v4037 = vxor.u32 %v3987, 2147483648
  %v4038 = vxor.u32 %v3990, 2147483648
  %v4039 = vxor.u32 %v3995, 2147483648
  %v4040 = vxor.u32 %v3998, 2147483648
  %v4041 = vxor.u32 %v4003, 2147483648
  %v4042 = vxor.u32 %v4006, 2147483648
  %v4043 = vxor.u32 %v4011, 2147483648
  %v4044 = vxor.u32 %v4014, 2147483648
  %v4045 = vxor.u32 %v4019, 2147483648
  %v4046 = vxor.u32 %v4022, 2147483648
  %v4047 = vxor.u32 %v4027, 2147483648
  %v4048 = vxor.u32 %v4030, 2147483648
  %v4049 = vmul.f32 %v4033, 1.442695
  %v4050 = vpow.pop %v4049
  %v4051 = vmul.f32 %v4034, 1.442695
  %v4052 = vpow.pop %v4051
  %v4053 = vmul.f32 %v4035, 1.442695
  %v4054 = vpow.pop %v4053
  %v4055 = vmul.f32 %v4036, 1.442695
  %v4056 = vpow.pop %v4055
  %v4057 = vmul.f32 %v4037, 1.442695
  %v4058 = vpow.pop %v4057
  %v4059 = vmul.f32 %v4038, 1.442695
  %v4060 = vpow.pop %v4059
  %v4061 = vmul.f32 %v4039, 1.442695
  %v4062 = vpow.pop %v4061
  %v4063 = vmul.f32 %v4040, 1.442695
  %v4064 = vpow.pop %v4063
  %v4065 = vmul.f32 %v4041, 1.442695
  %v4066 = vpow.pop %v4065
  %v4067 = vmul.f32 %v4042, 1.442695
  %v4068 = vpow.pop %v4067
  %v4069 = vmul.f32 %v4043, 1.442695
  %v4070 = vpow.pop %v4069
  %v4071 = vmul.f32 %v4044, 1.442695
  %v4072 = vpow.pop %v4071
  %v4073 = vmul.f32 %v4045, 1.442695
  %v4074 = vpow.pop %v4073
  %v4075 = vmul.f32 %v4046, 1.442695
  %v4076 = vpow.pop %v4075
  %v4077 = vmul.f32 %v4047, 1.442695
  %v4078 = vpow.pop %v4077
  %v4079 = vmul.f32 %v4048, 1.442695
  %v4080 = vpow.pop %v4079
  %v4081 = vadd.f32 %v4050, 1.0
  %v4082 = vadd.f32 %v4052, 1.0
  %v4083 = vadd.f32 %v4054, 1.0
  %v4084 = vadd.f32 %v4056, 1.0
  %v4085 = vadd.f32 %v4058, 1.0
  %v4086 = vadd.f32 %v4060, 1.0
  %v4087 = vadd.f32 %v4062, 1.0
  %v4088 = vadd.f32 %v4064, 1.0
  %v4089 = vadd.f32 %v4066, 1.0
  %v4090 = vadd.f32 %v4068, 1.0
  %v4091 = vadd.f32 %v4070, 1.0
  %v4092 = vadd.f32 %v4072, 1.0
  %v4093 = vadd.f32 %v4074, 1.0
  %v4094 = vadd.f32 %v4076, 1.0
  %v4095 = vadd.f32 %v4078, 1.0
  %v4096 = vadd.f32 %v4080, 1.0
  %v4097 = vrcp.pop %v4081
  %v4098 = vmul.f32 1.0, %v4097
  %v4099 = vrcp.pop %v4082
  %v4100 = vmul.f32 1.0, %v4099
  %v4101 = vrcp.pop %v4083
  %v4102 = vmul.f32 1.0, %v4101
  %v4103 = vrcp.pop %v4084
  %v4104 = vmul.f32 1.0, %v4103
  %v4105 = vrcp.pop %v4085
  %v4106 = vmul.f32 1.0, %v4105
  %v4107 = vrcp.pop %v4086
  %v4108 = vmul.f32 1.0, %v4107
  %v4109 = vrcp.pop %v4087
  %v4110 = vmul.f32 1.0, %v4109
  %v4111 = vrcp.pop %v4088
  %v4112 = vmul.f32 1.0, %v4111
  %v4113 = vrcp.pop %v4089
  %v4114 = vmul.f32 1.0, %v4113
  %v4115 = vrcp.pop %v4090
  %v4116 = vmul.f32 1.0, %v4115
  %v4117 = vrcp.pop %v4091
  %v4118 = vmul.f32 1.0, %v4117
  %v4119 = vrcp.pop %v4092
  %v4120 = vmul.f32 1.0, %v4119
  %v4121 = vrcp.pop %v4093
  %v4122 = vmul.f32 1.0, %v4121
  %v4123 = vrcp.pop %v4094
  %v4124 = vmul.f32 1.0, %v4123
  %v4125 = vrcp.pop %v4095
  %v4126 = vmul.f32 1.0, %v4125
  %v4127 = vrcp.pop %v4096
  %v4128 = vmul.f32 1.0, %v4127
  %v4129 = vmul.f32 %v3971, %v4098
  %v4130 = vmul.f32 %v3974, %v4100
  %v4131 = vmul.f32 %v3979, %v4102
  %v4132 = vmul.f32 %v3982, %v4104
  %v4133 = vmul.f32 %v3987, %v4106
  %v4134 = vmul.f32 %v3990, %v4108
  %v4135 = vmul.f32 %v3995, %v4110
  %v4136 = vmul.f32 %v3998, %v4112
  %v4137 = vmul.f32 %v4003, %v4114
  %v4138 = vmul.f32 %v4006, %v4116
  %v4139 = vmul.f32 %v4011, %v4118
  %v4140 = vmul.f32 %v4014, %v4120
  %v4141 = vmul.f32 %v4019, %v4122
  %v4142 = vmul.f32 %v4022, %v4124
  %v4143 = vmul.f32 %v4027, %v4126
  %v4144 = vmul.f32 %v4030, %v4128
  %4161 = vrot.lane.b32.xlu0 %v3971, 64
  %v4162 = vpop.permute.xlu0 %4161
  %4163 = vrot.lane.b32.xlu0 %v3974, 64
  %v4164 = vpop.permute.xlu0 %4163
  %4165 = vrot.lane.b32.xlu0 %v3979, 64
  %v4166 = vpop.permute.xlu0 %4165
  %4167 = vrot.lane.b32.xlu0 %v3982, 64
  %v4168 = vpop.permute.xlu0 %4167
  %4169 = vrot.lane.b32.xlu0 %v3987, 64
  %v4170 = vpop.permute.xlu0 %4169
  %4171 = vrot.lane.b32.xlu0 %v3990, 64
  %v4172 = vpop.permute.xlu0 %4171
  %4173 = vrot.lane.b32.xlu0 %v3995, 64
  %v4174 = vpop.permute.xlu0 %4173
  %4175 = vrot.lane.b32.xlu0 %v3998, 64
  %v4176 = vpop.permute.xlu0 %4175
  %4177 = vrot.lane.b32.xlu0 %v4003, 64
  %v4178 = vpop.permute.xlu0 %4177
  %4179 = vrot.lane.b32.xlu0 %v4006, 64
  %v4180 = vpop.permute.xlu0 %4179
  %4181 = vrot.lane.b32.xlu0 %v4011, 64
  %v4182 = vpop.permute.xlu0 %4181
  %4183 = vrot.lane.b32.xlu0 %v4014, 64
  %v4184 = vpop.permute.xlu0 %4183
  %4185 = vrot.lane.b32.xlu0 %v4019, 64
  %v4186 = vpop.permute.xlu0 %4185
  %4187 = vrot.lane.b32.xlu0 %v4022, 64
  %v4188 = vpop.permute.xlu0 %4187
  %4189 = vrot.lane.b32.xlu0 %v4027, 64
  %v4190 = vpop.permute.xlu0 %4189
  %4191 = vrot.lane.b32.xlu0 %v4030, 64
  %v4192 = vpop.permute.xlu0 %4191
  %v4209 = vmul.f32 %v4129, %v4162
  %v4210 = vmul.f32 %v4130, %v4164
  %v4211 = vmul.f32 %v4131, %v4166
  %v4212 = vmul.f32 %v4132, %v4168
  %v4213 = vmul.f32 %v4133, %v4170
  %v4214 = vmul.f32 %v4134, %v4172
  %v4215 = vmul.f32 %v4135, %v4174
  %v4216 = vmul.f32 %v4136, %v4176
  %v4217 = vmul.f32 %v4137, %v4178
  %v4218 = vmul.f32 %v4138, %v4180
  %v4219 = vmul.f32 %v4139, %v4182
  %v4220 = vmul.f32 %v4140, %v4184
  %v4221 = vmul.f32 %v4141, %v4186
  %v4222 = vmul.f32 %v4142, %v4188
  %v4223 = vmul.f32 %v4143, %v4190
  %v4224 = vmul.f32 %v4144, %v4192
  %v4225 = vpack.c.bf16 %v4210, %v4209
  %v4226 = vpack.c.bf16 %v4212, %v4211
  %v4227 = vpack.c.bf16 %v4214, %v4213
  %v4228 = vpack.c.bf16 %v4216, %v4215
  %v4229 = vpack.c.bf16 %v4218, %v4217
  %v4230 = vpack.c.bf16 %v4220, %v4219
  %v4231 = vpack.c.bf16 %v4222, %v4221
  %v4232 = vpack.c.bf16 %v4224, %v4223
  %v4233 = vld [vmem:[%s11] sm:$0xf]
  %v4234 = vld [vmem:[%s11 + $0x4] sm:$0xf]
  %v4235 = vld [vmem:[%s11 + $0x8] sm:$0xf]
  %v4236 = vld [vmem:[%s11 + $0xc] sm:$0xf]
  %v4237 = vld [vmem:[%s11 + $0x10] sm:$0xf]
  %v4238 = vld [vmem:[%s11 + $0x14] sm:$0xf]
  %v4239 = vld [vmem:[%s11 + $0x18] sm:$0xf]
  %v4240 = vld [vmem:[%s11 + $0x1c] sm:$0xf]
  %v4249 = vunpack.c.l.b16 %v4233
  %v4250 = vunpack.c.l.b16 %v4234
  %v4251 = vunpack.c.l.b16 %v4235
  %v4252 = vunpack.c.l.b16 %v4236
  %v4253 = vunpack.c.l.b16 %v4237
  %v4254 = vunpack.c.l.b16 %v4238
  %v4255 = vunpack.c.l.b16 %v4239
  %v4256 = vunpack.c.l.b16 %v4240
  %v4257 = vpack.c.b16 %v4250, %v4249
  %v4258 = vpack.c.b16 %v4252, %v4251
  %v4259 = vpack.c.b16 %v4254, %v4253
  %v4260 = vpack.c.b16 %v4256, %v4255
  %vm4265 = vcmask 523264
  %v4267 = vsel %vm4265, %v4225, 0
  %v4270 = vsel %vm4265, %v4226, 0
  %v4273 = vsel %vm4265, %v4227, 0
  %v4276 = vsel %vm4265, %v4228, 0
  %v4279 = vsel %vm4265, %v4229, 0
  %v4282 = vsel %vm4265, %v4230, 0
  %v4285 = vsel %vm4265, %v4231, 0
  %v4288 = vsel %vm4265, %v4232, 0
  %4290 = vmatprep.subr.bf16.mxu0 0
  %4291 = vmatpush1.bf16.msra.mxu0 %v4257
  %4292 = vmatprep.subr.bf16.mxu0 0
  %4293 = vmatpush1.bf16.msra.mxu0 %v4258
  %4294 = vmatprep.subr.bf16.mxu0 0
  %4295 = vmatpush1.bf16.msra.mxu0 %v4259
  %4296 = vmatprep.subr.bf16.mxu0 0
  %4297 = vmatpush1.bf16.msra.mxu0 %v4260
  %4298 = vmatprep.subr.bf16.mxu0 0
  %4299 = vmatpush1.bf16.msra.mxu0 0
  %4300 = vmatprep.subr.bf16.mxu0 0
  %4301 = vmatpush1.bf16.msra.mxu0 0
  %4302 = vmatprep.subr.bf16.mxu0 0
  %4303 = vmatpush1.bf16.msra.mxu0 0
  %4304 = vmatprep.subr.bf16.mxu0 0
  %4305 = vmatpush1.bf16.msra.mxu0 0
  %4306 = vmatprep.subr.bf16.mxu0 0
  %4307 = vmatpush1.bf16.msra.mxu0 0
  %4308 = vmatprep.subr.bf16.mxu0 0
  %4309 = vmatpush1.bf16.msra.mxu0 0
  %4310 = vmatprep.subr.bf16.mxu0 0
  %4311 = vmatpush1.bf16.msra.mxu0 0
  %4312 = vmatprep.subr.bf16.mxu0 0
  %4313 = vmatpush1.bf16.msra.mxu0 0
  %4314 = vmatprep.subr.bf16.mxu0 0
  %4315 = vmatpush1.bf16.msra.mxu0 0
  %4316 = vmatprep.subr.bf16.mxu0 0
  %4317 = vmatpush1.bf16.msra.mxu0 0
  %4318 = vmatprep.subr.bf16.mxu0 0
  %4319 = vmatpush1.bf16.msra.mxu0 0
  %4320 = vmatprep.subr.bf16.mxu0 0
  %4321 = vmatpush1.bf16.msra.mxu0 0
  %4322 = vmatprep.mubr.bf16.mxu0 0
  %4323 = vmatmul.mubr.bf16.gmra.mrb[0].mxu0 %v4267
  %v4324 = vpop.f32.mrb[0].mxu0
  %v4325 = vadd.f32 0.0, %v4324
  %v4326 = vpop.f32.mrb[0].mxu0
  %v4327 = vpop.f32.mrb[0].mxu0
  %v4328 = vadd.f32 0.0, %v4327
  %v4329 = vpop.f32.mrb[0].mxu0
  %4330 = vmatprep.mubr.bf16.mxu0 0
  %4331 = vmatmul.mubr.bf16.gmra.mrb[0].mxu0 %v4270
  %v4332 = vpop.f32.mrb[0].mxu0
  %v4333 = vadd.f32 0.0, %v4332
  %v4334 = vpop.f32.mrb[0].mxu0
  %v4335 = vpop.f32.mrb[0].mxu0
  %v4336 = vadd.f32 0.0, %v4335
  %v4337 = vpop.f32.mrb[0].mxu0
  %4338 = vmatprep.mubr.bf16.mxu0 0
  %4339 = vmatmul.mubr.bf16.gmra.mrb[0].mxu0 %v4273
  %v4340 = vpop.f32.mrb[0].mxu0
  %v4341 = vadd.f32 0.0, %v4340
  %v4342 = vpop.f32.mrb[0].mxu0
  %v4343 = vpop.f32.mrb[0].mxu0
  %v4344 = vadd.f32 0.0, %v4343
  %v4345 = vpop.f32.mrb[0].mxu0
  %4346 = vmatprep.mubr.bf16.mxu0 0
  %4347 = vmatmul.mubr.bf16.gmra.mrb[0].mxu0 %v4276
  %v4348 = vpop.f32.mrb[0].mxu0
  %v4349 = vadd.f32 0.0, %v4348
  %v4350 = vpop.f32.mrb[0].mxu0
  %v4351 = vpop.f32.mrb[0].mxu0
  %v4352 = vadd.f32 0.0, %v4351
  %v4353 = vpop.f32.mrb[0].mxu0
  %4354 = vmatprep.mubr.bf16.mxu0 0
  %4355 = vmatmul.mubr.bf16.gmra.mrb[0].mxu0 %v4279
  %v4356 = vpop.f32.mrb[0].mxu0
  %v4357 = vadd.f32 0.0, %v4356
  %v4358 = vpop.f32.mrb[0].mxu0
  %v4359 = vpop.f32.mrb[0].mxu0
  %v4360 = vadd.f32 0.0, %v4359
  %v4361 = vpop.f32.mrb[0].mxu0
  %4362 = vmatprep.mubr.bf16.mxu0 0
  %4363 = vmatmul.mubr.bf16.gmra.mrb[0].mxu0 %v4282
  %v4364 = vpop.f32.mrb[0].mxu0
  %v4365 = vadd.f32 0.0, %v4364
  %v4366 = vpop.f32.mrb[0].mxu0
  %v4367 = vpop.f32.mrb[0].mxu0
  %v4368 = vadd.f32 0.0, %v4367
  %v4369 = vpop.f32.mrb[0].mxu0
  %4370 = vmatprep.mubr.bf16.mxu0 0
  %4371 = vmatmul.mubr.bf16.gmra.mrb[0].mxu0 %v4285
  %v4372 = vpop.f32.mrb[0].mxu0
  %v4373 = vadd.f32 0.0, %v4372
  %v4374 = vpop.f32.mrb[0].mxu0
  %v4375 = vpop.f32.mrb[0].mxu0
  %v4376 = vadd.f32 0.0, %v4375
  %v4377 = vpop.f32.mrb[0].mxu0
  %4378 = vmatprep.mubr.bf16.mxu0 0
  %4379 = vmatmul.mubr.bf16.gmra.mrb[0].mxu0 %v4288
  %v4380 = vpop.f32.mrb[0].mxu0
  %v4381 = vadd.f32 0.0, %v4380
  %v4382 = vpop.f32.mrb[0].mxu0
  %v4383 = vpop.f32.mrb[0].mxu0
  %v4384 = vadd.f32 0.0, %v4383
  %v4385 = vpop.f32.mrb[0].mxu0
  %4386 = vdwg.mxu0
  %v4387 = vadd.f32 %v3721, %v4325
  %v4388 = vadd.f32 %v3722, %v4328
  %v4389 = vadd.f32 %v3723, %v4333
  %v4390 = vadd.f32 %v3724, %v4336
  %v4391 = vadd.f32 %v3725, %v4341
  %v4392 = vadd.f32 %v3726, %v4344
  %v4393 = vadd.f32 %v3727, %v4349
  %v4394 = vadd.f32 %v3728, %v4352
  %v4395 = vadd.f32 %v3729, %v4357
  %v4396 = vadd.f32 %v3730, %v4360
  %v4397 = vadd.f32 %v3731, %v4365
  %v4398 = vadd.f32 %v3732, %v4368
  %v4399 = vadd.f32 %v3733, %v4373
  %v4400 = vadd.f32 %v3734, %v4376
  %v4401 = vadd.f32 %v3735, %v4381
  %v4402 = vadd.f32 %v3736, %v4384
  %s4403 = scalar_lea.vmem %s5, 1
  %v4404 = vld [vmem:[%s4403] sm:$0x1]
  %v4405 = vmul.f32 %v4387, %v4387
  %v4406 = vmul.f32 %v4388, %v4388
  %v4407 = vmul.f32 %v4389, %v4389
  %v4408 = vmul.f32 %v4390, %v4390
  %v4409 = vmul.f32 %v4391, %v4391
  %v4410 = vmul.f32 %v4392, %v4392
  %v4411 = vmul.f32 %v4393, %v4393
  %v4412 = vmul.f32 %v4394, %v4394
  %v4413 = vmul.f32 %v4395, %v4395
  %v4414 = vmul.f32 %v4396, %v4396
  %v4415 = vmul.f32 %v4397, %v4397
  %v4416 = vmul.f32 %v4398, %v4398
  %v4417 = vmul.f32 %v4399, %v4399
  %v4418 = vmul.f32 %v4400, %v4400
  %v4419 = vmul.f32 %v4401, %v4401
  %v4420 = vmul.f32 %v4402, %v4402
  %v4421 = vsel %vm123, %v4405, 0.0
  %4422 = vadd.xlane.f32.xlu0 %v4421
  %v4423 = vpop.xlane.xlu0 %4422
  %v4424 = vsel %vm123, %v4406, 0.0
  %4425 = vadd.xlane.f32.xlu0 %v4424
  %v4426 = vpop.xlane.xlu0 %4425
  %v4427 = vsel %vm123, %v4407, 0.0
  %4428 = vadd.xlane.f32.xlu0 %v4427
  %v4429 = vpop.xlane.xlu0 %4428
  %v4430 = vsel %vm123, %v4408, 0.0
  %4431 = vadd.xlane.f32.xlu0 %v4430
  %v4432 = vpop.xlane.xlu0 %4431
  %v4433 = vsel %vm123, %v4409, 0.0
  %4434 = vadd.xlane.f32.xlu0 %v4433
  %v4435 = vpop.xlane.xlu0 %4434
  %v4436 = vsel %vm123, %v4410, 0.0
  %4437 = vadd.xlane.f32.xlu0 %v4436
  %v4438 = vpop.xlane.xlu0 %4437
  %v4439 = vsel %vm123, %v4411, 0.0
  %4440 = vadd.xlane.f32.xlu0 %v4439
  %v4441 = vpop.xlane.xlu0 %4440
  %v4442 = vsel %vm123, %v4412, 0.0
  %4443 = vadd.xlane.f32.xlu0 %v4442
  %v4444 = vpop.xlane.xlu0 %4443
  %v4445 = vsel %vm123, %v4413, 0.0
  %4446 = vadd.xlane.f32.xlu0 %v4445
  %v4447 = vpop.xlane.xlu0 %4446
  %v4448 = vsel %vm123, %v4414, 0.0
  %4449 = vadd.xlane.f32.xlu0 %v4448
  %v4450 = vpop.xlane.xlu0 %4449
  %v4451 = vsel %vm123, %v4415, 0.0
  %4452 = vadd.xlane.f32.xlu0 %v4451
  %v4453 = vpop.xlane.xlu0 %4452
  %v4454 = vsel %vm123, %v4416, 0.0
  %4455 = vadd.xlane.f32.xlu0 %v4454
  %v4456 = vpop.xlane.xlu0 %4455
  %v4457 = vsel %vm123, %v4417, 0.0
  %4458 = vadd.xlane.f32.xlu0 %v4457
  %v4459 = vpop.xlane.xlu0 %4458
  %v4460 = vsel %vm123, %v4418, 0.0
  %4461 = vadd.xlane.f32.xlu0 %v4460
  %v4462 = vpop.xlane.xlu0 %4461
  %v4463 = vsel %vm123, %v4419, 0.0
  %4464 = vadd.xlane.f32.xlu0 %v4463
  %v4465 = vpop.xlane.xlu0 %4464
  %v4466 = vsel %vm123, %v4420, 0.0
  %4467 = vadd.xlane.f32.xlu0 %v4466
  %v4468 = vpop.xlane.xlu0 %4467
  %v4469 = vmul.f32 %v4423, %v172
  %v4470 = vmul.f32 %v4426, %v172
  %v4471 = vmul.f32 %v4429, %v172
  %v4472 = vmul.f32 %v4432, %v172
  %v4473 = vmul.f32 %v4435, %v172
  %v4474 = vmul.f32 %v4438, %v172
  %v4475 = vmul.f32 %v4441, %v172
  %v4476 = vmul.f32 %v4444, %v172
  %v4477 = vmul.f32 %v4447, %v172
  %v4478 = vmul.f32 %v4450, %v172
  %v4479 = vmul.f32 %v4453, %v172
  %v4480 = vmul.f32 %v4456, %v172
  %v4481 = vmul.f32 %v4459, %v172
  %v4482 = vmul.f32 %v4462, %v172
  %v4483 = vmul.f32 %v4465, %v172
  %v4484 = vmul.f32 %v4468, %v172
  %v4485 = vadd.f32 %v4469, 1e-05
  %v4486 = vadd.f32 %v4470, 1e-05
  %v4487 = vadd.f32 %v4471, 1e-05
  %v4488 = vadd.f32 %v4472, 1e-05
  %v4489 = vadd.f32 %v4473, 1e-05
  %v4490 = vadd.f32 %v4474, 1e-05
  %v4491 = vadd.f32 %v4475, 1e-05
  %v4492 = vadd.f32 %v4476, 1e-05
  %v4493 = vadd.f32 %v4477, 1e-05
  %v4494 = vadd.f32 %v4478, 1e-05
  %v4495 = vadd.f32 %v4479, 1e-05
  %v4496 = vadd.f32 %v4480, 1e-05
  %v4497 = vadd.f32 %v4481, 1e-05
  %v4498 = vadd.f32 %v4482, 1e-05
  %v4499 = vadd.f32 %v4483, 1e-05
  %v4500 = vadd.f32 %v4484, 1e-05
  %v4501 = vrsqrt.pop %v4485
  %v4502 = vrsqrt.pop %v4486
  %v4503 = vrsqrt.pop %v4487
  %v4504 = vrsqrt.pop %v4488
  %v4505 = vrsqrt.pop %v4489
  %v4506 = vrsqrt.pop %v4490
  %v4507 = vrsqrt.pop %v4491
  %v4508 = vrsqrt.pop %v4492
  %v4509 = vrsqrt.pop %v4493
  %v4510 = vrsqrt.pop %v4494
  %v4511 = vrsqrt.pop %v4495
  %v4512 = vrsqrt.pop %v4496
  %v4513 = vrsqrt.pop %v4497
  %v4514 = vrsqrt.pop %v4498
  %v4515 = vrsqrt.pop %v4499
  %v4516 = vrsqrt.pop %v4500
  %v4517 = vmul.f32 %v4387, %v4501
  %v4518 = vmul.f32 %v4388, %v4502
  %v4519 = vmul.f32 %v4389, %v4503
  %v4520 = vmul.f32 %v4390, %v4504
  %v4521 = vmul.f32 %v4391, %v4505
  %v4522 = vmul.f32 %v4392, %v4506
  %v4523 = vmul.f32 %v4393, %v4507
  %v4524 = vmul.f32 %v4394, %v4508
  %v4525 = vmul.f32 %v4395, %v4509
  %v4526 = vmul.f32 %v4396, %v4510
  %v4527 = vmul.f32 %v4397, %v4511
  %v4528 = vmul.f32 %v4398, %v4512
  %v4529 = vmul.f32 %v4399, %v4513
  %v4530 = vmul.f32 %v4400, %v4514
  %v4531 = vmul.f32 %v4401, %v4515
  %v4532 = vmul.f32 %v4402, %v4516
  %v4534 = vlaneseq
  %v4535 = vshrl.u32 %v4534, 7
  %v4536 = vsub.s32 0, %v4535
  %v4537 = vrot.slane %v4404, %v4536
  %v4539 = vmul.f32 %v4517, %v4537
  %v4540 = vmul.f32 %v4518, %v4537
  %v4541 = vmul.f32 %v4519, %v4537
  %v4542 = vmul.f32 %v4520, %v4537
  %v4543 = vmul.f32 %v4521, %v4537
  %v4544 = vmul.f32 %v4522, %v4537
  %v4545 = vmul.f32 %v4523, %v4537
  %v4546 = vmul.f32 %v4524, %v4537
  %v4547 = vmul.f32 %v4525, %v4537
  %v4548 = vmul.f32 %v4526, %v4537
  %v4549 = vmul.f32 %v4527, %v4537
  %v4550 = vmul.f32 %v4528, %v4537
  %v4551 = vmul.f32 %v4529, %v4537
  %v4552 = vmul.f32 %v4530, %v4537
  %v4553 = vmul.f32 %v4531, %v4537
  %v4554 = vmul.f32 %v4532, %v4537
  %v4555 = vpack.c.bf16 %v4540, %v4539
  %v4556 = vpack.c.bf16 %v4542, %v4541
  %v4557 = vpack.c.bf16 %v4544, %v4543
  %v4558 = vpack.c.bf16 %v4546, %v4545
  %v4559 = vpack.c.bf16 %v4548, %v4547
  %v4560 = vpack.c.bf16 %v4550, %v4549
  %v4561 = vpack.c.bf16 %v4552, %v4551
  %v4562 = vpack.c.bf16 %v4554, %v4553
  %s4563 = scalar_lea.vmem %s7, 16
  %v4564 = vld [vmem:[%s4563] sm:$0xf]
  %v4565 = vld [vmem:[%s4563 + $0x4] sm:$0xf]
  %v4566 = vld [vmem:[%s4563 + $0x8] sm:$0xf]
  %v4567 = vld [vmem:[%s4563 + $0xc] sm:$0xf]
  %s4568 = scalar_lea.vmem %s8, 1
  %v4569 = vld [vmem:[%s4568] sm:$0x1]
  %v4571 = vlaneseq
  %v4572 = vshrl.u32 %v4571, 7
  %v4573 = vsub.s32 0, %v4572
  %v4574 = vrot.slane %v4569, %v4573
  %v4580 = vunpack.c.l.b16 %v4564
  %v4581 = vunpack.c.l.b16 %v4565
  %v4582 = vunpack.c.l.b16 %v4566
  %v4583 = vunpack.c.l.b16 %v4567
  %v4584 = vpack.c.b16 %v4581, %v4580
  %v4585 = vpack.c.b16 %v4583, %v4582
  %v4589 = vsel %vm123, %v4555, 0
  %v4592 = vsel %vm123, %v4556, 0
  %v4595 = vsel %vm123, %v4557, 0
  %v4598 = vsel %vm123, %v4558, 0
  %v4601 = vsel %vm123, %v4559, 0
  %v4604 = vsel %vm123, %v4560, 0
  %v4607 = vsel %vm123, %v4561, 0
  %v4610 = vsel %vm123, %v4562, 0
  %4612 = vmatprep.subr.bf16.mxu0 0
  %4613 = vmatpush1.bf16.msra.mxu0 %v4584
  %4614 = vmatprep.subr.bf16.mxu0 0
  %4615 = vmatpush1.bf16.msra.mxu0 %v4585
  %4616 = vmatprep.subr.bf16.mxu0 0
  %4617 = vmatpush1.bf16.msra.mxu0 0
  %4618 = vmatprep.subr.bf16.mxu0 0
  %4619 = vmatpush1.bf16.msra.mxu0 0
  %4620 = vmatprep.subr.bf16.mxu0 0
  %4621 = vmatpush1.bf16.msra.mxu0 0
  %4622 = vmatprep.subr.bf16.mxu0 0
  %4623 = vmatpush1.bf16.msra.mxu0 0
  %4624 = vmatprep.subr.bf16.mxu0 0
  %4625 = vmatpush1.bf16.msra.mxu0 0
  %4626 = vmatprep.subr.bf16.mxu0 0
  %4627 = vmatpush1.bf16.msra.mxu0 0
  %4628 = vmatprep.subr.bf16.mxu0 0
  %4629 = vmatpush1.bf16.msra.mxu0 0
  %4630 = vmatprep.subr.bf16.mxu0 0
  %4631 = vmatpush1.bf16.msra.mxu0 0
  %4632 = vmatprep.subr.bf16.mxu0 0
  %4633 = vmatpush1.bf16.msra.mxu0 0
  %4634 = vmatprep.subr.bf16.mxu0 0
  %4635 = vmatpush1.bf16.msra.mxu0 0
  %4636 = vmatprep.subr.bf16.mxu0 0
  %4637 = vmatpush1.bf16.msra.mxu0 0
  %4638 = vmatprep.subr.bf16.mxu0 0
  %4639 = vmatpush1.bf16.msra.mxu0 0
  %4640 = vmatprep.subr.bf16.mxu0 0
  %4641 = vmatpush1.bf16.msra.mxu0 0
  %4642 = vmatprep.subr.bf16.mxu0 0
  %4643 = vmatpush1.bf16.msra.mxu0 0
  %4644 = vmatprep.mubr.bf16.mxu0 0
  %4645 = vmatmul.mubr.bf16.gmra.mrb[0].mxu0 %v4589
  %v4646 = vpop.f32.mrb[0].mxu0
  %v4647 = vadd.f32 %v4574, %v4646
  %v4648 = vpop.f32.mrb[0].mxu0
  %v4649 = vpop.f32.mrb[0].mxu0
  %v4650 = vadd.f32 %v4574, %v4649
  %v4651 = vpop.f32.mrb[0].mxu0
  %4652 = vmatprep.mubr.bf16.mxu0 0
  %4653 = vmatmul.mubr.bf16.gmra.mrb[0].mxu0 %v4592
  %v4654 = vpop.f32.mrb[0].mxu0
  %v4655 = vadd.f32 %v4574, %v4654
  %v4656 = vpop.f32.mrb[0].mxu0
  %v4657 = vpop.f32.mrb[0].mxu0
  %v4658 = vadd.f32 %v4574, %v4657
  %v4659 = vpop.f32.mrb[0].mxu0
  %4660 = vmatprep.mubr.bf16.mxu0 0
  %4661 = vmatmul.mubr.bf16.gmra.mrb[0].mxu0 %v4595
  %v4662 = vpop.f32.mrb[0].mxu0
  %v4663 = vadd.f32 %v4574, %v4662
  %v4664 = vpop.f32.mrb[0].mxu0
  %v4665 = vpop.f32.mrb[0].mxu0
  %v4666 = vadd.f32 %v4574, %v4665
  %v4667 = vpop.f32.mrb[0].mxu0
  %4668 = vmatprep.mubr.bf16.mxu0 0
  %4669 = vmatmul.mubr.bf16.gmra.mrb[0].mxu0 %v4598
  %v4670 = vpop.f32.mrb[0].mxu0
  %v4671 = vadd.f32 %v4574, %v4670
  %v4672 = vpop.f32.mrb[0].mxu0
  %v4673 = vpop.f32.mrb[0].mxu0
  %v4674 = vadd.f32 %v4574, %v4673
  %v4675 = vpop.f32.mrb[0].mxu0
  %4676 = vmatprep.mubr.bf16.mxu0 0
  %4677 = vmatmul.mubr.bf16.gmra.mrb[0].mxu0 %v4601
  %v4678 = vpop.f32.mrb[0].mxu0
  %v4679 = vadd.f32 %v4574, %v4678
  %v4680 = vpop.f32.mrb[0].mxu0
  %v4681 = vpop.f32.mrb[0].mxu0
  %v4682 = vadd.f32 %v4574, %v4681
  %v4683 = vpop.f32.mrb[0].mxu0
  %4684 = vmatprep.mubr.bf16.mxu0 0
  %4685 = vmatmul.mubr.bf16.gmra.mrb[0].mxu0 %v4604
  %v4686 = vpop.f32.mrb[0].mxu0
  %v4687 = vadd.f32 %v4574, %v4686
  %v4688 = vpop.f32.mrb[0].mxu0
  %v4689 = vpop.f32.mrb[0].mxu0
  %v4690 = vadd.f32 %v4574, %v4689
  %v4691 = vpop.f32.mrb[0].mxu0
  %4692 = vmatprep.mubr.bf16.mxu0 0
  %4693 = vmatmul.mubr.bf16.gmra.mrb[0].mxu0 %v4607
  %v4694 = vpop.f32.mrb[0].mxu0
  %v4695 = vadd.f32 %v4574, %v4694
  %v4696 = vpop.f32.mrb[0].mxu0
  %v4697 = vpop.f32.mrb[0].mxu0
  %v4698 = vadd.f32 %v4574, %v4697
  %v4699 = vpop.f32.mrb[0].mxu0
  %4700 = vmatprep.mubr.bf16.mxu0 0
  %4701 = vmatmul.mubr.bf16.gmra.mrb[0].mxu0 %v4610
  %v4702 = vpop.f32.mrb[0].mxu0
  %v4703 = vadd.f32 %v4574, %v4702
  %v4704 = vpop.f32.mrb[0].mxu0
  %v4705 = vpop.f32.mrb[0].mxu0
  %v4706 = vadd.f32 %v4574, %v4705
  %v4707 = vpop.f32.mrb[0].mxu0
  %4708 = vdwg.mxu0
  %4709 = vrot.lane.b32.xlu0 %v4647, 32
  %v4710 = vpop.permute.xlu0 %4709
  %v4711 = vsel %vm411, %v4710, %v4647
  %4712 = vrot.lane.b32.xlu0 %v4650, 32
  %v4713 = vpop.permute.xlu0 %4712
  %v4714 = vsel %vm411, %v4713, %v4650
  %4715 = vrot.lane.b32.xlu0 %v4655, 32
  %v4716 = vpop.permute.xlu0 %4715
  %v4717 = vsel %vm411, %v4716, %v4655
  %4718 = vrot.lane.b32.xlu0 %v4658, 32
  %v4719 = vpop.permute.xlu0 %4718
  %v4720 = vsel %vm411, %v4719, %v4658
  %4721 = vrot.lane.b32.xlu0 %v4663, 32
  %v4722 = vpop.permute.xlu0 %4721
  %v4723 = vsel %vm411, %v4722, %v4663
  %4724 = vrot.lane.b32.xlu0 %v4666, 32
  %v4725 = vpop.permute.xlu0 %4724
  %v4726 = vsel %vm411, %v4725, %v4666
  %4727 = vrot.lane.b32.xlu0 %v4671, 32
  %v4728 = vpop.permute.xlu0 %4727
  %v4729 = vsel %vm411, %v4728, %v4671
  %4730 = vrot.lane.b32.xlu0 %v4674, 32
  %v4731 = vpop.permute.xlu0 %4730
  %v4732 = vsel %vm411, %v4731, %v4674
  %4733 = vrot.lane.b32.xlu0 %v4679, 32
  %v4734 = vpop.permute.xlu0 %4733
  %v4735 = vsel %vm411, %v4734, %v4679
  %4736 = vrot.lane.b32.xlu0 %v4682, 32
  %v4737 = vpop.permute.xlu0 %4736
  %v4738 = vsel %vm411, %v4737, %v4682
  %4739 = vrot.lane.b32.xlu0 %v4687, 32
  %v4740 = vpop.permute.xlu0 %4739
  %v4741 = vsel %vm411, %v4740, %v4687
  %4742 = vrot.lane.b32.xlu0 %v4690, 32
  %v4743 = vpop.permute.xlu0 %4742
  %v4744 = vsel %vm411, %v4743, %v4690
  %4745 = vrot.lane.b32.xlu0 %v4695, 32
  %v4746 = vpop.permute.xlu0 %4745
  %v4747 = vsel %vm411, %v4746, %v4695
  %4748 = vrot.lane.b32.xlu0 %v4698, 32
  %v4749 = vpop.permute.xlu0 %4748
  %v4750 = vsel %vm411, %v4749, %v4698
  %4751 = vrot.lane.b32.xlu0 %v4703, 32
  %v4752 = vpop.permute.xlu0 %4751
  %v4753 = vsel %vm411, %v4752, %v4703
  %4754 = vrot.lane.b32.xlu0 %v4706, 32
  %v4755 = vpop.permute.xlu0 %4754
  %v4756 = vsel %vm411, %v4755, %v4706
  %4757 = vrot.lane.b32.xlu0 %v4711, 32
  %v4758 = vpop.permute.xlu0 %4757
  %4759 = vrot.lane.b32.xlu0 %v4714, 32
  %v4760 = vpop.permute.xlu0 %4759
  %4761 = vrot.lane.b32.xlu0 %v4717, 32
  %v4762 = vpop.permute.xlu0 %4761
  %4763 = vrot.lane.b32.xlu0 %v4720, 32
  %v4764 = vpop.permute.xlu0 %4763
  %4765 = vrot.lane.b32.xlu0 %v4723, 32
  %v4766 = vpop.permute.xlu0 %4765
  %4767 = vrot.lane.b32.xlu0 %v4726, 32
  %v4768 = vpop.permute.xlu0 %4767
  %4769 = vrot.lane.b32.xlu0 %v4729, 32
  %v4770 = vpop.permute.xlu0 %4769
  %4771 = vrot.lane.b32.xlu0 %v4732, 32
  %v4772 = vpop.permute.xlu0 %4771
  %4773 = vrot.lane.b32.xlu0 %v4735, 32
  %v4774 = vpop.permute.xlu0 %4773
  %4775 = vrot.lane.b32.xlu0 %v4738, 32
  %v4776 = vpop.permute.xlu0 %4775
  %4777 = vrot.lane.b32.xlu0 %v4741, 32
  %v4778 = vpop.permute.xlu0 %4777
  %4779 = vrot.lane.b32.xlu0 %v4744, 32
  %v4780 = vpop.permute.xlu0 %4779
  %4781 = vrot.lane.b32.xlu0 %v4747, 32
  %v4782 = vpop.permute.xlu0 %4781
  %4783 = vrot.lane.b32.xlu0 %v4750, 32
  %v4784 = vpop.permute.xlu0 %4783
  %4785 = vrot.lane.b32.xlu0 %v4753, 32
  %v4786 = vpop.permute.xlu0 %4785
  %4787 = vrot.lane.b32.xlu0 %v4756, 32
  %v4788 = vpop.permute.xlu0 %4787
  %v4789 = vsel %vm411, %v4758, %v4647
  %v4790 = vsel %vm411, %v4760, %v4650
  %v4791 = vsel %vm411, %v4762, %v4655
  %v4792 = vsel %vm411, %v4764, %v4658
  %v4793 = vsel %vm411, %v4766, %v4663
  %v4794 = vsel %vm411, %v4768, %v4666
  %v4795 = vsel %vm411, %v4770, %v4671
  %v4796 = vsel %vm411, %v4772, %v4674
  %v4797 = vsel %vm411, %v4774, %v4679
  %v4798 = vsel %vm411, %v4776, %v4682
  %v4799 = vsel %vm411, %v4778, %v4687
  %v4800 = vsel %vm411, %v4780, %v4690
  %v4801 = vsel %vm411, %v4782, %v4695
  %v4802 = vsel %vm411, %v4784, %v4698
  %v4803 = vsel %vm411, %v4786, %v4703
  %v4804 = vsel %vm411, %v4788, %v4706
  %v4805 = vmul.f32 %v4647, %v74
  %v4806 = vmul.f32 %v4650, %v75
  %v4807 = vmul.f32 %v4655, %v76
  %v4808 = vmul.f32 %v4658, %v77
  %v4809 = vmul.f32 %v4663, %v78
  %v4810 = vmul.f32 %v4666, %v79
  %v4811 = vmul.f32 %v4671, %v80
  %v4812 = vmul.f32 %v4674, %v81
  %v4813 = vmul.f32 %v4679, %v82
  %v4814 = vmul.f32 %v4682, %v83
  %v4815 = vmul.f32 %v4687, %v84
  %v4816 = vmul.f32 %v4690, %v85
  %v4817 = vmul.f32 %v4695, %v86
  %v4818 = vmul.f32 %v4698, %v87
  %v4819 = vmul.f32 %v4703, %v88
  %v4820 = vmul.f32 %v4706, %v89
  %v4821 = vmul.f32 %v4789, %v541
  %v4822 = vmul.f32 %v4790, %v543
  %v4823 = vmul.f32 %v4791, %v545
  %v4824 = vmul.f32 %v4792, %v547
  %v4825 = vmul.f32 %v4793, %v549
  %v4826 = vmul.f32 %v4794, %v551
  %v4827 = vmul.f32 %v4795, %v553
  %v4828 = vmul.f32 %v4796, %v555
  %v4829 = vmul.f32 %v4797, %v557
  %v4830 = vmul.f32 %v4798, %v559
  %v4831 = vmul.f32 %v4799, %v561
  %v4832 = vmul.f32 %v4800, %v563
  %v4833 = vmul.f32 %v4801, %v565
  %v4834 = vmul.f32 %v4802, %v567
  %v4835 = vmul.f32 %v4803, %v569
  %v4836 = vmul.f32 %v4804, %v571
  %4853 = vrot.lane.b32.xlu0 %v4821, 127
  %v4854 = vpop.permute.xlu0 %4853
  %4855 = vrot.lane.b32.xlu0 %v4822, 127
  %v4856 = vpop.permute.xlu0 %4855
  %4857 = vrot.lane.b32.xlu0 %v4823, 127
  %v4858 = vpop.permute.xlu0 %4857
  %4859 = vrot.lane.b32.xlu0 %v4824, 127
  %v4860 = vpop.permute.xlu0 %4859
  %4861 = vrot.lane.b32.xlu0 %v4825, 127
  %v4862 = vpop.permute.xlu0 %4861
  %4863 = vrot.lane.b32.xlu0 %v4826, 127
  %v4864 = vpop.permute.xlu0 %4863
  %4865 = vrot.lane.b32.xlu0 %v4827, 127
  %v4866 = vpop.permute.xlu0 %4865
  %4867 = vrot.lane.b32.xlu0 %v4828, 127
  %v4868 = vpop.permute.xlu0 %4867
  %4869 = vrot.lane.b32.xlu0 %v4829, 127
  %v4870 = vpop.permute.xlu0 %4869
  %4871 = vrot.lane.b32.xlu0 %v4830, 127
  %v4872 = vpop.permute.xlu0 %4871
  %4873 = vrot.lane.b32.xlu0 %v4831, 127
  %v4874 = vpop.permute.xlu0 %4873
  %4875 = vrot.lane.b32.xlu0 %v4832, 127
  %v4876 = vpop.permute.xlu0 %4875
  %4877 = vrot.lane.b32.xlu0 %v4833, 127
  %v4878 = vpop.permute.xlu0 %4877
  %4879 = vrot.lane.b32.xlu0 %v4834, 127
  %v4880 = vpop.permute.xlu0 %4879
  %4881 = vrot.lane.b32.xlu0 %v4835, 127
  %v4882 = vpop.permute.xlu0 %4881
  %4883 = vrot.lane.b32.xlu0 %v4836, 127
  %v4884 = vpop.permute.xlu0 %4883
  %v4901 = vadd.f32 %v4805, %v4854
  %v4902 = vadd.f32 %v4806, %v4856
  %v4903 = vadd.f32 %v4807, %v4858
  %v4904 = vadd.f32 %v4808, %v4860
  %v4905 = vadd.f32 %v4809, %v4862
  %v4906 = vadd.f32 %v4810, %v4864
  %v4907 = vadd.f32 %v4811, %v4866
  %v4908 = vadd.f32 %v4812, %v4868
  %v4909 = vadd.f32 %v4813, %v4870
  %v4910 = vadd.f32 %v4814, %v4872
  %v4911 = vadd.f32 %v4815, %v4874
  %v4912 = vadd.f32 %v4816, %v4876
  %v4913 = vadd.f32 %v4817, %v4878
  %v4914 = vadd.f32 %v4818, %v4880
  %v4915 = vadd.f32 %v4819, %v4882
  %v4916 = vadd.f32 %v4820, %v4884
  %v4917 = vmul.f32 %v4789, %v685
  %v4918 = vmul.f32 %v4790, %v687
  %v4919 = vmul.f32 %v4791, %v689
  %v4920 = vmul.f32 %v4792, %v691
  %v4921 = vmul.f32 %v4793, %v693
  %v4922 = vmul.f32 %v4794, %v695
  %v4923 = vmul.f32 %v4795, %v697
  %v4924 = vmul.f32 %v4796, %v699
  %v4925 = vmul.f32 %v4797, %v701
  %v4926 = vmul.f32 %v4798, %v703
  %v4927 = vmul.f32 %v4799, %v705
  %v4928 = vmul.f32 %v4800, %v707
  %v4929 = vmul.f32 %v4801, %v709
  %v4930 = vmul.f32 %v4802, %v711
  %v4931 = vmul.f32 %v4803, %v713
  %v4932 = vmul.f32 %v4804, %v715
  %4949 = vrot.lane.b32.xlu0 %v4917, 97
  %v4950 = vpop.permute.xlu0 %4949
  %4951 = vrot.lane.b32.xlu0 %v4918, 97
  %v4952 = vpop.permute.xlu0 %4951
  %4953 = vrot.lane.b32.xlu0 %v4919, 97
  %v4954 = vpop.permute.xlu0 %4953
  %4955 = vrot.lane.b32.xlu0 %v4920, 97
  %v4956 = vpop.permute.xlu0 %4955
  %4957 = vrot.lane.b32.xlu0 %v4921, 97
  %v4958 = vpop.permute.xlu0 %4957
  %4959 = vrot.lane.b32.xlu0 %v4922, 97
  %v4960 = vpop.permute.xlu0 %4959
  %4961 = vrot.lane.b32.xlu0 %v4923, 97
  %v4962 = vpop.permute.xlu0 %4961
  %4963 = vrot.lane.b32.xlu0 %v4924, 97
  %v4964 = vpop.permute.xlu0 %4963
  %4965 = vrot.lane.b32.xlu0 %v4925, 97
  %v4966 = vpop.permute.xlu0 %4965
  %4967 = vrot.lane.b32.xlu0 %v4926, 97
  %v4968 = vpop.permute.xlu0 %4967
  %4969 = vrot.lane.b32.xlu0 %v4927, 97
  %v4970 = vpop.permute.xlu0 %4969
  %4971 = vrot.lane.b32.xlu0 %v4928, 97
  %v4972 = vpop.permute.xlu0 %4971
  %4973 = vrot.lane.b32.xlu0 %v4929, 97
  %v4974 = vpop.permute.xlu0 %4973
  %4975 = vrot.lane.b32.xlu0 %v4930, 97
  %v4976 = vpop.permute.xlu0 %4975
  %4977 = vrot.lane.b32.xlu0 %v4931, 97
  %v4978 = vpop.permute.xlu0 %4977
  %4979 = vrot.lane.b32.xlu0 %v4932, 97
  %v4980 = vpop.permute.xlu0 %4979
  %v4997 = vadd.f32 %v4901, %v4950
  %v4998 = vadd.f32 %v4902, %v4952
  %v4999 = vadd.f32 %v4903, %v4954
  %v5000 = vadd.f32 %v4904, %v4956
  %v5001 = vadd.f32 %v4905, %v4958
  %v5002 = vadd.f32 %v4906, %v4960
  %v5003 = vadd.f32 %v4907, %v4962
  %v5004 = vadd.f32 %v4908, %v4964
  %v5005 = vadd.f32 %v4909, %v4966
  %v5006 = vadd.f32 %v4910, %v4968
  %v5007 = vadd.f32 %v4911, %v4970
  %v5008 = vadd.f32 %v4912, %v4972
  %v5009 = vadd.f32 %v4913, %v4974
  %v5010 = vadd.f32 %v4914, %v4976
  %v5011 = vadd.f32 %v4915, %v4978
  %v5012 = vadd.f32 %v4916, %v4980
  %5029 = vrot.lane.b32.xlu0 %v4647, 96
  %v5030 = vpop.permute.xlu0 %5029
  %5031 = vrot.lane.b32.xlu0 %v4650, 96
  %v5032 = vpop.permute.xlu0 %5031
  %5033 = vrot.lane.b32.xlu0 %v4655, 96
  %v5034 = vpop.permute.xlu0 %5033
  %5035 = vrot.lane.b32.xlu0 %v4658, 96
  %v5036 = vpop.permute.xlu0 %5035
  %5037 = vrot.lane.b32.xlu0 %v4663, 96
  %v5038 = vpop.permute.xlu0 %5037
  %5039 = vrot.lane.b32.xlu0 %v4666, 96
  %v5040 = vpop.permute.xlu0 %5039
  %5041 = vrot.lane.b32.xlu0 %v4671, 96
  %v5042 = vpop.permute.xlu0 %5041
  %5043 = vrot.lane.b32.xlu0 %v4674, 96
  %v5044 = vpop.permute.xlu0 %5043
  %5045 = vrot.lane.b32.xlu0 %v4679, 96
  %v5046 = vpop.permute.xlu0 %5045
  %5047 = vrot.lane.b32.xlu0 %v4682, 96
  %v5048 = vpop.permute.xlu0 %5047
  %5049 = vrot.lane.b32.xlu0 %v4687, 96
  %v5050 = vpop.permute.xlu0 %5049
  %5051 = vrot.lane.b32.xlu0 %v4690, 96
  %v5052 = vpop.permute.xlu0 %5051
  %5053 = vrot.lane.b32.xlu0 %v4695, 96
  %v5054 = vpop.permute.xlu0 %5053
  %5055 = vrot.lane.b32.xlu0 %v4698, 96
  %v5056 = vpop.permute.xlu0 %5055
  %5057 = vrot.lane.b32.xlu0 %v4703, 96
  %v5058 = vpop.permute.xlu0 %5057
  %5059 = vrot.lane.b32.xlu0 %v4706, 96
  %v5060 = vpop.permute.xlu0 %5059
  %5077 = vrot.lane.b32.xlu0 %v5030, 16
  %v5078 = vpop.permute.xlu0 %5077
  %v5079 = vsel %vm892, %v5078, %v5030
  %5080 = vrot.lane.b32.xlu0 %v5032, 16
  %v5081 = vpop.permute.xlu0 %5080
  %v5082 = vsel %vm892, %v5081, %v5032
  %5083 = vrot.lane.b32.xlu0 %v5034, 16
  %v5084 = vpop.permute.xlu0 %5083
  %v5085 = vsel %vm892, %v5084, %v5034
  %5086 = vrot.lane.b32.xlu0 %v5036, 16
  %v5087 = vpop.permute.xlu0 %5086
  %v5088 = vsel %vm892, %v5087, %v5036
  %5089 = vrot.lane.b32.xlu0 %v5038, 16
  %v5090 = vpop.permute.xlu0 %5089
  %v5091 = vsel %vm892, %v5090, %v5038
  %5092 = vrot.lane.b32.xlu0 %v5040, 16
  %v5093 = vpop.permute.xlu0 %5092
  %v5094 = vsel %vm892, %v5093, %v5040
  %5095 = vrot.lane.b32.xlu0 %v5042, 16
  %v5096 = vpop.permute.xlu0 %5095
  %v5097 = vsel %vm892, %v5096, %v5042
  %5098 = vrot.lane.b32.xlu0 %v5044, 16
  %v5099 = vpop.permute.xlu0 %5098
  %v5100 = vsel %vm892, %v5099, %v5044
  %5101 = vrot.lane.b32.xlu0 %v5046, 16
  %v5102 = vpop.permute.xlu0 %5101
  %v5103 = vsel %vm892, %v5102, %v5046
  %5104 = vrot.lane.b32.xlu0 %v5048, 16
  %v5105 = vpop.permute.xlu0 %5104
  %v5106 = vsel %vm892, %v5105, %v5048
  %5107 = vrot.lane.b32.xlu0 %v5050, 16
  %v5108 = vpop.permute.xlu0 %5107
  %v5109 = vsel %vm892, %v5108, %v5050
  %5110 = vrot.lane.b32.xlu0 %v5052, 16
  %v5111 = vpop.permute.xlu0 %5110
  %v5112 = vsel %vm892, %v5111, %v5052
  %5113 = vrot.lane.b32.xlu0 %v5054, 16
  %v5114 = vpop.permute.xlu0 %5113
  %v5115 = vsel %vm892, %v5114, %v5054
  %5116 = vrot.lane.b32.xlu0 %v5056, 16
  %v5117 = vpop.permute.xlu0 %5116
  %v5118 = vsel %vm892, %v5117, %v5056
  %5119 = vrot.lane.b32.xlu0 %v5058, 16
  %v5120 = vpop.permute.xlu0 %5119
  %v5121 = vsel %vm892, %v5120, %v5058
  %5122 = vrot.lane.b32.xlu0 %v5060, 16
  %v5123 = vpop.permute.xlu0 %5122
  %v5124 = vsel %vm892, %v5123, %v5060
  %5125 = vrot.lane.b32.xlu0 %v5079, 16
  %v5126 = vpop.permute.xlu0 %5125
  %5127 = vrot.lane.b32.xlu0 %v5082, 16
  %v5128 = vpop.permute.xlu0 %5127
  %5129 = vrot.lane.b32.xlu0 %v5085, 16
  %v5130 = vpop.permute.xlu0 %5129
  %5131 = vrot.lane.b32.xlu0 %v5088, 16
  %v5132 = vpop.permute.xlu0 %5131
  %5133 = vrot.lane.b32.xlu0 %v5091, 16
  %v5134 = vpop.permute.xlu0 %5133
  %5135 = vrot.lane.b32.xlu0 %v5094, 16
  %v5136 = vpop.permute.xlu0 %5135
  %5137 = vrot.lane.b32.xlu0 %v5097, 16
  %v5138 = vpop.permute.xlu0 %5137
  %5139 = vrot.lane.b32.xlu0 %v5100, 16
  %v5140 = vpop.permute.xlu0 %5139
  %5141 = vrot.lane.b32.xlu0 %v5103, 16
  %v5142 = vpop.permute.xlu0 %5141
  %5143 = vrot.lane.b32.xlu0 %v5106, 16
  %v5144 = vpop.permute.xlu0 %5143
  %5145 = vrot.lane.b32.xlu0 %v5109, 16
  %v5146 = vpop.permute.xlu0 %5145
  %5147 = vrot.lane.b32.xlu0 %v5112, 16
  %v5148 = vpop.permute.xlu0 %5147
  %5149 = vrot.lane.b32.xlu0 %v5115, 16
  %v5150 = vpop.permute.xlu0 %5149
  %5151 = vrot.lane.b32.xlu0 %v5118, 16
  %v5152 = vpop.permute.xlu0 %5151
  %5153 = vrot.lane.b32.xlu0 %v5121, 16
  %v5154 = vpop.permute.xlu0 %5153
  %5155 = vrot.lane.b32.xlu0 %v5124, 16
  %v5156 = vpop.permute.xlu0 %5155
  %v5157 = vsel %vm892, %v5126, %v5030
  %v5158 = vsel %vm892, %v5128, %v5032
  %v5159 = vsel %vm892, %v5130, %v5034
  %v5160 = vsel %vm892, %v5132, %v5036
  %v5161 = vsel %vm892, %v5134, %v5038
  %v5162 = vsel %vm892, %v5136, %v5040
  %v5163 = vsel %vm892, %v5138, %v5042
  %v5164 = vsel %vm892, %v5140, %v5044
  %v5165 = vsel %vm892, %v5142, %v5046
  %v5166 = vsel %vm892, %v5144, %v5048
  %v5167 = vsel %vm892, %v5146, %v5050
  %v5168 = vsel %vm892, %v5148, %v5052
  %v5169 = vsel %vm892, %v5150, %v5054
  %v5170 = vsel %vm892, %v5152, %v5056
  %v5171 = vsel %vm892, %v5154, %v5058
  %v5172 = vsel %vm892, %v5156, %v5060
  %v5173 = vmul.f32 %v4647, %v1006
  %v5174 = vmul.f32 %v4650, %v1008
  %v5175 = vmul.f32 %v4655, %v1010
  %v5176 = vmul.f32 %v4658, %v1012
  %v5177 = vmul.f32 %v4663, %v1014
  %v5178 = vmul.f32 %v4666, %v1016
  %v5179 = vmul.f32 %v4671, %v1018
  %v5180 = vmul.f32 %v4674, %v1020
  %v5181 = vmul.f32 %v4679, %v1022
  %v5182 = vmul.f32 %v4682, %v1024
  %v5183 = vmul.f32 %v4687, %v1026
  %v5184 = vmul.f32 %v4690, %v1028
  %v5185 = vmul.f32 %v4695, %v1030
  %v5186 = vmul.f32 %v4698, %v1032
  %v5187 = vmul.f32 %v4703, %v1034
  %v5188 = vmul.f32 %v4706, %v1036
  %v5189 = vmul.f32 %v5157, %v1070
  %v5190 = vmul.f32 %v5158, %v1072
  %v5191 = vmul.f32 %v5159, %v1074
  %v5192 = vmul.f32 %v5160, %v1076
  %v5193 = vmul.f32 %v5161, %v1078
  %v5194 = vmul.f32 %v5162, %v1080
  %v5195 = vmul.f32 %v5163, %v1082
  %v5196 = vmul.f32 %v5164, %v1084
  %v5197 = vmul.f32 %v5165, %v1086
  %v5198 = vmul.f32 %v5166, %v1088
  %v5199 = vmul.f32 %v5167, %v1090
  %v5200 = vmul.f32 %v5168, %v1092
  %v5201 = vmul.f32 %v5169, %v1094
  %v5202 = vmul.f32 %v5170, %v1096
  %v5203 = vmul.f32 %v5171, %v1098
  %v5204 = vmul.f32 %v5172, %v1100
  %5221 = vrot.lane.b32.xlu0 %v5189, 31
  %v5222 = vpop.permute.xlu0 %5221
  %5223 = vrot.lane.b32.xlu0 %v5190, 31
  %v5224 = vpop.permute.xlu0 %5223
  %5225 = vrot.lane.b32.xlu0 %v5191, 31
  %v5226 = vpop.permute.xlu0 %5225
  %5227 = vrot.lane.b32.xlu0 %v5192, 31
  %v5228 = vpop.permute.xlu0 %5227
  %5229 = vrot.lane.b32.xlu0 %v5193, 31
  %v5230 = vpop.permute.xlu0 %5229
  %5231 = vrot.lane.b32.xlu0 %v5194, 31
  %v5232 = vpop.permute.xlu0 %5231
  %5233 = vrot.lane.b32.xlu0 %v5195, 31
  %v5234 = vpop.permute.xlu0 %5233
  %5235 = vrot.lane.b32.xlu0 %v5196, 31
  %v5236 = vpop.permute.xlu0 %5235
  %5237 = vrot.lane.b32.xlu0 %v5197, 31
  %v5238 = vpop.permute.xlu0 %5237
  %5239 = vrot.lane.b32.xlu0 %v5198, 31
  %v5240 = vpop.permute.xlu0 %5239
  %5241 = vrot.lane.b32.xlu0 %v5199, 31
  %v5242 = vpop.permute.xlu0 %5241
  %5243 = vrot.lane.b32.xlu0 %v5200, 31
  %v5244 = vpop.permute.xlu0 %5243
  %5245 = vrot.lane.b32.xlu0 %v5201, 31
  %v5246 = vpop.permute.xlu0 %5245
  %5247 = vrot.lane.b32.xlu0 %v5202, 31
  %v5248 = vpop.permute.xlu0 %5247
  %5249 = vrot.lane.b32.xlu0 %v5203, 31
  %v5250 = vpop.permute.xlu0 %5249
  %5251 = vrot.lane.b32.xlu0 %v5204, 31
  %v5252 = vpop.permute.xlu0 %5251
  %v5269 = vadd.f32 %v5173, %v5222
  %v5270 = vadd.f32 %v5174, %v5224
  %v5271 = vadd.f32 %v5175, %v5226
  %v5272 = vadd.f32 %v5176, %v5228
  %v5273 = vadd.f32 %v5177, %v5230
  %v5274 = vadd.f32 %v5178, %v5232
  %v5275 = vadd.f32 %v5179, %v5234
  %v5276 = vadd.f32 %v5180, %v5236
  %v5277 = vadd.f32 %v5181, %v5238
  %v5278 = vadd.f32 %v5182, %v5240
  %v5279 = vadd.f32 %v5183, %v5242
  %v5280 = vadd.f32 %v5184, %v5244
  %v5281 = vadd.f32 %v5185, %v5246
  %v5282 = vadd.f32 %v5186, %v5248
  %v5283 = vadd.f32 %v5187, %v5250
  %v5284 = vadd.f32 %v5188, %v5252
  %v5285 = vmul.f32 %v5157, %v1214
  %v5286 = vmul.f32 %v5158, %v1216
  %v5287 = vmul.f32 %v5159, %v1218
  %v5288 = vmul.f32 %v5160, %v1220
  %v5289 = vmul.f32 %v5161, %v1222
  %v5290 = vmul.f32 %v5162, %v1224
  %v5291 = vmul.f32 %v5163, %v1226
  %v5292 = vmul.f32 %v5164, %v1228
  %v5293 = vmul.f32 %v5165, %v1230
  %v5294 = vmul.f32 %v5166, %v1232
  %v5295 = vmul.f32 %v5167, %v1234
  %v5296 = vmul.f32 %v5168, %v1236
  %v5297 = vmul.f32 %v5169, %v1238
  %v5298 = vmul.f32 %v5170, %v1240
  %v5299 = vmul.f32 %v5171, %v1242
  %v5300 = vmul.f32 %v5172, %v1244
  %5317 = vrot.lane.b32.xlu0 %v5285, 17
  %v5318 = vpop.permute.xlu0 %5317
  %5319 = vrot.lane.b32.xlu0 %v5286, 17
  %v5320 = vpop.permute.xlu0 %5319
  %5321 = vrot.lane.b32.xlu0 %v5287, 17
  %v5322 = vpop.permute.xlu0 %5321
  %5323 = vrot.lane.b32.xlu0 %v5288, 17
  %v5324 = vpop.permute.xlu0 %5323
  %5325 = vrot.lane.b32.xlu0 %v5289, 17
  %v5326 = vpop.permute.xlu0 %5325
  %5327 = vrot.lane.b32.xlu0 %v5290, 17
  %v5328 = vpop.permute.xlu0 %5327
  %5329 = vrot.lane.b32.xlu0 %v5291, 17
  %v5330 = vpop.permute.xlu0 %5329
  %5331 = vrot.lane.b32.xlu0 %v5292, 17
  %v5332 = vpop.permute.xlu0 %5331
  %5333 = vrot.lane.b32.xlu0 %v5293, 17
  %v5334 = vpop.permute.xlu0 %5333
  %5335 = vrot.lane.b32.xlu0 %v5294, 17
  %v5336 = vpop.permute.xlu0 %5335
  %5337 = vrot.lane.b32.xlu0 %v5295, 17
  %v5338 = vpop.permute.xlu0 %5337
  %5339 = vrot.lane.b32.xlu0 %v5296, 17
  %v5340 = vpop.permute.xlu0 %5339
  %5341 = vrot.lane.b32.xlu0 %v5297, 17
  %v5342 = vpop.permute.xlu0 %5341
  %5343 = vrot.lane.b32.xlu0 %v5298, 17
  %v5344 = vpop.permute.xlu0 %5343
  %5345 = vrot.lane.b32.xlu0 %v5299, 17
  %v5346 = vpop.permute.xlu0 %5345
  %5347 = vrot.lane.b32.xlu0 %v5300, 17
  %v5348 = vpop.permute.xlu0 %5347
  %v5365 = vadd.f32 %v5269, %v5318
  %v5366 = vadd.f32 %v5270, %v5320
  %v5367 = vadd.f32 %v5271, %v5322
  %v5368 = vadd.f32 %v5272, %v5324
  %v5369 = vadd.f32 %v5273, %v5326
  %v5370 = vadd.f32 %v5274, %v5328
  %v5371 = vadd.f32 %v5275, %v5330
  %v5372 = vadd.f32 %v5276, %v5332
  %v5373 = vadd.f32 %v5277, %v5334
  %v5374 = vadd.f32 %v5278, %v5336
  %v5375 = vadd.f32 %v5279, %v5338
  %v5376 = vadd.f32 %v5280, %v5340
  %v5377 = vadd.f32 %v5281, %v5342
  %v5378 = vadd.f32 %v5282, %v5344
  %v5379 = vadd.f32 %v5283, %v5346
  %v5380 = vadd.f32 %v5284, %v5348
  %5397 = vrot.lane.b32.xlu0 %v4997, 120
  %v5398 = vpop.permute.xlu0 %5397
  %5399 = vrot.lane.b32.xlu0 %v4998, 120
  %v5400 = vpop.permute.xlu0 %5399
  %5401 = vrot.lane.b32.xlu0 %v4999, 120
  %v5402 = vpop.permute.xlu0 %5401
  %5403 = vrot.lane.b32.xlu0 %v5000, 120
  %v5404 = vpop.permute.xlu0 %5403
  %5405 = vrot.lane.b32.xlu0 %v5001, 120
  %v5406 = vpop.permute.xlu0 %5405
  %5407 = vrot.lane.b32.xlu0 %v5002, 120
  %v5408 = vpop.permute.xlu0 %5407
  %5409 = vrot.lane.b32.xlu0 %v5003, 120
  %v5410 = vpop.permute.xlu0 %5409
  %5411 = vrot.lane.b32.xlu0 %v5004, 120
  %v5412 = vpop.permute.xlu0 %5411
  %5413 = vrot.lane.b32.xlu0 %v5005, 120
  %v5414 = vpop.permute.xlu0 %5413
  %5415 = vrot.lane.b32.xlu0 %v5006, 120
  %v5416 = vpop.permute.xlu0 %5415
  %5417 = vrot.lane.b32.xlu0 %v5007, 120
  %v5418 = vpop.permute.xlu0 %5417
  %5419 = vrot.lane.b32.xlu0 %v5008, 120
  %v5420 = vpop.permute.xlu0 %5419
  %5421 = vrot.lane.b32.xlu0 %v5009, 120
  %v5422 = vpop.permute.xlu0 %5421
  %5423 = vrot.lane.b32.xlu0 %v5010, 120
  %v5424 = vpop.permute.xlu0 %5423
  %5425 = vrot.lane.b32.xlu0 %v5011, 120
  %v5426 = vpop.permute.xlu0 %5425
  %5427 = vrot.lane.b32.xlu0 %v5012, 120
  %v5428 = vpop.permute.xlu0 %5427
  %5445 = vrot.lane.b32.xlu0 %v4997, 112
  %v5446 = vpop.permute.xlu0 %5445
  %5447 = vrot.lane.b32.xlu0 %v4998, 112
  %v5448 = vpop.permute.xlu0 %5447
  %5449 = vrot.lane.b32.xlu0 %v4999, 112
  %v5450 = vpop.permute.xlu0 %5449
  %5451 = vrot.lane.b32.xlu0 %v5000, 112
  %v5452 = vpop.permute.xlu0 %5451
  %5453 = vrot.lane.b32.xlu0 %v5001, 112
  %v5454 = vpop.permute.xlu0 %5453
  %5455 = vrot.lane.b32.xlu0 %v5002, 112
  %v5456 = vpop.permute.xlu0 %5455
  %5457 = vrot.lane.b32.xlu0 %v5003, 112
  %v5458 = vpop.permute.xlu0 %5457
  %5459 = vrot.lane.b32.xlu0 %v5004, 112
  %v5460 = vpop.permute.xlu0 %5459
  %5461 = vrot.lane.b32.xlu0 %v5005, 112
  %v5462 = vpop.permute.xlu0 %5461
  %5463 = vrot.lane.b32.xlu0 %v5006, 112
  %v5464 = vpop.permute.xlu0 %5463
  %5465 = vrot.lane.b32.xlu0 %v5007, 112
  %v5466 = vpop.permute.xlu0 %5465
  %5467 = vrot.lane.b32.xlu0 %v5008, 112
  %v5468 = vpop.permute.xlu0 %5467
  %5469 = vrot.lane.b32.xlu0 %v5009, 112
  %v5470 = vpop.permute.xlu0 %5469
  %5471 = vrot.lane.b32.xlu0 %v5010, 112
  %v5472 = vpop.permute.xlu0 %5471
  %5473 = vrot.lane.b32.xlu0 %v5011, 112
  %v5474 = vpop.permute.xlu0 %5473
  %5475 = vrot.lane.b32.xlu0 %v5012, 112
  %v5476 = vpop.permute.xlu0 %5475
  %5493 = vrot.lane.b32.xlu0 %v4997, 104
  %v5494 = vpop.permute.xlu0 %5493
  %5495 = vrot.lane.b32.xlu0 %v4998, 104
  %v5496 = vpop.permute.xlu0 %5495
  %5497 = vrot.lane.b32.xlu0 %v4999, 104
  %v5498 = vpop.permute.xlu0 %5497
  %5499 = vrot.lane.b32.xlu0 %v5000, 104
  %v5500 = vpop.permute.xlu0 %5499
  %5501 = vrot.lane.b32.xlu0 %v5001, 104
  %v5502 = vpop.permute.xlu0 %5501
  %5503 = vrot.lane.b32.xlu0 %v5002, 104
  %v5504 = vpop.permute.xlu0 %5503
  %5505 = vrot.lane.b32.xlu0 %v5003, 104
  %v5506 = vpop.permute.xlu0 %5505
  %5507 = vrot.lane.b32.xlu0 %v5004, 104
  %v5508 = vpop.permute.xlu0 %5507
  %5509 = vrot.lane.b32.xlu0 %v5005, 104
  %v5510 = vpop.permute.xlu0 %5509
  %5511 = vrot.lane.b32.xlu0 %v5006, 104
  %v5512 = vpop.permute.xlu0 %5511
  %5513 = vrot.lane.b32.xlu0 %v5007, 104
  %v5514 = vpop.permute.xlu0 %5513
  %5515 = vrot.lane.b32.xlu0 %v5008, 104
  %v5516 = vpop.permute.xlu0 %5515
  %5517 = vrot.lane.b32.xlu0 %v5009, 104
  %v5518 = vpop.permute.xlu0 %5517
  %5519 = vrot.lane.b32.xlu0 %v5010, 104
  %v5520 = vpop.permute.xlu0 %5519
  %5521 = vrot.lane.b32.xlu0 %v5011, 104
  %v5522 = vpop.permute.xlu0 %5521
  %5523 = vrot.lane.b32.xlu0 %v5012, 104
  %v5524 = vpop.permute.xlu0 %5523
  %v5541 = vpack.c.bf16 %v4998, %v4997
  %v5542 = vpack.c.bf16 %v5000, %v4999
  %v5543 = vpack.c.bf16 %v5002, %v5001
  %v5544 = vpack.c.bf16 %v5004, %v5003
  %v5545 = vpack.c.bf16 %v5006, %v5005
  %v5546 = vpack.c.bf16 %v5008, %v5007
  %v5547 = vpack.c.bf16 %v5010, %v5009
  %v5548 = vpack.c.bf16 %v5012, %v5011
  %v5549 = vpack.c.bf16 %v5400, %v5398
  %v5550 = vpack.c.bf16 %v5404, %v5402
  %v5551 = vpack.c.bf16 %v5408, %v5406
  %v5552 = vpack.c.bf16 %v5412, %v5410
  %v5553 = vpack.c.bf16 %v5416, %v5414
  %v5554 = vpack.c.bf16 %v5420, %v5418
  %v5555 = vpack.c.bf16 %v5424, %v5422
  %v5556 = vpack.c.bf16 %v5428, %v5426
  %v5557 = vpack.c.bf16 %v5448, %v5446
  %v5558 = vpack.c.bf16 %v5452, %v5450
  %v5559 = vpack.c.bf16 %v5456, %v5454
  %v5560 = vpack.c.bf16 %v5460, %v5458
  %v5561 = vpack.c.bf16 %v5464, %v5462
  %v5562 = vpack.c.bf16 %v5468, %v5466
  %v5563 = vpack.c.bf16 %v5472, %v5470
  %v5564 = vpack.c.bf16 %v5476, %v5474
  %v5565 = vpack.c.bf16 %v5496, %v5494
  %v5566 = vpack.c.bf16 %v5500, %v5498
  %v5567 = vpack.c.bf16 %v5504, %v5502
  %v5568 = vpack.c.bf16 %v5508, %v5506
  %v5569 = vpack.c.bf16 %v5512, %v5510
  %v5570 = vpack.c.bf16 %v5516, %v5514
  %v5571 = vpack.c.bf16 %v5520, %v5518
  %v5572 = vpack.c.bf16 %v5524, %v5522
  %5589 = vrot.lane.b32.xlu0 %v5365, 120
  %v5590 = vpop.permute.xlu0 %5589
  %5591 = vrot.lane.b32.xlu0 %v5366, 120
  %v5592 = vpop.permute.xlu0 %5591
  %5593 = vrot.lane.b32.xlu0 %v5367, 120
  %v5594 = vpop.permute.xlu0 %5593
  %5595 = vrot.lane.b32.xlu0 %v5368, 120
  %v5596 = vpop.permute.xlu0 %5595
  %5597 = vrot.lane.b32.xlu0 %v5369, 120
  %v5598 = vpop.permute.xlu0 %5597
  %5599 = vrot.lane.b32.xlu0 %v5370, 120
  %v5600 = vpop.permute.xlu0 %5599
  %5601 = vrot.lane.b32.xlu0 %v5371, 120
  %v5602 = vpop.permute.xlu0 %5601
  %5603 = vrot.lane.b32.xlu0 %v5372, 120
  %v5604 = vpop.permute.xlu0 %5603
  %5605 = vrot.lane.b32.xlu0 %v5373, 120
  %v5606 = vpop.permute.xlu0 %5605
  %5607 = vrot.lane.b32.xlu0 %v5374, 120
  %v5608 = vpop.permute.xlu0 %5607
  %5609 = vrot.lane.b32.xlu0 %v5375, 120
  %v5610 = vpop.permute.xlu0 %5609
  %5611 = vrot.lane.b32.xlu0 %v5376, 120
  %v5612 = vpop.permute.xlu0 %5611
  %5613 = vrot.lane.b32.xlu0 %v5377, 120
  %v5614 = vpop.permute.xlu0 %5613
  %5615 = vrot.lane.b32.xlu0 %v5378, 120
  %v5616 = vpop.permute.xlu0 %5615
  %5617 = vrot.lane.b32.xlu0 %v5379, 120
  %v5618 = vpop.permute.xlu0 %5617
  %5619 = vrot.lane.b32.xlu0 %v5380, 120
  %v5620 = vpop.permute.xlu0 %5619
  %v5637 = vpack.c.bf16 %v5366, %v5365
  %v5638 = vpack.c.bf16 %v5368, %v5367
  %v5639 = vpack.c.bf16 %v5370, %v5369
  %v5640 = vpack.c.bf16 %v5372, %v5371
  %v5641 = vpack.c.bf16 %v5374, %v5373
  %v5642 = vpack.c.bf16 %v5376, %v5375
  %v5643 = vpack.c.bf16 %v5378, %v5377
  %v5644 = vpack.c.bf16 %v5380, %v5379
  %v5645 = vpack.c.bf16 %v5592, %v5590
  %v5646 = vpack.c.bf16 %v5596, %v5594
  %v5647 = vpack.c.bf16 %v5600, %v5598
  %v5648 = vpack.c.bf16 %v5604, %v5602
  %v5649 = vpack.c.bf16 %v5608, %v5606
  %v5650 = vpack.c.bf16 %v5612, %v5610
  %v5651 = vpack.c.bf16 %v5616, %v5614
  %v5652 = vpack.c.bf16 %v5620, %v5618
  %5653 = vrot.lane.b32.xlu0 %v4647, 120
  %v5654 = vpop.permute.xlu0 %5653
  %5655 = vrot.lane.b32.xlu0 %v4650, 120
  %v5656 = vpop.permute.xlu0 %5655
  %5657 = vrot.lane.b32.xlu0 %v4655, 120
  %v5658 = vpop.permute.xlu0 %5657
  %5659 = vrot.lane.b32.xlu0 %v4658, 120
  %v5660 = vpop.permute.xlu0 %5659
  %5661 = vrot.lane.b32.xlu0 %v4663, 120
  %v5662 = vpop.permute.xlu0 %5661
  %5663 = vrot.lane.b32.xlu0 %v4666, 120
  %v5664 = vpop.permute.xlu0 %5663
  %5665 = vrot.lane.b32.xlu0 %v4671, 120
  %v5666 = vpop.permute.xlu0 %5665
  %5667 = vrot.lane.b32.xlu0 %v4674, 120
  %v5668 = vpop.permute.xlu0 %5667
  %5669 = vrot.lane.b32.xlu0 %v4679, 120
  %v5670 = vpop.permute.xlu0 %5669
  %5671 = vrot.lane.b32.xlu0 %v4682, 120
  %v5672 = vpop.permute.xlu0 %5671
  %5673 = vrot.lane.b32.xlu0 %v4687, 120
  %v5674 = vpop.permute.xlu0 %5673
  %5675 = vrot.lane.b32.xlu0 %v4690, 120
  %v5676 = vpop.permute.xlu0 %5675
  %5677 = vrot.lane.b32.xlu0 %v4695, 120
  %v5678 = vpop.permute.xlu0 %5677
  %5679 = vrot.lane.b32.xlu0 %v4698, 120
  %v5680 = vpop.permute.xlu0 %5679
  %5681 = vrot.lane.b32.xlu0 %v4703, 120
  %v5682 = vpop.permute.xlu0 %5681
  %5683 = vrot.lane.b32.xlu0 %v4706, 120
  %v5684 = vpop.permute.xlu0 %5683
  %v5701 = vpack.c.bf16 %v4650, %v4647
  %v5702 = vpack.c.bf16 %v4658, %v4655
  %v5703 = vpack.c.bf16 %v4666, %v4663
  %v5704 = vpack.c.bf16 %v4674, %v4671
  %v5705 = vpack.c.bf16 %v4682, %v4679
  %v5706 = vpack.c.bf16 %v4690, %v4687
  %v5707 = vpack.c.bf16 %v4698, %v4695
  %v5708 = vpack.c.bf16 %v4706, %v4703
  %v5709 = vpack.c.bf16 %v5656, %v5654
  %v5710 = vpack.c.bf16 %v5660, %v5658
  %v5711 = vpack.c.bf16 %v5664, %v5662
  %v5712 = vpack.c.bf16 %v5668, %v5666
  %v5713 = vpack.c.bf16 %v5672, %v5670
  %v5714 = vpack.c.bf16 %v5676, %v5674
  %v5715 = vpack.c.bf16 %v5680, %v5678
  %v5716 = vpack.c.bf16 %v5684, %v5682
  %5725 = vrot.lane.b32.xlu0 %v5637, 96
  %v5726 = vpop.permute.xlu0 %5725
  %5727 = vrot.lane.b32.xlu0 %v5638, 96
  %v5728 = vpop.permute.xlu0 %5727
  %5729 = vrot.lane.b32.xlu0 %v5639, 96
  %v5730 = vpop.permute.xlu0 %5729
  %5731 = vrot.lane.b32.xlu0 %v5640, 96
  %v5732 = vpop.permute.xlu0 %5731
  %5733 = vrot.lane.b32.xlu0 %v5641, 96
  %v5734 = vpop.permute.xlu0 %5733
  %5735 = vrot.lane.b32.xlu0 %v5642, 96
  %v5736 = vpop.permute.xlu0 %5735
  %5737 = vrot.lane.b32.xlu0 %v5643, 96
  %v5738 = vpop.permute.xlu0 %5737
  %5739 = vrot.lane.b32.xlu0 %v5644, 96
  %v5740 = vpop.permute.xlu0 %5739
  %v5742 = vsel %vm1717, %v5541, 0
  %v5745 = vsel %vm1717, %v5542, 0
  %v5748 = vsel %vm1717, %v5543, 0
  %v5751 = vsel %vm1717, %v5544, 0
  %v5754 = vsel %vm1717, %v5545, 0
  %v5757 = vsel %vm1717, %v5546, 0
  %v5760 = vsel %vm1717, %v5547, 0
  %v5763 = vsel %vm1717, %v5548, 0
  %v5766 = vsel %vm1717, %v5726, 0
  %v5769 = vsel %vm1717, %v5728, 0
  %v5772 = vsel %vm1717, %v5730, 0
  %v5775 = vsel %vm1717, %v5732, 0
  %v5778 = vsel %vm1717, %v5734, 0
  %v5781 = vsel %vm1717, %v5736, 0
  %v5784 = vsel %vm1717, %v5738, 0
  %v5787 = vsel %vm1717, %v5740, 0
  %5789 = vmatprep.subr.bf16.mxu0 0
  %5790 = vmatpush1.bf16.xpose.msra.mxu0 %v5766
  %5791 = vmatprep.subr.bf16.mxu0 0
  %5792 = vmatpush1.bf16.xpose.msra.mxu0 %v5769
  %5793 = vmatprep.subr.bf16.mxu0 0
  %5794 = vmatpush1.bf16.xpose.msra.mxu0 %v5772
  %5795 = vmatprep.subr.bf16.mxu0 0
  %5796 = vmatpush1.bf16.xpose.msra.mxu0 %v5775
  %5797 = vmatprep.subr.bf16.mxu0 0
  %5798 = vmatpush1.bf16.xpose.msra.mxu0 %v5778
  %5799 = vmatprep.subr.bf16.mxu0 0
  %5800 = vmatpush1.bf16.xpose.msra.mxu0 %v5781
  %5801 = vmatprep.subr.bf16.mxu0 0
  %5802 = vmatpush1.bf16.xpose.msra.mxu0 %v5784
  %5803 = vmatprep.subr.bf16.mxu0 0
  %5804 = vmatpush1.bf16.xpose.msra.mxu0 %v5787
  %5805 = vmatprep.subr.bf16.mxu0 0
  %5806 = vmatpush1.bf16.xpose.msra.mxu0 0
  %5807 = vmatprep.subr.bf16.mxu0 0
  %5808 = vmatpush1.bf16.xpose.msra.mxu0 0
  %5809 = vmatprep.subr.bf16.mxu0 0
  %5810 = vmatpush1.bf16.xpose.msra.mxu0 0
  %5811 = vmatprep.subr.bf16.mxu0 0
  %5812 = vmatpush1.bf16.xpose.msra.mxu0 0
  %5813 = vmatprep.subr.bf16.mxu0 0
  %5814 = vmatpush1.bf16.xpose.msra.mxu0 0
  %5815 = vmatprep.subr.bf16.mxu0 0
  %5816 = vmatpush1.bf16.xpose.msra.mxu0 0
  %5817 = vmatprep.subr.bf16.mxu0 0
  %5818 = vmatpush1.bf16.xpose.msra.mxu0 0
  %5819 = vmatprep.subr.bf16.mxu0 0
  %5820 = vmatpush1.bf16.xpose.msra.mxu0 0
  %5821 = vmatprep.mubr.bf16.mxu0 0
  %5822 = vmatmul.mubr.bf16.gmra.mrb[0].mxu0 %v5742
  %v5823 = vpop.f32.mrb[0].mxu0
  %v5824 = vadd.f32 %v58, %v5823
  %v5825 = vpop.f32.mrb[0].mxu0
  %v5826 = vpop.f32.mrb[0].mxu0
  %v5827 = vadd.f32 %v59, %v5826
  %v5828 = vpop.f32.mrb[0].mxu0
  %5829 = vmatprep.mubr.bf16.mxu0 0
  %5830 = vmatmul.mubr.bf16.gmra.mrb[0].mxu0 %v5745
  %v5831 = vpop.f32.mrb[0].mxu0
  %v5832 = vadd.f32 %v60, %v5831
  %v5833 = vpop.f32.mrb[0].mxu0
  %v5834 = vpop.f32.mrb[0].mxu0
  %v5835 = vadd.f32 %v61, %v5834
  %v5836 = vpop.f32.mrb[0].mxu0
  %5837 = vmatprep.mubr.bf16.mxu0 0
  %5838 = vmatmul.mubr.bf16.gmra.mrb[0].mxu0 %v5748
  %v5839 = vpop.f32.mrb[0].mxu0
  %v5840 = vadd.f32 %v62, %v5839
  %v5841 = vpop.f32.mrb[0].mxu0
  %v5842 = vpop.f32.mrb[0].mxu0
  %v5843 = vadd.f32 %v63, %v5842
  %v5844 = vpop.f32.mrb[0].mxu0
  %5845 = vmatprep.mubr.bf16.mxu0 0
  %5846 = vmatmul.mubr.bf16.gmra.mrb[0].mxu0 %v5751
  %v5847 = vpop.f32.mrb[0].mxu0
  %v5848 = vadd.f32 %v64, %v5847
  %v5849 = vpop.f32.mrb[0].mxu0
  %v5850 = vpop.f32.mrb[0].mxu0
  %v5851 = vadd.f32 %v65, %v5850
  %v5852 = vpop.f32.mrb[0].mxu0
  %5853 = vmatprep.mubr.bf16.mxu0 0
  %5854 = vmatmul.mubr.bf16.gmra.mrb[0].mxu0 %v5754
  %v5855 = vpop.f32.mrb[0].mxu0
  %v5856 = vadd.f32 %v66, %v5855
  %v5857 = vpop.f32.mrb[0].mxu0
  %v5858 = vpop.f32.mrb[0].mxu0
  %v5859 = vadd.f32 %v67, %v5858
  %v5860 = vpop.f32.mrb[0].mxu0
  %5861 = vmatprep.mubr.bf16.mxu0 0
  %5862 = vmatmul.mubr.bf16.gmra.mrb[0].mxu0 %v5757
  %v5863 = vpop.f32.mrb[0].mxu0
  %v5864 = vadd.f32 %v68, %v5863
  %v5865 = vpop.f32.mrb[0].mxu0
  %v5866 = vpop.f32.mrb[0].mxu0
  %v5867 = vadd.f32 %v69, %v5866
  %v5868 = vpop.f32.mrb[0].mxu0
  %5869 = vmatprep.mubr.bf16.mxu0 0
  %5870 = vmatmul.mubr.bf16.gmra.mrb[0].mxu0 %v5760
  %v5871 = vpop.f32.mrb[0].mxu0
  %v5872 = vadd.f32 %v70, %v5871
  %v5873 = vpop.f32.mrb[0].mxu0
  %v5874 = vpop.f32.mrb[0].mxu0
  %v5875 = vadd.f32 %v71, %v5874
  %v5876 = vpop.f32.mrb[0].mxu0
  %5877 = vmatprep.mubr.bf16.mxu0 0
  %5878 = vmatmul.mubr.bf16.gmra.mrb[0].mxu0 %v5763
  %v5879 = vpop.f32.mrb[0].mxu0
  %v5880 = vadd.f32 %v72, %v5879
  %v5881 = vpop.f32.mrb[0].mxu0
  %v5882 = vpop.f32.mrb[0].mxu0
  %v5883 = vadd.f32 %v73, %v5882
  %v5884 = vpop.f32.mrb[0].mxu0
  %5885 = vdwg.mxu0
  %v5887 = vsel %vm1717, %v5549, 0
  %v5890 = vsel %vm1717, %v5550, 0
  %v5893 = vsel %vm1717, %v5551, 0
  %v5896 = vsel %vm1717, %v5552, 0
  %v5899 = vsel %vm1717, %v5553, 0
  %v5902 = vsel %vm1717, %v5554, 0
  %v5905 = vsel %vm1717, %v5555, 0
  %v5908 = vsel %vm1717, %v5556, 0
  %5910 = vmatprep.subr.bf16.mxu0 0
  %5911 = vmatpush1.bf16.xpose.msra.mxu0 %v5766
  %5912 = vmatprep.subr.bf16.mxu0 0
  %5913 = vmatpush1.bf16.xpose.msra.mxu0 %v5769
  %5914 = vmatprep.subr.bf16.mxu0 0
  %5915 = vmatpush1.bf16.xpose.msra.mxu0 %v5772
  %5916 = vmatprep.subr.bf16.mxu0 0
  %5917 = vmatpush1.bf16.xpose.msra.mxu0 %v5775
  %5918 = vmatprep.subr.bf16.mxu0 0
  %5919 = vmatpush1.bf16.xpose.msra.mxu0 %v5778
  %5920 = vmatprep.subr.bf16.mxu0 0
  %5921 = vmatpush1.bf16.xpose.msra.mxu0 %v5781
  %5922 = vmatprep.subr.bf16.mxu0 0
  %5923 = vmatpush1.bf16.xpose.msra.mxu0 %v5784
  %5924 = vmatprep.subr.bf16.mxu0 0
  %5925 = vmatpush1.bf16.xpose.msra.mxu0 %v5787
  %5926 = vmatprep.subr.bf16.mxu0 0
  %5927 = vmatpush1.bf16.xpose.msra.mxu0 0
  %5928 = vmatprep.subr.bf16.mxu0 0
  %5929 = vmatpush1.bf16.xpose.msra.mxu0 0
  %5930 = vmatprep.subr.bf16.mxu0 0
  %5931 = vmatpush1.bf16.xpose.msra.mxu0 0
  %5932 = vmatprep.subr.bf16.mxu0 0
  %5933 = vmatpush1.bf16.xpose.msra.mxu0 0
  %5934 = vmatprep.subr.bf16.mxu0 0
  %5935 = vmatpush1.bf16.xpose.msra.mxu0 0
  %5936 = vmatprep.subr.bf16.mxu0 0
  %5937 = vmatpush1.bf16.xpose.msra.mxu0 0
  %5938 = vmatprep.subr.bf16.mxu0 0
  %5939 = vmatpush1.bf16.xpose.msra.mxu0 0
  %5940 = vmatprep.subr.bf16.mxu0 0
  %5941 = vmatpush1.bf16.xpose.msra.mxu0 0
  %5942 = vmatprep.mubr.bf16.mxu0 0
  %5943 = vmatmul.mubr.bf16.gmra.mrb[0].mxu0 %v5887
  %v5944 = vpop.f32.mrb[0].mxu0
  %v5945 = vadd.f32 %v58, %v5944
  %v5946 = vpop.f32.mrb[0].mxu0
  %v5947 = vpop.f32.mrb[0].mxu0
  %v5948 = vadd.f32 %v59, %v5947
  %v5949 = vpop.f32.mrb[0].mxu0
  %5950 = vmatprep.mubr.bf16.mxu0 0
  %5951 = vmatmul.mubr.bf16.gmra.mrb[0].mxu0 %v5890
  %v5952 = vpop.f32.mrb[0].mxu0
  %v5953 = vadd.f32 %v60, %v5952
  %v5954 = vpop.f32.mrb[0].mxu0
  %v5955 = vpop.f32.mrb[0].mxu0
  %v5956 = vadd.f32 %v61, %v5955
  %v5957 = vpop.f32.mrb[0].mxu0
  %5958 = vmatprep.mubr.bf16.mxu0 0
  %5959 = vmatmul.mubr.bf16.gmra.mrb[0].mxu0 %v5893
  %v5960 = vpop.f32.mrb[0].mxu0
  %v5961 = vadd.f32 %v62, %v5960
  %v5962 = vpop.f32.mrb[0].mxu0
  %v5963 = vpop.f32.mrb[0].mxu0
  %v5964 = vadd.f32 %v63, %v5963
  %v5965 = vpop.f32.mrb[0].mxu0
  %5966 = vmatprep.mubr.bf16.mxu0 0
  %5967 = vmatmul.mubr.bf16.gmra.mrb[0].mxu0 %v5896
  %v5968 = vpop.f32.mrb[0].mxu0
  %v5969 = vadd.f32 %v64, %v5968
  %v5970 = vpop.f32.mrb[0].mxu0
  %v5971 = vpop.f32.mrb[0].mxu0
  %v5972 = vadd.f32 %v65, %v5971
  %v5973 = vpop.f32.mrb[0].mxu0
  %5974 = vmatprep.mubr.bf16.mxu0 0
  %5975 = vmatmul.mubr.bf16.gmra.mrb[0].mxu0 %v5899
  %v5976 = vpop.f32.mrb[0].mxu0
  %v5977 = vadd.f32 %v66, %v5976
  %v5978 = vpop.f32.mrb[0].mxu0
  %v5979 = vpop.f32.mrb[0].mxu0
  %v5980 = vadd.f32 %v67, %v5979
  %v5981 = vpop.f32.mrb[0].mxu0
  %5982 = vmatprep.mubr.bf16.mxu0 0
  %5983 = vmatmul.mubr.bf16.gmra.mrb[0].mxu0 %v5902
  %v5984 = vpop.f32.mrb[0].mxu0
  %v5985 = vadd.f32 %v68, %v5984
  %v5986 = vpop.f32.mrb[0].mxu0
  %v5987 = vpop.f32.mrb[0].mxu0
  %v5988 = vadd.f32 %v69, %v5987
  %v5989 = vpop.f32.mrb[0].mxu0
  %5990 = vmatprep.mubr.bf16.mxu0 0
  %5991 = vmatmul.mubr.bf16.gmra.mrb[0].mxu0 %v5905
  %v5992 = vpop.f32.mrb[0].mxu0
  %v5993 = vadd.f32 %v70, %v5992
  %v5994 = vpop.f32.mrb[0].mxu0
  %v5995 = vpop.f32.mrb[0].mxu0
  %v5996 = vadd.f32 %v71, %v5995
  %v5997 = vpop.f32.mrb[0].mxu0
  %5998 = vmatprep.mubr.bf16.mxu0 0
  %5999 = vmatmul.mubr.bf16.gmra.mrb[0].mxu0 %v5908
  %v6000 = vpop.f32.mrb[0].mxu0
  %v6001 = vadd.f32 %v72, %v6000
  %v6002 = vpop.f32.mrb[0].mxu0
  %v6003 = vpop.f32.mrb[0].mxu0
  %v6004 = vadd.f32 %v73, %v6003
  %v6005 = vpop.f32.mrb[0].mxu0
  %6006 = vdwg.mxu0
  %6015 = vrot.lane.b32.xlu0 %v5645, 96
  %v6016 = vpop.permute.xlu0 %6015
  %6017 = vrot.lane.b32.xlu0 %v5646, 96
  %v6018 = vpop.permute.xlu0 %6017
  %6019 = vrot.lane.b32.xlu0 %v5647, 96
  %v6020 = vpop.permute.xlu0 %6019
  %6021 = vrot.lane.b32.xlu0 %v5648, 96
  %v6022 = vpop.permute.xlu0 %6021
  %6023 = vrot.lane.b32.xlu0 %v5649, 96
  %v6024 = vpop.permute.xlu0 %6023
  %6025 = vrot.lane.b32.xlu0 %v5650, 96
  %v6026 = vpop.permute.xlu0 %6025
  %6027 = vrot.lane.b32.xlu0 %v5651, 96
  %v6028 = vpop.permute.xlu0 %6027
  %6029 = vrot.lane.b32.xlu0 %v5652, 96
  %v6030 = vpop.permute.xlu0 %6029
  %v6032 = vsel %vm1717, %v5557, 0
  %v6035 = vsel %vm1717, %v5558, 0
  %v6038 = vsel %vm1717, %v5559, 0
  %v6041 = vsel %vm1717, %v5560, 0
  %v6044 = vsel %vm1717, %v5561, 0
  %v6047 = vsel %vm1717, %v5562, 0
  %v6050 = vsel %vm1717, %v5563, 0
  %v6053 = vsel %vm1717, %v5564, 0
  %v6056 = vsel %vm1717, %v6016, 0
  %v6059 = vsel %vm1717, %v6018, 0
  %v6062 = vsel %vm1717, %v6020, 0
  %v6065 = vsel %vm1717, %v6022, 0
  %v6068 = vsel %vm1717, %v6024, 0
  %v6071 = vsel %vm1717, %v6026, 0
  %v6074 = vsel %vm1717, %v6028, 0
  %v6077 = vsel %vm1717, %v6030, 0
  %6079 = vmatprep.subr.bf16.mxu0 0
  %6080 = vmatpush1.bf16.xpose.msra.mxu0 %v6056
  %6081 = vmatprep.subr.bf16.mxu0 0
  %6082 = vmatpush1.bf16.xpose.msra.mxu0 %v6059
  %6083 = vmatprep.subr.bf16.mxu0 0
  %6084 = vmatpush1.bf16.xpose.msra.mxu0 %v6062
  %6085 = vmatprep.subr.bf16.mxu0 0
  %6086 = vmatpush1.bf16.xpose.msra.mxu0 %v6065
  %6087 = vmatprep.subr.bf16.mxu0 0
  %6088 = vmatpush1.bf16.xpose.msra.mxu0 %v6068
  %6089 = vmatprep.subr.bf16.mxu0 0
  %6090 = vmatpush1.bf16.xpose.msra.mxu0 %v6071
  %6091 = vmatprep.subr.bf16.mxu0 0
  %6092 = vmatpush1.bf16.xpose.msra.mxu0 %v6074
  %6093 = vmatprep.subr.bf16.mxu0 0
  %6094 = vmatpush1.bf16.xpose.msra.mxu0 %v6077
  %6095 = vmatprep.subr.bf16.mxu0 0
  %6096 = vmatpush1.bf16.xpose.msra.mxu0 0
  %6097 = vmatprep.subr.bf16.mxu0 0
  %6098 = vmatpush1.bf16.xpose.msra.mxu0 0
  %6099 = vmatprep.subr.bf16.mxu0 0
  %6100 = vmatpush1.bf16.xpose.msra.mxu0 0
  %6101 = vmatprep.subr.bf16.mxu0 0
  %6102 = vmatpush1.bf16.xpose.msra.mxu0 0
  %6103 = vmatprep.subr.bf16.mxu0 0
  %6104 = vmatpush1.bf16.xpose.msra.mxu0 0
  %6105 = vmatprep.subr.bf16.mxu0 0
  %6106 = vmatpush1.bf16.xpose.msra.mxu0 0
  %6107 = vmatprep.subr.bf16.mxu0 0
  %6108 = vmatpush1.bf16.xpose.msra.mxu0 0
  %6109 = vmatprep.subr.bf16.mxu0 0
  %6110 = vmatpush1.bf16.xpose.msra.mxu0 0
  %6111 = vmatprep.mubr.bf16.mxu0 0
  %6112 = vmatmul.mubr.bf16.gmra.mrb[0].mxu0 %v6032
  %v6113 = vpop.f32.mrb[0].mxu0
  %v6114 = vadd.f32 %v58, %v6113
  %v6115 = vpop.f32.mrb[0].mxu0
  %v6116 = vpop.f32.mrb[0].mxu0
  %v6117 = vadd.f32 %v59, %v6116
  %v6118 = vpop.f32.mrb[0].mxu0
  %6119 = vmatprep.mubr.bf16.mxu0 0
  %6120 = vmatmul.mubr.bf16.gmra.mrb[0].mxu0 %v6035
  %v6121 = vpop.f32.mrb[0].mxu0
  %v6122 = vadd.f32 %v60, %v6121
  %v6123 = vpop.f32.mrb[0].mxu0
  %v6124 = vpop.f32.mrb[0].mxu0
  %v6125 = vadd.f32 %v61, %v6124
  %v6126 = vpop.f32.mrb[0].mxu0
  %6127 = vmatprep.mubr.bf16.mxu0 0
  %6128 = vmatmul.mubr.bf16.gmra.mrb[0].mxu0 %v6038
  %v6129 = vpop.f32.mrb[0].mxu0
  %v6130 = vadd.f32 %v62, %v6129
  %v6131 = vpop.f32.mrb[0].mxu0
  %v6132 = vpop.f32.mrb[0].mxu0
  %v6133 = vadd.f32 %v63, %v6132
  %v6134 = vpop.f32.mrb[0].mxu0
  %6135 = vmatprep.mubr.bf16.mxu0 0
  %6136 = vmatmul.mubr.bf16.gmra.mrb[0].mxu0 %v6041
  %v6137 = vpop.f32.mrb[0].mxu0
  %v6138 = vadd.f32 %v64, %v6137
  %v6139 = vpop.f32.mrb[0].mxu0
  %v6140 = vpop.f32.mrb[0].mxu0
  %v6141 = vadd.f32 %v65, %v6140
  %v6142 = vpop.f32.mrb[0].mxu0
  %6143 = vmatprep.mubr.bf16.mxu0 0
  %6144 = vmatmul.mubr.bf16.gmra.mrb[0].mxu0 %v6044
  %v6145 = vpop.f32.mrb[0].mxu0
  %v6146 = vadd.f32 %v66, %v6145
  %v6147 = vpop.f32.mrb[0].mxu0
  %v6148 = vpop.f32.mrb[0].mxu0
  %v6149 = vadd.f32 %v67, %v6148
  %v6150 = vpop.f32.mrb[0].mxu0
  %6151 = vmatprep.mubr.bf16.mxu0 0
  %6152 = vmatmul.mubr.bf16.gmra.mrb[0].mxu0 %v6047
  %v6153 = vpop.f32.mrb[0].mxu0
  %v6154 = vadd.f32 %v68, %v6153
  %v6155 = vpop.f32.mrb[0].mxu0
  %v6156 = vpop.f32.mrb[0].mxu0
  %v6157 = vadd.f32 %v69, %v6156
  %v6158 = vpop.f32.mrb[0].mxu0
  %6159 = vmatprep.mubr.bf16.mxu0 0
  %6160 = vmatmul.mubr.bf16.gmra.mrb[0].mxu0 %v6050
  %v6161 = vpop.f32.mrb[0].mxu0
  %v6162 = vadd.f32 %v70, %v6161
  %v6163 = vpop.f32.mrb[0].mxu0
  %v6164 = vpop.f32.mrb[0].mxu0
  %v6165 = vadd.f32 %v71, %v6164
  %v6166 = vpop.f32.mrb[0].mxu0
  %6167 = vmatprep.mubr.bf16.mxu0 0
  %6168 = vmatmul.mubr.bf16.gmra.mrb[0].mxu0 %v6053
  %v6169 = vpop.f32.mrb[0].mxu0
  %v6170 = vadd.f32 %v72, %v6169
  %v6171 = vpop.f32.mrb[0].mxu0
  %v6172 = vpop.f32.mrb[0].mxu0
  %v6173 = vadd.f32 %v73, %v6172
  %v6174 = vpop.f32.mrb[0].mxu0
  %6175 = vdwg.mxu0
  %v6177 = vsel %vm1717, %v5565, 0
  %v6180 = vsel %vm1717, %v5566, 0
  %v6183 = vsel %vm1717, %v5567, 0
  %v6186 = vsel %vm1717, %v5568, 0
  %v6189 = vsel %vm1717, %v5569, 0
  %v6192 = vsel %vm1717, %v5570, 0
  %v6195 = vsel %vm1717, %v5571, 0
  %v6198 = vsel %vm1717, %v5572, 0
  %6200 = vmatprep.subr.bf16.mxu0 0
  %6201 = vmatpush1.bf16.xpose.msra.mxu0 %v6056
  %6202 = vmatprep.subr.bf16.mxu0 0
  %6203 = vmatpush1.bf16.xpose.msra.mxu0 %v6059
  %6204 = vmatprep.subr.bf16.mxu0 0
  %6205 = vmatpush1.bf16.xpose.msra.mxu0 %v6062
  %6206 = vmatprep.subr.bf16.mxu0 0
  %6207 = vmatpush1.bf16.xpose.msra.mxu0 %v6065
  %6208 = vmatprep.subr.bf16.mxu0 0
  %6209 = vmatpush1.bf16.xpose.msra.mxu0 %v6068
  %6210 = vmatprep.subr.bf16.mxu0 0
  %6211 = vmatpush1.bf16.xpose.msra.mxu0 %v6071
  %6212 = vmatprep.subr.bf16.mxu0 0
  %6213 = vmatpush1.bf16.xpose.msra.mxu0 %v6074
  %6214 = vmatprep.subr.bf16.mxu0 0
  %6215 = vmatpush1.bf16.xpose.msra.mxu0 %v6077
  %6216 = vmatprep.subr.bf16.mxu0 0
  %6217 = vmatpush1.bf16.xpose.msra.mxu0 0
  %6218 = vmatprep.subr.bf16.mxu0 0
  %6219 = vmatpush1.bf16.xpose.msra.mxu0 0
  %6220 = vmatprep.subr.bf16.mxu0 0
  %6221 = vmatpush1.bf16.xpose.msra.mxu0 0
  %6222 = vmatprep.subr.bf16.mxu0 0
  %6223 = vmatpush1.bf16.xpose.msra.mxu0 0
  %6224 = vmatprep.subr.bf16.mxu0 0
  %6225 = vmatpush1.bf16.xpose.msra.mxu0 0
  %6226 = vmatprep.subr.bf16.mxu0 0
  %6227 = vmatpush1.bf16.xpose.msra.mxu0 0
  %6228 = vmatprep.subr.bf16.mxu0 0
  %6229 = vmatpush1.bf16.xpose.msra.mxu0 0
  %6230 = vmatprep.subr.bf16.mxu0 0
  %6231 = vmatpush1.bf16.xpose.msra.mxu0 0
  %6232 = vmatprep.mubr.bf16.mxu0 0
  %6233 = vmatmul.mubr.bf16.gmra.mrb[0].mxu0 %v6177
  %v6234 = vpop.f32.mrb[0].mxu0
  %v6235 = vadd.f32 %v58, %v6234
  %v6236 = vpop.f32.mrb[0].mxu0
  %v6237 = vpop.f32.mrb[0].mxu0
  %v6238 = vadd.f32 %v59, %v6237
  %v6239 = vpop.f32.mrb[0].mxu0
  %6240 = vmatprep.mubr.bf16.mxu0 0
  %6241 = vmatmul.mubr.bf16.gmra.mrb[0].mxu0 %v6180
  %v6242 = vpop.f32.mrb[0].mxu0
  %v6243 = vadd.f32 %v60, %v6242
  %v6244 = vpop.f32.mrb[0].mxu0
  %v6245 = vpop.f32.mrb[0].mxu0
  %v6246 = vadd.f32 %v61, %v6245
  %v6247 = vpop.f32.mrb[0].mxu0
  %6248 = vmatprep.mubr.bf16.mxu0 0
  %6249 = vmatmul.mubr.bf16.gmra.mrb[0].mxu0 %v6183
  %v6250 = vpop.f32.mrb[0].mxu0
  %v6251 = vadd.f32 %v62, %v6250
  %v6252 = vpop.f32.mrb[0].mxu0
  %v6253 = vpop.f32.mrb[0].mxu0
  %v6254 = vadd.f32 %v63, %v6253
  %v6255 = vpop.f32.mrb[0].mxu0
  %6256 = vmatprep.mubr.bf16.mxu0 0
  %6257 = vmatmul.mubr.bf16.gmra.mrb[0].mxu0 %v6186
  %v6258 = vpop.f32.mrb[0].mxu0
  %v6259 = vadd.f32 %v64, %v6258
  %v6260 = vpop.f32.mrb[0].mxu0
  %v6261 = vpop.f32.mrb[0].mxu0
  %v6262 = vadd.f32 %v65, %v6261
  %v6263 = vpop.f32.mrb[0].mxu0
  %6264 = vmatprep.mubr.bf16.mxu0 0
  %6265 = vmatmul.mubr.bf16.gmra.mrb[0].mxu0 %v6189
  %v6266 = vpop.f32.mrb[0].mxu0
  %v6267 = vadd.f32 %v66, %v6266
  %v6268 = vpop.f32.mrb[0].mxu0
  %v6269 = vpop.f32.mrb[0].mxu0
  %v6270 = vadd.f32 %v67, %v6269
  %v6271 = vpop.f32.mrb[0].mxu0
  %6272 = vmatprep.mubr.bf16.mxu0 0
  %6273 = vmatmul.mubr.bf16.gmra.mrb[0].mxu0 %v6192
  %v6274 = vpop.f32.mrb[0].mxu0
  %v6275 = vadd.f32 %v68, %v6274
  %v6276 = vpop.f32.mrb[0].mxu0
  %v6277 = vpop.f32.mrb[0].mxu0
  %v6278 = vadd.f32 %v69, %v6277
  %v6279 = vpop.f32.mrb[0].mxu0
  %6280 = vmatprep.mubr.bf16.mxu0 0
  %6281 = vmatmul.mubr.bf16.gmra.mrb[0].mxu0 %v6195
  %v6282 = vpop.f32.mrb[0].mxu0
  %v6283 = vadd.f32 %v70, %v6282
  %v6284 = vpop.f32.mrb[0].mxu0
  %v6285 = vpop.f32.mrb[0].mxu0
  %v6286 = vadd.f32 %v71, %v6285
  %v6287 = vpop.f32.mrb[0].mxu0
  %6288 = vmatprep.mubr.bf16.mxu0 0
  %6289 = vmatmul.mubr.bf16.gmra.mrb[0].mxu0 %v6198
  %v6290 = vpop.f32.mrb[0].mxu0
  %v6291 = vadd.f32 %v72, %v6290
  %v6292 = vpop.f32.mrb[0].mxu0
  %v6293 = vpop.f32.mrb[0].mxu0
  %v6294 = vadd.f32 %v73, %v6293
  %v6295 = vpop.f32.mrb[0].mxu0
  %6296 = vdwg.mxu0
  %6297 = vmax.xlane.f32.xlu0 %v5824
  %v6298 = vpop.xlane.xlu0 %6297
  %6299 = vmax.xlane.f32.xlu0 %v5827
  %v6300 = vpop.xlane.xlu0 %6299
  %6301 = vmax.xlane.f32.xlu0 %v5832
  %v6302 = vpop.xlane.xlu0 %6301
  %6303 = vmax.xlane.f32.xlu0 %v5835
  %v6304 = vpop.xlane.xlu0 %6303
  %6305 = vmax.xlane.f32.xlu0 %v5840
  %v6306 = vpop.xlane.xlu0 %6305
  %6307 = vmax.xlane.f32.xlu0 %v5843
  %v6308 = vpop.xlane.xlu0 %6307
  %6309 = vmax.xlane.f32.xlu0 %v5848
  %v6310 = vpop.xlane.xlu0 %6309
  %6311 = vmax.xlane.f32.xlu0 %v5851
  %v6312 = vpop.xlane.xlu0 %6311
  %6313 = vmax.xlane.f32.xlu0 %v5856
  %v6314 = vpop.xlane.xlu0 %6313
  %6315 = vmax.xlane.f32.xlu0 %v5859
  %v6316 = vpop.xlane.xlu0 %6315
  %6317 = vmax.xlane.f32.xlu0 %v5864
  %v6318 = vpop.xlane.xlu0 %6317
  %6319 = vmax.xlane.f32.xlu0 %v5867
  %v6320 = vpop.xlane.xlu0 %6319
  %6321 = vmax.xlane.f32.xlu0 %v5872
  %v6322 = vpop.xlane.xlu0 %6321
  %6323 = vmax.xlane.f32.xlu0 %v5875
  %v6324 = vpop.xlane.xlu0 %6323
  %6325 = vmax.xlane.f32.xlu0 %v5880
  %v6326 = vpop.xlane.xlu0 %6325
  %6327 = vmax.xlane.f32.xlu0 %v5883
  %v6328 = vpop.xlane.xlu0 %6327
  %6329 = vmax.xlane.f32.xlu0 %v5945
  %v6330 = vpop.xlane.xlu0 %6329
  %6331 = vmax.xlane.f32.xlu0 %v5948
  %v6332 = vpop.xlane.xlu0 %6331
  %6333 = vmax.xlane.f32.xlu0 %v5953
  %v6334 = vpop.xlane.xlu0 %6333
  %6335 = vmax.xlane.f32.xlu0 %v5956
  %v6336 = vpop.xlane.xlu0 %6335
  %6337 = vmax.xlane.f32.xlu0 %v5961
  %v6338 = vpop.xlane.xlu0 %6337
  %6339 = vmax.xlane.f32.xlu0 %v5964
  %v6340 = vpop.xlane.xlu0 %6339
  %6341 = vmax.xlane.f32.xlu0 %v5969
  %v6342 = vpop.xlane.xlu0 %6341
  %6343 = vmax.xlane.f32.xlu0 %v5972
  %v6344 = vpop.xlane.xlu0 %6343
  %6345 = vmax.xlane.f32.xlu0 %v5977
  %v6346 = vpop.xlane.xlu0 %6345
  %6347 = vmax.xlane.f32.xlu0 %v5980
  %v6348 = vpop.xlane.xlu0 %6347
  %6349 = vmax.xlane.f32.xlu0 %v5985
  %v6350 = vpop.xlane.xlu0 %6349
  %6351 = vmax.xlane.f32.xlu0 %v5988
  %v6352 = vpop.xlane.xlu0 %6351
  %6353 = vmax.xlane.f32.xlu0 %v5993
  %v6354 = vpop.xlane.xlu0 %6353
  %6355 = vmax.xlane.f32.xlu0 %v5996
  %v6356 = vpop.xlane.xlu0 %6355
  %6357 = vmax.xlane.f32.xlu0 %v6001
  %v6358 = vpop.xlane.xlu0 %6357
  %6359 = vmax.xlane.f32.xlu0 %v6004
  %v6360 = vpop.xlane.xlu0 %6359
  %6361 = vmax.xlane.f32.xlu0 %v6114
  %v6362 = vpop.xlane.xlu0 %6361
  %6363 = vmax.xlane.f32.xlu0 %v6117
  %v6364 = vpop.xlane.xlu0 %6363
  %6365 = vmax.xlane.f32.xlu0 %v6122
  %v6366 = vpop.xlane.xlu0 %6365
  %6367 = vmax.xlane.f32.xlu0 %v6125
  %v6368 = vpop.xlane.xlu0 %6367
  %6369 = vmax.xlane.f32.xlu0 %v6130
  %v6370 = vpop.xlane.xlu0 %6369
  %6371 = vmax.xlane.f32.xlu0 %v6133
  %v6372 = vpop.xlane.xlu0 %6371
  %6373 = vmax.xlane.f32.xlu0 %v6138
  %v6374 = vpop.xlane.xlu0 %6373
  %6375 = vmax.xlane.f32.xlu0 %v6141
  %v6376 = vpop.xlane.xlu0 %6375
  %6377 = vmax.xlane.f32.xlu0 %v6146
  %v6378 = vpop.xlane.xlu0 %6377
  %6379 = vmax.xlane.f32.xlu0 %v6149
  %v6380 = vpop.xlane.xlu0 %6379
  %6381 = vmax.xlane.f32.xlu0 %v6154
  %v6382 = vpop.xlane.xlu0 %6381
  %6383 = vmax.xlane.f32.xlu0 %v6157
  %v6384 = vpop.xlane.xlu0 %6383
  %6385 = vmax.xlane.f32.xlu0 %v6162
  %v6386 = vpop.xlane.xlu0 %6385
  %6387 = vmax.xlane.f32.xlu0 %v6165
  %v6388 = vpop.xlane.xlu0 %6387
  %6389 = vmax.xlane.f32.xlu0 %v6170
  %v6390 = vpop.xlane.xlu0 %6389
  %6391 = vmax.xlane.f32.xlu0 %v6173
  %v6392 = vpop.xlane.xlu0 %6391
  %6393 = vmax.xlane.f32.xlu0 %v6235
  %v6394 = vpop.xlane.xlu0 %6393
  %6395 = vmax.xlane.f32.xlu0 %v6238
  %v6396 = vpop.xlane.xlu0 %6395
  %6397 = vmax.xlane.f32.xlu0 %v6243
  %v6398 = vpop.xlane.xlu0 %6397
  %6399 = vmax.xlane.f32.xlu0 %v6246
  %v6400 = vpop.xlane.xlu0 %6399
  %6401 = vmax.xlane.f32.xlu0 %v6251
  %v6402 = vpop.xlane.xlu0 %6401
  %6403 = vmax.xlane.f32.xlu0 %v6254
  %v6404 = vpop.xlane.xlu0 %6403
  %6405 = vmax.xlane.f32.xlu0 %v6259
  %v6406 = vpop.xlane.xlu0 %6405
  %6407 = vmax.xlane.f32.xlu0 %v6262
  %v6408 = vpop.xlane.xlu0 %6407
  %6409 = vmax.xlane.f32.xlu0 %v6267
  %v6410 = vpop.xlane.xlu0 %6409
  %6411 = vmax.xlane.f32.xlu0 %v6270
  %v6412 = vpop.xlane.xlu0 %6411
  %6413 = vmax.xlane.f32.xlu0 %v6275
  %v6414 = vpop.xlane.xlu0 %6413
  %6415 = vmax.xlane.f32.xlu0 %v6278
  %v6416 = vpop.xlane.xlu0 %6415
  %6417 = vmax.xlane.f32.xlu0 %v6283
  %v6418 = vpop.xlane.xlu0 %6417
  %6419 = vmax.xlane.f32.xlu0 %v6286
  %v6420 = vpop.xlane.xlu0 %6419
  %6421 = vmax.xlane.f32.xlu0 %v6291
  %v6422 = vpop.xlane.xlu0 %6421
  %6423 = vmax.xlane.f32.xlu0 %v6294
  %v6424 = vpop.xlane.xlu0 %6423
  %v6425 = vsub.f32 %v5824, %v6298
  %v6426 = vsub.f32 %v5827, %v6300
  %v6427 = vsub.f32 %v5832, %v6302
  %v6428 = vsub.f32 %v5835, %v6304
  %v6429 = vsub.f32 %v5840, %v6306
  %v6430 = vsub.f32 %v5843, %v6308
  %v6431 = vsub.f32 %v5848, %v6310
  %v6432 = vsub.f32 %v5851, %v6312
  %v6433 = vsub.f32 %v5856, %v6314
  %v6434 = vsub.f32 %v5859, %v6316
  %v6435 = vsub.f32 %v5864, %v6318
  %v6436 = vsub.f32 %v5867, %v6320
  %v6437 = vsub.f32 %v5872, %v6322
  %v6438 = vsub.f32 %v5875, %v6324
  %v6439 = vsub.f32 %v5880, %v6326
  %v6440 = vsub.f32 %v5883, %v6328
  %v6441 = vsub.f32 %v5945, %v6330
  %v6442 = vsub.f32 %v5948, %v6332
  %v6443 = vsub.f32 %v5953, %v6334
  %v6444 = vsub.f32 %v5956, %v6336
  %v6445 = vsub.f32 %v5961, %v6338
  %v6446 = vsub.f32 %v5964, %v6340
  %v6447 = vsub.f32 %v5969, %v6342
  %v6448 = vsub.f32 %v5972, %v6344
  %v6449 = vsub.f32 %v5977, %v6346
  %v6450 = vsub.f32 %v5980, %v6348
  %v6451 = vsub.f32 %v5985, %v6350
  %v6452 = vsub.f32 %v5988, %v6352
  %v6453 = vsub.f32 %v5993, %v6354
  %v6454 = vsub.f32 %v5996, %v6356
  %v6455 = vsub.f32 %v6001, %v6358
  %v6456 = vsub.f32 %v6004, %v6360
  %v6457 = vsub.f32 %v6114, %v6362
  %v6458 = vsub.f32 %v6117, %v6364
  %v6459 = vsub.f32 %v6122, %v6366
  %v6460 = vsub.f32 %v6125, %v6368
  %v6461 = vsub.f32 %v6130, %v6370
  %v6462 = vsub.f32 %v6133, %v6372
  %v6463 = vsub.f32 %v6138, %v6374
  %v6464 = vsub.f32 %v6141, %v6376
  %v6465 = vsub.f32 %v6146, %v6378
  %v6466 = vsub.f32 %v6149, %v6380
  %v6467 = vsub.f32 %v6154, %v6382
  %v6468 = vsub.f32 %v6157, %v6384
  %v6469 = vsub.f32 %v6162, %v6386
  %v6470 = vsub.f32 %v6165, %v6388
  %v6471 = vsub.f32 %v6170, %v6390
  %v6472 = vsub.f32 %v6173, %v6392
  %v6473 = vsub.f32 %v6235, %v6394
  %v6474 = vsub.f32 %v6238, %v6396
  %v6475 = vsub.f32 %v6243, %v6398
  %v6476 = vsub.f32 %v6246, %v6400
  %v6477 = vsub.f32 %v6251, %v6402
  %v6478 = vsub.f32 %v6254, %v6404
  %v6479 = vsub.f32 %v6259, %v6406
  %v6480 = vsub.f32 %v6262, %v6408
  %v6481 = vsub.f32 %v6267, %v6410
  %v6482 = vsub.f32 %v6270, %v6412
  %v6483 = vsub.f32 %v6275, %v6414
  %v6484 = vsub.f32 %v6278, %v6416
  %v6485 = vsub.f32 %v6283, %v6418
  %v6486 = vsub.f32 %v6286, %v6420
  %v6487 = vsub.f32 %v6291, %v6422
  %v6488 = vsub.f32 %v6294, %v6424
  %v6489 = vmul.f32 %v6425, 1.442695
  %v6490 = vpow.pop %v6489
  %v6491 = vmul.f32 %v6426, 1.442695
  %v6492 = vpow.pop %v6491
  %v6493 = vmul.f32 %v6427, 1.442695
  %v6494 = vpow.pop %v6493
  %v6495 = vmul.f32 %v6428, 1.442695
  %v6496 = vpow.pop %v6495
  %v6497 = vmul.f32 %v6429, 1.442695
  %v6498 = vpow.pop %v6497
  %v6499 = vmul.f32 %v6430, 1.442695
  %v6500 = vpow.pop %v6499
  %v6501 = vmul.f32 %v6431, 1.442695
  %v6502 = vpow.pop %v6501
  %v6503 = vmul.f32 %v6432, 1.442695
  %v6504 = vpow.pop %v6503
  %v6505 = vmul.f32 %v6433, 1.442695
  %v6506 = vpow.pop %v6505
  %v6507 = vmul.f32 %v6434, 1.442695
  %v6508 = vpow.pop %v6507
  %v6509 = vmul.f32 %v6435, 1.442695
  %v6510 = vpow.pop %v6509
  %v6511 = vmul.f32 %v6436, 1.442695
  %v6512 = vpow.pop %v6511
  %v6513 = vmul.f32 %v6437, 1.442695
  %v6514 = vpow.pop %v6513
  %v6515 = vmul.f32 %v6438, 1.442695
  %v6516 = vpow.pop %v6515
  %v6517 = vmul.f32 %v6439, 1.442695
  %v6518 = vpow.pop %v6517
  %v6519 = vmul.f32 %v6440, 1.442695
  %v6520 = vpow.pop %v6519
  %v6521 = vmul.f32 %v6441, 1.442695
  %v6522 = vpow.pop %v6521
  %v6523 = vmul.f32 %v6442, 1.442695
  %v6524 = vpow.pop %v6523
  %v6525 = vmul.f32 %v6443, 1.442695
  %v6526 = vpow.pop %v6525
  %v6527 = vmul.f32 %v6444, 1.442695
  %v6528 = vpow.pop %v6527
  %v6529 = vmul.f32 %v6445, 1.442695
  %v6530 = vpow.pop %v6529
  %v6531 = vmul.f32 %v6446, 1.442695
  %v6532 = vpow.pop %v6531
  %v6533 = vmul.f32 %v6447, 1.442695
  %v6534 = vpow.pop %v6533
  %v6535 = vmul.f32 %v6448, 1.442695
  %v6536 = vpow.pop %v6535
  %v6537 = vmul.f32 %v6449, 1.442695
  %v6538 = vpow.pop %v6537
  %v6539 = vmul.f32 %v6450, 1.442695
  %v6540 = vpow.pop %v6539
  %v6541 = vmul.f32 %v6451, 1.442695
  %v6542 = vpow.pop %v6541
  %v6543 = vmul.f32 %v6452, 1.442695
  %v6544 = vpow.pop %v6543
  %v6545 = vmul.f32 %v6453, 1.442695
  %v6546 = vpow.pop %v6545
  %v6547 = vmul.f32 %v6454, 1.442695
  %v6548 = vpow.pop %v6547
  %v6549 = vmul.f32 %v6455, 1.442695
  %v6550 = vpow.pop %v6549
  %v6551 = vmul.f32 %v6456, 1.442695
  %v6552 = vpow.pop %v6551
  %v6553 = vmul.f32 %v6457, 1.442695
  %v6554 = vpow.pop %v6553
  %v6555 = vmul.f32 %v6458, 1.442695
  %v6556 = vpow.pop %v6555
  %v6557 = vmul.f32 %v6459, 1.442695
  %v6558 = vpow.pop %v6557
  %v6559 = vmul.f32 %v6460, 1.442695
  %v6560 = vpow.pop %v6559
  %v6561 = vmul.f32 %v6461, 1.442695
  %v6562 = vpow.pop %v6561
  %v6563 = vmul.f32 %v6462, 1.442695
  %v6564 = vpow.pop %v6563
  %v6565 = vmul.f32 %v6463, 1.442695
  %v6566 = vpow.pop %v6565
  %v6567 = vmul.f32 %v6464, 1.442695
  %v6568 = vpow.pop %v6567
  %v6569 = vmul.f32 %v6465, 1.442695
  %v6570 = vpow.pop %v6569
  %v6571 = vmul.f32 %v6466, 1.442695
  %v6572 = vpow.pop %v6571
  %v6573 = vmul.f32 %v6467, 1.442695
  %v6574 = vpow.pop %v6573
  %v6575 = vmul.f32 %v6468, 1.442695
  %v6576 = vpow.pop %v6575
  %v6577 = vmul.f32 %v6469, 1.442695
  %v6578 = vpow.pop %v6577
  %v6579 = vmul.f32 %v6470, 1.442695
  %v6580 = vpow.pop %v6579
  %v6581 = vmul.f32 %v6471, 1.442695
  %v6582 = vpow.pop %v6581
  %v6583 = vmul.f32 %v6472, 1.442695
  %v6584 = vpow.pop %v6583
  %v6585 = vmul.f32 %v6473, 1.442695
  %v6586 = vpow.pop %v6585
  %v6587 = vmul.f32 %v6474, 1.442695
  %v6588 = vpow.pop %v6587
  %v6589 = vmul.f32 %v6475, 1.442695
  %v6590 = vpow.pop %v6589
  %v6591 = vmul.f32 %v6476, 1.442695
  %v6592 = vpow.pop %v6591
  %v6593 = vmul.f32 %v6477, 1.442695
  %v6594 = vpow.pop %v6593
  %v6595 = vmul.f32 %v6478, 1.442695
  %v6596 = vpow.pop %v6595
  %v6597 = vmul.f32 %v6479, 1.442695
  %v6598 = vpow.pop %v6597
  %v6599 = vmul.f32 %v6480, 1.442695
  %v6600 = vpow.pop %v6599
  %v6601 = vmul.f32 %v6481, 1.442695
  %v6602 = vpow.pop %v6601
  %v6603 = vmul.f32 %v6482, 1.442695
  %v6604 = vpow.pop %v6603
  %v6605 = vmul.f32 %v6483, 1.442695
  %v6606 = vpow.pop %v6605
  %v6607 = vmul.f32 %v6484, 1.442695
  %v6608 = vpow.pop %v6607
  %v6609 = vmul.f32 %v6485, 1.442695
  %v6610 = vpow.pop %v6609
  %v6611 = vmul.f32 %v6486, 1.442695
  %v6612 = vpow.pop %v6611
  %v6613 = vmul.f32 %v6487, 1.442695
  %v6614 = vpow.pop %v6613
  %v6615 = vmul.f32 %v6488, 1.442695
  %v6616 = vpow.pop %v6615
  %6617 = vadd.xlane.f32.xlu0 %v6490
  %v6618 = vpop.xlane.xlu0 %6617
  %6619 = vadd.xlane.f32.xlu0 %v6492
  %v6620 = vpop.xlane.xlu0 %6619
  %6621 = vadd.xlane.f32.xlu0 %v6494
  %v6622 = vpop.xlane.xlu0 %6621
  %6623 = vadd.xlane.f32.xlu0 %v6496
  %v6624 = vpop.xlane.xlu0 %6623
  %6625 = vadd.xlane.f32.xlu0 %v6498
  %v6626 = vpop.xlane.xlu0 %6625
  %6627 = vadd.xlane.f32.xlu0 %v6500
  %v6628 = vpop.xlane.xlu0 %6627
  %6629 = vadd.xlane.f32.xlu0 %v6502
  %v6630 = vpop.xlane.xlu0 %6629
  %6631 = vadd.xlane.f32.xlu0 %v6504
  %v6632 = vpop.xlane.xlu0 %6631
  %6633 = vadd.xlane.f32.xlu0 %v6506
  %v6634 = vpop.xlane.xlu0 %6633
  %6635 = vadd.xlane.f32.xlu0 %v6508
  %v6636 = vpop.xlane.xlu0 %6635
  %6637 = vadd.xlane.f32.xlu0 %v6510
  %v6638 = vpop.xlane.xlu0 %6637
  %6639 = vadd.xlane.f32.xlu0 %v6512
  %v6640 = vpop.xlane.xlu0 %6639
  %6641 = vadd.xlane.f32.xlu0 %v6514
  %v6642 = vpop.xlane.xlu0 %6641
  %6643 = vadd.xlane.f32.xlu0 %v6516
  %v6644 = vpop.xlane.xlu0 %6643
  %6645 = vadd.xlane.f32.xlu0 %v6518
  %v6646 = vpop.xlane.xlu0 %6645
  %6647 = vadd.xlane.f32.xlu0 %v6520
  %v6648 = vpop.xlane.xlu0 %6647
  %6649 = vadd.xlane.f32.xlu0 %v6522
  %v6650 = vpop.xlane.xlu0 %6649
  %6651 = vadd.xlane.f32.xlu0 %v6524
  %v6652 = vpop.xlane.xlu0 %6651
  %6653 = vadd.xlane.f32.xlu0 %v6526
  %v6654 = vpop.xlane.xlu0 %6653
  %6655 = vadd.xlane.f32.xlu0 %v6528
  %v6656 = vpop.xlane.xlu0 %6655
  %6657 = vadd.xlane.f32.xlu0 %v6530
  %v6658 = vpop.xlane.xlu0 %6657
  %6659 = vadd.xlane.f32.xlu0 %v6532
  %v6660 = vpop.xlane.xlu0 %6659
  %6661 = vadd.xlane.f32.xlu0 %v6534
  %v6662 = vpop.xlane.xlu0 %6661
  %6663 = vadd.xlane.f32.xlu0 %v6536
  %v6664 = vpop.xlane.xlu0 %6663
  %6665 = vadd.xlane.f32.xlu0 %v6538
  %v6666 = vpop.xlane.xlu0 %6665
  %6667 = vadd.xlane.f32.xlu0 %v6540
  %v6668 = vpop.xlane.xlu0 %6667
  %6669 = vadd.xlane.f32.xlu0 %v6542
  %v6670 = vpop.xlane.xlu0 %6669
  %6671 = vadd.xlane.f32.xlu0 %v6544
  %v6672 = vpop.xlane.xlu0 %6671
  %6673 = vadd.xlane.f32.xlu0 %v6546
  %v6674 = vpop.xlane.xlu0 %6673
  %6675 = vadd.xlane.f32.xlu0 %v6548
  %v6676 = vpop.xlane.xlu0 %6675
  %6677 = vadd.xlane.f32.xlu0 %v6550
  %v6678 = vpop.xlane.xlu0 %6677
  %6679 = vadd.xlane.f32.xlu0 %v6552
  %v6680 = vpop.xlane.xlu0 %6679
  %6681 = vadd.xlane.f32.xlu0 %v6554
  %v6682 = vpop.xlane.xlu0 %6681
  %6683 = vadd.xlane.f32.xlu0 %v6556
  %v6684 = vpop.xlane.xlu0 %6683
  %6685 = vadd.xlane.f32.xlu0 %v6558
  %v6686 = vpop.xlane.xlu0 %6685
  %6687 = vadd.xlane.f32.xlu0 %v6560
  %v6688 = vpop.xlane.xlu0 %6687
  %6689 = vadd.xlane.f32.xlu0 %v6562
  %v6690 = vpop.xlane.xlu0 %6689
  %6691 = vadd.xlane.f32.xlu0 %v6564
  %v6692 = vpop.xlane.xlu0 %6691
  %6693 = vadd.xlane.f32.xlu0 %v6566
  %v6694 = vpop.xlane.xlu0 %6693
  %6695 = vadd.xlane.f32.xlu0 %v6568
  %v6696 = vpop.xlane.xlu0 %6695
  %6697 = vadd.xlane.f32.xlu0 %v6570
  %v6698 = vpop.xlane.xlu0 %6697
  %6699 = vadd.xlane.f32.xlu0 %v6572
  %v6700 = vpop.xlane.xlu0 %6699
  %6701 = vadd.xlane.f32.xlu0 %v6574
  %v6702 = vpop.xlane.xlu0 %6701
  %6703 = vadd.xlane.f32.xlu0 %v6576
  %v6704 = vpop.xlane.xlu0 %6703
  %6705 = vadd.xlane.f32.xlu0 %v6578
  %v6706 = vpop.xlane.xlu0 %6705
  %6707 = vadd.xlane.f32.xlu0 %v6580
  %v6708 = vpop.xlane.xlu0 %6707
  %6709 = vadd.xlane.f32.xlu0 %v6582
  %v6710 = vpop.xlane.xlu0 %6709
  %6711 = vadd.xlane.f32.xlu0 %v6584
  %v6712 = vpop.xlane.xlu0 %6711
  %6713 = vadd.xlane.f32.xlu0 %v6586
  %v6714 = vpop.xlane.xlu0 %6713
  %6715 = vadd.xlane.f32.xlu0 %v6588
  %v6716 = vpop.xlane.xlu0 %6715
  %6717 = vadd.xlane.f32.xlu0 %v6590
  %v6718 = vpop.xlane.xlu0 %6717
  %6719 = vadd.xlane.f32.xlu0 %v6592
  %v6720 = vpop.xlane.xlu0 %6719
  %6721 = vadd.xlane.f32.xlu0 %v6594
  %v6722 = vpop.xlane.xlu0 %6721
  %6723 = vadd.xlane.f32.xlu0 %v6596
  %v6724 = vpop.xlane.xlu0 %6723
  %6725 = vadd.xlane.f32.xlu0 %v6598
  %v6726 = vpop.xlane.xlu0 %6725
  %6727 = vadd.xlane.f32.xlu0 %v6600
  %v6728 = vpop.xlane.xlu0 %6727
  %6729 = vadd.xlane.f32.xlu0 %v6602
  %v6730 = vpop.xlane.xlu0 %6729
  %6731 = vadd.xlane.f32.xlu0 %v6604
  %v6732 = vpop.xlane.xlu0 %6731
  %6733 = vadd.xlane.f32.xlu0 %v6606
  %v6734 = vpop.xlane.xlu0 %6733
  %6735 = vadd.xlane.f32.xlu0 %v6608
  %v6736 = vpop.xlane.xlu0 %6735
  %6737 = vadd.xlane.f32.xlu0 %v6610
  %v6738 = vpop.xlane.xlu0 %6737
  %6739 = vadd.xlane.f32.xlu0 %v6612
  %v6740 = vpop.xlane.xlu0 %6739
  %6741 = vadd.xlane.f32.xlu0 %v6614
  %v6742 = vpop.xlane.xlu0 %6741
  %6743 = vadd.xlane.f32.xlu0 %v6616
  %v6744 = vpop.xlane.xlu0 %6743
  %v6745 = vrcp.pop %v6618
  %v6746 = vrcp.pop %v6620
  %v6747 = vrcp.pop %v6622
  %v6748 = vrcp.pop %v6624
  %v6749 = vrcp.pop %v6626
  %v6750 = vrcp.pop %v6628
  %v6751 = vrcp.pop %v6630
  %v6752 = vrcp.pop %v6632
  %v6753 = vrcp.pop %v6634
  %v6754 = vrcp.pop %v6636
  %v6755 = vrcp.pop %v6638
  %v6756 = vrcp.pop %v6640
  %v6757 = vrcp.pop %v6642
  %v6758 = vrcp.pop %v6644
  %v6759 = vrcp.pop %v6646
  %v6760 = vrcp.pop %v6648
  %v6761 = vrcp.pop %v6650
  %v6762 = vrcp.pop %v6652
  %v6763 = vrcp.pop %v6654
  %v6764 = vrcp.pop %v6656
  %v6765 = vrcp.pop %v6658
  %v6766 = vrcp.pop %v6660
  %v6767 = vrcp.pop %v6662
  %v6768 = vrcp.pop %v6664
  %v6769 = vrcp.pop %v6666
  %v6770 = vrcp.pop %v6668
  %v6771 = vrcp.pop %v6670
  %v6772 = vrcp.pop %v6672
  %v6773 = vrcp.pop %v6674
  %v6774 = vrcp.pop %v6676
  %v6775 = vrcp.pop %v6678
  %v6776 = vrcp.pop %v6680
  %v6777 = vrcp.pop %v6682
  %v6778 = vrcp.pop %v6684
  %v6779 = vrcp.pop %v6686
  %v6780 = vrcp.pop %v6688
  %v6781 = vrcp.pop %v6690
  %v6782 = vrcp.pop %v6692
  %v6783 = vrcp.pop %v6694
  %v6784 = vrcp.pop %v6696
  %v6785 = vrcp.pop %v6698
  %v6786 = vrcp.pop %v6700
  %v6787 = vrcp.pop %v6702
  %v6788 = vrcp.pop %v6704
  %v6789 = vrcp.pop %v6706
  %v6790 = vrcp.pop %v6708
  %v6791 = vrcp.pop %v6710
  %v6792 = vrcp.pop %v6712
  %v6793 = vrcp.pop %v6714
  %v6794 = vrcp.pop %v6716
  %v6795 = vrcp.pop %v6718
  %v6796 = vrcp.pop %v6720
  %v6797 = vrcp.pop %v6722
  %v6798 = vrcp.pop %v6724
  %v6799 = vrcp.pop %v6726
  %v6800 = vrcp.pop %v6728
  %v6801 = vrcp.pop %v6730
  %v6802 = vrcp.pop %v6732
  %v6803 = vrcp.pop %v6734
  %v6804 = vrcp.pop %v6736
  %v6805 = vrcp.pop %v6738
  %v6806 = vrcp.pop %v6740
  %v6807 = vrcp.pop %v6742
  %v6808 = vrcp.pop %v6744
  %v6809 = vmul.f32 %v6490, %v6745
  %v6810 = vmul.f32 %v6492, %v6746
  %v6811 = vmul.f32 %v6494, %v6747
  %v6812 = vmul.f32 %v6496, %v6748
  %v6813 = vmul.f32 %v6498, %v6749
  %v6814 = vmul.f32 %v6500, %v6750
  %v6815 = vmul.f32 %v6502, %v6751
  %v6816 = vmul.f32 %v6504, %v6752
  %v6817 = vmul.f32 %v6506, %v6753
  %v6818 = vmul.f32 %v6508, %v6754
  %v6819 = vmul.f32 %v6510, %v6755
  %v6820 = vmul.f32 %v6512, %v6756
  %v6821 = vmul.f32 %v6514, %v6757
  %v6822 = vmul.f32 %v6516, %v6758
  %v6823 = vmul.f32 %v6518, %v6759
  %v6824 = vmul.f32 %v6520, %v6760
  %v6825 = vmul.f32 %v6522, %v6761
  %v6826 = vmul.f32 %v6524, %v6762
  %v6827 = vmul.f32 %v6526, %v6763
  %v6828 = vmul.f32 %v6528, %v6764
  %v6829 = vmul.f32 %v6530, %v6765
  %v6830 = vmul.f32 %v6532, %v6766
  %v6831 = vmul.f32 %v6534, %v6767
  %v6832 = vmul.f32 %v6536, %v6768
  %v6833 = vmul.f32 %v6538, %v6769
  %v6834 = vmul.f32 %v6540, %v6770
  %v6835 = vmul.f32 %v6542, %v6771
  %v6836 = vmul.f32 %v6544, %v6772
  %v6837 = vmul.f32 %v6546, %v6773
  %v6838 = vmul.f32 %v6548, %v6774
  %v6839 = vmul.f32 %v6550, %v6775
  %v6840 = vmul.f32 %v6552, %v6776
  %v6841 = vmul.f32 %v6554, %v6777
  %v6842 = vmul.f32 %v6556, %v6778
  %v6843 = vmul.f32 %v6558, %v6779
  %v6844 = vmul.f32 %v6560, %v6780
  %v6845 = vmul.f32 %v6562, %v6781
  %v6846 = vmul.f32 %v6564, %v6782
  %v6847 = vmul.f32 %v6566, %v6783
  %v6848 = vmul.f32 %v6568, %v6784
  %v6849 = vmul.f32 %v6570, %v6785
  %v6850 = vmul.f32 %v6572, %v6786
  %v6851 = vmul.f32 %v6574, %v6787
  %v6852 = vmul.f32 %v6576, %v6788
  %v6853 = vmul.f32 %v6578, %v6789
  %v6854 = vmul.f32 %v6580, %v6790
  %v6855 = vmul.f32 %v6582, %v6791
  %v6856 = vmul.f32 %v6584, %v6792
  %v6857 = vmul.f32 %v6586, %v6793
  %v6858 = vmul.f32 %v6588, %v6794
  %v6859 = vmul.f32 %v6590, %v6795
  %v6860 = vmul.f32 %v6592, %v6796
  %v6861 = vmul.f32 %v6594, %v6797
  %v6862 = vmul.f32 %v6596, %v6798
  %v6863 = vmul.f32 %v6598, %v6799
  %v6864 = vmul.f32 %v6600, %v6800
  %v6865 = vmul.f32 %v6602, %v6801
  %v6866 = vmul.f32 %v6604, %v6802
  %v6867 = vmul.f32 %v6606, %v6803
  %v6868 = vmul.f32 %v6608, %v6804
  %v6869 = vmul.f32 %v6610, %v6805
  %v6870 = vmul.f32 %v6612, %v6806
  %v6871 = vmul.f32 %v6614, %v6807
  %v6872 = vmul.f32 %v6616, %v6808
  %v6873 = vpack.c.bf16 %v6810, %v6809
  %v6874 = vpack.c.bf16 %v6812, %v6811
  %v6875 = vpack.c.bf16 %v6814, %v6813
  %v6876 = vpack.c.bf16 %v6816, %v6815
  %v6877 = vpack.c.bf16 %v6818, %v6817
  %v6878 = vpack.c.bf16 %v6820, %v6819
  %v6879 = vpack.c.bf16 %v6822, %v6821
  %v6880 = vpack.c.bf16 %v6824, %v6823
  %v6881 = vpack.c.bf16 %v6826, %v6825
  %v6882 = vpack.c.bf16 %v6828, %v6827
  %v6883 = vpack.c.bf16 %v6830, %v6829
  %v6884 = vpack.c.bf16 %v6832, %v6831
  %v6885 = vpack.c.bf16 %v6834, %v6833
  %v6886 = vpack.c.bf16 %v6836, %v6835
  %v6887 = vpack.c.bf16 %v6838, %v6837
  %v6888 = vpack.c.bf16 %v6840, %v6839
  %v6889 = vpack.c.bf16 %v6842, %v6841
  %v6890 = vpack.c.bf16 %v6844, %v6843
  %v6891 = vpack.c.bf16 %v6846, %v6845
  %v6892 = vpack.c.bf16 %v6848, %v6847
  %v6893 = vpack.c.bf16 %v6850, %v6849
  %v6894 = vpack.c.bf16 %v6852, %v6851
  %v6895 = vpack.c.bf16 %v6854, %v6853
  %v6896 = vpack.c.bf16 %v6856, %v6855
  %v6897 = vpack.c.bf16 %v6858, %v6857
  %v6898 = vpack.c.bf16 %v6860, %v6859
  %v6899 = vpack.c.bf16 %v6862, %v6861
  %v6900 = vpack.c.bf16 %v6864, %v6863
  %v6901 = vpack.c.bf16 %v6866, %v6865
  %v6902 = vpack.c.bf16 %v6868, %v6867
  %v6903 = vpack.c.bf16 %v6870, %v6869
  %v6904 = vpack.c.bf16 %v6872, %v6871
  %6913 = vrot.lane.b32.xlu0 %v5701, 80
  %v6914 = vpop.permute.xlu0 %6913
  %6915 = vrot.lane.b32.xlu0 %v5702, 80
  %v6916 = vpop.permute.xlu0 %6915
  %6917 = vrot.lane.b32.xlu0 %v5703, 80
  %v6918 = vpop.permute.xlu0 %6917
  %6919 = vrot.lane.b32.xlu0 %v5704, 80
  %v6920 = vpop.permute.xlu0 %6919
  %6921 = vrot.lane.b32.xlu0 %v5705, 80
  %v6922 = vpop.permute.xlu0 %6921
  %6923 = vrot.lane.b32.xlu0 %v5706, 80
  %v6924 = vpop.permute.xlu0 %6923
  %6925 = vrot.lane.b32.xlu0 %v5707, 80
  %v6926 = vpop.permute.xlu0 %6925
  %6927 = vrot.lane.b32.xlu0 %v5708, 80
  %v6928 = vpop.permute.xlu0 %6927
  %6937 = vmatprep.subr.bf16.mxu0 0
  %6938 = vmatpush1.bf16.msra.mxu0 %v6914
  %6939 = vmatprep.subr.bf16.mxu0 0
  %6940 = vmatpush1.bf16.msra.mxu0 %v6916
  %6941 = vmatprep.subr.bf16.mxu0 0
  %6942 = vmatpush1.bf16.msra.mxu0 %v6918
  %6943 = vmatprep.subr.bf16.mxu0 0
  %6944 = vmatpush1.bf16.msra.mxu0 %v6920
  %6945 = vmatprep.subr.bf16.mxu0 0
  %6946 = vmatpush1.bf16.msra.mxu0 %v6922
  %6947 = vmatprep.subr.bf16.mxu0 0
  %6948 = vmatpush1.bf16.msra.mxu0 %v6924
  %6949 = vmatprep.subr.bf16.mxu0 0
  %6950 = vmatpush1.bf16.msra.mxu0 %v6926
  %6951 = vmatprep.subr.bf16.mxu0 0
  %6952 = vmatpush1.bf16.msra.mxu0 %v6928
  %6953 = vmatprep.subr.bf16.mxu0 0
  %6954 = vmatpush1.bf16.msra.mxu0 0
  %6955 = vmatprep.subr.bf16.mxu0 0
  %6956 = vmatpush1.bf16.msra.mxu0 0
  %6957 = vmatprep.subr.bf16.mxu0 0
  %6958 = vmatpush1.bf16.msra.mxu0 0
  %6959 = vmatprep.subr.bf16.mxu0 0
  %6960 = vmatpush1.bf16.msra.mxu0 0
  %6961 = vmatprep.subr.bf16.mxu0 0
  %6962 = vmatpush1.bf16.msra.mxu0 0
  %6963 = vmatprep.subr.bf16.mxu0 0
  %6964 = vmatpush1.bf16.msra.mxu0 0
  %6965 = vmatprep.subr.bf16.mxu0 0
  %6966 = vmatpush1.bf16.msra.mxu0 0
  %6967 = vmatprep.subr.bf16.mxu0 0
  %6968 = vmatpush1.bf16.msra.mxu0 0
  %6969 = vmatprep.mubr.bf16.mxu0 0
  %6970 = vmatmul.mubr.bf16.gmra.mrb[0].mxu0 %v6873
  %v6971 = vpop.f32.mrb[0].mxu0
  %v6972 = vadd.f32 0.0, %v6971
  %v6973 = vpop.f32.mrb[0].mxu0
  %v6974 = vpop.f32.mrb[0].mxu0
  %v6975 = vadd.f32 0.0, %v6974
  %v6976 = vpop.f32.mrb[0].mxu0
  %6977 = vmatprep.mubr.bf16.mxu0 0
  %6978 = vmatmul.mubr.bf16.gmra.mrb[0].mxu0 %v6874
  %v6979 = vpop.f32.mrb[0].mxu0
  %v6980 = vadd.f32 0.0, %v6979
  %v6981 = vpop.f32.mrb[0].mxu0
  %v6982 = vpop.f32.mrb[0].mxu0
  %v6983 = vadd.f32 0.0, %v6982
  %v6984 = vpop.f32.mrb[0].mxu0
  %6985 = vmatprep.mubr.bf16.mxu0 0
  %6986 = vmatmul.mubr.bf16.gmra.mrb[0].mxu0 %v6875
  %v6987 = vpop.f32.mrb[0].mxu0
  %v6988 = vadd.f32 0.0, %v6987
  %v6989 = vpop.f32.mrb[0].mxu0
  %v6990 = vpop.f32.mrb[0].mxu0
  %v6991 = vadd.f32 0.0, %v6990
  %v6992 = vpop.f32.mrb[0].mxu0
  %6993 = vmatprep.mubr.bf16.mxu0 0
  %6994 = vmatmul.mubr.bf16.gmra.mrb[0].mxu0 %v6876
  %v6995 = vpop.f32.mrb[0].mxu0
  %v6996 = vadd.f32 0.0, %v6995
  %v6997 = vpop.f32.mrb[0].mxu0
  %v6998 = vpop.f32.mrb[0].mxu0
  %v6999 = vadd.f32 0.0, %v6998
  %v7000 = vpop.f32.mrb[0].mxu0
  %7001 = vmatprep.mubr.bf16.mxu0 0
  %7002 = vmatmul.mubr.bf16.gmra.mrb[0].mxu0 %v6877
  %v7003 = vpop.f32.mrb[0].mxu0
  %v7004 = vadd.f32 0.0, %v7003
  %v7005 = vpop.f32.mrb[0].mxu0
  %v7006 = vpop.f32.mrb[0].mxu0
  %v7007 = vadd.f32 0.0, %v7006
  %v7008 = vpop.f32.mrb[0].mxu0
  %7009 = vmatprep.mubr.bf16.mxu0 0
  %7010 = vmatmul.mubr.bf16.gmra.mrb[0].mxu0 %v6878
  %v7011 = vpop.f32.mrb[0].mxu0
  %v7012 = vadd.f32 0.0, %v7011
  %v7013 = vpop.f32.mrb[0].mxu0
  %v7014 = vpop.f32.mrb[0].mxu0
  %v7015 = vadd.f32 0.0, %v7014
  %v7016 = vpop.f32.mrb[0].mxu0
  %7017 = vmatprep.mubr.bf16.mxu0 0
  %7018 = vmatmul.mubr.bf16.gmra.mrb[0].mxu0 %v6879
  %v7019 = vpop.f32.mrb[0].mxu0
  %v7020 = vadd.f32 0.0, %v7019
  %v7021 = vpop.f32.mrb[0].mxu0
  %v7022 = vpop.f32.mrb[0].mxu0
  %v7023 = vadd.f32 0.0, %v7022
  %v7024 = vpop.f32.mrb[0].mxu0
  %7025 = vmatprep.mubr.bf16.mxu0 0
  %7026 = vmatmul.mubr.bf16.gmra.mrb[0].mxu0 %v6880
  %v7027 = vpop.f32.mrb[0].mxu0
  %v7028 = vadd.f32 0.0, %v7027
  %v7029 = vpop.f32.mrb[0].mxu0
  %v7030 = vpop.f32.mrb[0].mxu0
  %v7031 = vadd.f32 0.0, %v7030
  %v7032 = vpop.f32.mrb[0].mxu0
  %7033 = vdwg.mxu0
  %7034 = vmatprep.subr.bf16.mxu0 0
  %7035 = vmatpush1.bf16.msra.mxu0 %v6914
  %7036 = vmatprep.subr.bf16.mxu0 0
  %7037 = vmatpush1.bf16.msra.mxu0 %v6916
  %7038 = vmatprep.subr.bf16.mxu0 0
  %7039 = vmatpush1.bf16.msra.mxu0 %v6918
  %7040 = vmatprep.subr.bf16.mxu0 0
  %7041 = vmatpush1.bf16.msra.mxu0 %v6920
  %7042 = vmatprep.subr.bf16.mxu0 0
  %7043 = vmatpush1.bf16.msra.mxu0 %v6922
  %7044 = vmatprep.subr.bf16.mxu0 0
  %7045 = vmatpush1.bf16.msra.mxu0 %v6924
  %7046 = vmatprep.subr.bf16.mxu0 0
  %7047 = vmatpush1.bf16.msra.mxu0 %v6926
  %7048 = vmatprep.subr.bf16.mxu0 0
  %7049 = vmatpush1.bf16.msra.mxu0 %v6928
  %7050 = vmatprep.subr.bf16.mxu0 0
  %7051 = vmatpush1.bf16.msra.mxu0 0
  %7052 = vmatprep.subr.bf16.mxu0 0
  %7053 = vmatpush1.bf16.msra.mxu0 0
  %7054 = vmatprep.subr.bf16.mxu0 0
  %7055 = vmatpush1.bf16.msra.mxu0 0
  %7056 = vmatprep.subr.bf16.mxu0 0
  %7057 = vmatpush1.bf16.msra.mxu0 0
  %7058 = vmatprep.subr.bf16.mxu0 0
  %7059 = vmatpush1.bf16.msra.mxu0 0
  %7060 = vmatprep.subr.bf16.mxu0 0
  %7061 = vmatpush1.bf16.msra.mxu0 0
  %7062 = vmatprep.subr.bf16.mxu0 0
  %7063 = vmatpush1.bf16.msra.mxu0 0
  %7064 = vmatprep.subr.bf16.mxu0 0
  %7065 = vmatpush1.bf16.msra.mxu0 0
  %7066 = vmatprep.mubr.bf16.mxu0 0
  %7067 = vmatmul.mubr.bf16.gmra.mrb[0].mxu0 %v6881
  %v7068 = vpop.f32.mrb[0].mxu0
  %v7069 = vadd.f32 0.0, %v7068
  %v7070 = vpop.f32.mrb[0].mxu0
  %v7071 = vpop.f32.mrb[0].mxu0
  %v7072 = vadd.f32 0.0, %v7071
  %v7073 = vpop.f32.mrb[0].mxu0
  %7074 = vmatprep.mubr.bf16.mxu0 0
  %7075 = vmatmul.mubr.bf16.gmra.mrb[0].mxu0 %v6882
  %v7076 = vpop.f32.mrb[0].mxu0
  %v7077 = vadd.f32 0.0, %v7076
  %v7078 = vpop.f32.mrb[0].mxu0
  %v7079 = vpop.f32.mrb[0].mxu0
  %v7080 = vadd.f32 0.0, %v7079
  %v7081 = vpop.f32.mrb[0].mxu0
  %7082 = vmatprep.mubr.bf16.mxu0 0
  %7083 = vmatmul.mubr.bf16.gmra.mrb[0].mxu0 %v6883
  %v7084 = vpop.f32.mrb[0].mxu0
  %v7085 = vadd.f32 0.0, %v7084
  %v7086 = vpop.f32.mrb[0].mxu0
  %v7087 = vpop.f32.mrb[0].mxu0
  %v7088 = vadd.f32 0.0, %v7087
  %v7089 = vpop.f32.mrb[0].mxu0
  %7090 = vmatprep.mubr.bf16.mxu0 0
  %7091 = vmatmul.mubr.bf16.gmra.mrb[0].mxu0 %v6884
  %v7092 = vpop.f32.mrb[0].mxu0
  %v7093 = vadd.f32 0.0, %v7092
  %v7094 = vpop.f32.mrb[0].mxu0
  %v7095 = vpop.f32.mrb[0].mxu0
  %v7096 = vadd.f32 0.0, %v7095
  %v7097 = vpop.f32.mrb[0].mxu0
  %7098 = vmatprep.mubr.bf16.mxu0 0
  %7099 = vmatmul.mubr.bf16.gmra.mrb[0].mxu0 %v6885
  %v7100 = vpop.f32.mrb[0].mxu0
  %v7101 = vadd.f32 0.0, %v7100
  %v7102 = vpop.f32.mrb[0].mxu0
  %v7103 = vpop.f32.mrb[0].mxu0
  %v7104 = vadd.f32 0.0, %v7103
  %v7105 = vpop.f32.mrb[0].mxu0
  %7106 = vmatprep.mubr.bf16.mxu0 0
  %7107 = vmatmul.mubr.bf16.gmra.mrb[0].mxu0 %v6886
  %v7108 = vpop.f32.mrb[0].mxu0
  %v7109 = vadd.f32 0.0, %v7108
  %v7110 = vpop.f32.mrb[0].mxu0
  %v7111 = vpop.f32.mrb[0].mxu0
  %v7112 = vadd.f32 0.0, %v7111
  %v7113 = vpop.f32.mrb[0].mxu0
  %7114 = vmatprep.mubr.bf16.mxu0 0
  %7115 = vmatmul.mubr.bf16.gmra.mrb[0].mxu0 %v6887
  %v7116 = vpop.f32.mrb[0].mxu0
  %v7117 = vadd.f32 0.0, %v7116
  %v7118 = vpop.f32.mrb[0].mxu0
  %v7119 = vpop.f32.mrb[0].mxu0
  %v7120 = vadd.f32 0.0, %v7119
  %v7121 = vpop.f32.mrb[0].mxu0
  %7122 = vmatprep.mubr.bf16.mxu0 0
  %7123 = vmatmul.mubr.bf16.gmra.mrb[0].mxu0 %v6888
  %v7124 = vpop.f32.mrb[0].mxu0
  %v7125 = vadd.f32 0.0, %v7124
  %v7126 = vpop.f32.mrb[0].mxu0
  %v7127 = vpop.f32.mrb[0].mxu0
  %v7128 = vadd.f32 0.0, %v7127
  %v7129 = vpop.f32.mrb[0].mxu0
  %7130 = vdwg.mxu0
  %7139 = vrot.lane.b32.xlu0 %v5709, 80
  %v7140 = vpop.permute.xlu0 %7139
  %7141 = vrot.lane.b32.xlu0 %v5710, 80
  %v7142 = vpop.permute.xlu0 %7141
  %7143 = vrot.lane.b32.xlu0 %v5711, 80
  %v7144 = vpop.permute.xlu0 %7143
  %7145 = vrot.lane.b32.xlu0 %v5712, 80
  %v7146 = vpop.permute.xlu0 %7145
  %7147 = vrot.lane.b32.xlu0 %v5713, 80
  %v7148 = vpop.permute.xlu0 %7147
  %7149 = vrot.lane.b32.xlu0 %v5714, 80
  %v7150 = vpop.permute.xlu0 %7149
  %7151 = vrot.lane.b32.xlu0 %v5715, 80
  %v7152 = vpop.permute.xlu0 %7151
  %7153 = vrot.lane.b32.xlu0 %v5716, 80
  %v7154 = vpop.permute.xlu0 %7153
  %7163 = vmatprep.subr.bf16.mxu0 0
  %7164 = vmatpush1.bf16.msra.mxu0 %v7140
  %7165 = vmatprep.subr.bf16.mxu0 0
  %7166 = vmatpush1.bf16.msra.mxu0 %v7142
  %7167 = vmatprep.subr.bf16.mxu0 0
  %7168 = vmatpush1.bf16.msra.mxu0 %v7144
  %7169 = vmatprep.subr.bf16.mxu0 0
  %7170 = vmatpush1.bf16.msra.mxu0 %v7146
  %7171 = vmatprep.subr.bf16.mxu0 0
  %7172 = vmatpush1.bf16.msra.mxu0 %v7148
  %7173 = vmatprep.subr.bf16.mxu0 0
  %7174 = vmatpush1.bf16.msra.mxu0 %v7150
  %7175 = vmatprep.subr.bf16.mxu0 0
  %7176 = vmatpush1.bf16.msra.mxu0 %v7152
  %7177 = vmatprep.subr.bf16.mxu0 0
  %7178 = vmatpush1.bf16.msra.mxu0 %v7154
  %7179 = vmatprep.subr.bf16.mxu0 0
  %7180 = vmatpush1.bf16.msra.mxu0 0
  %7181 = vmatprep.subr.bf16.mxu0 0
  %7182 = vmatpush1.bf16.msra.mxu0 0
  %7183 = vmatprep.subr.bf16.mxu0 0
  %7184 = vmatpush1.bf16.msra.mxu0 0
  %7185 = vmatprep.subr.bf16.mxu0 0
  %7186 = vmatpush1.bf16.msra.mxu0 0
  %7187 = vmatprep.subr.bf16.mxu0 0
  %7188 = vmatpush1.bf16.msra.mxu0 0
  %7189 = vmatprep.subr.bf16.mxu0 0
  %7190 = vmatpush1.bf16.msra.mxu0 0
  %7191 = vmatprep.subr.bf16.mxu0 0
  %7192 = vmatpush1.bf16.msra.mxu0 0
  %7193 = vmatprep.subr.bf16.mxu0 0
  %7194 = vmatpush1.bf16.msra.mxu0 0
  %7195 = vmatprep.mubr.bf16.mxu0 0
  %7196 = vmatmul.mubr.bf16.gmra.mrb[0].mxu0 %v6889
  %v7197 = vpop.f32.mrb[0].mxu0
  %v7198 = vadd.f32 0.0, %v7197
  %v7199 = vpop.f32.mrb[0].mxu0
  %v7200 = vpop.f32.mrb[0].mxu0
  %v7201 = vadd.f32 0.0, %v7200
  %v7202 = vpop.f32.mrb[0].mxu0
  %7203 = vmatprep.mubr.bf16.mxu0 0
  %7204 = vmatmul.mubr.bf16.gmra.mrb[0].mxu0 %v6890
  %v7205 = vpop.f32.mrb[0].mxu0
  %v7206 = vadd.f32 0.0, %v7205
  %v7207 = vpop.f32.mrb[0].mxu0
  %v7208 = vpop.f32.mrb[0].mxu0
  %v7209 = vadd.f32 0.0, %v7208
  %v7210 = vpop.f32.mrb[0].mxu0
  %7211 = vmatprep.mubr.bf16.mxu0 0
  %7212 = vmatmul.mubr.bf16.gmra.mrb[0].mxu0 %v6891
  %v7213 = vpop.f32.mrb[0].mxu0
  %v7214 = vadd.f32 0.0, %v7213
  %v7215 = vpop.f32.mrb[0].mxu0
  %v7216 = vpop.f32.mrb[0].mxu0
  %v7217 = vadd.f32 0.0, %v7216
  %v7218 = vpop.f32.mrb[0].mxu0
  %7219 = vmatprep.mubr.bf16.mxu0 0
  %7220 = vmatmul.mubr.bf16.gmra.mrb[0].mxu0 %v6892
  %v7221 = vpop.f32.mrb[0].mxu0
  %v7222 = vadd.f32 0.0, %v7221
  %v7223 = vpop.f32.mrb[0].mxu0
  %v7224 = vpop.f32.mrb[0].mxu0
  %v7225 = vadd.f32 0.0, %v7224
  %v7226 = vpop.f32.mrb[0].mxu0
  %7227 = vmatprep.mubr.bf16.mxu0 0
  %7228 = vmatmul.mubr.bf16.gmra.mrb[0].mxu0 %v6893
  %v7229 = vpop.f32.mrb[0].mxu0
  %v7230 = vadd.f32 0.0, %v7229
  %v7231 = vpop.f32.mrb[0].mxu0
  %v7232 = vpop.f32.mrb[0].mxu0
  %v7233 = vadd.f32 0.0, %v7232
  %v7234 = vpop.f32.mrb[0].mxu0
  %7235 = vmatprep.mubr.bf16.mxu0 0
  %7236 = vmatmul.mubr.bf16.gmra.mrb[0].mxu0 %v6894
  %v7237 = vpop.f32.mrb[0].mxu0
  %v7238 = vadd.f32 0.0, %v7237
  %v7239 = vpop.f32.mrb[0].mxu0
  %v7240 = vpop.f32.mrb[0].mxu0
  %v7241 = vadd.f32 0.0, %v7240
  %v7242 = vpop.f32.mrb[0].mxu0
  %7243 = vmatprep.mubr.bf16.mxu0 0
  %7244 = vmatmul.mubr.bf16.gmra.mrb[0].mxu0 %v6895
  %v7245 = vpop.f32.mrb[0].mxu0
  %v7246 = vadd.f32 0.0, %v7245
  %v7247 = vpop.f32.mrb[0].mxu0
  %v7248 = vpop.f32.mrb[0].mxu0
  %v7249 = vadd.f32 0.0, %v7248
  %v7250 = vpop.f32.mrb[0].mxu0
  %7251 = vmatprep.mubr.bf16.mxu0 0
  %7252 = vmatmul.mubr.bf16.gmra.mrb[0].mxu0 %v6896
  %v7253 = vpop.f32.mrb[0].mxu0
  %v7254 = vadd.f32 0.0, %v7253
  %v7255 = vpop.f32.mrb[0].mxu0
  %v7256 = vpop.f32.mrb[0].mxu0
  %v7257 = vadd.f32 0.0, %v7256
  %v7258 = vpop.f32.mrb[0].mxu0
  %7259 = vdwg.mxu0
  %7260 = vmatprep.subr.bf16.mxu0 0
  %7261 = vmatpush1.bf16.msra.mxu0 %v7140
  %7262 = vmatprep.subr.bf16.mxu0 0
  %7263 = vmatpush1.bf16.msra.mxu0 %v7142
  %7264 = vmatprep.subr.bf16.mxu0 0
  %7265 = vmatpush1.bf16.msra.mxu0 %v7144
  %7266 = vmatprep.subr.bf16.mxu0 0
  %7267 = vmatpush1.bf16.msra.mxu0 %v7146
  %7268 = vmatprep.subr.bf16.mxu0 0
  %7269 = vmatpush1.bf16.msra.mxu0 %v7148
  %7270 = vmatprep.subr.bf16.mxu0 0
  %7271 = vmatpush1.bf16.msra.mxu0 %v7150
  %7272 = vmatprep.subr.bf16.mxu0 0
  %7273 = vmatpush1.bf16.msra.mxu0 %v7152
  %7274 = vmatprep.subr.bf16.mxu0 0
  %7275 = vmatpush1.bf16.msra.mxu0 %v7154
  %7276 = vmatprep.subr.bf16.mxu0 0
  %7277 = vmatpush1.bf16.msra.mxu0 0
  %7278 = vmatprep.subr.bf16.mxu0 0
  %7279 = vmatpush1.bf16.msra.mxu0 0
  %7280 = vmatprep.subr.bf16.mxu0 0
  %7281 = vmatpush1.bf16.msra.mxu0 0
  %7282 = vmatprep.subr.bf16.mxu0 0
  %7283 = vmatpush1.bf16.msra.mxu0 0
  %7284 = vmatprep.subr.bf16.mxu0 0
  %7285 = vmatpush1.bf16.msra.mxu0 0
  %7286 = vmatprep.subr.bf16.mxu0 0
  %7287 = vmatpush1.bf16.msra.mxu0 0
  %7288 = vmatprep.subr.bf16.mxu0 0
  %7289 = vmatpush1.bf16.msra.mxu0 0
  %7290 = vmatprep.subr.bf16.mxu0 0
  %7291 = vmatpush1.bf16.msra.mxu0 0
  %7292 = vmatprep.mubr.bf16.mxu0 0
  %7293 = vmatmul.mubr.bf16.gmra.mrb[0].mxu0 %v6897
  %v7294 = vpop.f32.mrb[0].mxu0
  %v7295 = vadd.f32 0.0, %v7294
  %v7296 = vpop.f32.mrb[0].mxu0
  %v7297 = vpop.f32.mrb[0].mxu0
  %v7298 = vadd.f32 0.0, %v7297
  %v7299 = vpop.f32.mrb[0].mxu0
  %7300 = vmatprep.mubr.bf16.mxu0 0
  %7301 = vmatmul.mubr.bf16.gmra.mrb[0].mxu0 %v6898
  %v7302 = vpop.f32.mrb[0].mxu0
  %v7303 = vadd.f32 0.0, %v7302
  %v7304 = vpop.f32.mrb[0].mxu0
  %v7305 = vpop.f32.mrb[0].mxu0
  %v7306 = vadd.f32 0.0, %v7305
  %v7307 = vpop.f32.mrb[0].mxu0
  %7308 = vmatprep.mubr.bf16.mxu0 0
  %7309 = vmatmul.mubr.bf16.gmra.mrb[0].mxu0 %v6899
  %v7310 = vpop.f32.mrb[0].mxu0
  %v7311 = vadd.f32 0.0, %v7310
  %v7312 = vpop.f32.mrb[0].mxu0
  %v7313 = vpop.f32.mrb[0].mxu0
  %v7314 = vadd.f32 0.0, %v7313
  %v7315 = vpop.f32.mrb[0].mxu0
  %7316 = vmatprep.mubr.bf16.mxu0 0
  %7317 = vmatmul.mubr.bf16.gmra.mrb[0].mxu0 %v6900
  %v7318 = vpop.f32.mrb[0].mxu0
  %v7319 = vadd.f32 0.0, %v7318
  %v7320 = vpop.f32.mrb[0].mxu0
  %v7321 = vpop.f32.mrb[0].mxu0
  %v7322 = vadd.f32 0.0, %v7321
  %v7323 = vpop.f32.mrb[0].mxu0
  %7324 = vmatprep.mubr.bf16.mxu0 0
  %7325 = vmatmul.mubr.bf16.gmra.mrb[0].mxu0 %v6901
  %v7326 = vpop.f32.mrb[0].mxu0
  %v7327 = vadd.f32 0.0, %v7326
  %v7328 = vpop.f32.mrb[0].mxu0
  %v7329 = vpop.f32.mrb[0].mxu0
  %v7330 = vadd.f32 0.0, %v7329
  %v7331 = vpop.f32.mrb[0].mxu0
  %7332 = vmatprep.mubr.bf16.mxu0 0
  %7333 = vmatmul.mubr.bf16.gmra.mrb[0].mxu0 %v6902
  %v7334 = vpop.f32.mrb[0].mxu0
  %v7335 = vadd.f32 0.0, %v7334
  %v7336 = vpop.f32.mrb[0].mxu0
  %v7337 = vpop.f32.mrb[0].mxu0
  %v7338 = vadd.f32 0.0, %v7337
  %v7339 = vpop.f32.mrb[0].mxu0
  %7340 = vmatprep.mubr.bf16.mxu0 0
  %7341 = vmatmul.mubr.bf16.gmra.mrb[0].mxu0 %v6903
  %v7342 = vpop.f32.mrb[0].mxu0
  %v7343 = vadd.f32 0.0, %v7342
  %v7344 = vpop.f32.mrb[0].mxu0
  %v7345 = vpop.f32.mrb[0].mxu0
  %v7346 = vadd.f32 0.0, %v7345
  %v7347 = vpop.f32.mrb[0].mxu0
  %7348 = vmatprep.mubr.bf16.mxu0 0
  %7349 = vmatmul.mubr.bf16.gmra.mrb[0].mxu0 %v6904
  %v7350 = vpop.f32.mrb[0].mxu0
  %v7351 = vadd.f32 0.0, %v7350
  %v7352 = vpop.f32.mrb[0].mxu0
  %v7353 = vpop.f32.mrb[0].mxu0
  %v7354 = vadd.f32 0.0, %v7353
  %v7355 = vpop.f32.mrb[0].mxu0
  %7356 = vdwg.mxu0
  %7373 = vrot.lane.b32.xlu0 %v7069, 8
  %v7374 = vpop.permute.xlu0 %7373
  %7375 = vrot.lane.b32.xlu0 %v7072, 8
  %v7376 = vpop.permute.xlu0 %7375
  %7377 = vrot.lane.b32.xlu0 %v7077, 8
  %v7378 = vpop.permute.xlu0 %7377
  %7379 = vrot.lane.b32.xlu0 %v7080, 8
  %v7380 = vpop.permute.xlu0 %7379
  %7381 = vrot.lane.b32.xlu0 %v7085, 8
  %v7382 = vpop.permute.xlu0 %7381
  %7383 = vrot.lane.b32.xlu0 %v7088, 8
  %v7384 = vpop.permute.xlu0 %7383
  %7385 = vrot.lane.b32.xlu0 %v7093, 8
  %v7386 = vpop.permute.xlu0 %7385
  %7387 = vrot.lane.b32.xlu0 %v7096, 8
  %v7388 = vpop.permute.xlu0 %7387
  %7389 = vrot.lane.b32.xlu0 %v7101, 8
  %v7390 = vpop.permute.xlu0 %7389
  %7391 = vrot.lane.b32.xlu0 %v7104, 8
  %v7392 = vpop.permute.xlu0 %7391
  %7393 = vrot.lane.b32.xlu0 %v7109, 8
  %v7394 = vpop.permute.xlu0 %7393
  %7395 = vrot.lane.b32.xlu0 %v7112, 8
  %v7396 = vpop.permute.xlu0 %7395
  %7397 = vrot.lane.b32.xlu0 %v7117, 8
  %v7398 = vpop.permute.xlu0 %7397
  %7399 = vrot.lane.b32.xlu0 %v7120, 8
  %v7400 = vpop.permute.xlu0 %7399
  %7401 = vrot.lane.b32.xlu0 %v7125, 8
  %v7402 = vpop.permute.xlu0 %7401
  %7403 = vrot.lane.b32.xlu0 %v7128, 8
  %v7404 = vpop.permute.xlu0 %7403
  %7437 = vrot.lane.b32.xlu0 %v7198, 16
  %v7438 = vpop.permute.xlu0 %7437
  %7439 = vrot.lane.b32.xlu0 %v7201, 16
  %v7440 = vpop.permute.xlu0 %7439
  %7441 = vrot.lane.b32.xlu0 %v7206, 16
  %v7442 = vpop.permute.xlu0 %7441
  %7443 = vrot.lane.b32.xlu0 %v7209, 16
  %v7444 = vpop.permute.xlu0 %7443
  %7445 = vrot.lane.b32.xlu0 %v7214, 16
  %v7446 = vpop.permute.xlu0 %7445
  %7447 = vrot.lane.b32.xlu0 %v7217, 16
  %v7448 = vpop.permute.xlu0 %7447
  %7449 = vrot.lane.b32.xlu0 %v7222, 16
  %v7450 = vpop.permute.xlu0 %7449
  %7451 = vrot.lane.b32.xlu0 %v7225, 16
  %v7452 = vpop.permute.xlu0 %7451
  %7453 = vrot.lane.b32.xlu0 %v7230, 16
  %v7454 = vpop.permute.xlu0 %7453
  %7455 = vrot.lane.b32.xlu0 %v7233, 16
  %v7456 = vpop.permute.xlu0 %7455
  %7457 = vrot.lane.b32.xlu0 %v7238, 16
  %v7458 = vpop.permute.xlu0 %7457
  %7459 = vrot.lane.b32.xlu0 %v7241, 16
  %v7460 = vpop.permute.xlu0 %7459
  %7461 = vrot.lane.b32.xlu0 %v7246, 16
  %v7462 = vpop.permute.xlu0 %7461
  %7463 = vrot.lane.b32.xlu0 %v7249, 16
  %v7464 = vpop.permute.xlu0 %7463
  %7465 = vrot.lane.b32.xlu0 %v7254, 16
  %v7466 = vpop.permute.xlu0 %7465
  %7467 = vrot.lane.b32.xlu0 %v7257, 16
  %v7468 = vpop.permute.xlu0 %7467
  %7501 = vrot.lane.b32.xlu0 %v7295, 24
  %v7502 = vpop.permute.xlu0 %7501
  %7503 = vrot.lane.b32.xlu0 %v7298, 24
  %v7504 = vpop.permute.xlu0 %7503
  %7505 = vrot.lane.b32.xlu0 %v7303, 24
  %v7506 = vpop.permute.xlu0 %7505
  %7507 = vrot.lane.b32.xlu0 %v7306, 24
  %v7508 = vpop.permute.xlu0 %7507
  %7509 = vrot.lane.b32.xlu0 %v7311, 24
  %v7510 = vpop.permute.xlu0 %7509
  %7511 = vrot.lane.b32.xlu0 %v7314, 24
  %v7512 = vpop.permute.xlu0 %7511
  %7513 = vrot.lane.b32.xlu0 %v7319, 24
  %v7514 = vpop.permute.xlu0 %7513
  %7515 = vrot.lane.b32.xlu0 %v7322, 24
  %v7516 = vpop.permute.xlu0 %7515
  %7517 = vrot.lane.b32.xlu0 %v7327, 24
  %v7518 = vpop.permute.xlu0 %7517
  %7519 = vrot.lane.b32.xlu0 %v7330, 24
  %v7520 = vpop.permute.xlu0 %7519
  %7521 = vrot.lane.b32.xlu0 %v7335, 24
  %v7522 = vpop.permute.xlu0 %7521
  %7523 = vrot.lane.b32.xlu0 %v7338, 24
  %v7524 = vpop.permute.xlu0 %7523
  %7525 = vrot.lane.b32.xlu0 %v7343, 24
  %v7526 = vpop.permute.xlu0 %7525
  %7527 = vrot.lane.b32.xlu0 %v7346, 24
  %v7528 = vpop.permute.xlu0 %7527
  %7529 = vrot.lane.b32.xlu0 %v7351, 24
  %v7530 = vpop.permute.xlu0 %7529
  %7531 = vrot.lane.b32.xlu0 %v7354, 24
  %v7532 = vpop.permute.xlu0 %7531
  %v7549 = vsel %vm1717, %v6972, %v7374
  %v7550 = vsel %vm1717, %v6975, %v7376
  %v7551 = vsel %vm1717, %v6980, %v7378
  %v7552 = vsel %vm1717, %v6983, %v7380
  %v7553 = vsel %vm1717, %v6988, %v7382
  %v7554 = vsel %vm1717, %v6991, %v7384
  %v7555 = vsel %vm1717, %v6996, %v7386
  %v7556 = vsel %vm1717, %v6999, %v7388
  %v7557 = vsel %vm1717, %v7004, %v7390
  %v7558 = vsel %vm1717, %v7007, %v7392
  %v7559 = vsel %vm1717, %v7012, %v7394
  %v7560 = vsel %vm1717, %v7015, %v7396
  %v7561 = vsel %vm1717, %v7020, %v7398
  %v7562 = vsel %vm1717, %v7023, %v7400
  %v7563 = vsel %vm1717, %v7028, %v7402
  %v7564 = vsel %vm1717, %v7031, %v7404
  %v7565 = vsel %vm3542, %v7549, %v7438
  %v7566 = vsel %vm3542, %v7550, %v7440
  %v7567 = vsel %vm3542, %v7551, %v7442
  %v7568 = vsel %vm3542, %v7552, %v7444
  %v7569 = vsel %vm3542, %v7553, %v7446
  %v7570 = vsel %vm3542, %v7554, %v7448
  %v7571 = vsel %vm3542, %v7555, %v7450
  %v7572 = vsel %vm3542, %v7556, %v7452
  %v7573 = vsel %vm3542, %v7557, %v7454
  %v7574 = vsel %vm3542, %v7558, %v7456
  %v7575 = vsel %vm3542, %v7559, %v7458
  %v7576 = vsel %vm3542, %v7560, %v7460
  %v7577 = vsel %vm3542, %v7561, %v7462
  %v7578 = vsel %vm3542, %v7562, %v7464
  %v7579 = vsel %vm3542, %v7563, %v7466
  %v7580 = vsel %vm3542, %v7564, %v7468
  %v7581 = vsel %vm3559, %v7565, %v7502
  %v7582 = vsel %vm3559, %v7566, %v7504
  %v7583 = vsel %vm3559, %v7567, %v7506
  %v7584 = vsel %vm3559, %v7568, %v7508
  %v7585 = vsel %vm3559, %v7569, %v7510
  %v7586 = vsel %vm3559, %v7570, %v7512
  %v7587 = vsel %vm3559, %v7571, %v7514
  %v7588 = vsel %vm3559, %v7572, %v7516
  %v7589 = vsel %vm3559, %v7573, %v7518
  %v7590 = vsel %vm3559, %v7574, %v7520
  %v7591 = vsel %vm3559, %v7575, %v7522
  %v7592 = vsel %vm3559, %v7576, %v7524
  %v7593 = vsel %vm3559, %v7577, %v7526
  %v7594 = vsel %vm3559, %v7578, %v7528
  %v7595 = vsel %vm3559, %v7579, %v7530
  %v7596 = vsel %vm3559, %v7580, %v7532
  %v7597 = vpack.c.bf16 %v7582, %v7581
  %v7598 = vpack.c.bf16 %v7584, %v7583
  %v7599 = vpack.c.bf16 %v7586, %v7585
  %v7600 = vpack.c.bf16 %v7588, %v7587
  %v7601 = vpack.c.bf16 %v7590, %v7589
  %v7602 = vpack.c.bf16 %v7592, %v7591
  %v7603 = vpack.c.bf16 %v7594, %v7593
  %v7604 = vpack.c.bf16 %v7596, %v7595
  %s7605 = scalar_lea.vmem %s9, 16
  %v7606 = vld [vmem:[%s7605] sm:$0xf]
  %v7607 = vld [vmem:[%s7605 + $0x4] sm:$0xf]
  %v7608 = vld [vmem:[%s7605 + $0x8] sm:$0xf]
  %v7609 = vld [vmem:[%s7605 + $0xc] sm:$0xf]
  %v7614 = vunpack.c.l.b16 %v7606
  %v7615 = vunpack.c.l.b16 %v7607
  %v7616 = vunpack.c.l.b16 %v7608
  %v7617 = vunpack.c.l.b16 %v7609
  %v7618 = vpack.c.b16 %v7615, %v7614
  %v7619 = vpack.c.b16 %v7617, %v7616
  %v7623 = vsel %vm123, %v7597, 0
  %v7626 = vsel %vm123, %v7598, 0
  %v7629 = vsel %vm123, %v7599, 0
  %v7632 = vsel %vm123, %v7600, 0
  %v7635 = vsel %vm123, %v7601, 0
  %v7638 = vsel %vm123, %v7602, 0
  %v7641 = vsel %vm123, %v7603, 0
  %v7644 = vsel %vm123, %v7604, 0
  %7646 = vmatprep.subr.bf16.mxu0 0
  %7647 = vmatpush1.bf16.msra.mxu0 %v7618
  %7648 = vmatprep.subr.bf16.mxu0 0
  %7649 = vmatpush1.bf16.msra.mxu0 %v7619
  %7650 = vmatprep.subr.bf16.mxu0 0
  %7651 = vmatpush1.bf16.msra.mxu0 0
  %7652 = vmatprep.subr.bf16.mxu0 0
  %7653 = vmatpush1.bf16.msra.mxu0 0
  %7654 = vmatprep.subr.bf16.mxu0 0
  %7655 = vmatpush1.bf16.msra.mxu0 0
  %7656 = vmatprep.subr.bf16.mxu0 0
  %7657 = vmatpush1.bf16.msra.mxu0 0
  %7658 = vmatprep.subr.bf16.mxu0 0
  %7659 = vmatpush1.bf16.msra.mxu0 0
  %7660 = vmatprep.subr.bf16.mxu0 0
  %7661 = vmatpush1.bf16.msra.mxu0 0
  %7662 = vmatprep.subr.bf16.mxu0 0
  %7663 = vmatpush1.bf16.msra.mxu0 0
  %7664 = vmatprep.subr.bf16.mxu0 0
  %7665 = vmatpush1.bf16.msra.mxu0 0
  %7666 = vmatprep.subr.bf16.mxu0 0
  %7667 = vmatpush1.bf16.msra.mxu0 0
  %7668 = vmatprep.subr.bf16.mxu0 0
  %7669 = vmatpush1.bf16.msra.mxu0 0
  %7670 = vmatprep.subr.bf16.mxu0 0
  %7671 = vmatpush1.bf16.msra.mxu0 0
  %7672 = vmatprep.subr.bf16.mxu0 0
  %7673 = vmatpush1.bf16.msra.mxu0 0
  %7674 = vmatprep.subr.bf16.mxu0 0
  %7675 = vmatpush1.bf16.msra.mxu0 0
  %7676 = vmatprep.subr.bf16.mxu0 0
  %7677 = vmatpush1.bf16.msra.mxu0 0
  %7678 = vmatprep.mubr.bf16.mxu0 0
  %7679 = vmatmul.mubr.bf16.gmra.mrb[0].mxu0 %v7623
  %v7680 = vpop.f32.mrb[0].mxu0
  %v7681 = vadd.f32 0.0, %v7680
  %v7682 = vpop.f32.mrb[0].mxu0
  %v7683 = vpop.f32.mrb[0].mxu0
  %v7684 = vadd.f32 0.0, %v7683
  %v7685 = vpop.f32.mrb[0].mxu0
  %7686 = vmatprep.mubr.bf16.mxu0 0
  %7687 = vmatmul.mubr.bf16.gmra.mrb[0].mxu0 %v7626
  %v7688 = vpop.f32.mrb[0].mxu0
  %v7689 = vadd.f32 0.0, %v7688
  %v7690 = vpop.f32.mrb[0].mxu0
  %v7691 = vpop.f32.mrb[0].mxu0
  %v7692 = vadd.f32 0.0, %v7691
  %v7693 = vpop.f32.mrb[0].mxu0
  %7694 = vmatprep.mubr.bf16.mxu0 0
  %7695 = vmatmul.mubr.bf16.gmra.mrb[0].mxu0 %v7629
  %v7696 = vpop.f32.mrb[0].mxu0
  %v7697 = vadd.f32 0.0, %v7696
  %v7698 = vpop.f32.mrb[0].mxu0
  %v7699 = vpop.f32.mrb[0].mxu0
  %v7700 = vadd.f32 0.0, %v7699
  %v7701 = vpop.f32.mrb[0].mxu0
  %7702 = vmatprep.mubr.bf16.mxu0 0
  %7703 = vmatmul.mubr.bf16.gmra.mrb[0].mxu0 %v7632
  %v7704 = vpop.f32.mrb[0].mxu0
  %v7705 = vadd.f32 0.0, %v7704
  %v7706 = vpop.f32.mrb[0].mxu0
  %v7707 = vpop.f32.mrb[0].mxu0
  %v7708 = vadd.f32 0.0, %v7707
  %v7709 = vpop.f32.mrb[0].mxu0
  %7710 = vmatprep.mubr.bf16.mxu0 0
  %7711 = vmatmul.mubr.bf16.gmra.mrb[0].mxu0 %v7635
  %v7712 = vpop.f32.mrb[0].mxu0
  %v7713 = vadd.f32 0.0, %v7712
  %v7714 = vpop.f32.mrb[0].mxu0
  %v7715 = vpop.f32.mrb[0].mxu0
  %v7716 = vadd.f32 0.0, %v7715
  %v7717 = vpop.f32.mrb[0].mxu0
  %7718 = vmatprep.mubr.bf16.mxu0 0
  %7719 = vmatmul.mubr.bf16.gmra.mrb[0].mxu0 %v7638
  %v7720 = vpop.f32.mrb[0].mxu0
  %v7721 = vadd.f32 0.0, %v7720
  %v7722 = vpop.f32.mrb[0].mxu0
  %v7723 = vpop.f32.mrb[0].mxu0
  %v7724 = vadd.f32 0.0, %v7723
  %v7725 = vpop.f32.mrb[0].mxu0
  %7726 = vmatprep.mubr.bf16.mxu0 0
  %7727 = vmatmul.mubr.bf16.gmra.mrb[0].mxu0 %v7641
  %v7728 = vpop.f32.mrb[0].mxu0
  %v7729 = vadd.f32 0.0, %v7728
  %v7730 = vpop.f32.mrb[0].mxu0
  %v7731 = vpop.f32.mrb[0].mxu0
  %v7732 = vadd.f32 0.0, %v7731
  %v7733 = vpop.f32.mrb[0].mxu0
  %7734 = vmatprep.mubr.bf16.mxu0 0
  %7735 = vmatmul.mubr.bf16.gmra.mrb[0].mxu0 %v7644
  %v7736 = vpop.f32.mrb[0].mxu0
  %v7737 = vadd.f32 0.0, %v7736
  %v7738 = vpop.f32.mrb[0].mxu0
  %v7739 = vpop.f32.mrb[0].mxu0
  %v7740 = vadd.f32 0.0, %v7739
  %v7741 = vpop.f32.mrb[0].mxu0
  %7742 = vdwg.mxu0
  %v7743 = vadd.f32 %v4387, %v7681
  %v7744 = vadd.f32 %v4388, %v7684
  %v7745 = vadd.f32 %v4389, %v7689
  %v7746 = vadd.f32 %v4390, %v7692
  %v7747 = vadd.f32 %v4391, %v7697
  %v7748 = vadd.f32 %v4392, %v7700
  %v7749 = vadd.f32 %v4393, %v7705
  %v7750 = vadd.f32 %v4394, %v7708
  %v7751 = vadd.f32 %v4395, %v7713
  %v7752 = vadd.f32 %v4396, %v7716
  %v7753 = vadd.f32 %v4397, %v7721
  %v7754 = vadd.f32 %v4398, %v7724
  %v7755 = vadd.f32 %v4399, %v7729
  %v7756 = vadd.f32 %v4400, %v7732
  %v7757 = vadd.f32 %v4401, %v7737
  %v7758 = vadd.f32 %v4402, %v7740
  %s7759 = scalar_lea.vmem %s6, 1
  %v7760 = vld [vmem:[%s7759] sm:$0x1]
  %v7761 = vmul.f32 %v7743, %v7743
  %v7762 = vmul.f32 %v7744, %v7744
  %v7763 = vmul.f32 %v7745, %v7745
  %v7764 = vmul.f32 %v7746, %v7746
  %v7765 = vmul.f32 %v7747, %v7747
  %v7766 = vmul.f32 %v7748, %v7748
  %v7767 = vmul.f32 %v7749, %v7749
  %v7768 = vmul.f32 %v7750, %v7750
  %v7769 = vmul.f32 %v7751, %v7751
  %v7770 = vmul.f32 %v7752, %v7752
  %v7771 = vmul.f32 %v7753, %v7753
  %v7772 = vmul.f32 %v7754, %v7754
  %v7773 = vmul.f32 %v7755, %v7755
  %v7774 = vmul.f32 %v7756, %v7756
  %v7775 = vmul.f32 %v7757, %v7757
  %v7776 = vmul.f32 %v7758, %v7758
  %v7777 = vsel %vm123, %v7761, 0.0
  %7778 = vadd.xlane.f32.xlu0 %v7777
  %v7779 = vpop.xlane.xlu0 %7778
  %v7780 = vsel %vm123, %v7762, 0.0
  %7781 = vadd.xlane.f32.xlu0 %v7780
  %v7782 = vpop.xlane.xlu0 %7781
  %v7783 = vsel %vm123, %v7763, 0.0
  %7784 = vadd.xlane.f32.xlu0 %v7783
  %v7785 = vpop.xlane.xlu0 %7784
  %v7786 = vsel %vm123, %v7764, 0.0
  %7787 = vadd.xlane.f32.xlu0 %v7786
  %v7788 = vpop.xlane.xlu0 %7787
  %v7789 = vsel %vm123, %v7765, 0.0
  %7790 = vadd.xlane.f32.xlu0 %v7789
  %v7791 = vpop.xlane.xlu0 %7790
  %v7792 = vsel %vm123, %v7766, 0.0
  %7793 = vadd.xlane.f32.xlu0 %v7792
  %v7794 = vpop.xlane.xlu0 %7793
  %v7795 = vsel %vm123, %v7767, 0.0
  %7796 = vadd.xlane.f32.xlu0 %v7795
  %v7797 = vpop.xlane.xlu0 %7796
  %v7798 = vsel %vm123, %v7768, 0.0
  %7799 = vadd.xlane.f32.xlu0 %v7798
  %v7800 = vpop.xlane.xlu0 %7799
  %v7801 = vsel %vm123, %v7769, 0.0
  %7802 = vadd.xlane.f32.xlu0 %v7801
  %v7803 = vpop.xlane.xlu0 %7802
  %v7804 = vsel %vm123, %v7770, 0.0
  %7805 = vadd.xlane.f32.xlu0 %v7804
  %v7806 = vpop.xlane.xlu0 %7805
  %v7807 = vsel %vm123, %v7771, 0.0
  %7808 = vadd.xlane.f32.xlu0 %v7807
  %v7809 = vpop.xlane.xlu0 %7808
  %v7810 = vsel %vm123, %v7772, 0.0
  %7811 = vadd.xlane.f32.xlu0 %v7810
  %v7812 = vpop.xlane.xlu0 %7811
  %v7813 = vsel %vm123, %v7773, 0.0
  %7814 = vadd.xlane.f32.xlu0 %v7813
  %v7815 = vpop.xlane.xlu0 %7814
  %v7816 = vsel %vm123, %v7774, 0.0
  %7817 = vadd.xlane.f32.xlu0 %v7816
  %v7818 = vpop.xlane.xlu0 %7817
  %v7819 = vsel %vm123, %v7775, 0.0
  %7820 = vadd.xlane.f32.xlu0 %v7819
  %v7821 = vpop.xlane.xlu0 %7820
  %v7822 = vsel %vm123, %v7776, 0.0
  %7823 = vadd.xlane.f32.xlu0 %v7822
  %v7824 = vpop.xlane.xlu0 %7823
  %v7825 = vmul.f32 %v7779, %v172
  %v7826 = vmul.f32 %v7782, %v172
  %v7827 = vmul.f32 %v7785, %v172
  %v7828 = vmul.f32 %v7788, %v172
  %v7829 = vmul.f32 %v7791, %v172
  %v7830 = vmul.f32 %v7794, %v172
  %v7831 = vmul.f32 %v7797, %v172
  %v7832 = vmul.f32 %v7800, %v172
  %v7833 = vmul.f32 %v7803, %v172
  %v7834 = vmul.f32 %v7806, %v172
  %v7835 = vmul.f32 %v7809, %v172
  %v7836 = vmul.f32 %v7812, %v172
  %v7837 = vmul.f32 %v7815, %v172
  %v7838 = vmul.f32 %v7818, %v172
  %v7839 = vmul.f32 %v7821, %v172
  %v7840 = vmul.f32 %v7824, %v172
  %v7841 = vadd.f32 %v7825, 1e-05
  %v7842 = vadd.f32 %v7826, 1e-05
  %v7843 = vadd.f32 %v7827, 1e-05
  %v7844 = vadd.f32 %v7828, 1e-05
  %v7845 = vadd.f32 %v7829, 1e-05
  %v7846 = vadd.f32 %v7830, 1e-05
  %v7847 = vadd.f32 %v7831, 1e-05
  %v7848 = vadd.f32 %v7832, 1e-05
  %v7849 = vadd.f32 %v7833, 1e-05
  %v7850 = vadd.f32 %v7834, 1e-05
  %v7851 = vadd.f32 %v7835, 1e-05
  %v7852 = vadd.f32 %v7836, 1e-05
  %v7853 = vadd.f32 %v7837, 1e-05
  %v7854 = vadd.f32 %v7838, 1e-05
  %v7855 = vadd.f32 %v7839, 1e-05
  %v7856 = vadd.f32 %v7840, 1e-05
  %v7857 = vrsqrt.pop %v7841
  %v7858 = vrsqrt.pop %v7842
  %v7859 = vrsqrt.pop %v7843
  %v7860 = vrsqrt.pop %v7844
  %v7861 = vrsqrt.pop %v7845
  %v7862 = vrsqrt.pop %v7846
  %v7863 = vrsqrt.pop %v7847
  %v7864 = vrsqrt.pop %v7848
  %v7865 = vrsqrt.pop %v7849
  %v7866 = vrsqrt.pop %v7850
  %v7867 = vrsqrt.pop %v7851
  %v7868 = vrsqrt.pop %v7852
  %v7869 = vrsqrt.pop %v7853
  %v7870 = vrsqrt.pop %v7854
  %v7871 = vrsqrt.pop %v7855
  %v7872 = vrsqrt.pop %v7856
  %v7873 = vmul.f32 %v7743, %v7857
  %v7874 = vmul.f32 %v7744, %v7858
  %v7875 = vmul.f32 %v7745, %v7859
  %v7876 = vmul.f32 %v7746, %v7860
  %v7877 = vmul.f32 %v7747, %v7861
  %v7878 = vmul.f32 %v7748, %v7862
  %v7879 = vmul.f32 %v7749, %v7863
  %v7880 = vmul.f32 %v7750, %v7864
  %v7881 = vmul.f32 %v7751, %v7865
  %v7882 = vmul.f32 %v7752, %v7866
  %v7883 = vmul.f32 %v7753, %v7867
  %v7884 = vmul.f32 %v7754, %v7868
  %v7885 = vmul.f32 %v7755, %v7869
  %v7886 = vmul.f32 %v7756, %v7870
  %v7887 = vmul.f32 %v7757, %v7871
  %v7888 = vmul.f32 %v7758, %v7872
  %v7890 = vlaneseq
  %v7891 = vshrl.u32 %v7890, 7
  %v7892 = vsub.s32 0, %v7891
  %v7893 = vrot.slane %v7760, %v7892
  %v7895 = vmul.f32 %v7873, %v7893
  %v7896 = vmul.f32 %v7874, %v7893
  %v7897 = vmul.f32 %v7875, %v7893
  %v7898 = vmul.f32 %v7876, %v7893
  %v7899 = vmul.f32 %v7877, %v7893
  %v7900 = vmul.f32 %v7878, %v7893
  %v7901 = vmul.f32 %v7879, %v7893
  %v7902 = vmul.f32 %v7880, %v7893
  %v7903 = vmul.f32 %v7881, %v7893
  %v7904 = vmul.f32 %v7882, %v7893
  %v7905 = vmul.f32 %v7883, %v7893
  %v7906 = vmul.f32 %v7884, %v7893
  %v7907 = vmul.f32 %v7885, %v7893
  %v7908 = vmul.f32 %v7886, %v7893
  %v7909 = vmul.f32 %v7887, %v7893
  %v7910 = vmul.f32 %v7888, %v7893
  %v7911 = vpack.c.bf16 %v7896, %v7895
  %v7912 = vpack.c.bf16 %v7898, %v7897
  %v7913 = vpack.c.bf16 %v7900, %v7899
  %v7914 = vpack.c.bf16 %v7902, %v7901
  %v7915 = vpack.c.bf16 %v7904, %v7903
  %v7916 = vpack.c.bf16 %v7906, %v7905
  %v7917 = vpack.c.bf16 %v7908, %v7907
  %v7918 = vpack.c.bf16 %v7910, %v7909
  %s7919 = scalar_lea.vmem %s10, 16
  %v7920 = vld [vmem:[%s7919] sm:$0xf]
  %v7921 = vld [vmem:[%s7919 + $0x4] sm:$0xf]
  %v7922 = vld [vmem:[%s7919 + $0x8] sm:$0xf]
  %v7923 = vld [vmem:[%s7919 + $0xc] sm:$0xf]
  %v7928 = vunpack.c.l.b16 %v7920
  %v7929 = vunpack.c.l.b16 %v7921
  %v7930 = vunpack.c.l.b16 %v7922
  %v7931 = vunpack.c.l.b16 %v7923
  %v7932 = vpack.c.b16 %v7929, %v7928
  %v7933 = vpack.c.b16 %v7931, %v7930
  %v7937 = vsel %vm123, %v7911, 0
  %v7940 = vsel %vm123, %v7912, 0
  %v7943 = vsel %vm123, %v7913, 0
  %v7946 = vsel %vm123, %v7914, 0
  %v7949 = vsel %vm123, %v7915, 0
  %v7952 = vsel %vm123, %v7916, 0
  %v7955 = vsel %vm123, %v7917, 0
  %v7958 = vsel %vm123, %v7918, 0
  %7960 = vmatprep.subr.bf16.mxu0 0
  %7961 = vmatpush1.bf16.msra.mxu0 %v7932
  %7962 = vmatprep.subr.bf16.mxu0 0
  %7963 = vmatpush1.bf16.msra.mxu0 %v7933
  %7964 = vmatprep.subr.bf16.mxu0 0
  %7965 = vmatpush1.bf16.msra.mxu0 0
  %7966 = vmatprep.subr.bf16.mxu0 0
  %7967 = vmatpush1.bf16.msra.mxu0 0
  %7968 = vmatprep.subr.bf16.mxu0 0
  %7969 = vmatpush1.bf16.msra.mxu0 0
  %7970 = vmatprep.subr.bf16.mxu0 0
  %7971 = vmatpush1.bf16.msra.mxu0 0
  %7972 = vmatprep.subr.bf16.mxu0 0
  %7973 = vmatpush1.bf16.msra.mxu0 0
  %7974 = vmatprep.subr.bf16.mxu0 0
  %7975 = vmatpush1.bf16.msra.mxu0 0
  %7976 = vmatprep.subr.bf16.mxu0 0
  %7977 = vmatpush1.bf16.msra.mxu0 0
  %7978 = vmatprep.subr.bf16.mxu0 0
  %7979 = vmatpush1.bf16.msra.mxu0 0
  %7980 = vmatprep.subr.bf16.mxu0 0
  %7981 = vmatpush1.bf16.msra.mxu0 0
  %7982 = vmatprep.subr.bf16.mxu0 0
  %7983 = vmatpush1.bf16.msra.mxu0 0
  %7984 = vmatprep.subr.bf16.mxu0 0
  %7985 = vmatpush1.bf16.msra.mxu0 0
  %7986 = vmatprep.subr.bf16.mxu0 0
  %7987 = vmatpush1.bf16.msra.mxu0 0
  %7988 = vmatprep.subr.bf16.mxu0 0
  %7989 = vmatpush1.bf16.msra.mxu0 0
  %7990 = vmatprep.subr.bf16.mxu0 0
  %7991 = vmatpush1.bf16.msra.mxu0 0
  %7992 = vmatprep.mubr.bf16.mxu0 0
  %7993 = vmatmul.mubr.bf16.gmra.mrb[0].mxu0 %v7937
  %v7994 = vpop.f32.mrb[0].mxu0
  %v7995 = vadd.f32 0.0, %v7994
  %v7996 = vpop.f32.mrb[0].mxu0
  %v7997 = vpop.f32.mrb[0].mxu0
  %v7998 = vadd.f32 0.0, %v7997
  %v7999 = vpop.f32.mrb[0].mxu0
  %8000 = vmatprep.mubr.bf16.mxu0 0
  %8001 = vmatmul.mubr.bf16.gmra.mrb[0].mxu0 %v7940
  %v8002 = vpop.f32.mrb[0].mxu0
  %v8003 = vadd.f32 0.0, %v8002
  %v8004 = vpop.f32.mrb[0].mxu0
  %v8005 = vpop.f32.mrb[0].mxu0
  %v8006 = vadd.f32 0.0, %v8005
  %v8007 = vpop.f32.mrb[0].mxu0
  %8008 = vmatprep.mubr.bf16.mxu0 0
  %8009 = vmatmul.mubr.bf16.gmra.mrb[0].mxu0 %v7943
  %v8010 = vpop.f32.mrb[0].mxu0
  %v8011 = vadd.f32 0.0, %v8010
  %v8012 = vpop.f32.mrb[0].mxu0
  %v8013 = vpop.f32.mrb[0].mxu0
  %v8014 = vadd.f32 0.0, %v8013
  %v8015 = vpop.f32.mrb[0].mxu0
  %8016 = vmatprep.mubr.bf16.mxu0 0
  %8017 = vmatmul.mubr.bf16.gmra.mrb[0].mxu0 %v7946
  %v8018 = vpop.f32.mrb[0].mxu0
  %v8019 = vadd.f32 0.0, %v8018
  %v8020 = vpop.f32.mrb[0].mxu0
  %v8021 = vpop.f32.mrb[0].mxu0
  %v8022 = vadd.f32 0.0, %v8021
  %v8023 = vpop.f32.mrb[0].mxu0
  %8024 = vmatprep.mubr.bf16.mxu0 0
  %8025 = vmatmul.mubr.bf16.gmra.mrb[0].mxu0 %v7949
  %v8026 = vpop.f32.mrb[0].mxu0
  %v8027 = vadd.f32 0.0, %v8026
  %v8028 = vpop.f32.mrb[0].mxu0
  %v8029 = vpop.f32.mrb[0].mxu0
  %v8030 = vadd.f32 0.0, %v8029
  %v8031 = vpop.f32.mrb[0].mxu0
  %8032 = vmatprep.mubr.bf16.mxu0 0
  %8033 = vmatmul.mubr.bf16.gmra.mrb[0].mxu0 %v7952
  %v8034 = vpop.f32.mrb[0].mxu0
  %v8035 = vadd.f32 0.0, %v8034
  %v8036 = vpop.f32.mrb[0].mxu0
  %v8037 = vpop.f32.mrb[0].mxu0
  %v8038 = vadd.f32 0.0, %v8037
  %v8039 = vpop.f32.mrb[0].mxu0
  %8040 = vmatprep.mubr.bf16.mxu0 0
  %8041 = vmatmul.mubr.bf16.gmra.mrb[0].mxu0 %v7955
  %v8042 = vpop.f32.mrb[0].mxu0
  %v8043 = vadd.f32 0.0, %v8042
  %v8044 = vpop.f32.mrb[0].mxu0
  %v8045 = vpop.f32.mrb[0].mxu0
  %v8046 = vadd.f32 0.0, %v8045
  %v8047 = vpop.f32.mrb[0].mxu0
  %8048 = vmatprep.mubr.bf16.mxu0 0
  %8049 = vmatmul.mubr.bf16.gmra.mrb[0].mxu0 %v7958
  %v8050 = vpop.f32.mrb[0].mxu0
  %v8051 = vadd.f32 0.0, %v8050
  %v8052 = vpop.f32.mrb[0].mxu0
  %v8053 = vpop.f32.mrb[0].mxu0
  %v8054 = vadd.f32 0.0, %v8053
  %v8055 = vpop.f32.mrb[0].mxu0
  %8056 = vdwg.mxu0
  %v8057 = vxor.u32 %v7995, 2147483648
  %v8058 = vxor.u32 %v7998, 2147483648
  %v8059 = vxor.u32 %v8003, 2147483648
  %v8060 = vxor.u32 %v8006, 2147483648
  %v8061 = vxor.u32 %v8011, 2147483648
  %v8062 = vxor.u32 %v8014, 2147483648
  %v8063 = vxor.u32 %v8019, 2147483648
  %v8064 = vxor.u32 %v8022, 2147483648
  %v8065 = vxor.u32 %v8027, 2147483648
  %v8066 = vxor.u32 %v8030, 2147483648
  %v8067 = vxor.u32 %v8035, 2147483648
  %v8068 = vxor.u32 %v8038, 2147483648
  %v8069 = vxor.u32 %v8043, 2147483648
  %v8070 = vxor.u32 %v8046, 2147483648
  %v8071 = vxor.u32 %v8051, 2147483648
  %v8072 = vxor.u32 %v8054, 2147483648
  %v8073 = vmul.f32 %v8057, 1.442695
  %v8074 = vpow.pop %v8073
  %v8075 = vmul.f32 %v8058, 1.442695
  %v8076 = vpow.pop %v8075
  %v8077 = vmul.f32 %v8059, 1.442695
  %v8078 = vpow.pop %v8077
  %v8079 = vmul.f32 %v8060, 1.442695
  %v8080 = vpow.pop %v8079
  %v8081 = vmul.f32 %v8061, 1.442695
  %v8082 = vpow.pop %v8081
  %v8083 = vmul.f32 %v8062, 1.442695
  %v8084 = vpow.pop %v8083
  %v8085 = vmul.f32 %v8063, 1.442695
  %v8086 = vpow.pop %v8085
  %v8087 = vmul.f32 %v8064, 1.442695
  %v8088 = vpow.pop %v8087
  %v8089 = vmul.f32 %v8065, 1.442695
  %v8090 = vpow.pop %v8089
  %v8091 = vmul.f32 %v8066, 1.442695
  %v8092 = vpow.pop %v8091
  %v8093 = vmul.f32 %v8067, 1.442695
  %v8094 = vpow.pop %v8093
  %v8095 = vmul.f32 %v8068, 1.442695
  %v8096 = vpow.pop %v8095
  %v8097 = vmul.f32 %v8069, 1.442695
  %v8098 = vpow.pop %v8097
  %v8099 = vmul.f32 %v8070, 1.442695
  %v8100 = vpow.pop %v8099
  %v8101 = vmul.f32 %v8071, 1.442695
  %v8102 = vpow.pop %v8101
  %v8103 = vmul.f32 %v8072, 1.442695
  %v8104 = vpow.pop %v8103
  %v8105 = vadd.f32 %v8074, 1.0
  %v8106 = vadd.f32 %v8076, 1.0
  %v8107 = vadd.f32 %v8078, 1.0
  %v8108 = vadd.f32 %v8080, 1.0
  %v8109 = vadd.f32 %v8082, 1.0
  %v8110 = vadd.f32 %v8084, 1.0
  %v8111 = vadd.f32 %v8086, 1.0
  %v8112 = vadd.f32 %v8088, 1.0
  %v8113 = vadd.f32 %v8090, 1.0
  %v8114 = vadd.f32 %v8092, 1.0
  %v8115 = vadd.f32 %v8094, 1.0
  %v8116 = vadd.f32 %v8096, 1.0
  %v8117 = vadd.f32 %v8098, 1.0
  %v8118 = vadd.f32 %v8100, 1.0
  %v8119 = vadd.f32 %v8102, 1.0
  %v8120 = vadd.f32 %v8104, 1.0
  %v8121 = vrcp.pop %v8105
  %v8122 = vmul.f32 1.0, %v8121
  %v8123 = vrcp.pop %v8106
  %v8124 = vmul.f32 1.0, %v8123
  %v8125 = vrcp.pop %v8107
  %v8126 = vmul.f32 1.0, %v8125
  %v8127 = vrcp.pop %v8108
  %v8128 = vmul.f32 1.0, %v8127
  %v8129 = vrcp.pop %v8109
  %v8130 = vmul.f32 1.0, %v8129
  %v8131 = vrcp.pop %v8110
  %v8132 = vmul.f32 1.0, %v8131
  %v8133 = vrcp.pop %v8111
  %v8134 = vmul.f32 1.0, %v8133
  %v8135 = vrcp.pop %v8112
  %v8136 = vmul.f32 1.0, %v8135
  %v8137 = vrcp.pop %v8113
  %v8138 = vmul.f32 1.0, %v8137
  %v8139 = vrcp.pop %v8114
  %v8140 = vmul.f32 1.0, %v8139
  %v8141 = vrcp.pop %v8115
  %v8142 = vmul.f32 1.0, %v8141
  %v8143 = vrcp.pop %v8116
  %v8144 = vmul.f32 1.0, %v8143
  %v8145 = vrcp.pop %v8117
  %v8146 = vmul.f32 1.0, %v8145
  %v8147 = vrcp.pop %v8118
  %v8148 = vmul.f32 1.0, %v8147
  %v8149 = vrcp.pop %v8119
  %v8150 = vmul.f32 1.0, %v8149
  %v8151 = vrcp.pop %v8120
  %v8152 = vmul.f32 1.0, %v8151
  %v8153 = vmul.f32 %v7995, %v8122
  %v8154 = vmul.f32 %v7998, %v8124
  %v8155 = vmul.f32 %v8003, %v8126
  %v8156 = vmul.f32 %v8006, %v8128
  %v8157 = vmul.f32 %v8011, %v8130
  %v8158 = vmul.f32 %v8014, %v8132
  %v8159 = vmul.f32 %v8019, %v8134
  %v8160 = vmul.f32 %v8022, %v8136
  %v8161 = vmul.f32 %v8027, %v8138
  %v8162 = vmul.f32 %v8030, %v8140
  %v8163 = vmul.f32 %v8035, %v8142
  %v8164 = vmul.f32 %v8038, %v8144
  %v8165 = vmul.f32 %v8043, %v8146
  %v8166 = vmul.f32 %v8046, %v8148
  %v8167 = vmul.f32 %v8051, %v8150
  %v8168 = vmul.f32 %v8054, %v8152
  %8185 = vrot.lane.b32.xlu0 %v7995, 64
  %v8186 = vpop.permute.xlu0 %8185
  %8187 = vrot.lane.b32.xlu0 %v7998, 64
  %v8188 = vpop.permute.xlu0 %8187
  %8189 = vrot.lane.b32.xlu0 %v8003, 64
  %v8190 = vpop.permute.xlu0 %8189
  %8191 = vrot.lane.b32.xlu0 %v8006, 64
  %v8192 = vpop.permute.xlu0 %8191
  %8193 = vrot.lane.b32.xlu0 %v8011, 64
  %v8194 = vpop.permute.xlu0 %8193
  %8195 = vrot.lane.b32.xlu0 %v8014, 64
  %v8196 = vpop.permute.xlu0 %8195
  %8197 = vrot.lane.b32.xlu0 %v8019, 64
  %v8198 = vpop.permute.xlu0 %8197
  %8199 = vrot.lane.b32.xlu0 %v8022, 64
  %v8200 = vpop.permute.xlu0 %8199
  %8201 = vrot.lane.b32.xlu0 %v8027, 64
  %v8202 = vpop.permute.xlu0 %8201
  %8203 = vrot.lane.b32.xlu0 %v8030, 64
  %v8204 = vpop.permute.xlu0 %8203
  %8205 = vrot.lane.b32.xlu0 %v8035, 64
  %v8206 = vpop.permute.xlu0 %8205
  %8207 = vrot.lane.b32.xlu0 %v8038, 64
  %v8208 = vpop.permute.xlu0 %8207
  %8209 = vrot.lane.b32.xlu0 %v8043, 64
  %v8210 = vpop.permute.xlu0 %8209
  %8211 = vrot.lane.b32.xlu0 %v8046, 64
  %v8212 = vpop.permute.xlu0 %8211
  %8213 = vrot.lane.b32.xlu0 %v8051, 64
  %v8214 = vpop.permute.xlu0 %8213
  %8215 = vrot.lane.b32.xlu0 %v8054, 64
  %v8216 = vpop.permute.xlu0 %8215
  %v8233 = vmul.f32 %v8153, %v8186
  %v8234 = vmul.f32 %v8154, %v8188
  %v8235 = vmul.f32 %v8155, %v8190
  %v8236 = vmul.f32 %v8156, %v8192
  %v8237 = vmul.f32 %v8157, %v8194
  %v8238 = vmul.f32 %v8158, %v8196
  %v8239 = vmul.f32 %v8159, %v8198
  %v8240 = vmul.f32 %v8160, %v8200
  %v8241 = vmul.f32 %v8161, %v8202
  %v8242 = vmul.f32 %v8162, %v8204
  %v8243 = vmul.f32 %v8163, %v8206
  %v8244 = vmul.f32 %v8164, %v8208
  %v8245 = vmul.f32 %v8165, %v8210
  %v8246 = vmul.f32 %v8166, %v8212
  %v8247 = vmul.f32 %v8167, %v8214
  %v8248 = vmul.f32 %v8168, %v8216
  %v8249 = vpack.c.bf16 %v8234, %v8233
  %v8250 = vpack.c.bf16 %v8236, %v8235
  %v8251 = vpack.c.bf16 %v8238, %v8237
  %v8252 = vpack.c.bf16 %v8240, %v8239
  %v8253 = vpack.c.bf16 %v8242, %v8241
  %v8254 = vpack.c.bf16 %v8244, %v8243
  %v8255 = vpack.c.bf16 %v8246, %v8245
  %v8256 = vpack.c.bf16 %v8248, %v8247
  %s8257 = scalar_lea.vmem %s11, 32
  %v8258 = vld [vmem:[%s8257] sm:$0xf]
  %v8259 = vld [vmem:[%s8257 + $0x4] sm:$0xf]
  %v8260 = vld [vmem:[%s8257 + $0x8] sm:$0xf]
  %v8261 = vld [vmem:[%s8257 + $0xc] sm:$0xf]
  %v8262 = vld [vmem:[%s8257 + $0x10] sm:$0xf]
  %v8263 = vld [vmem:[%s8257 + $0x14] sm:$0xf]
  %v8264 = vld [vmem:[%s8257 + $0x18] sm:$0xf]
  %v8265 = vld [vmem:[%s8257 + $0x1c] sm:$0xf]
  %v8274 = vunpack.c.l.b16 %v8258
  %v8275 = vunpack.c.l.b16 %v8259
  %v8276 = vunpack.c.l.b16 %v8260
  %v8277 = vunpack.c.l.b16 %v8261
  %v8278 = vunpack.c.l.b16 %v8262
  %v8279 = vunpack.c.l.b16 %v8263
  %v8280 = vunpack.c.l.b16 %v8264
  %v8281 = vunpack.c.l.b16 %v8265
  %v8282 = vpack.c.b16 %v8275, %v8274
  %v8283 = vpack.c.b16 %v8277, %v8276
  %v8284 = vpack.c.b16 %v8279, %v8278
  %v8285 = vpack.c.b16 %v8281, %v8280
  %v8291 = vsel %vm4265, %v8249, 0
  %v8294 = vsel %vm4265, %v8250, 0
  %v8297 = vsel %vm4265, %v8251, 0
  %v8300 = vsel %vm4265, %v8252, 0
  %v8303 = vsel %vm4265, %v8253, 0
  %v8306 = vsel %vm4265, %v8254, 0
  %v8309 = vsel %vm4265, %v8255, 0
  %v8312 = vsel %vm4265, %v8256, 0
  %8314 = vmatprep.subr.bf16.mxu0 0
  %8315 = vmatpush1.bf16.msra.mxu0 %v8282
  %8316 = vmatprep.subr.bf16.mxu0 0
  %8317 = vmatpush1.bf16.msra.mxu0 %v8283
  %8318 = vmatprep.subr.bf16.mxu0 0
  %8319 = vmatpush1.bf16.msra.mxu0 %v8284
  %8320 = vmatprep.subr.bf16.mxu0 0
  %8321 = vmatpush1.bf16.msra.mxu0 %v8285
  %8322 = vmatprep.subr.bf16.mxu0 0
  %8323 = vmatpush1.bf16.msra.mxu0 0
  %8324 = vmatprep.subr.bf16.mxu0 0
  %8325 = vmatpush1.bf16.msra.mxu0 0
  %8326 = vmatprep.subr.bf16.mxu0 0
  %8327 = vmatpush1.bf16.msra.mxu0 0
  %8328 = vmatprep.subr.bf16.mxu0 0
  %8329 = vmatpush1.bf16.msra.mxu0 0
  %8330 = vmatprep.subr.bf16.mxu0 0
  %8331 = vmatpush1.bf16.msra.mxu0 0
  %8332 = vmatprep.subr.bf16.mxu0 0
  %8333 = vmatpush1.bf16.msra.mxu0 0
  %8334 = vmatprep.subr.bf16.mxu0 0
  %8335 = vmatpush1.bf16.msra.mxu0 0
  %8336 = vmatprep.subr.bf16.mxu0 0
  %8337 = vmatpush1.bf16.msra.mxu0 0
  %8338 = vmatprep.subr.bf16.mxu0 0
  %8339 = vmatpush1.bf16.msra.mxu0 0
  %8340 = vmatprep.subr.bf16.mxu0 0
  %8341 = vmatpush1.bf16.msra.mxu0 0
  %8342 = vmatprep.subr.bf16.mxu0 0
  %8343 = vmatpush1.bf16.msra.mxu0 0
  %8344 = vmatprep.subr.bf16.mxu0 0
  %8345 = vmatpush1.bf16.msra.mxu0 0
  %8346 = vmatprep.mubr.bf16.mxu0 0
  %8347 = vmatmul.mubr.bf16.gmra.mrb[0].mxu0 %v8291
  %v8348 = vpop.f32.mrb[0].mxu0
  %v8349 = vadd.f32 0.0, %v8348
  %v8350 = vpop.f32.mrb[0].mxu0
  %v8351 = vpop.f32.mrb[0].mxu0
  %v8352 = vadd.f32 0.0, %v8351
  %v8353 = vpop.f32.mrb[0].mxu0
  %8354 = vmatprep.mubr.bf16.mxu0 0
  %8355 = vmatmul.mubr.bf16.gmra.mrb[0].mxu0 %v8294
  %v8356 = vpop.f32.mrb[0].mxu0
  %v8357 = vadd.f32 0.0, %v8356
  %v8358 = vpop.f32.mrb[0].mxu0
  %v8359 = vpop.f32.mrb[0].mxu0
  %v8360 = vadd.f32 0.0, %v8359
  %v8361 = vpop.f32.mrb[0].mxu0
  %8362 = vmatprep.mubr.bf16.mxu0 0
  %8363 = vmatmul.mubr.bf16.gmra.mrb[0].mxu0 %v8297
  %v8364 = vpop.f32.mrb[0].mxu0
  %v8365 = vadd.f32 0.0, %v8364
  %v8366 = vpop.f32.mrb[0].mxu0
  %v8367 = vpop.f32.mrb[0].mxu0
  %v8368 = vadd.f32 0.0, %v8367
  %v8369 = vpop.f32.mrb[0].mxu0
  %8370 = vmatprep.mubr.bf16.mxu0 0
  %8371 = vmatmul.mubr.bf16.gmra.mrb[0].mxu0 %v8300
  %v8372 = vpop.f32.mrb[0].mxu0
  %v8373 = vadd.f32 0.0, %v8372
  %v8374 = vpop.f32.mrb[0].mxu0
  %v8375 = vpop.f32.mrb[0].mxu0
  %v8376 = vadd.f32 0.0, %v8375
  %v8377 = vpop.f32.mrb[0].mxu0
  %8378 = vmatprep.mubr.bf16.mxu0 0
  %8379 = vmatmul.mubr.bf16.gmra.mrb[0].mxu0 %v8303
  %v8380 = vpop.f32.mrb[0].mxu0
  %v8381 = vadd.f32 0.0, %v8380
  %v8382 = vpop.f32.mrb[0].mxu0
  %v8383 = vpop.f32.mrb[0].mxu0
  %v8384 = vadd.f32 0.0, %v8383
  %v8385 = vpop.f32.mrb[0].mxu0
  %8386 = vmatprep.mubr.bf16.mxu0 0
  %8387 = vmatmul.mubr.bf16.gmra.mrb[0].mxu0 %v8306
  %v8388 = vpop.f32.mrb[0].mxu0
  %v8389 = vadd.f32 0.0, %v8388
  %v8390 = vpop.f32.mrb[0].mxu0
  %v8391 = vpop.f32.mrb[0].mxu0
  %v8392 = vadd.f32 0.0, %v8391
  %v8393 = vpop.f32.mrb[0].mxu0
  %8394 = vmatprep.mubr.bf16.mxu0 0
  %8395 = vmatmul.mubr.bf16.gmra.mrb[0].mxu0 %v8309
  %v8396 = vpop.f32.mrb[0].mxu0
  %v8397 = vadd.f32 0.0, %v8396
  %v8398 = vpop.f32.mrb[0].mxu0
  %v8399 = vpop.f32.mrb[0].mxu0
  %v8400 = vadd.f32 0.0, %v8399
  %v8401 = vpop.f32.mrb[0].mxu0
  %8402 = vmatprep.mubr.bf16.mxu0 0
  %8403 = vmatmul.mubr.bf16.gmra.mrb[0].mxu0 %v8312
  %v8404 = vpop.f32.mrb[0].mxu0
  %v8405 = vadd.f32 0.0, %v8404
  %v8406 = vpop.f32.mrb[0].mxu0
  %v8407 = vpop.f32.mrb[0].mxu0
  %v8408 = vadd.f32 0.0, %v8407
  %v8409 = vpop.f32.mrb[0].mxu0
  %8410 = vdwg.mxu0
  %v8411 = vadd.f32 %v7743, %v8349
  %v8412 = vadd.f32 %v7744, %v8352
  %v8413 = vadd.f32 %v7745, %v8357
  %v8414 = vadd.f32 %v7746, %v8360
  %v8415 = vadd.f32 %v7747, %v8365
  %v8416 = vadd.f32 %v7748, %v8368
  %v8417 = vadd.f32 %v7749, %v8373
  %v8418 = vadd.f32 %v7750, %v8376
  %v8419 = vadd.f32 %v7751, %v8381
  %v8420 = vadd.f32 %v7752, %v8384
  %v8421 = vadd.f32 %v7753, %v8389
  %v8422 = vadd.f32 %v7754, %v8392
  %v8423 = vadd.f32 %v7755, %v8397
  %v8424 = vadd.f32 %v7756, %v8400
  %v8425 = vadd.f32 %v7757, %v8405
  %v8426 = vadd.f32 %v7758, %v8408
  %v8427 = vld [vmem:[%s4] sm:$0x1]
  %v8428 = vmul.f32 %v8411, %v8411
  %v8429 = vmul.f32 %v8412, %v8412
  %v8430 = vmul.f32 %v8413, %v8413
  %v8431 = vmul.f32 %v8414, %v8414
  %v8432 = vmul.f32 %v8415, %v8415
  %v8433 = vmul.f32 %v8416, %v8416
  %v8434 = vmul.f32 %v8417, %v8417
  %v8435 = vmul.f32 %v8418, %v8418
  %v8436 = vmul.f32 %v8419, %v8419
  %v8437 = vmul.f32 %v8420, %v8420
  %v8438 = vmul.f32 %v8421, %v8421
  %v8439 = vmul.f32 %v8422, %v8422
  %v8440 = vmul.f32 %v8423, %v8423
  %v8441 = vmul.f32 %v8424, %v8424
  %v8442 = vmul.f32 %v8425, %v8425
  %v8443 = vmul.f32 %v8426, %v8426
  %v8444 = vsel %vm123, %v8428, 0.0
  %8445 = vadd.xlane.f32.xlu0 %v8444
  %v8446 = vpop.xlane.xlu0 %8445
  %v8447 = vsel %vm123, %v8429, 0.0
  %8448 = vadd.xlane.f32.xlu0 %v8447
  %v8449 = vpop.xlane.xlu0 %8448
  %v8450 = vsel %vm123, %v8430, 0.0
  %8451 = vadd.xlane.f32.xlu0 %v8450
  %v8452 = vpop.xlane.xlu0 %8451
  %v8453 = vsel %vm123, %v8431, 0.0
  %8454 = vadd.xlane.f32.xlu0 %v8453
  %v8455 = vpop.xlane.xlu0 %8454
  %v8456 = vsel %vm123, %v8432, 0.0
  %8457 = vadd.xlane.f32.xlu0 %v8456
  %v8458 = vpop.xlane.xlu0 %8457
  %v8459 = vsel %vm123, %v8433, 0.0
  %8460 = vadd.xlane.f32.xlu0 %v8459
  %v8461 = vpop.xlane.xlu0 %8460
  %v8462 = vsel %vm123, %v8434, 0.0
  %8463 = vadd.xlane.f32.xlu0 %v8462
  %v8464 = vpop.xlane.xlu0 %8463
  %v8465 = vsel %vm123, %v8435, 0.0
  %8466 = vadd.xlane.f32.xlu0 %v8465
  %v8467 = vpop.xlane.xlu0 %8466
  %v8468 = vsel %vm123, %v8436, 0.0
  %8469 = vadd.xlane.f32.xlu0 %v8468
  %v8470 = vpop.xlane.xlu0 %8469
  %v8471 = vsel %vm123, %v8437, 0.0
  %8472 = vadd.xlane.f32.xlu0 %v8471
  %v8473 = vpop.xlane.xlu0 %8472
  %v8474 = vsel %vm123, %v8438, 0.0
  %8475 = vadd.xlane.f32.xlu0 %v8474
  %v8476 = vpop.xlane.xlu0 %8475
  %v8477 = vsel %vm123, %v8439, 0.0
  %8478 = vadd.xlane.f32.xlu0 %v8477
  %v8479 = vpop.xlane.xlu0 %8478
  %v8480 = vsel %vm123, %v8440, 0.0
  %8481 = vadd.xlane.f32.xlu0 %v8480
  %v8482 = vpop.xlane.xlu0 %8481
  %v8483 = vsel %vm123, %v8441, 0.0
  %8484 = vadd.xlane.f32.xlu0 %v8483
  %v8485 = vpop.xlane.xlu0 %8484
  %v8486 = vsel %vm123, %v8442, 0.0
  %8487 = vadd.xlane.f32.xlu0 %v8486
  %v8488 = vpop.xlane.xlu0 %8487
  %v8489 = vsel %vm123, %v8443, 0.0
  %8490 = vadd.xlane.f32.xlu0 %v8489
  %v8491 = vpop.xlane.xlu0 %8490
  %v8492 = vmul.f32 %v8446, %v172
  %v8493 = vmul.f32 %v8449, %v172
  %v8494 = vmul.f32 %v8452, %v172
  %v8495 = vmul.f32 %v8455, %v172
  %v8496 = vmul.f32 %v8458, %v172
  %v8497 = vmul.f32 %v8461, %v172
  %v8498 = vmul.f32 %v8464, %v172
  %v8499 = vmul.f32 %v8467, %v172
  %v8500 = vmul.f32 %v8470, %v172
  %v8501 = vmul.f32 %v8473, %v172
  %v8502 = vmul.f32 %v8476, %v172
  %v8503 = vmul.f32 %v8479, %v172
  %v8504 = vmul.f32 %v8482, %v172
  %v8505 = vmul.f32 %v8485, %v172
  %v8506 = vmul.f32 %v8488, %v172
  %v8507 = vmul.f32 %v8491, %v172
  %v8508 = vadd.f32 %v8492, 1e-05
  %v8509 = vadd.f32 %v8493, 1e-05
  %v8510 = vadd.f32 %v8494, 1e-05
  %v8511 = vadd.f32 %v8495, 1e-05
  %v8512 = vadd.f32 %v8496, 1e-05
  %v8513 = vadd.f32 %v8497, 1e-05
  %v8514 = vadd.f32 %v8498, 1e-05
  %v8515 = vadd.f32 %v8499, 1e-05
  %v8516 = vadd.f32 %v8500, 1e-05
  %v8517 = vadd.f32 %v8501, 1e-05
  %v8518 = vadd.f32 %v8502, 1e-05
  %v8519 = vadd.f32 %v8503, 1e-05
  %v8520 = vadd.f32 %v8504, 1e-05
  %v8521 = vadd.f32 %v8505, 1e-05
  %v8522 = vadd.f32 %v8506, 1e-05
  %v8523 = vadd.f32 %v8507, 1e-05
  %v8524 = vrsqrt.pop %v8508
  %v8525 = vrsqrt.pop %v8509
  %v8526 = vrsqrt.pop %v8510
  %v8527 = vrsqrt.pop %v8511
  %v8528 = vrsqrt.pop %v8512
  %v8529 = vrsqrt.pop %v8513
  %v8530 = vrsqrt.pop %v8514
  %v8531 = vrsqrt.pop %v8515
  %v8532 = vrsqrt.pop %v8516
  %v8533 = vrsqrt.pop %v8517
  %v8534 = vrsqrt.pop %v8518
  %v8535 = vrsqrt.pop %v8519
  %v8536 = vrsqrt.pop %v8520
  %v8537 = vrsqrt.pop %v8521
  %v8538 = vrsqrt.pop %v8522
  %v8539 = vrsqrt.pop %v8523
  %v8540 = vmul.f32 %v8411, %v8524
  %v8541 = vmul.f32 %v8412, %v8525
  %v8542 = vmul.f32 %v8413, %v8526
  %v8543 = vmul.f32 %v8414, %v8527
  %v8544 = vmul.f32 %v8415, %v8528
  %v8545 = vmul.f32 %v8416, %v8529
  %v8546 = vmul.f32 %v8417, %v8530
  %v8547 = vmul.f32 %v8418, %v8531
  %v8548 = vmul.f32 %v8419, %v8532
  %v8549 = vmul.f32 %v8420, %v8533
  %v8550 = vmul.f32 %v8421, %v8534
  %v8551 = vmul.f32 %v8422, %v8535
  %v8552 = vmul.f32 %v8423, %v8536
  %v8553 = vmul.f32 %v8424, %v8537
  %v8554 = vmul.f32 %v8425, %v8538
  %v8555 = vmul.f32 %v8426, %v8539
  %v8557 = vlaneseq
  %v8558 = vshrl.u32 %v8557, 7
  %v8559 = vsub.s32 0, %v8558
  %v8560 = vrot.slane %v8427, %v8559
  %v8562 = vmul.f32 %v8540, %v8560
  %v8563 = vmul.f32 %v8541, %v8560
  %v8564 = vmul.f32 %v8542, %v8560
  %v8565 = vmul.f32 %v8543, %v8560
  %v8566 = vmul.f32 %v8544, %v8560
  %v8567 = vmul.f32 %v8545, %v8560
  %v8568 = vmul.f32 %v8546, %v8560
  %v8569 = vmul.f32 %v8547, %v8560
  %v8570 = vmul.f32 %v8548, %v8560
  %v8571 = vmul.f32 %v8549, %v8560
  %v8572 = vmul.f32 %v8550, %v8560
  %v8573 = vmul.f32 %v8551, %v8560
  %v8574 = vmul.f32 %v8552, %v8560
  %v8575 = vmul.f32 %v8553, %v8560
  %v8576 = vmul.f32 %v8554, %v8560
  %v8577 = vmul.f32 %v8555, %v8560
  %8578 = vst.msk [vmem:[%s12] sm:$0xff] %vm123, %v8562
  %8579 = vst.msk [vmem:[%s12 + $0x8] sm:$0xff] %vm123, %v8563
  %8580 = vst.msk [vmem:[%s12 + $0x10] sm:$0xff] %vm123, %v8564
  %8581 = vst.msk [vmem:[%s12 + $0x18] sm:$0xff] %vm123, %v8565
  %8582 = vst.msk [vmem:[%s12 + $0x20] sm:$0xff] %vm123, %v8566
  %8583 = vst.msk [vmem:[%s12 + $0x28] sm:$0xff] %vm123, %v8567
  %8584 = vst.msk [vmem:[%s12 + $0x30] sm:$0xff] %vm123, %v8568
  %8585 = vst.msk [vmem:[%s12 + $0x38] sm:$0xff] %vm123, %v8569
  %8586 = vst.msk [vmem:[%s12 + $0x40] sm:$0xff] %vm123, %v8570
  %8587 = vst.msk [vmem:[%s12 + $0x48] sm:$0xff] %vm123, %v8571
  %8588 = vst.msk [vmem:[%s12 + $0x50] sm:$0xff] %vm123, %v8572
  %8589 = vst.msk [vmem:[%s12 + $0x58] sm:$0xff] %vm123, %v8573
  %8590 = vst.msk [vmem:[%s12 + $0x60] sm:$0xff] %vm123, %v8574
  %8591 = vst.msk [vmem:[%s12 + $0x68] sm:$0xff] %vm123, %v8575
  %8592 = vst.msk [vmem:[%s12 + $0x70] sm:$0xff] %vm123, %v8576
  %8593 = vst.msk [vmem:[%s12 + $0x78] sm:$0xff] %vm123, %v8577
  // Predicated region
  $region50: #{chatglm_forward.1} parent=0 // pred_check
    _
  $region51: #{chatglm_forward.1} parent=0 // pred_check_branch
    %8595 = sbr.rel (0) target = $region53
  $region52: #{chatglm_forward.1} parent=0 // pred_region
    _
  $region53: #{chatglm_forward.1} parent=0 // pred_fallthru
    _
  // Predicated region
  $region54: #{chatglm_forward.1} parent=0 // pred_check
    _
  $region55: #{chatglm_forward.1} parent=0 // pred_check_branch
    %8597 = sbr.rel (0) target = $region57
  $region56: #{chatglm_forward.1} parent=0 // pred_region
    _
  $region57: #{chatglm_forward.1} parent=0 // pred_fallthru
    _

</llo_original>
